<compile_context>
chip_gen: v5e
topology: v5e:2x2
jax: 0.10.0
libtpu: 0.0.40
codegen_flags: <defaults>
</compile_context>

<pallas_src>
import functools

import jax
import jax.numpy as jnp
from jax.experimental import pallas as pl
from jax.experimental.pallas import tpu as pltpu

_NEG_BIG = -1e30  # f32 bias padding for fake classes -> exp() underflows to exactly 0.0


def _round_up(n, m):
    return ((n + m - 1) // m) * m


def _cdiv(a, b):
    return -(-a // b)


def _mlp_kernel(input_dim, num_classes,
                x_ref,
                w1_ref, b1_ref, w2_ref, b2_ref, w3_ref, b3_ref, w4_ref, b4_ref,
                wc_ref, bc_ref,
                logits_ref, probs_ref,
                xpad_ref):
    """One batch tile: pad/cast input -> 4x (Linear + ReLU) -> Linear -> softmax."""
    # In-kernel f32 -> bf16 cast plus zero K-padding (input_dim -> 128) via a VMEM
    # staging buffer.  Re-zeroed every grid step (a few vreg stores, negligible) so it
    # is correct even when the "parallel" batch axis is sharded across TensorCores
    # (no reliance on a program_id == 0 init that core 1 would never execute).
    xpad_ref[...] = jnp.zeros_like(xpad_ref)
    xpad_ref[:, :input_dim] = x_ref[...].astype(jnp.bfloat16)

    def dense(h_bf16, w_ref, b_ref):
        # bf16 operands on the MXU, f32 accumulate; bias add stays in f32.
        return jnp.dot(h_bf16, w_ref[...],
                       preferred_element_type=jnp.float32) + b_ref[...]

    h = xpad_ref[...]                                         # (tb, din_p) bf16
    h = jnp.maximum(dense(h, w1_ref, b1_ref), 0.0).astype(jnp.bfloat16)
    h = jnp.maximum(dense(h, w2_ref, b2_ref), 0.0).astype(jnp.bfloat16)
    h = jnp.maximum(dense(h, w3_ref, b3_ref), 0.0).astype(jnp.bfloat16)
    h = jnp.maximum(dense(h, w4_ref, b4_ref), 0.0).astype(jnp.bfloat16)
    # Dropout is identity in eval mode.

    logits = dense(h, wc_ref, bc_ref)                         # (tb, c_p) f32, fake classes ~ -1e30

    # Numerically stable, exactly normalized softmax; padded classes contribute exactly 0.
    m = jnp.max(logits, axis=-1, keepdims=True)
    e = jnp.exp(logits - m)
    probs = e / jnp.sum(e, axis=-1, keepdims=True)

    # Write back only the real classes (lane-masked 12-wide stores); padded columns
    # never touch HBM, so no wrapper column-slice copy is needed.
    logits_ref[...] = logits[:, :num_classes]
    probs_ref[...] = probs[:, :num_classes]


def _mlp_forward(x, padded_params, *, num_classes, block_batch):
    """x: (B, input_dim) float. padded_params: output of prepare_params (weights bf16 (in,out),
    biases f32 (1,out); edge layers lane-padded). Returns (logits, probs), (B, num_classes) f32."""
    w1_p = padded_params[0]
    B, input_dim = x.shape
    din_p, hidden_dim = w1_p.shape
    c_p = padded_params[8].shape[1]

    # Adaptive batch tiling: at most 7 padded rows per tile; >= 2 (even) tiles when
    # possible so both v7x TensorCores get balanced work.
    n_tiles = _cdiv(B, block_batch)
    if B >= 16:
        n_tiles = max(n_tiles, 2)
    if n_tiles > 1 and n_tiles % 2:
        n_tiles += 1
    tb = _round_up(_cdiv(B, n_tiles), 8)
    b_p = n_tiles * tb

    x_p = x if b_p == B else jnp.pad(x, ((0, b_p - B), (0, 0)))

    kernel = functools.partial(_mlp_kernel, input_dim, num_classes)

    # Constant block index -> weights/biases DMA'd once, resident in VMEM across tiles.
    resident_specs = [pl.BlockSpec(p.shape, lambda i: (0, 0)) for p in padded_params]
    in_specs = [pl.BlockSpec((tb, input_dim), lambda i: (i, 0))] + resident_specs
    out_spec = pl.BlockSpec((tb, num_classes), lambda i: (i, 0))
    out_shape = (jax.ShapeDtypeStruct((b_p, num_classes), jnp.float32),   # logits
                 jax.ShapeDtypeStruct((b_p, num_classes), jnp.float32))   # probs

    flops = 2 * b_p * (din_p * hidden_dim + 3 * hidden_dim * hidden_dim + hidden_dim * c_p)
    bytes_accessed = (x_p.size * x_p.dtype.itemsize
                      + sum(p.size * p.dtype.itemsize for p in padded_params)
                      + 2 * b_p * num_classes * 4)
    cost = pl.CostEstimate(flops=flops,
                           transcendentals=b_p * c_p,
                           bytes_accessed=bytes_accessed)

    logits_p, probs_p = pl.pallas_call(
        kernel,
        grid=(n_tiles,),
        in_specs=in_specs,
        out_specs=(out_spec, out_spec),
        out_shape=out_shape,
        scratch_shapes=[pltpu.VMEM((tb, din_p), jnp.bfloat16)],   # input staging buffer
        compiler_params=pltpu.CompilerParams(
            dimension_semantics=("parallel",)),   # v7x: shard batch tiles across both TCs
        cost_estimate=cost,
    )(x_p, *padded_params)

    if b_p != B:
        logits_p = logits_p[:B]
        probs_p = probs_p[:B]
    return logits_p, probs_p


_jit_mlp_forward = jax.jit(_mlp_forward, static_argnames=("num_classes", "block_batch"))


def prepare_params(params):
    """One-time lane-dense padding of the edge layers (hoisted out of the per-call path)."""
    w1, b1, w2, b2, w3, b3, w4, b4, wc, bc = params
    input_dim = w1.shape[0]
    num_classes = wc.shape[1]
    din_p = _round_up(input_dim, 128)
    c_p = _round_up(num_classes, 128)
    w1_p = jnp.pad(w1, ((0, din_p - input_dim), (0, 0)))
    wc_p = jnp.pad(wc, ((0, 0), (0, c_p - num_classes)))
    # Fake classes get a hugely negative f32 bias -> exactly zero softmax mass.
    bc_p = jnp.pad(bc, ((0, 0), (0, c_p - num_classes)), constant_values=_NEG_BIG)
    padded = (w1_p, b1, w2, b2, w3, b3, w4, b4, wc_p, bc_p)
    return padded, num_classes


def make_mlp_forward(params, *, block_batch=512):
    """Build a jitted forward fn. Padding is done once here, not per call."""
    padded_params, num_classes = prepare_params(params)

    def forward(x):
        return _jit_mlp_forward(x, padded_params,
                                num_classes=num_classes, block_batch=block_batch)

    return forward


def init_params(key, input_dim, hidden_dim, num_classes):
    """PyTorch-Linear-like init (uniform +/- 1/sqrt(fan_in)); weights (in,out) bf16, biases (1,out) f32."""
    dims = [(input_dim, hidden_dim),
            (hidden_dim, hidden_dim),
            (hidden_dim, hidden_dim),
            (hidden_dim, hidden_dim),
            (hidden_dim, num_classes)]
    params = []
    for fan_in, fan_out in dims:
        key, kw, kb = jax.random.split(key, 3)
        bound = 1.0 / float(fan_in) ** 0.5
        w = jax.random.uniform(kw, (fan_in, fan_out), jnp.float32, -bound, bound)
        b = jax.random.uniform(kb, (1, fan_out), jnp.float32, -bound, bound)
        params += [w.astype(jnp.bfloat16), b]
    return tuple(params)


def mlp_reference(x, params):
    """Pure-JAX reference mirroring the kernel's precision (bf16 MXU operands, f32 accumulate)."""
    w1, b1, w2, b2, w3, b3, w4, b4, wc, bc = params
    h = x.astype(jnp.bfloat16)
    for w, b in [(w1, b1), (w2, b2), (w3, b3), (w4, b4)]:
        y = jnp.dot(h, w, preferred_element_type=jnp.float32) + b
        h = jnp.maximum(y, 0.0).astype(jnp.bfloat16)
    logits = jnp.dot(h, wc, preferred_element_type=jnp.float32) + bc
    probs = jax.nn.softmax(logits, axis=-1)
    return logits, probs


if __name__ == "__main__":
    input_dim, hidden_dim, num_classes = 47, 512, 12
    batch = 300  # exercises adaptive tiling: 2 tiles of 152 rows, 4 padded rows total

    key = jax.random.PRNGKey(0)
    key, kx = jax.random.split(key)
    x = jax.random.normal(kx, (batch, input_dim), jnp.float32)
    params = init_params(key, input_dim, hidden_dim, num_classes)

    forward = make_mlp_forward(params)
    logits, probs = forward(x)
    jax.block_until_ready((logits, probs))

    ref_logits, ref_probs = mlp_reference(x, params)
    assert logits.shape == (batch, num_classes)
    assert probs.shape == (batch, num_classes)
    assert jnp.allclose(logits, ref_logits, atol=2e-3, rtol=2e-3)
    assert jnp.allclose(probs, ref_probs, atol=2e-3, rtol=2e-3)
    assert jnp.allclose(jnp.sum(probs, axis=-1), 1.0, atol=1e-4)  # exact normalization in-kernel

    print("KERNEL_OK")
</pallas_src>

<mosaic_0001>
module attributes {stable_mosaic.version = 11 : i64} {
  func.func @_mlp_kernel(%arg0: i32, %arg1: memref<152x47xf32, #tpu.memory_space<vmem>>, %arg2: memref<128x512xbf16, #tpu.memory_space<vmem>>, %arg3: memref<1x512xf32, #tpu.memory_space<vmem>>, %arg4: memref<512x512xbf16, #tpu.memory_space<vmem>>, %arg5: memref<1x512xf32, #tpu.memory_space<vmem>>, %arg6: memref<512x512xbf16, #tpu.memory_space<vmem>>, %arg7: memref<1x512xf32, #tpu.memory_space<vmem>>, %arg8: memref<512x512xbf16, #tpu.memory_space<vmem>>, %arg9: memref<1x512xf32, #tpu.memory_space<vmem>>, %arg10: memref<512x128xbf16, #tpu.memory_space<vmem>>, %arg11: memref<1x128xf32, #tpu.memory_space<vmem>>, %arg12: memref<152x12xf32, #tpu.memory_space<vmem>>, %arg13: memref<152x12xf32, #tpu.memory_space<vmem>>, %arg14: memref<152x128xbf16, #tpu.memory_space<vmem>>) attributes {dimension_semantics = [#tpu.dimension_semantics<parallel>], iteration_bounds = array<i64: 2>, scalar_prefetch = 0 : i64, scratch_operands = 1 : i64, tpu.core_type = #tpu.core_type<tc>, window_params = [{transform_indices = @transform_0, window_bounds = array<i64: 152, 47>}, {pipeline_mode = #tpu.pipeline_mode<synchronous>, transform_indices = @transform_1, window_bounds = array<i64: 128, 512>}, {pipeline_mode = #tpu.pipeline_mode<synchronous>, transform_indices = @transform_2, window_bounds = array<i64: 1, 512>}, {pipeline_mode = #tpu.pipeline_mode<synchronous>, transform_indices = @transform_3, window_bounds = array<i64: 512, 512>}, {pipeline_mode = #tpu.pipeline_mode<synchronous>, transform_indices = @transform_4, window_bounds = array<i64: 1, 512>}, {pipeline_mode = #tpu.pipeline_mode<synchronous>, transform_indices = @transform_5, window_bounds = array<i64: 512, 512>}, {pipeline_mode = #tpu.pipeline_mode<synchronous>, transform_indices = @transform_6, window_bounds = array<i64: 1, 512>}, {pipeline_mode = #tpu.pipeline_mode<synchronous>, transform_indices = @transform_7, window_bounds = array<i64: 512, 512>}, {pipeline_mode = #tpu.pipeline_mode<synchronous>, transform_indices = @transform_8, window_bounds = array<i64: 1, 512>}, {pipeline_mode = #tpu.pipeline_mode<synchronous>, transform_indices = @transform_9, window_bounds = array<i64: 512, 128>}, {pipeline_mode = #tpu.pipeline_mode<synchronous>, transform_indices = @transform_10, window_bounds = array<i64: 1, 128>}, {transform_indices = @transform_11, window_bounds = array<i64: 152, 12>}, {transform_indices = @transform_12, window_bounds = array<i64: 152, 12>}]} {
    %cst = arith.constant 0.000000e+00 : bf16
    %0 = vector.broadcast %cst : bf16 to vector<152x128xbf16>
    %c0 = arith.constant 0 : index
    %c0_0 = arith.constant 0 : index
    %1 = vector.load %arg14[%c0, %c0_0] : memref<152x128xbf16, #tpu.memory_space<vmem>>, vector<152x128xbf16>
    tpu.vector_store %arg14[%c0, %c0_0], %0 {strides = array<i32>} : memref<152x128xbf16, #tpu.memory_space<vmem>>, vector<152x128xbf16>,
    %c0_1 = arith.constant 0 : index
    %c0_2 = arith.constant 0 : index
    %2 = vector.load %arg1[%c0_1, %c0_2] : memref<152x47xf32, #tpu.memory_space<vmem>>, vector<152x47xf32>
    %3 = arith.truncf %2 : vector<152x47xf32> to vector<152x47xbf16>
    %c0_3 = arith.constant 0 : index
    %c0_4 = arith.constant 0 : index
    %4 = vector.load %arg14[%c0_3, %c0_4] : memref<152x128xbf16, #tpu.memory_space<vmem>>, vector<152x47xbf16>
    tpu.vector_store %arg14[%c0_3, %c0_4], %3 {strides = array<i32>} : memref<152x128xbf16, #tpu.memory_space<vmem>>, vector<152x47xbf16>,
    %c0_5 = arith.constant 0 : index
    %c0_6 = arith.constant 0 : index
    %5 = vector.load %arg14[%c0_5, %c0_6] : memref<152x128xbf16, #tpu.memory_space<vmem>>, vector<152x128xbf16>
    %c0_7 = arith.constant 0 : index
    %c0_8 = arith.constant 0 : index
    %6 = vector.load %arg2[%c0_7, %c0_8] : memref<128x512xbf16, #tpu.memory_space<vmem>>, vector<128x512xbf16>
    %cst_9 = arith.constant dense<0.000000e+00> : vector<152x512xf32>
    %7 = tpu.matmul %5, %6, %cst_9 {dimension_numbers = #tpu.dot_dimension_numbers<[1], [0], [0], [1], [0, 0, 1, 1], [], []>} : vector<152x128xbf16>, vector<128x512xbf16>, vector<152x512xf32> -> vector<152x512xf32>
    %c0_10 = arith.constant 0 : index
    %c0_11 = arith.constant 0 : index
    %8 = vector.load %arg3[%c0_10, %c0_11] : memref<1x512xf32, #tpu.memory_space<vmem>>, vector<1x512xf32>
    %9 = vector.broadcast %8 : vector<1x512xf32> to vector<152x512xf32>
    %10 = arith.addf %7, %9 : vector<152x512xf32>
    %cst_12 = arith.constant 0.000000e+00 : f32
    %11 = vector.broadcast %cst_12 : f32 to vector<152x512xf32>
    %12 = arith.maximumf %10, %11 : vector<152x512xf32>
    %13 = arith.truncf %12 : vector<152x512xf32> to vector<152x512xbf16>
    %c0_13 = arith.constant 0 : index
    %c0_14 = arith.constant 0 : index
    %14 = vector.load %arg4[%c0_13, %c0_14] : memref<512x512xbf16, #tpu.memory_space<vmem>>, vector<512x512xbf16>
    %cst_15 = arith.constant dense<0.000000e+00> : vector<152x512xf32>
    %15 = tpu.matmul %13, %14, %cst_15 {dimension_numbers = #tpu.dot_dimension_numbers<[1], [0], [0], [1], [0, 0, 1, 1], [], []>} : vector<152x512xbf16>, vector<512x512xbf16>, vector<152x512xf32> -> vector<152x512xf32>
    %c0_16 = arith.constant 0 : index
    %c0_17 = arith.constant 0 : index
    %16 = vector.load %arg5[%c0_16, %c0_17] : memref<1x512xf32, #tpu.memory_space<vmem>>, vector<1x512xf32>
    %17 = vector.broadcast %16 : vector<1x512xf32> to vector<152x512xf32>
    %18 = arith.addf %15, %17 : vector<152x512xf32>
    %cst_18 = arith.constant 0.000000e+00 : f32
    %19 = vector.broadcast %cst_18 : f32 to vector<152x512xf32>
    %20 = arith.maximumf %18, %19 : vector<152x512xf32>
    %21 = arith.truncf %20 : vector<152x512xf32> to vector<152x512xbf16>
    %c0_19 = arith.constant 0 : index
    %c0_20 = arith.constant 0 : index
    %22 = vector.load %arg6[%c0_19, %c0_20] : memref<512x512xbf16, #tpu.memory_space<vmem>>, vector<512x512xbf16>
    %cst_21 = arith.constant dense<0.000000e+00> : vector<152x512xf32>
    %23 = tpu.matmul %21, %22, %cst_21 {dimension_numbers = #tpu.dot_dimension_numbers<[1], [0], [0], [1], [0, 0, 1, 1], [], []>} : vector<152x512xbf16>, vector<512x512xbf16>, vector<152x512xf32> -> vector<152x512xf32>
    %c0_22 = arith.constant 0 : index
    %c0_23 = arith.constant 0 : index
    %24 = vector.load %arg7[%c0_22, %c0_23] : memref<1x512xf32, #tpu.memory_space<vmem>>, vector<1x512xf32>
    %25 = vector.broadcast %24 : vector<1x512xf32> to vector<152x512xf32>
    %26 = arith.addf %23, %25 : vector<152x512xf32>
    %cst_24 = arith.constant 0.000000e+00 : f32
    %27 = vector.broadcast %cst_24 : f32 to vector<152x512xf32>
    %28 = arith.maximumf %26, %27 : vector<152x512xf32>
    %29 = arith.truncf %28 : vector<152x512xf32> to vector<152x512xbf16>
    %c0_25 = arith.constant 0 : index
    %c0_26 = arith.constant 0 : index
    %30 = vector.load %arg8[%c0_25, %c0_26] : memref<512x512xbf16, #tpu.memory_space<vmem>>, vector<512x512xbf16>
    %cst_27 = arith.constant dense<0.000000e+00> : vector<152x512xf32>
    %31 = tpu.matmul %29, %30, %cst_27 {dimension_numbers = #tpu.dot_dimension_numbers<[1], [0], [0], [1], [0, 0, 1, 1], [], []>} : vector<152x512xbf16>, vector<512x512xbf16>, vector<152x512xf32> -> vector<152x512xf32>
    %c0_28 = arith.constant 0 : index
    %c0_29 = arith.constant 0 : index
    %32 = vector.load %arg9[%c0_28, %c0_29] : memref<1x512xf32, #tpu.memory_space<vmem>>, vector<1x512xf32>
    %33 = vector.broadcast %32 : vector<1x512xf32> to vector<152x512xf32>
    %34 = arith.addf %31, %33 : vector<152x512xf32>
    %cst_30 = arith.constant 0.000000e+00 : f32
    %35 = vector.broadcast %cst_30 : f32 to vector<152x512xf32>
    %36 = arith.maximumf %34, %35 : vector<152x512xf32>
    %37 = arith.truncf %36 : vector<152x512xf32> to vector<152x512xbf16>
    %c0_31 = arith.constant 0 : index
    %c0_32 = arith.constant 0 : index
    %38 = vector.load %arg10[%c0_31, %c0_32] : memref<512x128xbf16, #tpu.memory_space<vmem>>, vector<512x128xbf16>
    %cst_33 = arith.constant dense<0.000000e+00> : vector<152x128xf32>
    %39 = tpu.matmul %37, %38, %cst_33 {dimension_numbers = #tpu.dot_dimension_numbers<[1], [0], [0], [1], [0, 0, 1, 1], [], []>} : vector<152x512xbf16>, vector<512x128xbf16>, vector<152x128xf32> -> vector<152x128xf32>
    %c0_34 = arith.constant 0 : index
    %c0_35 = arith.constant 0 : index
    %40 = vector.load %arg11[%c0_34, %c0_35] : memref<1x128xf32, #tpu.memory_space<vmem>>, vector<1x128xf32>
    %41 = vector.broadcast %40 : vector<1x128xf32> to vector<152x128xf32>
    %42 = arith.addf %39, %41 : vector<152x128xf32>
    %cst_36 = arith.constant dense<0xFF800000> : vector<152xf32>
    %43 = vector.multi_reduction <maximumf>, %42, %cst_36 [1] : vector<152x128xf32> to vector<152xf32>
    %44 = vector.shape_cast %43 : vector<152xf32> to vector<152x1xf32>
    %45 = vector.broadcast %44 : vector<152x1xf32> to vector<152x128xf32>
    %46 = arith.subf %42, %45 : vector<152x128xf32>
    %47 = math.exp %46 : vector<152x128xf32>
    %cst_37 = arith.constant dense<0.000000e+00> : vector<152xf32>
    %48 = vector.multi_reduction <add>, %47, %cst_37 [1] : vector<152x128xf32> to vector<152xf32>
    %49 = vector.shape_cast %48 : vector<152xf32> to vector<152x1xf32>
    %50 = vector.broadcast %49 : vector<152x1xf32> to vector<152x128xf32>
    %51 = arith.divf %47, %50 : vector<152x128xf32>
    %52 = vector.extract_strided_slice %42 {offsets = [0, 0], sizes = [152, 12], strides = [1, 1]} : vector<152x128xf32> to vector<152x12xf32>
    %c0_38 = arith.constant 0 : index
    %c0_39 = arith.constant 0 : index
    %53 = vector.load %arg12[%c0_38, %c0_39] : memref<152x12xf32, #tpu.memory_space<vmem>>, vector<152x12xf32>
    tpu.vector_store %arg12[%c0_38, %c0_39], %52 {strides = array<i32>} : memref<152x12xf32, #tpu.memory_space<vmem>>, vector<152x12xf32>,
    %54 = vector.extract_strided_slice %51 {offsets = [0, 0], sizes = [152, 12], strides = [1, 1]} : vector<152x128xf32> to vector<152x12xf32>
    %c0_40 = arith.constant 0 : index
    %c0_41 = arith.constant 0 : index
    %55 = vector.load %arg13[%c0_40, %c0_41] : memref<152x12xf32, #tpu.memory_space<vmem>>, vector<152x12xf32>
    tpu.vector_store %arg13[%c0_40, %c0_41], %54 {strides = array<i32>} : memref<152x12xf32, #tpu.memory_space<vmem>>, vector<152x12xf32>,
    return
  }
  func.func @transform_0(%arg0: i32) -> (i32, i32) {
    %c0_i32 = arith.constant 0 : i32
    %c0_i32_0 = arith.constant 0 : i32
    return %arg0, %c0_i32 : i32, i32
  }
  func.func @transform_1(%arg0: i32) -> (i32, i32) {
    %c0_i32 = arith.constant 0 : i32
    %c0_i32_0 = arith.constant 0 : i32
    %c0_i32_1 = arith.constant 0 : i32
    return %c0_i32, %c0_i32_0 : i32, i32
  }
  func.func @transform_2(%arg0: i32) -> (i32, i32) {
    %c0_i32 = arith.constant 0 : i32
    %c0_i32_0 = arith.constant 0 : i32
    %c0_i32_1 = arith.constant 0 : i32
    return %c0_i32, %c0_i32_0 : i32, i32
  }
  func.func @transform_3(%arg0: i32) -> (i32, i32) {
    %c0_i32 = arith.constant 0 : i32
    %c0_i32_0 = arith.constant 0 : i32
    %c0_i32_1 = arith.constant 0 : i32
    return %c0_i32, %c0_i32_0 : i32, i32
  }
  func.func @transform_4(%arg0: i32) -> (i32, i32) {
    %c0_i32 = arith.constant 0 : i32
    %c0_i32_0 = arith.constant 0 : i32
    %c0_i32_1 = arith.constant 0 : i32
    return %c0_i32, %c0_i32_0 : i32, i32
  }
  func.func @transform_5(%arg0: i32) -> (i32, i32) {
    %c0_i32 = arith.constant 0 : i32
    %c0_i32_0 = arith.constant 0 : i32
    %c0_i32_1 = arith.constant 0 : i32
    return %c0_i32, %c0_i32_0 : i32, i32
  }
  func.func @transform_6(%arg0: i32) -> (i32, i32) {
    %c0_i32 = arith.constant 0 : i32
    %c0_i32_0 = arith.constant 0 : i32
    %c0_i32_1 = arith.constant 0 : i32
    return %c0_i32, %c0_i32_0 : i32, i32
  }
  func.func @transform_7(%arg0: i32) -> (i32, i32) {
    %c0_i32 = arith.constant 0 : i32
    %c0_i32_0 = arith.constant 0 : i32
    %c0_i32_1 = arith.constant 0 : i32
    return %c0_i32, %c0_i32_0 : i32, i32
  }
  func.func @transform_8(%arg0: i32) -> (i32, i32) {
    %c0_i32 = arith.constant 0 : i32
    %c0_i32_0 = arith.constant 0 : i32
    %c0_i32_1 = arith.constant 0 : i32
    return %c0_i32, %c0_i32_0 : i32, i32
  }
  func.func @transform_9(%arg0: i32) -> (i32, i32) {
    %c0_i32 = arith.constant 0 : i32
    %c0_i32_0 = arith.constant 0 : i32
    %c0_i32_1 = arith.constant 0 : i32
    return %c0_i32, %c0_i32_0 : i32, i32
  }
  func.func @transform_10(%arg0: i32) -> (i32, i32) {
    %c0_i32 = arith.constant 0 : i32
    %c0_i32_0 = arith.constant 0 : i32
    %c0_i32_1 = arith.constant 0 : i32
    return %c0_i32, %c0_i32_0 : i32, i32
  }
  func.func @transform_11(%arg0: i32) -> (i32, i32) {
    %c0_i32 = arith.constant 0 : i32
    %c0_i32_0 = arith.constant 0 : i32
    return %arg0, %c0_i32 : i32, i32
  }
  func.func @transform_12(%arg0: i32) -> (i32, i32) {
    %c0_i32 = arith.constant 0 : i32
    %c0_i32_0 = arith.constant 0 : i32
    return %arg0, %c0_i32 : i32, i32
  }
}

</mosaic_0001>

<llo_original>
// kernel: _mlp_forward.1
$region0: #{_mlp_forward.1}
  #allocation0 [shape = 'u32[]', space=smem, size = 0x4, offset = 0x4, fixed_abs, tag = 'smem constant byte address 0x4 - core index']
  #allocation1 [shape = 'u32[72,128]{1,0:T(1,128)}', space=vmem, size = 0x9000, scoped, tag = 'internal scratch']
  #allocation2 [shape = 'bf16[152,128]{1,0:T(8,128)(2,1)}', space=vmem, size = 0x9800, scoped, tag = 'scratch operand']
  %s0 = inlined_call_operand.vmem [shape: f32[304,47], index: 0, kind: input, shape index: {}]
  %s1 = inlined_call_operand.hbm [shape: bf16[128,512], index: 1, kind: input, shape index: {}]
  %s2 = inlined_call_operand.vmem [shape: f32[1,512], index: 2, kind: input, shape index: {}]
  %s3 = inlined_call_operand.vmem [shape: bf16[512,512], index: 3, kind: input, shape index: {}]
  %s4 = inlined_call_operand.vmem [shape: f32[1,512], index: 4, kind: input, shape index: {}]
  %s5 = inlined_call_operand.hbm [shape: bf16[512,512], index: 5, kind: input, shape index: {}]
  %s6 = inlined_call_operand.vmem [shape: f32[1,512], index: 6, kind: input, shape index: {}]
  %s7 = inlined_call_operand.hbm [shape: bf16[512,512], index: 7, kind: input, shape index: {}]
  %s8 = inlined_call_operand.vmem [shape: f32[1,512], index: 8, kind: input, shape index: {}]
  %s9 = inlined_call_operand.hbm [shape: bf16[512,128], index: 9, kind: input, shape index: {}]
  %s10 = inlined_call_operand.vmem [shape: f32[1,128], index: 10, kind: input, shape index: {}]
  %s11 = inlined_call_operand.vmem [shape: f32[304,12], index: 11, kind: output, shape index: {0}]
  %s12 = inlined_call_operand.vmem [shape: f32[304,12], index: 12, kind: output, shape index: {1}]
  %13 = xla_tuple %s11, %s12
  %s14 = sld [smem:[#allocation0]]
  $region101: #{_mlp_forward.1} parent=0
    _
  %s16 = ssub.s32 1, %s14
  %s17 = scalar_select 0, %s16, %s14
  $region1: #{_mlp_forward.1} parent=0
    #allocation3 [shape = 'u8[131072]{0}', space=vmem, size = 0x20000, scoped, tag = 'input window, operand 1, single buffered']
    #allocation4 [shape = 's32[2]{0}', space=sflag, size = 0x8, scoped, tag = 'scoped memory for _mlp_forward.1']
    #allocation5 [shape = 'u8[524288]{0}', space=vmem, size = 0x80000, scoped, tag = 'input window, operand 5, single buffered']
    #allocation6 [shape = 's32[1]{0}', space=sflag, size = 0x4, scoped, tag = 'scoped memory for _mlp_forward.1']
    #allocation7 [shape = 'u8[524288]{0}', space=vmem, size = 0x80000, scoped, tag = 'input window, operand 7, single buffered']
    #allocation8 [shape = 'u8[131072]{0}', space=vmem, size = 0x20000, scoped, tag = 'input window, operand 9, single buffered']
    #allocation9 [shape = 's32[1]{0}', space=sflag, size = 0x4, scoped, tag = 'scoped memory for _mlp_forward.1']
    %18 = vsyncpa [#allocation4], 0
    %19 = vsyncpa [#allocation6], 0
    %20 = vsyncpa [#allocation9], 0
    loop: start=0, step=1, limit=4
    $region2: #{_mlp_forward.1} parent=1 // loop_pre_header
      _
    $region3: #{_mlp_forward.1} parent=1 // loop_header
      %s22 = sphi 0, %s26
      %p23 = scmp.ge.s32.totalorder %s22, 4
      %s32 = sphi 0, %s34
      %s35 = sphi 0, %s32
      %s36 = sphi 0, %s35
      %s52 = sphi 0, %s36
      %s56 = sphi 0, %s56
      %s58 = sphi 0, %s56
      %s59 = sphi 0, %s58
      %s73 = sphi 0, %s59
      %s77 = sphi 0, %s77
      %s79 = sphi 0, %s77
      %s80 = sphi 0, %s79
      %s94 = sphi 0, %s80
      %s98 = sphi 0, %s98
      %s100 = sphi 0, %s98
      %s101 = sphi 0, %s100
      %s115 = sphi 0, %s101
      %s119 = sphi 0, %s119
      %s121 = sphi 0, %s119
      %s122 = sphi 0, %s121
      %s136 = sphi 0, %s122
      %s140 = sphi 0, %s140
      %s142 = sphi 0, %s140
      %s143 = sphi 0, %s142
      %s157 = sphi 0, %s143
      %s161 = sphi 0, %s161
      %s163 = sphi 0, %s161
      %s164 = sphi 0, %s163
      %s178 = sphi 0, %s164
      %s182 = sphi 0, %s182
      %s184 = sphi 0, %s182
      %s185 = sphi 0, %s184
      %s199 = sphi 0, %s185
      %s203 = sphi 0, %s203
      %s205 = sphi 0, %s203
      %s206 = sphi 0, %s205
      %s220 = sphi 0, %s206
      %s224 = sphi 0, %s224
      %s226 = sphi 0, %s224
      %s227 = sphi 0, %s226
      %s241 = sphi 0, %s227
      %s245 = sphi 0, %s245
      %s247 = sphi 0, %s245
      %s248 = sphi 0, %s247
      %s262 = sphi 0, %s248
      %s268 = sphi 0, %s270
      %s271 = sphi 0, %s268
      %s272 = sphi 0, %s271
      %s288 = sphi 0, %s272
      %s294 = sphi 0, %s296
      %s297 = sphi 0, %s294
      %s298 = sphi 0, %s297
      %s314 = sphi 0, %s298
    $region4: #{_mlp_forward.1} parent=1 // loop_header_branch
      %25 = sbr.rel (%p23) target = $region8
    $region5: #{_mlp_forward.1} parent=1 // loop_body
      %s27 = ssub.s32 %s22, 1
      %s28 = ssub.s32 %s22, 2
      %s29 = sadd.s32 %s22, 1
      %s30 = ssub.s32 %s22, %s29
      %p31 = scmp.eq.s32.totalorder %s30, 0
      %s33 = sadd.s32 %s32, 1
      %s34 = scalar_select %p31, %s32, %s33
      %p37 = pneg %p31
      %p38 = scmp.eq.s32.totalorder %s22, 1
      %p39 = por %p37, %p38
      %p40 = scmp.ne.s32.totalorder %s32, %s35
      %p41 = scmp.eq.s32.totalorder %s22, 0
      %p42 = por %p40, %p41
      %p43 = scmp.ne.s32.totalorder %s32, %s35
      %p44 = scmp.eq.s32.totalorder %s27, 1
      %p45 = por %p43, %p44
      %p46 = scmp.ne.s32.totalorder %s35, %s36
      %p47 = scmp.eq.s32.totalorder %s27, 0
      %p48 = por %p46, %p47
      %p49 = scmp.ne.s32.totalorder %s35, %s36
      %p50 = scmp.eq.s32.totalorder %s28, 1
      %p51 = por %p49, %p50
      %p53 = scmp.ne.s32.totalorder %s36, %s52
      %p54 = scmp.eq.s32.totalorder %s28, 0
      %p55 = por %p53, %p54
      %s57 = sadd.s32 %s56, 1
      %p60 = scmp.eq.s32.totalorder %s22, 1
      %p61 = scmp.ne.s32.totalorder %s56, %s58
      %p62 = scmp.eq.s32.totalorder %s22, 0
      %p63 = por %p61, %p62
      %p64 = scmp.ne.s32.totalorder %s56, %s58
      %p65 = scmp.eq.s32.totalorder %s27, 1
      %p66 = por %p64, %p65
      %p67 = scmp.ne.s32.totalorder %s58, %s59
      %p68 = scmp.eq.s32.totalorder %s27, 0
      %p69 = por %p67, %p68
      %p70 = scmp.ne.s32.totalorder %s58, %s59
      %p71 = scmp.eq.s32.totalorder %s28, 1
      %p72 = por %p70, %p71
      %p74 = scmp.ne.s32.totalorder %s59, %s73
      %p75 = scmp.eq.s32.totalorder %s28, 0
      %p76 = por %p74, %p75
      %s78 = sadd.s32 %s77, 1
      %p81 = scmp.eq.s32.totalorder %s22, 1
      %p82 = scmp.ne.s32.totalorder %s77, %s79
      %p83 = scmp.eq.s32.totalorder %s22, 0
      %p84 = por %p82, %p83
      %p85 = scmp.ne.s32.totalorder %s77, %s79
      %p86 = scmp.eq.s32.totalorder %s27, 1
      %p87 = por %p85, %p86
      %p88 = scmp.ne.s32.totalorder %s79, %s80
      %p89 = scmp.eq.s32.totalorder %s27, 0
      %p90 = por %p88, %p89
      %p91 = scmp.ne.s32.totalorder %s79, %s80
      %p92 = scmp.eq.s32.totalorder %s28, 1
      %p93 = por %p91, %p92
      %p95 = scmp.ne.s32.totalorder %s80, %s94
      %p96 = scmp.eq.s32.totalorder %s28, 0
      %p97 = por %p95, %p96
      %s99 = sadd.s32 %s98, 1
      %p102 = scmp.eq.s32.totalorder %s22, 1
      %p103 = scmp.ne.s32.totalorder %s98, %s100
      %p104 = scmp.eq.s32.totalorder %s22, 0
      %p105 = por %p103, %p104
      %p106 = scmp.ne.s32.totalorder %s98, %s100
      %p107 = scmp.eq.s32.totalorder %s27, 1
      %p108 = por %p106, %p107
      %p109 = scmp.ne.s32.totalorder %s100, %s101
      %p110 = scmp.eq.s32.totalorder %s27, 0
      %p111 = por %p109, %p110
      %p112 = scmp.ne.s32.totalorder %s100, %s101
      %p113 = scmp.eq.s32.totalorder %s28, 1
      %p114 = por %p112, %p113
      %p116 = scmp.ne.s32.totalorder %s101, %s115
      %p117 = scmp.eq.s32.totalorder %s28, 0
      %p118 = por %p116, %p117
      %s120 = sadd.s32 %s119, 1
      %p123 = scmp.eq.s32.totalorder %s22, 1
      %p124 = scmp.ne.s32.totalorder %s119, %s121
      %p125 = scmp.eq.s32.totalorder %s22, 0
      %p126 = por %p124, %p125
      %p127 = scmp.ne.s32.totalorder %s119, %s121
      %p128 = scmp.eq.s32.totalorder %s27, 1
      %p129 = por %p127, %p128
      %p130 = scmp.ne.s32.totalorder %s121, %s122
      %p131 = scmp.eq.s32.totalorder %s27, 0
      %p132 = por %p130, %p131
      %p133 = scmp.ne.s32.totalorder %s121, %s122
      %p134 = scmp.eq.s32.totalorder %s28, 1
      %p135 = por %p133, %p134
      %p137 = scmp.ne.s32.totalorder %s122, %s136
      %p138 = scmp.eq.s32.totalorder %s28, 0
      %p139 = por %p137, %p138
      %s141 = sadd.s32 %s140, 1
      %p144 = scmp.eq.s32.totalorder %s22, 1
      %p145 = scmp.ne.s32.totalorder %s140, %s142
      %p146 = scmp.eq.s32.totalorder %s22, 0
      %p147 = por %p145, %p146
      %p148 = scmp.ne.s32.totalorder %s140, %s142
      %p149 = scmp.eq.s32.totalorder %s27, 1
      %p150 = por %p148, %p149
      %p151 = scmp.ne.s32.totalorder %s142, %s143
      %p152 = scmp.eq.s32.totalorder %s27, 0
      %p153 = por %p151, %p152
      %p154 = scmp.ne.s32.totalorder %s142, %s143
      %p155 = scmp.eq.s32.totalorder %s28, 1
      %p156 = por %p154, %p155
      %p158 = scmp.ne.s32.totalorder %s143, %s157
      %p159 = scmp.eq.s32.totalorder %s28, 0
      %p160 = por %p158, %p159
      %s162 = sadd.s32 %s161, 1
      %p165 = scmp.eq.s32.totalorder %s22, 1
      %p166 = scmp.ne.s32.totalorder %s161, %s163
      %p167 = scmp.eq.s32.totalorder %s22, 0
      %p168 = por %p166, %p167
      %p169 = scmp.ne.s32.totalorder %s161, %s163
      %p170 = scmp.eq.s32.totalorder %s27, 1
      %p171 = por %p169, %p170
      %p172 = scmp.ne.s32.totalorder %s163, %s164
      %p173 = scmp.eq.s32.totalorder %s27, 0
      %p174 = por %p172, %p173
      %p175 = scmp.ne.s32.totalorder %s163, %s164
      %p176 = scmp.eq.s32.totalorder %s28, 1
      %p177 = por %p175, %p176
      %p179 = scmp.ne.s32.totalorder %s164, %s178
      %p180 = scmp.eq.s32.totalorder %s28, 0
      %p181 = por %p179, %p180
      %s183 = sadd.s32 %s182, 1
      %p186 = scmp.eq.s32.totalorder %s22, 1
      %p187 = scmp.ne.s32.totalorder %s182, %s184
      %p188 = scmp.eq.s32.totalorder %s22, 0
      %p189 = por %p187, %p188
      %p190 = scmp.ne.s32.totalorder %s182, %s184
      %p191 = scmp.eq.s32.totalorder %s27, 1
      %p192 = por %p190, %p191
      %p193 = scmp.ne.s32.totalorder %s184, %s185
      %p194 = scmp.eq.s32.totalorder %s27, 0
      %p195 = por %p193, %p194
      %p196 = scmp.ne.s32.totalorder %s184, %s185
      %p197 = scmp.eq.s32.totalorder %s28, 1
      %p198 = por %p196, %p197
      %p200 = scmp.ne.s32.totalorder %s185, %s199
      %p201 = scmp.eq.s32.totalorder %s28, 0
      %p202 = por %p200, %p201
      %s204 = sadd.s32 %s203, 1
      %p207 = scmp.eq.s32.totalorder %s22, 1
      %p208 = scmp.ne.s32.totalorder %s203, %s205
      %p209 = scmp.eq.s32.totalorder %s22, 0
      %p210 = por %p208, %p209
      %p211 = scmp.ne.s32.totalorder %s203, %s205
      %p212 = scmp.eq.s32.totalorder %s27, 1
      %p213 = por %p211, %p212
      %p214 = scmp.ne.s32.totalorder %s205, %s206
      %p215 = scmp.eq.s32.totalorder %s27, 0
      %p216 = por %p214, %p215
      %p217 = scmp.ne.s32.totalorder %s205, %s206
      %p218 = scmp.eq.s32.totalorder %s28, 1
      %p219 = por %p217, %p218
      %p221 = scmp.ne.s32.totalorder %s206, %s220
      %p222 = scmp.eq.s32.totalorder %s28, 0
      %p223 = por %p221, %p222
      %s225 = sadd.s32 %s224, 1
      %p228 = scmp.eq.s32.totalorder %s22, 1
      %p229 = scmp.ne.s32.totalorder %s224, %s226
      %p230 = scmp.eq.s32.totalorder %s22, 0
      %p231 = por %p229, %p230
      %p232 = scmp.ne.s32.totalorder %s224, %s226
      %p233 = scmp.eq.s32.totalorder %s27, 1
      %p234 = por %p232, %p233
      %p235 = scmp.ne.s32.totalorder %s226, %s227
      %p236 = scmp.eq.s32.totalorder %s27, 0
      %p237 = por %p235, %p236
      %p238 = scmp.ne.s32.totalorder %s226, %s227
      %p239 = scmp.eq.s32.totalorder %s28, 1
      %p240 = por %p238, %p239
      %p242 = scmp.ne.s32.totalorder %s227, %s241
      %p243 = scmp.eq.s32.totalorder %s28, 0
      %p244 = por %p242, %p243
      %s246 = sadd.s32 %s245, 1
      %p249 = scmp.eq.s32.totalorder %s22, 1
      %p250 = scmp.ne.s32.totalorder %s245, %s247
      %p251 = scmp.eq.s32.totalorder %s22, 0
      %p252 = por %p250, %p251
      %p253 = scmp.ne.s32.totalorder %s245, %s247
      %p254 = scmp.eq.s32.totalorder %s27, 1
      %p255 = por %p253, %p254
      %p256 = scmp.ne.s32.totalorder %s247, %s248
      %p257 = scmp.eq.s32.totalorder %s27, 0
      %p258 = por %p256, %p257
      %p259 = scmp.ne.s32.totalorder %s247, %s248
      %p260 = scmp.eq.s32.totalorder %s28, 1
      %p261 = por %p259, %p260
      %p263 = scmp.ne.s32.totalorder %s248, %s262
      %p264 = scmp.eq.s32.totalorder %s28, 0
      %p265 = por %p263, %p264
      %s266 = ssub.s32 %s22, %s29
      %p267 = scmp.eq.s32.totalorder %s266, 0
      %s269 = sadd.s32 %s268, 1
      %s270 = scalar_select %p267, %s268, %s269
      %p273 = pneg %p267
      %p274 = scmp.eq.s32.totalorder %s22, 1
      %p275 = por %p273, %p274
      %p276 = scmp.ne.s32.totalorder %s268, %s271
      %p277 = scmp.eq.s32.totalorder %s22, 0
      %p278 = por %p276, %p277
      %p279 = scmp.ne.s32.totalorder %s268, %s271
      %p280 = scmp.eq.s32.totalorder %s27, 1
      %p281 = por %p279, %p280
      %p282 = scmp.ne.s32.totalorder %s271, %s272
      %p283 = scmp.eq.s32.totalorder %s27, 0
      %p284 = por %p282, %p283
      %p285 = scmp.ne.s32.totalorder %s271, %s272
      %p286 = scmp.eq.s32.totalorder %s28, 1
      %p287 = por %p285, %p286
      %p289 = scmp.ne.s32.totalorder %s272, %s288
      %p290 = scmp.eq.s32.totalorder %s28, 0
      %p291 = por %p289, %p290
      %s292 = ssub.s32 %s22, %s29
      %p293 = scmp.eq.s32.totalorder %s292, 0
      %s295 = sadd.s32 %s294, 1
      %s296 = scalar_select %p293, %s294, %s295
      %p299 = pneg %p293
      %p300 = scmp.eq.s32.totalorder %s22, 1
      %p301 = por %p299, %p300
      %p302 = scmp.ne.s32.totalorder %s294, %s297
      %p303 = scmp.eq.s32.totalorder %s22, 0
      %p304 = por %p302, %p303
      %p305 = scmp.ne.s32.totalorder %s294, %s297
      %p306 = scmp.eq.s32.totalorder %s27, 1
      %p307 = por %p305, %p306
      %p308 = scmp.ne.s32.totalorder %s297, %s298
      %p309 = scmp.eq.s32.totalorder %s27, 0
      %p310 = por %p308, %p309
      %p311 = scmp.ne.s32.totalorder %s297, %s298
      %p312 = scmp.eq.s32.totalorder %s28, 1
      %p313 = por %p311, %p312
      %p315 = scmp.ne.s32.totalorder %s298, %s314
      %p316 = scmp.eq.s32.totalorder %s28, 0
      %p317 = por %p315, %p316
      %p318 = scmp.le.s32.totalorder 1, %s22
      %p319 = scmp.lt.s32.totalorder %s22, 3
      %p320 = pnand %p318, %p319
      %p321 = pneg %p320
      // Predicated region
      $region9: #{_mlp_forward.1} parent=5 // pred_check
        _
      $region10: #{_mlp_forward.1} parent=5 // pred_check_branch
        %323 = sbr.rel (%p320) target = $region12
      $region11: #{_mlp_forward.1} parent=5 // pred_region
        %s324 = ssub.s32 %s22, 1
        // Predicated region
        $region13: #{_mlp_forward.1} parent=11 // pred_check
          %p325 = pneg %p69
        $region14: #{_mlp_forward.1} parent=11 // pred_check_branch
          %327 = sbr.rel (%p325) target = $region16
        $region15: #{_mlp_forward.1} parent=11 // pred_region
          %329 = vsyncadd [#allocation4], 0
          %s330 = sshll.u32 %s1, 4
          %s331 = int_to_ptr.hbm [resolvable:$true] %s330
          %s332 = sshll.u32 [#allocation3], 4
          %s333 = int_to_ptr.vmem [resolvable:$true] %s332
          %338 = dma.hbm_to_vmem [thread:$0]  %s331, 4096, %s333, [#allocation4], 256, 256, 16
        $region16: #{_mlp_forward.1} parent=11 // pred_fallthru
          _
        // Predicated region
        $region17: #{_mlp_forward.1} parent=11 // pred_check
          %p339 = pneg %p90
        $region18: #{_mlp_forward.1} parent=11 // pred_check_branch
          %341 = sbr.rel (%p339) target = $region20
        $region19: #{_mlp_forward.1} parent=11 // pred_region
          _
        $region20: #{_mlp_forward.1} parent=11 // pred_fallthru
          _
        // Predicated region
        $region21: #{_mlp_forward.1} parent=11 // pred_check
          %p342 = pneg %p111
        $region22: #{_mlp_forward.1} parent=11 // pred_check_branch
          %344 = sbr.rel (%p342) target = $region24
        $region23: #{_mlp_forward.1} parent=11 // pred_region
          _
        $region24: #{_mlp_forward.1} parent=11 // pred_fallthru
          _
        // Predicated region
        $region25: #{_mlp_forward.1} parent=11 // pred_check
          %p345 = pneg %p132
        $region26: #{_mlp_forward.1} parent=11 // pred_check_branch
          %347 = sbr.rel (%p345) target = $region28
        $region27: #{_mlp_forward.1} parent=11 // pred_region
          _
        $region28: #{_mlp_forward.1} parent=11 // pred_fallthru
          _
        // Predicated region
        $region29: #{_mlp_forward.1} parent=11 // pred_check
          %p348 = pneg %p153
        $region30: #{_mlp_forward.1} parent=11 // pred_check_branch
          %350 = sbr.rel (%p348) target = $region32
        $region31: #{_mlp_forward.1} parent=11 // pred_region
          %352 = vsyncadd [#allocation6], 0
          %s353 = sshll.u32 %s5, 4
          %s354 = int_to_ptr.hbm [resolvable:$true] %s353
          %s355 = sshll.u32 [#allocation5], 4
          %s356 = int_to_ptr.vmem [resolvable:$true] %s355
          %361 = dma.hbm_to_vmem [thread:$0]  %s354, 16384, %s356, [#allocation6], 256, 256, 16
        $region32: #{_mlp_forward.1} parent=11 // pred_fallthru
          _
        // Predicated region
        $region33: #{_mlp_forward.1} parent=11 // pred_check
          %p362 = pneg %p174
        $region34: #{_mlp_forward.1} parent=11 // pred_check_branch
          %364 = sbr.rel (%p362) target = $region36
        $region35: #{_mlp_forward.1} parent=11 // pred_region
          _
        $region36: #{_mlp_forward.1} parent=11 // pred_fallthru
          _
        // Predicated region
        $region37: #{_mlp_forward.1} parent=11 // pred_check
          %p365 = pneg %p195
        $region38: #{_mlp_forward.1} parent=11 // pred_check_branch
          %367 = sbr.rel (%p365) target = $region40
        $region39: #{_mlp_forward.1} parent=11 // pred_region
          %369 = vsyncadd [#allocation6], 0
          %s370 = sshll.u32 %s7, 4
          %s371 = int_to_ptr.hbm [resolvable:$true] %s370
          %s372 = sshll.u32 [#allocation7], 4
          %s373 = int_to_ptr.vmem [resolvable:$true] %s372
          %378 = dma.hbm_to_vmem [thread:$0]  %s371, 16384, %s373, [#allocation6], 256, 256, 16
        $region40: #{_mlp_forward.1} parent=11 // pred_fallthru
          _
        // Predicated region
        $region41: #{_mlp_forward.1} parent=11 // pred_check
          %p379 = pneg %p216
        $region42: #{_mlp_forward.1} parent=11 // pred_check_branch
          %381 = sbr.rel (%p379) target = $region44
        $region43: #{_mlp_forward.1} parent=11 // pred_region
          _
        $region44: #{_mlp_forward.1} parent=11 // pred_fallthru
          _
        // Predicated region
        $region45: #{_mlp_forward.1} parent=11 // pred_check
          %p382 = pneg %p237
        $region46: #{_mlp_forward.1} parent=11 // pred_check_branch
          %384 = sbr.rel (%p382) target = $region48
        $region47: #{_mlp_forward.1} parent=11 // pred_region
          %386 = vsyncadd [#allocation9], 0
          %s387 = sshll.u32 %s9, 4
          %s388 = int_to_ptr.hbm [resolvable:$true] %s387
          %s389 = sshll.u32 [#allocation8], 4
          %s390 = int_to_ptr.vmem [resolvable:$true] %s389
          %395 = dma.hbm_to_vmem [thread:$0]  %s388, 4096, %s390, [#allocation9], 64, 64, 4
        $region48: #{_mlp_forward.1} parent=11 // pred_fallthru
          _
        // Predicated region
        $region49: #{_mlp_forward.1} parent=11 // pred_check
          %p396 = pneg %p258
        $region50: #{_mlp_forward.1} parent=11 // pred_check_branch
          %398 = sbr.rel (%p396) target = $region52
        $region51: #{_mlp_forward.1} parent=11 // pred_region
          _
        $region52: #{_mlp_forward.1} parent=11 // pred_fallthru
          _
      $region12: #{_mlp_forward.1} parent=5 // pred_fallthru
        _
      %p399 = scmp.lt.s32.totalorder %s22, 2
      // Predicated region
      $region53: #{_mlp_forward.1} parent=5 // pred_check
        %p400 = pneg %p399
      $region54: #{_mlp_forward.1} parent=5 // pred_check_branch
        %402 = sbr.rel (%p400) target = $region56
      $region55: #{_mlp_forward.1} parent=5 // pred_region
        // Predicated region
        $region57: #{_mlp_forward.1} parent=55 // pred_check
          %p403 = pneg %p42
        $region58: #{_mlp_forward.1} parent=55 // pred_check_branch
          %405 = sbr.rel (%p403) target = $region60
        $region59: #{_mlp_forward.1} parent=55 // pred_region
          %s406 = smul.u32 19, %s22
          %p407 = scmp.lt.s32.totalorder %s406, 37
          %s408 = scalar_select %p407, %s406, 37
          %s409 = smul.addr %s408, 8
          %s410 = scalar_lea.vmem %s0, %s409
          %s411 = smul.u32 19, %s22
        $region60: #{_mlp_forward.1} parent=55 // pred_fallthru
          _
      $region56: #{_mlp_forward.1} parent=5 // pred_fallthru
        _
      %p412 = scmp.le.s32.totalorder 1, %s22
      %p413 = scmp.lt.s32.totalorder %s22, 3
      %p414 = pnand %p412, %p413
      %p415 = pneg %p414
      // Predicated region
      $region61: #{_mlp_forward.1} parent=5 // pred_check
        _
      $region62: #{_mlp_forward.1} parent=5 // pred_check_branch
        %417 = sbr.rel (%p414) target = $region64
      $region63: #{_mlp_forward.1} parent=5 // pred_region
        %s418 = ssub.s32 %s22, 1
        // Predicated region
        $region65: #{_mlp_forward.1} parent=63 // pred_check
          %p419 = pneg %p69
        $region66: #{_mlp_forward.1} parent=63 // pred_check_branch
          %421 = sbr.rel (%p419) target = $region68
        $region67: #{_mlp_forward.1} parent=63 // pred_region
          %423 = dma.done [#allocation4], 4096
        $region68: #{_mlp_forward.1} parent=63 // pred_fallthru
          _
        // Predicated region
        $region69: #{_mlp_forward.1} parent=63 // pred_check
          %p424 = pneg %p153
        $region70: #{_mlp_forward.1} parent=63 // pred_check_branch
          %426 = sbr.rel (%p424) target = $region72
        $region71: #{_mlp_forward.1} parent=63 // pred_region
          %428 = dma.done [#allocation6], 16384
        $region72: #{_mlp_forward.1} parent=63 // pred_fallthru
          _
        // Predicated region
        $region73: #{_mlp_forward.1} parent=63 // pred_check
          %p429 = pneg %p195
        $region74: #{_mlp_forward.1} parent=63 // pred_check_branch
          %431 = sbr.rel (%p429) target = $region76
        $region75: #{_mlp_forward.1} parent=63 // pred_region
          %433 = dma.done [#allocation6], 16384
        $region76: #{_mlp_forward.1} parent=63 // pred_fallthru
          _
        // Predicated region
        $region77: #{_mlp_forward.1} parent=63 // pred_check
          %p434 = pneg %p237
        $region78: #{_mlp_forward.1} parent=63 // pred_check_branch
          %436 = sbr.rel (%p434) target = $region80
        $region79: #{_mlp_forward.1} parent=63 // pred_region
          %438 = dma.done [#allocation9], 4096
        $region80: #{_mlp_forward.1} parent=63 // pred_fallthru
          _
        %s439 = smul.u32 19, %s27
        %p440 = scmp.lt.s32.totalorder %s439, 37
        %s441 = scalar_select %p440, %s439, 37
        %s442 = smul.addr %s441, 8
        %s443 = scalar_lea.vmem %s0, %s442
        %p444 = pneg %p48
        %p445 = pneg %p45
        %p446 = pneg %p69
        %p447 = pneg %p66
        %p448 = pneg %p90
        %p449 = pneg %p87
        %p450 = pneg %p111
        %p451 = pneg %p108
        %p452 = pneg %p132
        %p453 = pneg %p129
        %p454 = pneg %p153
        %p455 = pneg %p150
        %p456 = pneg %p174
        %p457 = pneg %p171
        %p458 = pneg %p195
        %p459 = pneg %p192
        %p460 = pneg %p216
        %p461 = pneg %p213
        %p462 = pneg %p237
        %p463 = pneg %p234
        %p464 = pneg %p258
        %p465 = pneg %p255
        %p466 = pneg %p284
        %p467 = pneg %p281
        %s468 = smul.u32 19, %s27
        %p469 = scmp.lt.s32.totalorder %s468, 37
        %s470 = scalar_select %p469, %s468, 37
        %s471 = smul.addr %s470, 8
        %s472 = scalar_lea.vmem %s11, %s471
        %p473 = pneg %p310
        %p474 = pneg %p307
        %s475 = smul.u32 19, %s27
        %p476 = scmp.lt.s32.totalorder %s475, 37
        %s477 = scalar_select %p476, %s475, 37
        %s478 = smul.addr %s477, 8
        %s479 = scalar_lea.vmem %s12, %s478
        %s480 = smul.u32 19, %s27
        %p481 = scmp.lt.s32.totalorder %s480, 37
        %s482 = scalar_select %p481, %s480, 37
        %s483 = smul.addr %s482, 8
        %s484 = scalar_lea.vmem %s0, %s483
        %s485 = smul.u32 19, %s27
        %s486 = smul.u32 19, %s27
        %p487 = scmp.lt.s32.totalorder %s486, 37
        %s488 = scalar_select %p487, %s486, 37
        %s489 = smul.addr %s488, 8
        %s490 = scalar_lea.vmem %s11, %s489
        %s491 = smul.u32 19, %s27
        %s492 = smul.u32 19, %s27
        %p493 = scmp.lt.s32.totalorder %s492, 37
        %s494 = scalar_select %p493, %s492, 37
        %s495 = smul.addr %s494, 8
        %s496 = scalar_lea.vmem %s12, %s495
        %s497 = smul.u32 19, %s27
        %499 = vst [vmem:[#allocation2] sm:$0xf] 0
        %500 = vst [vmem:[#allocation2 + $0x4] sm:$0xf] 0
        %501 = vst [vmem:[#allocation2 + $0x8] sm:$0xf] 0
        %502 = vst [vmem:[#allocation2 + $0xc] sm:$0xf] 0
        %503 = vst [vmem:[#allocation2 + $0x10] sm:$0xf] 0
        %504 = vst [vmem:[#allocation2 + $0x14] sm:$0xf] 0
        %505 = vst [vmem:[#allocation2 + $0x18] sm:$0xf] 0
        %506 = vst [vmem:[#allocation2 + $0x1c] sm:$0xf] 0
        %507 = vst [vmem:[#allocation2 + $0x20] sm:$0xf] 0
        %508 = vst [vmem:[#allocation2 + $0x24] sm:$0xf] 0
        %509 = vst [vmem:[#allocation2 + $0x28] sm:$0xf] 0
        %510 = vst [vmem:[#allocation2 + $0x2c] sm:$0xf] 0
        %511 = vst [vmem:[#allocation2 + $0x30] sm:$0xf] 0
        %512 = vst [vmem:[#allocation2 + $0x34] sm:$0xf] 0
        %513 = vst [vmem:[#allocation2 + $0x38] sm:$0xf] 0
        %514 = vst [vmem:[#allocation2 + $0x3c] sm:$0xf] 0
        %515 = vst [vmem:[#allocation2 + $0x40] sm:$0xf] 0
        %516 = vst [vmem:[#allocation2 + $0x44] sm:$0xf] 0
        %517 = vst [vmem:[#allocation2 + $0x48] sm:$0xf] 0
        %v518 = vld [vmem:[%s484] sm:$0xff]
        %v519 = vld [vmem:[%s484 + $0x8] sm:$0xff]
        %v520 = vld [vmem:[%s484 + $0x10] sm:$0xff]
        %v521 = vld [vmem:[%s484 + $0x18] sm:$0xff]
        %v522 = vld [vmem:[%s484 + $0x20] sm:$0xff]
        %v523 = vld [vmem:[%s484 + $0x28] sm:$0xff]
        %v524 = vld [vmem:[%s484 + $0x30] sm:$0xff]
        %v525 = vld [vmem:[%s484 + $0x38] sm:$0xff]
        %v526 = vld [vmem:[%s484 + $0x40] sm:$0xff]
        %v527 = vld [vmem:[%s484 + $0x48] sm:$0xff]
        %v528 = vld [vmem:[%s484 + $0x50] sm:$0xff]
        %v529 = vld [vmem:[%s484 + $0x58] sm:$0xff]
        %v530 = vld [vmem:[%s484 + $0x60] sm:$0xff]
        %v531 = vld [vmem:[%s484 + $0x68] sm:$0xff]
        %v532 = vld [vmem:[%s484 + $0x70] sm:$0xff]
        %v533 = vld [vmem:[%s484 + $0x78] sm:$0xff]
        %v534 = vld [vmem:[%s484 + $0x80] sm:$0xff]
        %v535 = vld [vmem:[%s484 + $0x88] sm:$0xff]
        %v536 = vld [vmem:[%s484 + $0x90] sm:$0xff]
        %v537 = vpack.c.bf16 %v518, %v518
        %v538 = vpack.c.bf16 %v519, %v519
        %v539 = vpack.c.bf16 %v520, %v520
        %v540 = vpack.c.bf16 %v521, %v521
        %v541 = vpack.c.bf16 %v522, %v522
        %v542 = vpack.c.bf16 %v523, %v523
        %v543 = vpack.c.bf16 %v524, %v524
        %v544 = vpack.c.bf16 %v525, %v525
        %v545 = vpack.c.bf16 %v526, %v526
        %v546 = vpack.c.bf16 %v527, %v527
        %v547 = vpack.c.bf16 %v528, %v528
        %v548 = vpack.c.bf16 %v529, %v529
        %v549 = vpack.c.bf16 %v530, %v530
        %v550 = vpack.c.bf16 %v531, %v531
        %v551 = vpack.c.bf16 %v532, %v532
        %v552 = vpack.c.bf16 %v533, %v533
        %v553 = vpack.c.bf16 %v534, %v534
        %v554 = vpack.c.bf16 %v535, %v535
        %v555 = vpack.c.bf16 %v536, %v536
        %vm556 = vcmask 379904
        %557 = vst.msk [vmem:[#allocation2] sm:$0xf] %vm556, %v537
        %558 = vst.msk [vmem:[#allocation2 + $0x4] sm:$0xf] %vm556, %v538
        %559 = vst.msk [vmem:[#allocation2 + $0x8] sm:$0xf] %vm556, %v539
        %560 = vst.msk [vmem:[#allocation2 + $0xc] sm:$0xf] %vm556, %v540
        %561 = vst.msk [vmem:[#allocation2 + $0x10] sm:$0xf] %vm556, %v541
        %562 = vst.msk [vmem:[#allocation2 + $0x14] sm:$0xf] %vm556, %v542
        %563 = vst.msk [vmem:[#allocation2 + $0x18] sm:$0xf] %vm556, %v543
        %564 = vst.msk [vmem:[#allocation2 + $0x1c] sm:$0xf] %vm556, %v544
        %565 = vst.msk [vmem:[#allocation2 + $0x20] sm:$0xf] %vm556, %v545
        %566 = vst.msk [vmem:[#allocation2 + $0x24] sm:$0xf] %vm556, %v546
        %567 = vst.msk [vmem:[#allocation2 + $0x28] sm:$0xf] %vm556, %v547
        %568 = vst.msk [vmem:[#allocation2 + $0x2c] sm:$0xf] %vm556, %v548
        %569 = vst.msk [vmem:[#allocation2 + $0x30] sm:$0xf] %vm556, %v549
        %570 = vst.msk [vmem:[#allocation2 + $0x34] sm:$0xf] %vm556, %v550
        %571 = vst.msk [vmem:[#allocation2 + $0x38] sm:$0xf] %vm556, %v551
        %572 = vst.msk [vmem:[#allocation2 + $0x3c] sm:$0xf] %vm556, %v552
        %573 = vst.msk [vmem:[#allocation2 + $0x40] sm:$0xf] %vm556, %v553
        %574 = vst.msk [vmem:[#allocation2 + $0x44] sm:$0xf] %vm556, %v554
        %575 = vst.msk [vmem:[#allocation2 + $0x48] sm:$0xf] %vm556, %v555
        %v576 = vld [vmem:[#allocation2] sm:$0xf]
        %v577 = vld [vmem:[#allocation2 + $0x4] sm:$0xf]
        %v578 = vld [vmem:[#allocation2 + $0x8] sm:$0xf]
        %v579 = vld [vmem:[#allocation2 + $0xc] sm:$0xf]
        %v580 = vld [vmem:[#allocation2 + $0x10] sm:$0xf]
        %v581 = vld [vmem:[#allocation2 + $0x14] sm:$0xf]
        %v582 = vld [vmem:[#allocation2 + $0x18] sm:$0xf]
        %v583 = vld [vmem:[#allocation2 + $0x1c] sm:$0xf]
        %v584 = vld [vmem:[#allocation2 + $0x20] sm:$0xf]
        %v585 = vld [vmem:[#allocation2 + $0x24] sm:$0xf]
        %v586 = vld [vmem:[#allocation2 + $0x28] sm:$0xf]
        %v587 = vld [vmem:[#allocation2 + $0x2c] sm:$0xf]
        %v588 = vld [vmem:[#allocation2 + $0x30] sm:$0xf]
        %v589 = vld [vmem:[#allocation2 + $0x34] sm:$0xf]
        %v590 = vld [vmem:[#allocation2 + $0x38] sm:$0xf]
        %v591 = vld [vmem:[#allocation2 + $0x3c] sm:$0xf]
        %v592 = vld [vmem:[#allocation2 + $0x40] sm:$0xf]
        %v593 = vld [vmem:[#allocation2 + $0x44] sm:$0xf]
        %v594 = vld [vmem:[#allocation2 + $0x48] sm:$0xf]
        %v595 = vld [vmem:[#allocation3] sm:$0xff]
        %v596 = vld [vmem:[#allocation3 + $0x8] sm:$0xff]
        %v597 = vld [vmem:[#allocation3 + $0x10] sm:$0xff]
        %v598 = vld [vmem:[#allocation3 + $0x18] sm:$0xff]
        %v599 = vld [vmem:[#allocation3 + $0x20] sm:$0xff]
        %v600 = vld [vmem:[#allocation3 + $0x28] sm:$0xff]
        %v601 = vld [vmem:[#allocation3 + $0x30] sm:$0xff]
        %v602 = vld [vmem:[#allocation3 + $0x38] sm:$0xff]
        %v603 = vld [vmem:[#allocation3 + $0x40] sm:$0xff]
        %v604 = vld [vmem:[#allocation3 + $0x48] sm:$0xff]
        %v605 = vld [vmem:[#allocation3 + $0x50] sm:$0xff]
        %v606 = vld [vmem:[#allocation3 + $0x58] sm:$0xff]
        %v607 = vld [vmem:[#allocation3 + $0x60] sm:$0xff]
        %v608 = vld [vmem:[#allocation3 + $0x68] sm:$0xff]
        %v609 = vld [vmem:[#allocation3 + $0x70] sm:$0xff]
        %v610 = vld [vmem:[#allocation3 + $0x78] sm:$0xff]
        %v611 = vld [vmem:[#allocation3 + $0x80] sm:$0xff]
        %v612 = vld [vmem:[#allocation3 + $0x88] sm:$0xff]
        %v613 = vld [vmem:[#allocation3 + $0x90] sm:$0xff]
        %v614 = vld [vmem:[#allocation3 + $0x98] sm:$0xff]
        %v615 = vld [vmem:[#allocation3 + $0xa0] sm:$0xff]
        %v616 = vld [vmem:[#allocation3 + $0xa8] sm:$0xff]
        %v617 = vld [vmem:[#allocation3 + $0xb0] sm:$0xff]
        %v618 = vld [vmem:[#allocation3 + $0xb8] sm:$0xff]
        %v619 = vld [vmem:[#allocation3 + $0xc0] sm:$0xff]
        %v620 = vld [vmem:[#allocation3 + $0xc8] sm:$0xff]
        %v621 = vld [vmem:[#allocation3 + $0xd0] sm:$0xff]
        %v622 = vld [vmem:[#allocation3 + $0xd8] sm:$0xff]
        %v623 = vld [vmem:[#allocation3 + $0xe0] sm:$0xff]
        %v624 = vld [vmem:[#allocation3 + $0xe8] sm:$0xff]
        %v625 = vld [vmem:[#allocation3 + $0xf0] sm:$0xff]
        %v626 = vld [vmem:[#allocation3 + $0xf8] sm:$0xff]
        %v627 = vld [vmem:[%s2] sm:$0xf]
        %v629 = vperm.slane %v627, 0
        %v630 = vperm.slane %v627, 1
        %v631 = vperm.slane %v627, 2
        %v632 = vperm.slane %v627, 3
        %v656 = vunpack.c.l.b16 %v576
        %v657 = vunpack.c.l.b16 %v577
        %v658 = vunpack.c.l.b16 %v578
        %v659 = vunpack.c.l.b16 %v579
        %v660 = vunpack.c.l.b16 %v580
        %v661 = vunpack.c.l.b16 %v581
        %v662 = vunpack.c.l.b16 %v582
        %v663 = vunpack.c.l.b16 %v583
        %v664 = vunpack.c.l.b16 %v584
        %v665 = vunpack.c.l.b16 %v585
        %v666 = vunpack.c.l.b16 %v586
        %v667 = vunpack.c.l.b16 %v587
        %v668 = vunpack.c.l.b16 %v588
        %v669 = vunpack.c.l.b16 %v589
        %v670 = vunpack.c.l.b16 %v590
        %v671 = vunpack.c.l.b16 %v591
        %v672 = vunpack.c.l.b16 %v592
        %v673 = vunpack.c.l.b16 %v593
        %v674 = vunpack.c.l.b16 %v594
        %v675 = vpack.c.b16 %v657, %v656
        %v676 = vpack.c.b16 %v659, %v658
        %v677 = vpack.c.b16 %v661, %v660
        %v678 = vpack.c.b16 %v663, %v662
        %v679 = vpack.c.b16 %v665, %v664
        %v680 = vpack.c.b16 %v667, %v666
        %v681 = vpack.c.b16 %v669, %v668
        %v682 = vpack.c.b16 %v671, %v670
        %v683 = vpack.c.b16 %v673, %v672
        %v684 = vpack.c.b16 %v674, %v674
        %v727 = vunpack.c.l.b16 %v595
        %v728 = vunpack.c.h.b16 %v595
        %v729 = vunpack.c.l.b16 %v596
        %v730 = vunpack.c.h.b16 %v596
        %v731 = vunpack.c.l.b16 %v597
        %v732 = vunpack.c.h.b16 %v597
        %v733 = vunpack.c.l.b16 %v598
        %v734 = vunpack.c.h.b16 %v598
        %v735 = vunpack.c.l.b16 %v599
        %v736 = vunpack.c.h.b16 %v599
        %v737 = vunpack.c.l.b16 %v600
        %v738 = vunpack.c.h.b16 %v600
        %v739 = vunpack.c.l.b16 %v601
        %v740 = vunpack.c.h.b16 %v601
        %v741 = vunpack.c.l.b16 %v602
        %v742 = vunpack.c.h.b16 %v602
        %v743 = vunpack.c.l.b16 %v603
        %v744 = vunpack.c.h.b16 %v603
        %v745 = vunpack.c.l.b16 %v604
        %v746 = vunpack.c.h.b16 %v604
        %v747 = vunpack.c.l.b16 %v605
        %v748 = vunpack.c.h.b16 %v605
        %v749 = vunpack.c.l.b16 %v606
        %v750 = vunpack.c.h.b16 %v606
        %v751 = vunpack.c.l.b16 %v607
        %v752 = vunpack.c.h.b16 %v607
        %v753 = vunpack.c.l.b16 %v608
        %v754 = vunpack.c.h.b16 %v608
        %v755 = vunpack.c.l.b16 %v609
        %v756 = vunpack.c.h.b16 %v609
        %v757 = vunpack.c.l.b16 %v610
        %v758 = vunpack.c.h.b16 %v610
        %v759 = vunpack.c.l.b16 %v611
        %v760 = vunpack.c.h.b16 %v611
        %v761 = vunpack.c.l.b16 %v612
        %v762 = vunpack.c.h.b16 %v612
        %v763 = vunpack.c.l.b16 %v613
        %v764 = vunpack.c.h.b16 %v613
        %v765 = vunpack.c.l.b16 %v614
        %v766 = vunpack.c.h.b16 %v614
        %v767 = vunpack.c.l.b16 %v615
        %v768 = vunpack.c.h.b16 %v615
        %v769 = vunpack.c.l.b16 %v616
        %v770 = vunpack.c.h.b16 %v616
        %v771 = vunpack.c.l.b16 %v617
        %v772 = vunpack.c.h.b16 %v617
        %v773 = vunpack.c.l.b16 %v618
        %v774 = vunpack.c.h.b16 %v618
        %v775 = vunpack.c.l.b16 %v619
        %v776 = vunpack.c.h.b16 %v619
        %v777 = vunpack.c.l.b16 %v620
        %v778 = vunpack.c.h.b16 %v620
        %v779 = vunpack.c.l.b16 %v621
        %v780 = vunpack.c.h.b16 %v621
        %v781 = vunpack.c.l.b16 %v622
        %v782 = vunpack.c.h.b16 %v622
        %v783 = vunpack.c.l.b16 %v623
        %v784 = vunpack.c.h.b16 %v623
        %v785 = vunpack.c.l.b16 %v624
        %v786 = vunpack.c.h.b16 %v624
        %v787 = vunpack.c.l.b16 %v625
        %v788 = vunpack.c.h.b16 %v625
        %v789 = vunpack.c.l.b16 %v626
        %v790 = vunpack.c.h.b16 %v626
        %v791 = vpack.c.b16 %v731, %v727
        %v792 = vpack.c.b16 %v732, %v728
        %v793 = vpack.c.b16 %v733, %v729
        %v794 = vpack.c.b16 %v734, %v730
        %v795 = vpack.c.b16 %v739, %v735
        %v796 = vpack.c.b16 %v740, %v736
        %v797 = vpack.c.b16 %v741, %v737
        %v798 = vpack.c.b16 %v742, %v738
        %v799 = vpack.c.b16 %v747, %v743
        %v800 = vpack.c.b16 %v748, %v744
        %v801 = vpack.c.b16 %v749, %v745
        %v802 = vpack.c.b16 %v750, %v746
        %v803 = vpack.c.b16 %v755, %v751
        %v804 = vpack.c.b16 %v756, %v752
        %v805 = vpack.c.b16 %v757, %v753
        %v806 = vpack.c.b16 %v758, %v754
        %v807 = vpack.c.b16 %v763, %v759
        %v808 = vpack.c.b16 %v764, %v760
        %v809 = vpack.c.b16 %v765, %v761
        %v810 = vpack.c.b16 %v766, %v762
        %v811 = vpack.c.b16 %v771, %v767
        %v812 = vpack.c.b16 %v772, %v768
        %v813 = vpack.c.b16 %v773, %v769
        %v814 = vpack.c.b16 %v774, %v770
        %v815 = vpack.c.b16 %v779, %v775
        %v816 = vpack.c.b16 %v780, %v776
        %v817 = vpack.c.b16 %v781, %v777
        %v818 = vpack.c.b16 %v782, %v778
        %v819 = vpack.c.b16 %v787, %v783
        %v820 = vpack.c.b16 %v788, %v784
        %v821 = vpack.c.b16 %v789, %v785
        %v822 = vpack.c.b16 %v790, %v786
        %855 = vmatpush.bf16.msra.mxu0 %v819
        %856 = vmatpush.bf16.msra.mxu0 %v815
        %857 = vmatpush.bf16.msra.mxu0 %v811
        %858 = vmatpush.bf16.msra.mxu0 %v807
        %859 = vmatpush.bf16.msra.mxu0 %v803
        %860 = vmatpush.bf16.msra.mxu0 %v799
        %861 = vmatpush.bf16.msra.mxu0 %v795
        %862 = vmatpush.bf16.msra.mxu0 %v791
        %863 = vmatmul.bf16.gmra.mxu0 %v675
        %v864 = vpop.f32.mrf.mxu0
        %v865 = vadd.f32 %v629, %v864
        %v866 = vpop.f32.mrf.mxu0
        %v867 = vadd.f32 %v629, %v866
        %868 = vmatmul.bf16.gmra.mxu0 %v676
        %v869 = vpop.f32.mrf.mxu0
        %v870 = vadd.f32 %v629, %v869
        %v871 = vpop.f32.mrf.mxu0
        %v872 = vadd.f32 %v629, %v871
        %873 = vmatmul.bf16.gmra.mxu0 %v677
        %v874 = vpop.f32.mrf.mxu0
        %v875 = vadd.f32 %v629, %v874
        %v876 = vpop.f32.mrf.mxu0
        %v877 = vadd.f32 %v629, %v876
        %878 = vmatmul.bf16.gmra.mxu0 %v678
        %v879 = vpop.f32.mrf.mxu0
        %v880 = vadd.f32 %v629, %v879
        %v881 = vpop.f32.mrf.mxu0
        %v882 = vadd.f32 %v629, %v881
        %883 = vmatmul.bf16.gmra.mxu0 %v679
        %v884 = vpop.f32.mrf.mxu0
        %v885 = vadd.f32 %v629, %v884
        %v886 = vpop.f32.mrf.mxu0
        %v887 = vadd.f32 %v629, %v886
        %888 = vmatmul.bf16.gmra.mxu0 %v680
        %v889 = vpop.f32.mrf.mxu0
        %v890 = vadd.f32 %v629, %v889
        %v891 = vpop.f32.mrf.mxu0
        %v892 = vadd.f32 %v629, %v891
        %893 = vmatmul.bf16.gmra.mxu0 %v681
        %v894 = vpop.f32.mrf.mxu0
        %v895 = vadd.f32 %v629, %v894
        %v896 = vpop.f32.mrf.mxu0
        %v897 = vadd.f32 %v629, %v896
        %898 = vmatmul.bf16.gmra.mxu0 %v682
        %v899 = vpop.f32.mrf.mxu0
        %v900 = vadd.f32 %v629, %v899
        %v901 = vpop.f32.mrf.mxu0
        %v902 = vadd.f32 %v629, %v901
        %903 = vmatmul.bf16.gmra.mxu0 %v683
        %v904 = vpop.f32.mrf.mxu0
        %v905 = vadd.f32 %v629, %v904
        %v906 = vpop.f32.mrf.mxu0
        %v907 = vadd.f32 %v629, %v906
        %908 = vmatmul.bf16.gmra.mxu0 %v684
        %v909 = vpop.f32.mrf.mxu0
        %v910 = vadd.f32 %v629, %v909
        %v911 = vpop.f32.mrf.mxu0
        %912 = vdwg.mxu0
        %913 = vmatpush.bf16.msra.mxu0 %v820
        %914 = vmatpush.bf16.msra.mxu0 %v816
        %915 = vmatpush.bf16.msra.mxu0 %v812
        %916 = vmatpush.bf16.msra.mxu0 %v808
        %917 = vmatpush.bf16.msra.mxu0 %v804
        %918 = vmatpush.bf16.msra.mxu0 %v800
        %919 = vmatpush.bf16.msra.mxu0 %v796
        %920 = vmatpush.bf16.msra.mxu0 %v792
        %921 = vmatmul.bf16.gmra.mxu0 %v675
        %v922 = vpop.f32.mrf.mxu0
        %v923 = vadd.f32 %v630, %v922
        %v924 = vpop.f32.mrf.mxu0
        %v925 = vadd.f32 %v630, %v924
        %926 = vmatmul.bf16.gmra.mxu0 %v676
        %v927 = vpop.f32.mrf.mxu0
        %v928 = vadd.f32 %v630, %v927
        %v929 = vpop.f32.mrf.mxu0
        %v930 = vadd.f32 %v630, %v929
        %931 = vmatmul.bf16.gmra.mxu0 %v677
        %v932 = vpop.f32.mrf.mxu0
        %v933 = vadd.f32 %v630, %v932
        %v934 = vpop.f32.mrf.mxu0
        %v935 = vadd.f32 %v630, %v934
        %936 = vmatmul.bf16.gmra.mxu0 %v678
        %v937 = vpop.f32.mrf.mxu0
        %v938 = vadd.f32 %v630, %v937
        %v939 = vpop.f32.mrf.mxu0
        %v940 = vadd.f32 %v630, %v939
        %941 = vmatmul.bf16.gmra.mxu0 %v679
        %v942 = vpop.f32.mrf.mxu0
        %v943 = vadd.f32 %v630, %v942
        %v944 = vpop.f32.mrf.mxu0
        %v945 = vadd.f32 %v630, %v944
        %946 = vmatmul.bf16.gmra.mxu0 %v680
        %v947 = vpop.f32.mrf.mxu0
        %v948 = vadd.f32 %v630, %v947
        %v949 = vpop.f32.mrf.mxu0
        %v950 = vadd.f32 %v630, %v949
        %951 = vmatmul.bf16.gmra.mxu0 %v681
        %v952 = vpop.f32.mrf.mxu0
        %v953 = vadd.f32 %v630, %v952
        %v954 = vpop.f32.mrf.mxu0
        %v955 = vadd.f32 %v630, %v954
        %956 = vmatmul.bf16.gmra.mxu0 %v682
        %v957 = vpop.f32.mrf.mxu0
        %v958 = vadd.f32 %v630, %v957
        %v959 = vpop.f32.mrf.mxu0
        %v960 = vadd.f32 %v630, %v959
        %961 = vmatmul.bf16.gmra.mxu0 %v683
        %v962 = vpop.f32.mrf.mxu0
        %v963 = vadd.f32 %v630, %v962
        %v964 = vpop.f32.mrf.mxu0
        %v965 = vadd.f32 %v630, %v964
        %966 = vmatmul.bf16.gmra.mxu0 %v684
        %v967 = vpop.f32.mrf.mxu0
        %v968 = vadd.f32 %v630, %v967
        %v969 = vpop.f32.mrf.mxu0
        %970 = vdwg.mxu0
        %971 = vmatpush.bf16.msra.mxu0 %v821
        %972 = vmatpush.bf16.msra.mxu0 %v817
        %973 = vmatpush.bf16.msra.mxu0 %v813
        %974 = vmatpush.bf16.msra.mxu0 %v809
        %975 = vmatpush.bf16.msra.mxu0 %v805
        %976 = vmatpush.bf16.msra.mxu0 %v801
        %977 = vmatpush.bf16.msra.mxu0 %v797
        %978 = vmatpush.bf16.msra.mxu0 %v793
        %979 = vmatmul.bf16.gmra.mxu0 %v675
        %v980 = vpop.f32.mrf.mxu0
        %v981 = vadd.f32 %v631, %v980
        %v982 = vpop.f32.mrf.mxu0
        %v983 = vadd.f32 %v631, %v982
        %984 = vmatmul.bf16.gmra.mxu0 %v676
        %v985 = vpop.f32.mrf.mxu0
        %v986 = vadd.f32 %v631, %v985
        %v987 = vpop.f32.mrf.mxu0
        %v988 = vadd.f32 %v631, %v987
        %989 = vmatmul.bf16.gmra.mxu0 %v677
        %v990 = vpop.f32.mrf.mxu0
        %v991 = vadd.f32 %v631, %v990
        %v992 = vpop.f32.mrf.mxu0
        %v993 = vadd.f32 %v631, %v992
        %994 = vmatmul.bf16.gmra.mxu0 %v678
        %v995 = vpop.f32.mrf.mxu0
        %v996 = vadd.f32 %v631, %v995
        %v997 = vpop.f32.mrf.mxu0
        %v998 = vadd.f32 %v631, %v997
        %999 = vmatmul.bf16.gmra.mxu0 %v679
        %v1000 = vpop.f32.mrf.mxu0
        %v1001 = vadd.f32 %v631, %v1000
        %v1002 = vpop.f32.mrf.mxu0
        %v1003 = vadd.f32 %v631, %v1002
        %1004 = vmatmul.bf16.gmra.mxu0 %v680
        %v1005 = vpop.f32.mrf.mxu0
        %v1006 = vadd.f32 %v631, %v1005
        %v1007 = vpop.f32.mrf.mxu0
        %v1008 = vadd.f32 %v631, %v1007
        %1009 = vmatmul.bf16.gmra.mxu0 %v681
        %v1010 = vpop.f32.mrf.mxu0
        %v1011 = vadd.f32 %v631, %v1010
        %v1012 = vpop.f32.mrf.mxu0
        %v1013 = vadd.f32 %v631, %v1012
        %1014 = vmatmul.bf16.gmra.mxu0 %v682
        %v1015 = vpop.f32.mrf.mxu0
        %v1016 = vadd.f32 %v631, %v1015
        %v1017 = vpop.f32.mrf.mxu0
        %v1018 = vadd.f32 %v631, %v1017
        %1019 = vmatmul.bf16.gmra.mxu0 %v683
        %v1020 = vpop.f32.mrf.mxu0
        %v1021 = vadd.f32 %v631, %v1020
        %v1022 = vpop.f32.mrf.mxu0
        %v1023 = vadd.f32 %v631, %v1022
        %1024 = vmatmul.bf16.gmra.mxu0 %v684
        %v1025 = vpop.f32.mrf.mxu0
        %v1026 = vadd.f32 %v631, %v1025
        %v1027 = vpop.f32.mrf.mxu0
        %1028 = vdwg.mxu0
        %1029 = vmatpush.bf16.msra.mxu0 %v822
        %1030 = vmatpush.bf16.msra.mxu0 %v818
        %1031 = vmatpush.bf16.msra.mxu0 %v814
        %1032 = vmatpush.bf16.msra.mxu0 %v810
        %1033 = vmatpush.bf16.msra.mxu0 %v806
        %1034 = vmatpush.bf16.msra.mxu0 %v802
        %1035 = vmatpush.bf16.msra.mxu0 %v798
        %1036 = vmatpush.bf16.msra.mxu0 %v794
        %1037 = vmatmul.bf16.gmra.mxu0 %v675
        %v1038 = vpop.f32.mrf.mxu0
        %v1039 = vadd.f32 %v632, %v1038
        %v1040 = vpop.f32.mrf.mxu0
        %v1041 = vadd.f32 %v632, %v1040
        %1042 = vmatmul.bf16.gmra.mxu0 %v676
        %v1043 = vpop.f32.mrf.mxu0
        %v1044 = vadd.f32 %v632, %v1043
        %v1045 = vpop.f32.mrf.mxu0
        %v1046 = vadd.f32 %v632, %v1045
        %1047 = vmatmul.bf16.gmra.mxu0 %v677
        %v1048 = vpop.f32.mrf.mxu0
        %v1049 = vadd.f32 %v632, %v1048
        %v1050 = vpop.f32.mrf.mxu0
        %v1051 = vadd.f32 %v632, %v1050
        %1052 = vmatmul.bf16.gmra.mxu0 %v678
        %v1053 = vpop.f32.mrf.mxu0
        %v1054 = vadd.f32 %v632, %v1053
        %v1055 = vpop.f32.mrf.mxu0
        %v1056 = vadd.f32 %v632, %v1055
        %1057 = vmatmul.bf16.gmra.mxu0 %v679
        %v1058 = vpop.f32.mrf.mxu0
        %v1059 = vadd.f32 %v632, %v1058
        %v1060 = vpop.f32.mrf.mxu0
        %v1061 = vadd.f32 %v632, %v1060
        %1062 = vmatmul.bf16.gmra.mxu0 %v680
        %v1063 = vpop.f32.mrf.mxu0
        %v1064 = vadd.f32 %v632, %v1063
        %v1065 = vpop.f32.mrf.mxu0
        %v1066 = vadd.f32 %v632, %v1065
        %1067 = vmatmul.bf16.gmra.mxu0 %v681
        %v1068 = vpop.f32.mrf.mxu0
        %v1069 = vadd.f32 %v632, %v1068
        %v1070 = vpop.f32.mrf.mxu0
        %v1071 = vadd.f32 %v632, %v1070
        %1072 = vmatmul.bf16.gmra.mxu0 %v682
        %v1073 = vpop.f32.mrf.mxu0
        %v1074 = vadd.f32 %v632, %v1073
        %v1075 = vpop.f32.mrf.mxu0
        %v1076 = vadd.f32 %v632, %v1075
        %1077 = vmatmul.bf16.gmra.mxu0 %v683
        %v1078 = vpop.f32.mrf.mxu0
        %v1079 = vadd.f32 %v632, %v1078
        %v1080 = vpop.f32.mrf.mxu0
        %v1081 = vadd.f32 %v632, %v1080
        %1082 = vmatmul.bf16.gmra.mxu0 %v684
        %v1083 = vpop.f32.mrf.mxu0
        %v1084 = vadd.f32 %v632, %v1083
        %v1085 = vpop.f32.mrf.mxu0
        %1086 = vdwg.mxu0
        %v1087 = vmax.f32 %v865, 0.0
        %v1088 = vmax.f32 %v923, 0.0
        %v1089 = vmax.f32 %v981, 0.0
        %v1090 = vmax.f32 %v1039, 0.0
        %v1091 = vmax.f32 %v867, 0.0
        %v1092 = vmax.f32 %v925, 0.0
        %v1093 = vmax.f32 %v983, 0.0
        %v1094 = vmax.f32 %v1041, 0.0
        %v1095 = vmax.f32 %v870, 0.0
        %v1096 = vmax.f32 %v928, 0.0
        %v1097 = vmax.f32 %v986, 0.0
        %v1098 = vmax.f32 %v1044, 0.0
        %v1099 = vmax.f32 %v872, 0.0
        %v1100 = vmax.f32 %v930, 0.0
        %v1101 = vmax.f32 %v988, 0.0
        %v1102 = vmax.f32 %v1046, 0.0
        %v1103 = vmax.f32 %v875, 0.0
        %v1104 = vmax.f32 %v933, 0.0
        %v1105 = vmax.f32 %v991, 0.0
        %v1106 = vmax.f32 %v1049, 0.0
        %v1107 = vmax.f32 %v877, 0.0
        %v1108 = vmax.f32 %v935, 0.0
        %v1109 = vmax.f32 %v993, 0.0
        %v1110 = vmax.f32 %v1051, 0.0
        %v1111 = vmax.f32 %v880, 0.0
        %v1112 = vmax.f32 %v938, 0.0
        %v1113 = vmax.f32 %v996, 0.0
        %v1114 = vmax.f32 %v1054, 0.0
        %v1115 = vmax.f32 %v882, 0.0
        %v1116 = vmax.f32 %v940, 0.0
        %v1117 = vmax.f32 %v998, 0.0
        %v1118 = vmax.f32 %v1056, 0.0
        %v1119 = vmax.f32 %v885, 0.0
        %v1120 = vmax.f32 %v943, 0.0
        %v1121 = vmax.f32 %v1001, 0.0
        %v1122 = vmax.f32 %v1059, 0.0
        %v1123 = vmax.f32 %v887, 0.0
        %v1124 = vmax.f32 %v945, 0.0
        %v1125 = vmax.f32 %v1003, 0.0
        %v1126 = vmax.f32 %v1061, 0.0
        %v1127 = vmax.f32 %v890, 0.0
        %v1128 = vmax.f32 %v948, 0.0
        %v1129 = vmax.f32 %v1006, 0.0
        %v1130 = vmax.f32 %v1064, 0.0
        %v1131 = vmax.f32 %v892, 0.0
        %v1132 = vmax.f32 %v950, 0.0
        %v1133 = vmax.f32 %v1008, 0.0
        %v1134 = vmax.f32 %v1066, 0.0
        %v1135 = vmax.f32 %v895, 0.0
        %v1136 = vmax.f32 %v953, 0.0
        %v1137 = vmax.f32 %v1011, 0.0
        %v1138 = vmax.f32 %v1069, 0.0
        %v1139 = vmax.f32 %v897, 0.0
        %v1140 = vmax.f32 %v955, 0.0
        %v1141 = vmax.f32 %v1013, 0.0
        %v1142 = vmax.f32 %v1071, 0.0
        %v1143 = vmax.f32 %v900, 0.0
        %v1144 = vmax.f32 %v958, 0.0
        %v1145 = vmax.f32 %v1016, 0.0
        %v1146 = vmax.f32 %v1074, 0.0
        %v1147 = vmax.f32 %v902, 0.0
        %v1148 = vmax.f32 %v960, 0.0
        %v1149 = vmax.f32 %v1018, 0.0
        %v1150 = vmax.f32 %v1076, 0.0
        %v1151 = vmax.f32 %v905, 0.0
        %v1152 = vmax.f32 %v963, 0.0
        %v1153 = vmax.f32 %v1021, 0.0
        %v1154 = vmax.f32 %v1079, 0.0
        %v1155 = vmax.f32 %v907, 0.0
        %v1156 = vmax.f32 %v965, 0.0
        %v1157 = vmax.f32 %v1023, 0.0
        %v1158 = vmax.f32 %v1081, 0.0
        %v1159 = vmax.f32 %v910, 0.0
        %v1160 = vmax.f32 %v968, 0.0
        %v1161 = vmax.f32 %v1026, 0.0
        %v1162 = vmax.f32 %v1084, 0.0
        %v1163 = vpack.c.bf16 %v1091, %v1087
        %v1164 = vpack.c.bf16 %v1092, %v1088
        %v1165 = vpack.c.bf16 %v1093, %v1089
        %v1166 = vpack.c.bf16 %v1094, %v1090
        %v1167 = vpack.c.bf16 %v1099, %v1095
        %v1168 = vpack.c.bf16 %v1100, %v1096
        %v1169 = vpack.c.bf16 %v1101, %v1097
        %v1170 = vpack.c.bf16 %v1102, %v1098
        %v1171 = vpack.c.bf16 %v1107, %v1103
        %v1172 = vpack.c.bf16 %v1108, %v1104
        %v1173 = vpack.c.bf16 %v1109, %v1105
        %v1174 = vpack.c.bf16 %v1110, %v1106
        %v1175 = vpack.c.bf16 %v1115, %v1111
        %v1176 = vpack.c.bf16 %v1116, %v1112
        %v1177 = vpack.c.bf16 %v1117, %v1113
        %v1178 = vpack.c.bf16 %v1118, %v1114
        %v1179 = vpack.c.bf16 %v1123, %v1119
        %v1180 = vpack.c.bf16 %v1124, %v1120
        %v1181 = vpack.c.bf16 %v1125, %v1121
        %v1182 = vpack.c.bf16 %v1126, %v1122
        %v1183 = vpack.c.bf16 %v1131, %v1127
        %v1184 = vpack.c.bf16 %v1132, %v1128
        %v1185 = vpack.c.bf16 %v1133, %v1129
        %v1186 = vpack.c.bf16 %v1134, %v1130
        %v1187 = vpack.c.bf16 %v1139, %v1135
        %v1188 = vpack.c.bf16 %v1140, %v1136
        %v1189 = vpack.c.bf16 %v1141, %v1137
        %v1190 = vpack.c.bf16 %v1142, %v1138
        %v1191 = vpack.c.bf16 %v1147, %v1143
        %v1192 = vpack.c.bf16 %v1148, %v1144
        %v1193 = vpack.c.bf16 %v1149, %v1145
        %v1194 = vpack.c.bf16 %v1150, %v1146
        %v1195 = vpack.c.bf16 %v1155, %v1151
        %v1196 = vpack.c.bf16 %v1156, %v1152
        %v1197 = vpack.c.bf16 %v1157, %v1153
        %v1198 = vpack.c.bf16 %v1158, %v1154
        %v1199 = vpack.c.bf16 %v1159, %v1159
        %v1200 = vpack.c.bf16 %v1160, %v1160
        %v1201 = vpack.c.bf16 %v1161, %v1161
        %v1202 = vpack.c.bf16 %v1162, %v1162
        %v1203 = vld [vmem:[%s3] sm:$0xff]
        %v1204 = vld [vmem:[%s3 + $0x8] sm:$0xff]
        %v1205 = vld [vmem:[%s3 + $0x10] sm:$0xff]
        %v1206 = vld [vmem:[%s3 + $0x18] sm:$0xff]
        %v1207 = vld [vmem:[%s3 + $0x20] sm:$0xff]
        %v1208 = vld [vmem:[%s3 + $0x28] sm:$0xff]
        %v1209 = vld [vmem:[%s3 + $0x30] sm:$0xff]
        %v1210 = vld [vmem:[%s3 + $0x38] sm:$0xff]
        %v1211 = vld [vmem:[%s3 + $0x40] sm:$0xff]
        %v1212 = vld [vmem:[%s3 + $0x48] sm:$0xff]
        %v1213 = vld [vmem:[%s3 + $0x50] sm:$0xff]
        %v1214 = vld [vmem:[%s3 + $0x58] sm:$0xff]
        %v1215 = vld [vmem:[%s3 + $0x60] sm:$0xff]
        %v1216 = vld [vmem:[%s3 + $0x68] sm:$0xff]
        %v1217 = vld [vmem:[%s3 + $0x70] sm:$0xff]
        %v1218 = vld [vmem:[%s3 + $0x78] sm:$0xff]
        %v1219 = vld [vmem:[%s3 + $0x80] sm:$0xff]
        %v1220 = vld [vmem:[%s3 + $0x88] sm:$0xff]
        %v1221 = vld [vmem:[%s3 + $0x90] sm:$0xff]
        %v1222 = vld [vmem:[%s3 + $0x98] sm:$0xff]
        %v1223 = vld [vmem:[%s3 + $0xa0] sm:$0xff]
        %v1224 = vld [vmem:[%s3 + $0xa8] sm:$0xff]
        %v1225 = vld [vmem:[%s3 + $0xb0] sm:$0xff]
        %v1226 = vld [vmem:[%s3 + $0xb8] sm:$0xff]
        %v1227 = vld [vmem:[%s3 + $0xc0] sm:$0xff]
        %v1228 = vld [vmem:[%s3 + $0xc8] sm:$0xff]
        %v1229 = vld [vmem:[%s3 + $0xd0] sm:$0xff]
        %v1230 = vld [vmem:[%s3 + $0xd8] sm:$0xff]
        %v1231 = vld [vmem:[%s3 + $0xe0] sm:$0xff]
        %v1232 = vld [vmem:[%s3 + $0xe8] sm:$0xff]
        %v1233 = vld [vmem:[%s3 + $0xf0] sm:$0xff]
        %v1234 = vld [vmem:[%s3 + $0xf8] sm:$0xff]
        %v1235 = vld [vmem:[%s3 + $0x100] sm:$0xff]
        %v1236 = vld [vmem:[%s3 + $0x108] sm:$0xff]
        %v1237 = vld [vmem:[%s3 + $0x110] sm:$0xff]
        %v1238 = vld [vmem:[%s3 + $0x118] sm:$0xff]
        %v1239 = vld [vmem:[%s3 + $0x120] sm:$0xff]
        %v1240 = vld [vmem:[%s3 + $0x128] sm:$0xff]
        %v1241 = vld [vmem:[%s3 + $0x130] sm:$0xff]
        %v1242 = vld [vmem:[%s3 + $0x138] sm:$0xff]
        %v1243 = vld [vmem:[%s3 + $0x140] sm:$0xff]
        %v1244 = vld [vmem:[%s3 + $0x148] sm:$0xff]
        %v1245 = vld [vmem:[%s3 + $0x150] sm:$0xff]
        %v1246 = vld [vmem:[%s3 + $0x158] sm:$0xff]
        %v1247 = vld [vmem:[%s3 + $0x160] sm:$0xff]
        %v1248 = vld [vmem:[%s3 + $0x168] sm:$0xff]
        %v1249 = vld [vmem:[%s3 + $0x170] sm:$0xff]
        %v1250 = vld [vmem:[%s3 + $0x178] sm:$0xff]
        %v1251 = vld [vmem:[%s3 + $0x180] sm:$0xff]
        %v1252 = vld [vmem:[%s3 + $0x188] sm:$0xff]
        %v1253 = vld [vmem:[%s3 + $0x190] sm:$0xff]
        %v1254 = vld [vmem:[%s3 + $0x198] sm:$0xff]
        %v1255 = vld [vmem:[%s3 + $0x1a0] sm:$0xff]
        %v1256 = vld [vmem:[%s3 + $0x1a8] sm:$0xff]
        %v1257 = vld [vmem:[%s3 + $0x1b0] sm:$0xff]
        %v1258 = vld [vmem:[%s3 + $0x1b8] sm:$0xff]
        %v1259 = vld [vmem:[%s3 + $0x1c0] sm:$0xff]
        %v1260 = vld [vmem:[%s3 + $0x1c8] sm:$0xff]
        %v1261 = vld [vmem:[%s3 + $0x1d0] sm:$0xff]
        %v1262 = vld [vmem:[%s3 + $0x1d8] sm:$0xff]
        %v1263 = vld [vmem:[%s3 + $0x1e0] sm:$0xff]
        %v1264 = vld [vmem:[%s3 + $0x1e8] sm:$0xff]
        %v1265 = vld [vmem:[%s3 + $0x1f0] sm:$0xff]
        %v1266 = vld [vmem:[%s3 + $0x1f8] sm:$0xff]
        %v1267 = vld [vmem:[%s3 + $0x200] sm:$0xff]
        %v1268 = vld [vmem:[%s3 + $0x208] sm:$0xff]
        %v1269 = vld [vmem:[%s3 + $0x210] sm:$0xff]
        %v1270 = vld [vmem:[%s3 + $0x218] sm:$0xff]
        %v1271 = vld [vmem:[%s3 + $0x220] sm:$0xff]
        %v1272 = vld [vmem:[%s3 + $0x228] sm:$0xff]
        %v1273 = vld [vmem:[%s3 + $0x230] sm:$0xff]
        %v1274 = vld [vmem:[%s3 + $0x238] sm:$0xff]
        %v1275 = vld [vmem:[%s3 + $0x240] sm:$0xff]
        %v1276 = vld [vmem:[%s3 + $0x248] sm:$0xff]
        %v1277 = vld [vmem:[%s3 + $0x250] sm:$0xff]
        %v1278 = vld [vmem:[%s3 + $0x258] sm:$0xff]
        %v1279 = vld [vmem:[%s3 + $0x260] sm:$0xff]
        %v1280 = vld [vmem:[%s3 + $0x268] sm:$0xff]
        %v1281 = vld [vmem:[%s3 + $0x270] sm:$0xff]
        %v1282 = vld [vmem:[%s3 + $0x278] sm:$0xff]
        %v1283 = vld [vmem:[%s3 + $0x280] sm:$0xff]
        %v1284 = vld [vmem:[%s3 + $0x288] sm:$0xff]
        %v1285 = vld [vmem:[%s3 + $0x290] sm:$0xff]
        %v1286 = vld [vmem:[%s3 + $0x298] sm:$0xff]
        %v1287 = vld [vmem:[%s3 + $0x2a0] sm:$0xff]
        %v1288 = vld [vmem:[%s3 + $0x2a8] sm:$0xff]
        %v1289 = vld [vmem:[%s3 + $0x2b0] sm:$0xff]
        %v1290 = vld [vmem:[%s3 + $0x2b8] sm:$0xff]
        %v1291 = vld [vmem:[%s3 + $0x2c0] sm:$0xff]
        %v1292 = vld [vmem:[%s3 + $0x2c8] sm:$0xff]
        %v1293 = vld [vmem:[%s3 + $0x2d0] sm:$0xff]
        %v1294 = vld [vmem:[%s3 + $0x2d8] sm:$0xff]
        %v1295 = vld [vmem:[%s3 + $0x2e0] sm:$0xff]
        %v1296 = vld [vmem:[%s3 + $0x2e8] sm:$0xff]
        %v1297 = vld [vmem:[%s3 + $0x2f0] sm:$0xff]
        %v1298 = vld [vmem:[%s3 + $0x2f8] sm:$0xff]
        %v1299 = vld [vmem:[%s3 + $0x300] sm:$0xff]
        %v1300 = vld [vmem:[%s3 + $0x308] sm:$0xff]
        %v1301 = vld [vmem:[%s3 + $0x310] sm:$0xff]
        %v1302 = vld [vmem:[%s3 + $0x318] sm:$0xff]
        %v1303 = vld [vmem:[%s3 + $0x320] sm:$0xff]
        %v1304 = vld [vmem:[%s3 + $0x328] sm:$0xff]
        %v1305 = vld [vmem:[%s3 + $0x330] sm:$0xff]
        %v1306 = vld [vmem:[%s3 + $0x338] sm:$0xff]
        %v1307 = vld [vmem:[%s3 + $0x340] sm:$0xff]
        %v1308 = vld [vmem:[%s3 + $0x348] sm:$0xff]
        %v1309 = vld [vmem:[%s3 + $0x350] sm:$0xff]
        %v1310 = vld [vmem:[%s3 + $0x358] sm:$0xff]
        %v1311 = vld [vmem:[%s3 + $0x360] sm:$0xff]
        %v1312 = vld [vmem:[%s3 + $0x368] sm:$0xff]
        %v1313 = vld [vmem:[%s3 + $0x370] sm:$0xff]
        %v1314 = vld [vmem:[%s3 + $0x378] sm:$0xff]
        %v1315 = vld [vmem:[%s3 + $0x380] sm:$0xff]
        %v1316 = vld [vmem:[%s3 + $0x388] sm:$0xff]
        %v1317 = vld [vmem:[%s3 + $0x390] sm:$0xff]
        %v1318 = vld [vmem:[%s3 + $0x398] sm:$0xff]
        %v1319 = vld [vmem:[%s3 + $0x3a0] sm:$0xff]
        %v1320 = vld [vmem:[%s3 + $0x3a8] sm:$0xff]
        %v1321 = vld [vmem:[%s3 + $0x3b0] sm:$0xff]
        %v1322 = vld [vmem:[%s3 + $0x3b8] sm:$0xff]
        %v1323 = vld [vmem:[%s3 + $0x3c0] sm:$0xff]
        %v1324 = vld [vmem:[%s3 + $0x3c8] sm:$0xff]
        %v1325 = vld [vmem:[%s3 + $0x3d0] sm:$0xff]
        %v1326 = vld [vmem:[%s3 + $0x3d8] sm:$0xff]
        %v1327 = vld [vmem:[%s3 + $0x3e0] sm:$0xff]
        %v1328 = vld [vmem:[%s3 + $0x3e8] sm:$0xff]
        %v1329 = vld [vmem:[%s3 + $0x3f0] sm:$0xff]
        %v1330 = vld [vmem:[%s3 + $0x3f8] sm:$0xff]
        %v1331 = vld [vmem:[%s4] sm:$0xf]
        %v1333 = vperm.slane %v1331, 0
        %v1334 = vperm.slane %v1331, 1
        %v1335 = vperm.slane %v1331, 2
        %v1336 = vperm.slane %v1331, 3
        %v1469 = vunpack.c.l.b16 %v1203
        %v1470 = vunpack.c.h.b16 %v1203
        %v1471 = vunpack.c.l.b16 %v1204
        %v1472 = vunpack.c.h.b16 %v1204
        %v1473 = vunpack.c.l.b16 %v1205
        %v1474 = vunpack.c.h.b16 %v1205
        %v1475 = vunpack.c.l.b16 %v1206
        %v1476 = vunpack.c.h.b16 %v1206
        %v1477 = vunpack.c.l.b16 %v1207
        %v1478 = vunpack.c.h.b16 %v1207
        %v1479 = vunpack.c.l.b16 %v1208
        %v1480 = vunpack.c.h.b16 %v1208
        %v1481 = vunpack.c.l.b16 %v1209
        %v1482 = vunpack.c.h.b16 %v1209
        %v1483 = vunpack.c.l.b16 %v1210
        %v1484 = vunpack.c.h.b16 %v1210
        %v1485 = vunpack.c.l.b16 %v1211
        %v1486 = vunpack.c.h.b16 %v1211
        %v1487 = vunpack.c.l.b16 %v1212
        %v1488 = vunpack.c.h.b16 %v1212
        %v1489 = vunpack.c.l.b16 %v1213
        %v1490 = vunpack.c.h.b16 %v1213
        %v1491 = vunpack.c.l.b16 %v1214
        %v1492 = vunpack.c.h.b16 %v1214
        %v1493 = vunpack.c.l.b16 %v1215
        %v1494 = vunpack.c.h.b16 %v1215
        %v1495 = vunpack.c.l.b16 %v1216
        %v1496 = vunpack.c.h.b16 %v1216
        %v1497 = vunpack.c.l.b16 %v1217
        %v1498 = vunpack.c.h.b16 %v1217
        %v1499 = vunpack.c.l.b16 %v1218
        %v1500 = vunpack.c.h.b16 %v1218
        %v1501 = vunpack.c.l.b16 %v1219
        %v1502 = vunpack.c.h.b16 %v1219
        %v1503 = vunpack.c.l.b16 %v1220
        %v1504 = vunpack.c.h.b16 %v1220
        %v1505 = vunpack.c.l.b16 %v1221
        %v1506 = vunpack.c.h.b16 %v1221
        %v1507 = vunpack.c.l.b16 %v1222
        %v1508 = vunpack.c.h.b16 %v1222
        %v1509 = vunpack.c.l.b16 %v1223
        %v1510 = vunpack.c.h.b16 %v1223
        %v1511 = vunpack.c.l.b16 %v1224
        %v1512 = vunpack.c.h.b16 %v1224
        %v1513 = vunpack.c.l.b16 %v1225
        %v1514 = vunpack.c.h.b16 %v1225
        %v1515 = vunpack.c.l.b16 %v1226
        %v1516 = vunpack.c.h.b16 %v1226
        %v1517 = vunpack.c.l.b16 %v1227
        %v1518 = vunpack.c.h.b16 %v1227
        %v1519 = vunpack.c.l.b16 %v1228
        %v1520 = vunpack.c.h.b16 %v1228
        %v1521 = vunpack.c.l.b16 %v1229
        %v1522 = vunpack.c.h.b16 %v1229
        %v1523 = vunpack.c.l.b16 %v1230
        %v1524 = vunpack.c.h.b16 %v1230
        %v1525 = vunpack.c.l.b16 %v1231
        %v1526 = vunpack.c.h.b16 %v1231
        %v1527 = vunpack.c.l.b16 %v1232
        %v1528 = vunpack.c.h.b16 %v1232
        %v1529 = vunpack.c.l.b16 %v1233
        %v1530 = vunpack.c.h.b16 %v1233
        %v1531 = vunpack.c.l.b16 %v1234
        %v1532 = vunpack.c.h.b16 %v1234
        %v1533 = vunpack.c.l.b16 %v1235
        %v1534 = vunpack.c.h.b16 %v1235
        %v1535 = vunpack.c.l.b16 %v1236
        %v1536 = vunpack.c.h.b16 %v1236
        %v1537 = vunpack.c.l.b16 %v1237
        %v1538 = vunpack.c.h.b16 %v1237
        %v1539 = vunpack.c.l.b16 %v1238
        %v1540 = vunpack.c.h.b16 %v1238
        %v1541 = vunpack.c.l.b16 %v1239
        %v1542 = vunpack.c.h.b16 %v1239
        %v1543 = vunpack.c.l.b16 %v1240
        %v1544 = vunpack.c.h.b16 %v1240
        %v1545 = vunpack.c.l.b16 %v1241
        %v1546 = vunpack.c.h.b16 %v1241
        %v1547 = vunpack.c.l.b16 %v1242
        %v1548 = vunpack.c.h.b16 %v1242
        %v1549 = vunpack.c.l.b16 %v1243
        %v1550 = vunpack.c.h.b16 %v1243
        %v1551 = vunpack.c.l.b16 %v1244
        %v1552 = vunpack.c.h.b16 %v1244
        %v1553 = vunpack.c.l.b16 %v1245
        %v1554 = vunpack.c.h.b16 %v1245
        %v1555 = vunpack.c.l.b16 %v1246
        %v1556 = vunpack.c.h.b16 %v1246
        %v1557 = vunpack.c.l.b16 %v1247
        %v1558 = vunpack.c.h.b16 %v1247
        %v1559 = vunpack.c.l.b16 %v1248
        %v1560 = vunpack.c.h.b16 %v1248
        %v1561 = vunpack.c.l.b16 %v1249
        %v1562 = vunpack.c.h.b16 %v1249
        %v1563 = vunpack.c.l.b16 %v1250
        %v1564 = vunpack.c.h.b16 %v1250
        %v1565 = vunpack.c.l.b16 %v1251
        %v1566 = vunpack.c.h.b16 %v1251
        %v1567 = vunpack.c.l.b16 %v1252
        %v1568 = vunpack.c.h.b16 %v1252
        %v1569 = vunpack.c.l.b16 %v1253
        %v1570 = vunpack.c.h.b16 %v1253
        %v1571 = vunpack.c.l.b16 %v1254
        %v1572 = vunpack.c.h.b16 %v1254
        %v1573 = vunpack.c.l.b16 %v1255
        %v1574 = vunpack.c.h.b16 %v1255
        %v1575 = vunpack.c.l.b16 %v1256
        %v1576 = vunpack.c.h.b16 %v1256
        %v1577 = vunpack.c.l.b16 %v1257
        %v1578 = vunpack.c.h.b16 %v1257
        %v1579 = vunpack.c.l.b16 %v1258
        %v1580 = vunpack.c.h.b16 %v1258
        %v1581 = vunpack.c.l.b16 %v1259
        %v1582 = vunpack.c.h.b16 %v1259
        %v1583 = vunpack.c.l.b16 %v1260
        %v1584 = vunpack.c.h.b16 %v1260
        %v1585 = vunpack.c.l.b16 %v1261
        %v1586 = vunpack.c.h.b16 %v1261
        %v1587 = vunpack.c.l.b16 %v1262
        %v1588 = vunpack.c.h.b16 %v1262
        %v1589 = vunpack.c.l.b16 %v1263
        %v1590 = vunpack.c.h.b16 %v1263
        %v1591 = vunpack.c.l.b16 %v1264
        %v1592 = vunpack.c.h.b16 %v1264
        %v1593 = vunpack.c.l.b16 %v1265
        %v1594 = vunpack.c.h.b16 %v1265
        %v1595 = vunpack.c.l.b16 %v1266
        %v1596 = vunpack.c.h.b16 %v1266
        %v1597 = vunpack.c.l.b16 %v1267
        %v1598 = vunpack.c.h.b16 %v1267
        %v1599 = vunpack.c.l.b16 %v1268
        %v1600 = vunpack.c.h.b16 %v1268
        %v1601 = vunpack.c.l.b16 %v1269
        %v1602 = vunpack.c.h.b16 %v1269
        %v1603 = vunpack.c.l.b16 %v1270
        %v1604 = vunpack.c.h.b16 %v1270
        %v1605 = vunpack.c.l.b16 %v1271
        %v1606 = vunpack.c.h.b16 %v1271
        %v1607 = vunpack.c.l.b16 %v1272
        %v1608 = vunpack.c.h.b16 %v1272
        %v1609 = vunpack.c.l.b16 %v1273
        %v1610 = vunpack.c.h.b16 %v1273
        %v1611 = vunpack.c.l.b16 %v1274
        %v1612 = vunpack.c.h.b16 %v1274
        %v1613 = vunpack.c.l.b16 %v1275
        %v1614 = vunpack.c.h.b16 %v1275
        %v1615 = vunpack.c.l.b16 %v1276
        %v1616 = vunpack.c.h.b16 %v1276
        %v1617 = vunpack.c.l.b16 %v1277
        %v1618 = vunpack.c.h.b16 %v1277
        %v1619 = vunpack.c.l.b16 %v1278
        %v1620 = vunpack.c.h.b16 %v1278
        %v1621 = vunpack.c.l.b16 %v1279
        %v1622 = vunpack.c.h.b16 %v1279
        %v1623 = vunpack.c.l.b16 %v1280
        %v1624 = vunpack.c.h.b16 %v1280
        %v1625 = vunpack.c.l.b16 %v1281
        %v1626 = vunpack.c.h.b16 %v1281
        %v1627 = vunpack.c.l.b16 %v1282
        %v1628 = vunpack.c.h.b16 %v1282
        %v1629 = vunpack.c.l.b16 %v1283
        %v1630 = vunpack.c.h.b16 %v1283
        %v1631 = vunpack.c.l.b16 %v1284
        %v1632 = vunpack.c.h.b16 %v1284
        %v1633 = vunpack.c.l.b16 %v1285
        %v1634 = vunpack.c.h.b16 %v1285
        %v1635 = vunpack.c.l.b16 %v1286
        %v1636 = vunpack.c.h.b16 %v1286
        %v1637 = vunpack.c.l.b16 %v1287
        %v1638 = vunpack.c.h.b16 %v1287
        %v1639 = vunpack.c.l.b16 %v1288
        %v1640 = vunpack.c.h.b16 %v1288
        %v1641 = vunpack.c.l.b16 %v1289
        %v1642 = vunpack.c.h.b16 %v1289
        %v1643 = vunpack.c.l.b16 %v1290
        %v1644 = vunpack.c.h.b16 %v1290
        %v1645 = vunpack.c.l.b16 %v1291
        %v1646 = vunpack.c.h.b16 %v1291
        %v1647 = vunpack.c.l.b16 %v1292
        %v1648 = vunpack.c.h.b16 %v1292
        %v1649 = vunpack.c.l.b16 %v1293
        %v1650 = vunpack.c.h.b16 %v1293
        %v1651 = vunpack.c.l.b16 %v1294
        %v1652 = vunpack.c.h.b16 %v1294
        %v1653 = vunpack.c.l.b16 %v1295
        %v1654 = vunpack.c.h.b16 %v1295
        %v1655 = vunpack.c.l.b16 %v1296
        %v1656 = vunpack.c.h.b16 %v1296
        %v1657 = vunpack.c.l.b16 %v1297
        %v1658 = vunpack.c.h.b16 %v1297
        %v1659 = vunpack.c.l.b16 %v1298
        %v1660 = vunpack.c.h.b16 %v1298
        %v1661 = vunpack.c.l.b16 %v1299
        %v1662 = vunpack.c.h.b16 %v1299
        %v1663 = vunpack.c.l.b16 %v1300
        %v1664 = vunpack.c.h.b16 %v1300
        %v1665 = vunpack.c.l.b16 %v1301
        %v1666 = vunpack.c.h.b16 %v1301
        %v1667 = vunpack.c.l.b16 %v1302
        %v1668 = vunpack.c.h.b16 %v1302
        %v1669 = vunpack.c.l.b16 %v1303
        %v1670 = vunpack.c.h.b16 %v1303
        %v1671 = vunpack.c.l.b16 %v1304
        %v1672 = vunpack.c.h.b16 %v1304
        %v1673 = vunpack.c.l.b16 %v1305
        %v1674 = vunpack.c.h.b16 %v1305
        %v1675 = vunpack.c.l.b16 %v1306
        %v1676 = vunpack.c.h.b16 %v1306
        %v1677 = vunpack.c.l.b16 %v1307
        %v1678 = vunpack.c.h.b16 %v1307
        %v1679 = vunpack.c.l.b16 %v1308
        %v1680 = vunpack.c.h.b16 %v1308
        %v1681 = vunpack.c.l.b16 %v1309
        %v1682 = vunpack.c.h.b16 %v1309
        %v1683 = vunpack.c.l.b16 %v1310
        %v1684 = vunpack.c.h.b16 %v1310
        %v1685 = vunpack.c.l.b16 %v1311
        %v1686 = vunpack.c.h.b16 %v1311
        %v1687 = vunpack.c.l.b16 %v1312
        %v1688 = vunpack.c.h.b16 %v1312
        %v1689 = vunpack.c.l.b16 %v1313
        %v1690 = vunpack.c.h.b16 %v1313
        %v1691 = vunpack.c.l.b16 %v1314
        %v1692 = vunpack.c.h.b16 %v1314
        %v1693 = vunpack.c.l.b16 %v1315
        %v1694 = vunpack.c.h.b16 %v1315
        %v1695 = vunpack.c.l.b16 %v1316
        %v1696 = vunpack.c.h.b16 %v1316
        %v1697 = vunpack.c.l.b16 %v1317
        %v1698 = vunpack.c.h.b16 %v1317
        %v1699 = vunpack.c.l.b16 %v1318
        %v1700 = vunpack.c.h.b16 %v1318
        %v1701 = vunpack.c.l.b16 %v1319
        %v1702 = vunpack.c.h.b16 %v1319
        %v1703 = vunpack.c.l.b16 %v1320
        %v1704 = vunpack.c.h.b16 %v1320
        %v1705 = vunpack.c.l.b16 %v1321
        %v1706 = vunpack.c.h.b16 %v1321
        %v1707 = vunpack.c.l.b16 %v1322
        %v1708 = vunpack.c.h.b16 %v1322
        %v1709 = vunpack.c.l.b16 %v1323
        %v1710 = vunpack.c.h.b16 %v1323
        %v1711 = vunpack.c.l.b16 %v1324
        %v1712 = vunpack.c.h.b16 %v1324
        %v1713 = vunpack.c.l.b16 %v1325
        %v1714 = vunpack.c.h.b16 %v1325
        %v1715 = vunpack.c.l.b16 %v1326
        %v1716 = vunpack.c.h.b16 %v1326
        %v1717 = vunpack.c.l.b16 %v1327
        %v1718 = vunpack.c.h.b16 %v1327
        %v1719 = vunpack.c.l.b16 %v1328
        %v1720 = vunpack.c.h.b16 %v1328
        %v1721 = vunpack.c.l.b16 %v1329
        %v1722 = vunpack.c.h.b16 %v1329
        %v1723 = vunpack.c.l.b16 %v1330
        %v1724 = vunpack.c.h.b16 %v1330
        %v1725 = vpack.c.b16 %v1473, %v1469
        %v1726 = vpack.c.b16 %v1474, %v1470
        %v1727 = vpack.c.b16 %v1475, %v1471
        %v1728 = vpack.c.b16 %v1476, %v1472
        %v1729 = vpack.c.b16 %v1481, %v1477
        %v1730 = vpack.c.b16 %v1482, %v1478
        %v1731 = vpack.c.b16 %v1483, %v1479
        %v1732 = vpack.c.b16 %v1484, %v1480
        %v1733 = vpack.c.b16 %v1489, %v1485
        %v1734 = vpack.c.b16 %v1490, %v1486
        %v1735 = vpack.c.b16 %v1491, %v1487
        %v1736 = vpack.c.b16 %v1492, %v1488
        %v1737 = vpack.c.b16 %v1497, %v1493
        %v1738 = vpack.c.b16 %v1498, %v1494
        %v1739 = vpack.c.b16 %v1499, %v1495
        %v1740 = vpack.c.b16 %v1500, %v1496
        %v1741 = vpack.c.b16 %v1505, %v1501
        %v1742 = vpack.c.b16 %v1506, %v1502
        %v1743 = vpack.c.b16 %v1507, %v1503
        %v1744 = vpack.c.b16 %v1508, %v1504
        %v1745 = vpack.c.b16 %v1513, %v1509
        %v1746 = vpack.c.b16 %v1514, %v1510
        %v1747 = vpack.c.b16 %v1515, %v1511
        %v1748 = vpack.c.b16 %v1516, %v1512
        %v1749 = vpack.c.b16 %v1521, %v1517
        %v1750 = vpack.c.b16 %v1522, %v1518
        %v1751 = vpack.c.b16 %v1523, %v1519
        %v1752 = vpack.c.b16 %v1524, %v1520
        %v1753 = vpack.c.b16 %v1529, %v1525
        %v1754 = vpack.c.b16 %v1530, %v1526
        %v1755 = vpack.c.b16 %v1531, %v1527
        %v1756 = vpack.c.b16 %v1532, %v1528
        %v1757 = vpack.c.b16 %v1537, %v1533
        %v1758 = vpack.c.b16 %v1538, %v1534
        %v1759 = vpack.c.b16 %v1539, %v1535
        %v1760 = vpack.c.b16 %v1540, %v1536
        %v1761 = vpack.c.b16 %v1545, %v1541
        %v1762 = vpack.c.b16 %v1546, %v1542
        %v1763 = vpack.c.b16 %v1547, %v1543
        %v1764 = vpack.c.b16 %v1548, %v1544
        %v1765 = vpack.c.b16 %v1553, %v1549
        %v1766 = vpack.c.b16 %v1554, %v1550
        %v1767 = vpack.c.b16 %v1555, %v1551
        %v1768 = vpack.c.b16 %v1556, %v1552
        %v1769 = vpack.c.b16 %v1561, %v1557
        %v1770 = vpack.c.b16 %v1562, %v1558
        %v1771 = vpack.c.b16 %v1563, %v1559
        %v1772 = vpack.c.b16 %v1564, %v1560
        %v1773 = vpack.c.b16 %v1569, %v1565
        %v1774 = vpack.c.b16 %v1570, %v1566
        %v1775 = vpack.c.b16 %v1571, %v1567
        %v1776 = vpack.c.b16 %v1572, %v1568
        %v1777 = vpack.c.b16 %v1577, %v1573
        %v1778 = vpack.c.b16 %v1578, %v1574
        %v1779 = vpack.c.b16 %v1579, %v1575
        %v1780 = vpack.c.b16 %v1580, %v1576
        %v1781 = vpack.c.b16 %v1585, %v1581
        %v1782 = vpack.c.b16 %v1586, %v1582
        %v1783 = vpack.c.b16 %v1587, %v1583
        %v1784 = vpack.c.b16 %v1588, %v1584
        %v1785 = vpack.c.b16 %v1593, %v1589
        %v1786 = vpack.c.b16 %v1594, %v1590
        %v1787 = vpack.c.b16 %v1595, %v1591
        %v1788 = vpack.c.b16 %v1596, %v1592
        %v1789 = vpack.c.b16 %v1601, %v1597
        %v1790 = vpack.c.b16 %v1602, %v1598
        %v1791 = vpack.c.b16 %v1603, %v1599
        %v1792 = vpack.c.b16 %v1604, %v1600
        %v1793 = vpack.c.b16 %v1609, %v1605
        %v1794 = vpack.c.b16 %v1610, %v1606
        %v1795 = vpack.c.b16 %v1611, %v1607
        %v1796 = vpack.c.b16 %v1612, %v1608
        %v1797 = vpack.c.b16 %v1617, %v1613
        %v1798 = vpack.c.b16 %v1618, %v1614
        %v1799 = vpack.c.b16 %v1619, %v1615
        %v1800 = vpack.c.b16 %v1620, %v1616
        %v1801 = vpack.c.b16 %v1625, %v1621
        %v1802 = vpack.c.b16 %v1626, %v1622
        %v1803 = vpack.c.b16 %v1627, %v1623
        %v1804 = vpack.c.b16 %v1628, %v1624
        %v1805 = vpack.c.b16 %v1633, %v1629
        %v1806 = vpack.c.b16 %v1634, %v1630
        %v1807 = vpack.c.b16 %v1635, %v1631
        %v1808 = vpack.c.b16 %v1636, %v1632
        %v1809 = vpack.c.b16 %v1641, %v1637
        %v1810 = vpack.c.b16 %v1642, %v1638
        %v1811 = vpack.c.b16 %v1643, %v1639
        %v1812 = vpack.c.b16 %v1644, %v1640
        %v1813 = vpack.c.b16 %v1649, %v1645
        %v1814 = vpack.c.b16 %v1650, %v1646
        %v1815 = vpack.c.b16 %v1651, %v1647
        %v1816 = vpack.c.b16 %v1652, %v1648
        %v1817 = vpack.c.b16 %v1657, %v1653
        %v1818 = vpack.c.b16 %v1658, %v1654
        %v1819 = vpack.c.b16 %v1659, %v1655
        %v1820 = vpack.c.b16 %v1660, %v1656
        %v1821 = vpack.c.b16 %v1665, %v1661
        %v1822 = vpack.c.b16 %v1666, %v1662
        %v1823 = vpack.c.b16 %v1667, %v1663
        %v1824 = vpack.c.b16 %v1668, %v1664
        %v1825 = vpack.c.b16 %v1673, %v1669
        %v1826 = vpack.c.b16 %v1674, %v1670
        %v1827 = vpack.c.b16 %v1675, %v1671
        %v1828 = vpack.c.b16 %v1676, %v1672
        %v1829 = vpack.c.b16 %v1681, %v1677
        %v1830 = vpack.c.b16 %v1682, %v1678
        %v1831 = vpack.c.b16 %v1683, %v1679
        %v1832 = vpack.c.b16 %v1684, %v1680
        %v1833 = vpack.c.b16 %v1689, %v1685
        %v1834 = vpack.c.b16 %v1690, %v1686
        %v1835 = vpack.c.b16 %v1691, %v1687
        %v1836 = vpack.c.b16 %v1692, %v1688
        %v1837 = vpack.c.b16 %v1697, %v1693
        %v1838 = vpack.c.b16 %v1698, %v1694
        %v1839 = vpack.c.b16 %v1699, %v1695
        %v1840 = vpack.c.b16 %v1700, %v1696
        %v1841 = vpack.c.b16 %v1705, %v1701
        %v1842 = vpack.c.b16 %v1706, %v1702
        %v1843 = vpack.c.b16 %v1707, %v1703
        %v1844 = vpack.c.b16 %v1708, %v1704
        %v1845 = vpack.c.b16 %v1713, %v1709
        %v1846 = vpack.c.b16 %v1714, %v1710
        %v1847 = vpack.c.b16 %v1715, %v1711
        %v1848 = vpack.c.b16 %v1716, %v1712
        %v1849 = vpack.c.b16 %v1721, %v1717
        %v1850 = vpack.c.b16 %v1722, %v1718
        %v1851 = vpack.c.b16 %v1723, %v1719
        %v1852 = vpack.c.b16 %v1724, %v1720
        %1981 = vmatpush.bf16.msra.mxu0 %v1753
        %1982 = vmatpush.bf16.msra.mxu0 %v1749
        %1983 = vmatpush.bf16.msra.mxu0 %v1745
        %1984 = vmatpush.bf16.msra.mxu0 %v1741
        %1985 = vmatpush.bf16.msra.mxu0 %v1737
        %1986 = vmatpush.bf16.msra.mxu0 %v1733
        %1987 = vmatpush.bf16.msra.mxu0 %v1729
        %1988 = vmatpush.bf16.msra.mxu0 %v1725
        %1989 = vmatmul.bf16.gmra.mxu0 %v1163
        %v1990 = vpop.f32.mrf.mxu0
        %v1991 = vadd.f32 %v1333, %v1990
        %v1992 = vpop.f32.mrf.mxu0
        %v1993 = vadd.f32 %v1333, %v1992
        %1994 = vmatmul.bf16.gmra.mxu0 %v1167
        %v1995 = vpop.f32.mrf.mxu0
        %v1996 = vadd.f32 %v1333, %v1995
        %v1997 = vpop.f32.mrf.mxu0
        %v1998 = vadd.f32 %v1333, %v1997
        %1999 = vmatmul.bf16.gmra.mxu0 %v1171
        %v2000 = vpop.f32.mrf.mxu0
        %v2001 = vadd.f32 %v1333, %v2000
        %v2002 = vpop.f32.mrf.mxu0
        %v2003 = vadd.f32 %v1333, %v2002
        %2004 = vmatmul.bf16.gmra.mxu0 %v1175
        %v2005 = vpop.f32.mrf.mxu0
        %v2006 = vadd.f32 %v1333, %v2005
        %v2007 = vpop.f32.mrf.mxu0
        %v2008 = vadd.f32 %v1333, %v2007
        %2009 = vmatmul.bf16.gmra.mxu0 %v1179
        %v2010 = vpop.f32.mrf.mxu0
        %v2011 = vadd.f32 %v1333, %v2010
        %v2012 = vpop.f32.mrf.mxu0
        %v2013 = vadd.f32 %v1333, %v2012
        %2014 = vmatmul.bf16.gmra.mxu0 %v1183
        %v2015 = vpop.f32.mrf.mxu0
        %v2016 = vadd.f32 %v1333, %v2015
        %v2017 = vpop.f32.mrf.mxu0
        %v2018 = vadd.f32 %v1333, %v2017
        %2019 = vmatmul.bf16.gmra.mxu0 %v1187
        %v2020 = vpop.f32.mrf.mxu0
        %v2021 = vadd.f32 %v1333, %v2020
        %v2022 = vpop.f32.mrf.mxu0
        %v2023 = vadd.f32 %v1333, %v2022
        %2024 = vmatmul.bf16.gmra.mxu0 %v1191
        %v2025 = vpop.f32.mrf.mxu0
        %v2026 = vadd.f32 %v1333, %v2025
        %v2027 = vpop.f32.mrf.mxu0
        %v2028 = vadd.f32 %v1333, %v2027
        %2029 = vmatmul.bf16.gmra.mxu0 %v1195
        %v2030 = vpop.f32.mrf.mxu0
        %v2031 = vadd.f32 %v1333, %v2030
        %v2032 = vpop.f32.mrf.mxu0
        %v2033 = vadd.f32 %v1333, %v2032
        %2034 = vmatmul.bf16.gmra.mxu0 %v1199
        %v2035 = vpop.f32.mrf.mxu0
        %v2036 = vadd.f32 %v1333, %v2035
        %v2037 = vpop.f32.mrf.mxu0
        %2038 = vdwg.mxu0
        %2039 = vmatpush.bf16.msra.mxu0 %v1785
        %2040 = vmatpush.bf16.msra.mxu0 %v1781
        %2041 = vmatpush.bf16.msra.mxu0 %v1777
        %2042 = vmatpush.bf16.msra.mxu0 %v1773
        %2043 = vmatpush.bf16.msra.mxu0 %v1769
        %2044 = vmatpush.bf16.msra.mxu0 %v1765
        %2045 = vmatpush.bf16.msra.mxu0 %v1761
        %2046 = vmatpush.bf16.msra.mxu0 %v1757
        %2047 = vmatmul.bf16.gmra.mxu0 %v1164
        %v2048 = vpop.f32.mrf.mxu0
        %v2049 = vadd.f32 %v1991, %v2048
        %v2050 = vpop.f32.mrf.mxu0
        %v2051 = vadd.f32 %v1993, %v2050
        %2052 = vmatmul.bf16.gmra.mxu0 %v1168
        %v2053 = vpop.f32.mrf.mxu0
        %v2054 = vadd.f32 %v1996, %v2053
        %v2055 = vpop.f32.mrf.mxu0
        %v2056 = vadd.f32 %v1998, %v2055
        %2057 = vmatmul.bf16.gmra.mxu0 %v1172
        %v2058 = vpop.f32.mrf.mxu0
        %v2059 = vadd.f32 %v2001, %v2058
        %v2060 = vpop.f32.mrf.mxu0
        %v2061 = vadd.f32 %v2003, %v2060
        %2062 = vmatmul.bf16.gmra.mxu0 %v1176
        %v2063 = vpop.f32.mrf.mxu0
        %v2064 = vadd.f32 %v2006, %v2063
        %v2065 = vpop.f32.mrf.mxu0
        %v2066 = vadd.f32 %v2008, %v2065
        %2067 = vmatmul.bf16.gmra.mxu0 %v1180
        %v2068 = vpop.f32.mrf.mxu0
        %v2069 = vadd.f32 %v2011, %v2068
        %v2070 = vpop.f32.mrf.mxu0
        %v2071 = vadd.f32 %v2013, %v2070
        %2072 = vmatmul.bf16.gmra.mxu0 %v1184
        %v2073 = vpop.f32.mrf.mxu0
        %v2074 = vadd.f32 %v2016, %v2073
        %v2075 = vpop.f32.mrf.mxu0
        %v2076 = vadd.f32 %v2018, %v2075
        %2077 = vmatmul.bf16.gmra.mxu0 %v1188
        %v2078 = vpop.f32.mrf.mxu0
        %v2079 = vadd.f32 %v2021, %v2078
        %v2080 = vpop.f32.mrf.mxu0
        %v2081 = vadd.f32 %v2023, %v2080
        %2082 = vmatmul.bf16.gmra.mxu0 %v1192
        %v2083 = vpop.f32.mrf.mxu0
        %v2084 = vadd.f32 %v2026, %v2083
        %v2085 = vpop.f32.mrf.mxu0
        %v2086 = vadd.f32 %v2028, %v2085
        %2087 = vmatmul.bf16.gmra.mxu0 %v1196
        %v2088 = vpop.f32.mrf.mxu0
        %v2089 = vadd.f32 %v2031, %v2088
        %v2090 = vpop.f32.mrf.mxu0
        %v2091 = vadd.f32 %v2033, %v2090
        %2092 = vmatmul.bf16.gmra.mxu0 %v1200
        %v2093 = vpop.f32.mrf.mxu0
        %v2094 = vadd.f32 %v2036, %v2093
        %v2095 = vpop.f32.mrf.mxu0
        %2096 = vdwg.mxu0
        %2097 = vmatpush.bf16.msra.mxu0 %v1817
        %2098 = vmatpush.bf16.msra.mxu0 %v1813
        %2099 = vmatpush.bf16.msra.mxu0 %v1809
        %2100 = vmatpush.bf16.msra.mxu0 %v1805
        %2101 = vmatpush.bf16.msra.mxu0 %v1801
        %2102 = vmatpush.bf16.msra.mxu0 %v1797
        %2103 = vmatpush.bf16.msra.mxu0 %v1793
        %2104 = vmatpush.bf16.msra.mxu0 %v1789
        %2105 = vmatmul.bf16.gmra.mxu0 %v1165
        %v2106 = vpop.f32.mrf.mxu0
        %v2107 = vadd.f32 %v2049, %v2106
        %v2108 = vpop.f32.mrf.mxu0
        %v2109 = vadd.f32 %v2051, %v2108
        %2110 = vmatmul.bf16.gmra.mxu0 %v1169
        %v2111 = vpop.f32.mrf.mxu0
        %v2112 = vadd.f32 %v2054, %v2111
        %v2113 = vpop.f32.mrf.mxu0
        %v2114 = vadd.f32 %v2056, %v2113
        %2115 = vmatmul.bf16.gmra.mxu0 %v1173
        %v2116 = vpop.f32.mrf.mxu0
        %v2117 = vadd.f32 %v2059, %v2116
        %v2118 = vpop.f32.mrf.mxu0
        %v2119 = vadd.f32 %v2061, %v2118
        %2120 = vmatmul.bf16.gmra.mxu0 %v1177
        %v2121 = vpop.f32.mrf.mxu0
        %v2122 = vadd.f32 %v2064, %v2121
        %v2123 = vpop.f32.mrf.mxu0
        %v2124 = vadd.f32 %v2066, %v2123
        %2125 = vmatmul.bf16.gmra.mxu0 %v1181
        %v2126 = vpop.f32.mrf.mxu0
        %v2127 = vadd.f32 %v2069, %v2126
        %v2128 = vpop.f32.mrf.mxu0
        %v2129 = vadd.f32 %v2071, %v2128
        %2130 = vmatmul.bf16.gmra.mxu0 %v1185
        %v2131 = vpop.f32.mrf.mxu0
        %v2132 = vadd.f32 %v2074, %v2131
        %v2133 = vpop.f32.mrf.mxu0
        %v2134 = vadd.f32 %v2076, %v2133
        %2135 = vmatmul.bf16.gmra.mxu0 %v1189
        %v2136 = vpop.f32.mrf.mxu0
        %v2137 = vadd.f32 %v2079, %v2136
        %v2138 = vpop.f32.mrf.mxu0
        %v2139 = vadd.f32 %v2081, %v2138
        %2140 = vmatmul.bf16.gmra.mxu0 %v1193
        %v2141 = vpop.f32.mrf.mxu0
        %v2142 = vadd.f32 %v2084, %v2141
        %v2143 = vpop.f32.mrf.mxu0
        %v2144 = vadd.f32 %v2086, %v2143
        %2145 = vmatmul.bf16.gmra.mxu0 %v1197
        %v2146 = vpop.f32.mrf.mxu0
        %v2147 = vadd.f32 %v2089, %v2146
        %v2148 = vpop.f32.mrf.mxu0
        %v2149 = vadd.f32 %v2091, %v2148
        %2150 = vmatmul.bf16.gmra.mxu0 %v1201
        %v2151 = vpop.f32.mrf.mxu0
        %v2152 = vadd.f32 %v2094, %v2151
        %v2153 = vpop.f32.mrf.mxu0
        %2154 = vdwg.mxu0
        %2155 = vmatpush.bf16.msra.mxu0 %v1849
        %2156 = vmatpush.bf16.msra.mxu0 %v1845
        %2157 = vmatpush.bf16.msra.mxu0 %v1841
        %2158 = vmatpush.bf16.msra.mxu0 %v1837
        %2159 = vmatpush.bf16.msra.mxu0 %v1833
        %2160 = vmatpush.bf16.msra.mxu0 %v1829
        %2161 = vmatpush.bf16.msra.mxu0 %v1825
        %2162 = vmatpush.bf16.msra.mxu0 %v1821
        %2163 = vmatmul.bf16.gmra.mxu0 %v1166
        %v2164 = vpop.f32.mrf.mxu0
        %v2165 = vadd.f32 %v2107, %v2164
        %v2166 = vpop.f32.mrf.mxu0
        %v2167 = vadd.f32 %v2109, %v2166
        %2168 = vmatmul.bf16.gmra.mxu0 %v1170
        %v2169 = vpop.f32.mrf.mxu0
        %v2170 = vadd.f32 %v2112, %v2169
        %v2171 = vpop.f32.mrf.mxu0
        %v2172 = vadd.f32 %v2114, %v2171
        %2173 = vmatmul.bf16.gmra.mxu0 %v1174
        %v2174 = vpop.f32.mrf.mxu0
        %v2175 = vadd.f32 %v2117, %v2174
        %v2176 = vpop.f32.mrf.mxu0
        %v2177 = vadd.f32 %v2119, %v2176
        %2178 = vmatmul.bf16.gmra.mxu0 %v1178
        %v2179 = vpop.f32.mrf.mxu0
        %v2180 = vadd.f32 %v2122, %v2179
        %v2181 = vpop.f32.mrf.mxu0
        %v2182 = vadd.f32 %v2124, %v2181
        %2183 = vmatmul.bf16.gmra.mxu0 %v1182
        %v2184 = vpop.f32.mrf.mxu0
        %v2185 = vadd.f32 %v2127, %v2184
        %v2186 = vpop.f32.mrf.mxu0
        %v2187 = vadd.f32 %v2129, %v2186
        %2188 = vmatmul.bf16.gmra.mxu0 %v1186
        %v2189 = vpop.f32.mrf.mxu0
        %v2190 = vadd.f32 %v2132, %v2189
        %v2191 = vpop.f32.mrf.mxu0
        %v2192 = vadd.f32 %v2134, %v2191
        %2193 = vmatmul.bf16.gmra.mxu0 %v1190
        %v2194 = vpop.f32.mrf.mxu0
        %v2195 = vadd.f32 %v2137, %v2194
        %v2196 = vpop.f32.mrf.mxu0
        %v2197 = vadd.f32 %v2139, %v2196
        %2198 = vmatmul.bf16.gmra.mxu0 %v1194
        %v2199 = vpop.f32.mrf.mxu0
        %v2200 = vadd.f32 %v2142, %v2199
        %v2201 = vpop.f32.mrf.mxu0
        %v2202 = vadd.f32 %v2144, %v2201
        %2203 = vmatmul.bf16.gmra.mxu0 %v1198
        %v2204 = vpop.f32.mrf.mxu0
        %v2205 = vadd.f32 %v2147, %v2204
        %v2206 = vpop.f32.mrf.mxu0
        %v2207 = vadd.f32 %v2149, %v2206
        %2208 = vmatmul.bf16.gmra.mxu0 %v1202
        %v2209 = vpop.f32.mrf.mxu0
        %v2210 = vadd.f32 %v2152, %v2209
        %v2211 = vpop.f32.mrf.mxu0
        %2212 = vdwg.mxu0
        %2213 = vmatpush.bf16.msra.mxu0 %v1754
        %2214 = vmatpush.bf16.msra.mxu0 %v1750
        %2215 = vmatpush.bf16.msra.mxu0 %v1746
        %2216 = vmatpush.bf16.msra.mxu0 %v1742
        %2217 = vmatpush.bf16.msra.mxu0 %v1738
        %2218 = vmatpush.bf16.msra.mxu0 %v1734
        %2219 = vmatpush.bf16.msra.mxu0 %v1730
        %2220 = vmatpush.bf16.msra.mxu0 %v1726
        %2221 = vmatmul.bf16.gmra.mxu0 %v1163
        %v2222 = vpop.f32.mrf.mxu0
        %v2223 = vadd.f32 %v1334, %v2222
        %v2224 = vpop.f32.mrf.mxu0
        %v2225 = vadd.f32 %v1334, %v2224
        %2226 = vmatmul.bf16.gmra.mxu0 %v1167
        %v2227 = vpop.f32.mrf.mxu0
        %v2228 = vadd.f32 %v1334, %v2227
        %v2229 = vpop.f32.mrf.mxu0
        %v2230 = vadd.f32 %v1334, %v2229
        %2231 = vmatmul.bf16.gmra.mxu0 %v1171
        %v2232 = vpop.f32.mrf.mxu0
        %v2233 = vadd.f32 %v1334, %v2232
        %v2234 = vpop.f32.mrf.mxu0
        %v2235 = vadd.f32 %v1334, %v2234
        %2236 = vmatmul.bf16.gmra.mxu0 %v1175
        %v2237 = vpop.f32.mrf.mxu0
        %v2238 = vadd.f32 %v1334, %v2237
        %v2239 = vpop.f32.mrf.mxu0
        %v2240 = vadd.f32 %v1334, %v2239
        %2241 = vmatmul.bf16.gmra.mxu0 %v1179
        %v2242 = vpop.f32.mrf.mxu0
        %v2243 = vadd.f32 %v1334, %v2242
        %v2244 = vpop.f32.mrf.mxu0
        %v2245 = vadd.f32 %v1334, %v2244
        %2246 = vmatmul.bf16.gmra.mxu0 %v1183
        %v2247 = vpop.f32.mrf.mxu0
        %v2248 = vadd.f32 %v1334, %v2247
        %v2249 = vpop.f32.mrf.mxu0
        %v2250 = vadd.f32 %v1334, %v2249
        %2251 = vmatmul.bf16.gmra.mxu0 %v1187
        %v2252 = vpop.f32.mrf.mxu0
        %v2253 = vadd.f32 %v1334, %v2252
        %v2254 = vpop.f32.mrf.mxu0
        %v2255 = vadd.f32 %v1334, %v2254
        %2256 = vmatmul.bf16.gmra.mxu0 %v1191
        %v2257 = vpop.f32.mrf.mxu0
        %v2258 = vadd.f32 %v1334, %v2257
        %v2259 = vpop.f32.mrf.mxu0
        %v2260 = vadd.f32 %v1334, %v2259
        %2261 = vmatmul.bf16.gmra.mxu0 %v1195
        %v2262 = vpop.f32.mrf.mxu0
        %v2263 = vadd.f32 %v1334, %v2262
        %v2264 = vpop.f32.mrf.mxu0
        %v2265 = vadd.f32 %v1334, %v2264
        %2266 = vmatmul.bf16.gmra.mxu0 %v1199
        %v2267 = vpop.f32.mrf.mxu0
        %v2268 = vadd.f32 %v1334, %v2267
        %v2269 = vpop.f32.mrf.mxu0
        %2270 = vdwg.mxu0
        %2271 = vmatpush.bf16.msra.mxu0 %v1786
        %2272 = vmatpush.bf16.msra.mxu0 %v1782
        %2273 = vmatpush.bf16.msra.mxu0 %v1778
        %2274 = vmatpush.bf16.msra.mxu0 %v1774
        %2275 = vmatpush.bf16.msra.mxu0 %v1770
        %2276 = vmatpush.bf16.msra.mxu0 %v1766
        %2277 = vmatpush.bf16.msra.mxu0 %v1762
        %2278 = vmatpush.bf16.msra.mxu0 %v1758
        %2279 = vmatmul.bf16.gmra.mxu0 %v1164
        %v2280 = vpop.f32.mrf.mxu0
        %v2281 = vadd.f32 %v2223, %v2280
        %v2282 = vpop.f32.mrf.mxu0
        %v2283 = vadd.f32 %v2225, %v2282
        %2284 = vmatmul.bf16.gmra.mxu0 %v1168
        %v2285 = vpop.f32.mrf.mxu0
        %v2286 = vadd.f32 %v2228, %v2285
        %v2287 = vpop.f32.mrf.mxu0
        %v2288 = vadd.f32 %v2230, %v2287
        %2289 = vmatmul.bf16.gmra.mxu0 %v1172
        %v2290 = vpop.f32.mrf.mxu0
        %v2291 = vadd.f32 %v2233, %v2290
        %v2292 = vpop.f32.mrf.mxu0
        %v2293 = vadd.f32 %v2235, %v2292
        %2294 = vmatmul.bf16.gmra.mxu0 %v1176
        %v2295 = vpop.f32.mrf.mxu0
        %v2296 = vadd.f32 %v2238, %v2295
        %v2297 = vpop.f32.mrf.mxu0
        %v2298 = vadd.f32 %v2240, %v2297
        %2299 = vmatmul.bf16.gmra.mxu0 %v1180
        %v2300 = vpop.f32.mrf.mxu0
        %v2301 = vadd.f32 %v2243, %v2300
        %v2302 = vpop.f32.mrf.mxu0
        %v2303 = vadd.f32 %v2245, %v2302
        %2304 = vmatmul.bf16.gmra.mxu0 %v1184
        %v2305 = vpop.f32.mrf.mxu0
        %v2306 = vadd.f32 %v2248, %v2305
        %v2307 = vpop.f32.mrf.mxu0
        %v2308 = vadd.f32 %v2250, %v2307
        %2309 = vmatmul.bf16.gmra.mxu0 %v1188
        %v2310 = vpop.f32.mrf.mxu0
        %v2311 = vadd.f32 %v2253, %v2310
        %v2312 = vpop.f32.mrf.mxu0
        %v2313 = vadd.f32 %v2255, %v2312
        %2314 = vmatmul.bf16.gmra.mxu0 %v1192
        %v2315 = vpop.f32.mrf.mxu0
        %v2316 = vadd.f32 %v2258, %v2315
        %v2317 = vpop.f32.mrf.mxu0
        %v2318 = vadd.f32 %v2260, %v2317
        %2319 = vmatmul.bf16.gmra.mxu0 %v1196
        %v2320 = vpop.f32.mrf.mxu0
        %v2321 = vadd.f32 %v2263, %v2320
        %v2322 = vpop.f32.mrf.mxu0
        %v2323 = vadd.f32 %v2265, %v2322
        %2324 = vmatmul.bf16.gmra.mxu0 %v1200
        %v2325 = vpop.f32.mrf.mxu0
        %v2326 = vadd.f32 %v2268, %v2325
        %v2327 = vpop.f32.mrf.mxu0
        %2328 = vdwg.mxu0
        %2329 = vmatpush.bf16.msra.mxu0 %v1818
        %2330 = vmatpush.bf16.msra.mxu0 %v1814
        %2331 = vmatpush.bf16.msra.mxu0 %v1810
        %2332 = vmatpush.bf16.msra.mxu0 %v1806
        %2333 = vmatpush.bf16.msra.mxu0 %v1802
        %2334 = vmatpush.bf16.msra.mxu0 %v1798
        %2335 = vmatpush.bf16.msra.mxu0 %v1794
        %2336 = vmatpush.bf16.msra.mxu0 %v1790
        %2337 = vmatmul.bf16.gmra.mxu0 %v1165
        %v2338 = vpop.f32.mrf.mxu0
        %v2339 = vadd.f32 %v2281, %v2338
        %v2340 = vpop.f32.mrf.mxu0
        %v2341 = vadd.f32 %v2283, %v2340
        %2342 = vmatmul.bf16.gmra.mxu0 %v1169
        %v2343 = vpop.f32.mrf.mxu0
        %v2344 = vadd.f32 %v2286, %v2343
        %v2345 = vpop.f32.mrf.mxu0
        %v2346 = vadd.f32 %v2288, %v2345
        %2347 = vmatmul.bf16.gmra.mxu0 %v1173
        %v2348 = vpop.f32.mrf.mxu0
        %v2349 = vadd.f32 %v2291, %v2348
        %v2350 = vpop.f32.mrf.mxu0
        %v2351 = vadd.f32 %v2293, %v2350
        %2352 = vmatmul.bf16.gmra.mxu0 %v1177
        %v2353 = vpop.f32.mrf.mxu0
        %v2354 = vadd.f32 %v2296, %v2353
        %v2355 = vpop.f32.mrf.mxu0
        %v2356 = vadd.f32 %v2298, %v2355
        %2357 = vmatmul.bf16.gmra.mxu0 %v1181
        %v2358 = vpop.f32.mrf.mxu0
        %v2359 = vadd.f32 %v2301, %v2358
        %v2360 = vpop.f32.mrf.mxu0
        %v2361 = vadd.f32 %v2303, %v2360
        %2362 = vmatmul.bf16.gmra.mxu0 %v1185
        %v2363 = vpop.f32.mrf.mxu0
        %v2364 = vadd.f32 %v2306, %v2363
        %v2365 = vpop.f32.mrf.mxu0
        %v2366 = vadd.f32 %v2308, %v2365
        %2367 = vmatmul.bf16.gmra.mxu0 %v1189
        %v2368 = vpop.f32.mrf.mxu0
        %v2369 = vadd.f32 %v2311, %v2368
        %v2370 = vpop.f32.mrf.mxu0
        %v2371 = vadd.f32 %v2313, %v2370
        %2372 = vmatmul.bf16.gmra.mxu0 %v1193
        %v2373 = vpop.f32.mrf.mxu0
        %v2374 = vadd.f32 %v2316, %v2373
        %v2375 = vpop.f32.mrf.mxu0
        %v2376 = vadd.f32 %v2318, %v2375
        %2377 = vmatmul.bf16.gmra.mxu0 %v1197
        %v2378 = vpop.f32.mrf.mxu0
        %v2379 = vadd.f32 %v2321, %v2378
        %v2380 = vpop.f32.mrf.mxu0
        %v2381 = vadd.f32 %v2323, %v2380
        %2382 = vmatmul.bf16.gmra.mxu0 %v1201
        %v2383 = vpop.f32.mrf.mxu0
        %v2384 = vadd.f32 %v2326, %v2383
        %v2385 = vpop.f32.mrf.mxu0
        %2386 = vdwg.mxu0
        %2387 = vmatpush.bf16.msra.mxu0 %v1850
        %2388 = vmatpush.bf16.msra.mxu0 %v1846
        %2389 = vmatpush.bf16.msra.mxu0 %v1842
        %2390 = vmatpush.bf16.msra.mxu0 %v1838
        %2391 = vmatpush.bf16.msra.mxu0 %v1834
        %2392 = vmatpush.bf16.msra.mxu0 %v1830
        %2393 = vmatpush.bf16.msra.mxu0 %v1826
        %2394 = vmatpush.bf16.msra.mxu0 %v1822
        %2395 = vmatmul.bf16.gmra.mxu0 %v1166
        %v2396 = vpop.f32.mrf.mxu0
        %v2397 = vadd.f32 %v2339, %v2396
        %v2398 = vpop.f32.mrf.mxu0
        %v2399 = vadd.f32 %v2341, %v2398
        %2400 = vmatmul.bf16.gmra.mxu0 %v1170
        %v2401 = vpop.f32.mrf.mxu0
        %v2402 = vadd.f32 %v2344, %v2401
        %v2403 = vpop.f32.mrf.mxu0
        %v2404 = vadd.f32 %v2346, %v2403
        %2405 = vmatmul.bf16.gmra.mxu0 %v1174
        %v2406 = vpop.f32.mrf.mxu0
        %v2407 = vadd.f32 %v2349, %v2406
        %v2408 = vpop.f32.mrf.mxu0
        %v2409 = vadd.f32 %v2351, %v2408
        %2410 = vmatmul.bf16.gmra.mxu0 %v1178
        %v2411 = vpop.f32.mrf.mxu0
        %v2412 = vadd.f32 %v2354, %v2411
        %v2413 = vpop.f32.mrf.mxu0
        %v2414 = vadd.f32 %v2356, %v2413
        %2415 = vmatmul.bf16.gmra.mxu0 %v1182
        %v2416 = vpop.f32.mrf.mxu0
        %v2417 = vadd.f32 %v2359, %v2416
        %v2418 = vpop.f32.mrf.mxu0
        %v2419 = vadd.f32 %v2361, %v2418
        %2420 = vmatmul.bf16.gmra.mxu0 %v1186
        %v2421 = vpop.f32.mrf.mxu0
        %v2422 = vadd.f32 %v2364, %v2421
        %v2423 = vpop.f32.mrf.mxu0
        %v2424 = vadd.f32 %v2366, %v2423
        %2425 = vmatmul.bf16.gmra.mxu0 %v1190
        %v2426 = vpop.f32.mrf.mxu0
        %v2427 = vadd.f32 %v2369, %v2426
        %v2428 = vpop.f32.mrf.mxu0
        %v2429 = vadd.f32 %v2371, %v2428
        %2430 = vmatmul.bf16.gmra.mxu0 %v1194
        %v2431 = vpop.f32.mrf.mxu0
        %v2432 = vadd.f32 %v2374, %v2431
        %v2433 = vpop.f32.mrf.mxu0
        %v2434 = vadd.f32 %v2376, %v2433
        %2435 = vmatmul.bf16.gmra.mxu0 %v1198
        %v2436 = vpop.f32.mrf.mxu0
        %v2437 = vadd.f32 %v2379, %v2436
        %v2438 = vpop.f32.mrf.mxu0
        %v2439 = vadd.f32 %v2381, %v2438
        %2440 = vmatmul.bf16.gmra.mxu0 %v1202
        %v2441 = vpop.f32.mrf.mxu0
        %v2442 = vadd.f32 %v2384, %v2441
        %v2443 = vpop.f32.mrf.mxu0
        %2444 = vdwg.mxu0
        %2445 = vmatpush.bf16.msra.mxu0 %v1755
        %2446 = vmatpush.bf16.msra.mxu0 %v1751
        %2447 = vmatpush.bf16.msra.mxu0 %v1747
        %2448 = vmatpush.bf16.msra.mxu0 %v1743
        %2449 = vmatpush.bf16.msra.mxu0 %v1739
        %2450 = vmatpush.bf16.msra.mxu0 %v1735
        %2451 = vmatpush.bf16.msra.mxu0 %v1731
        %2452 = vmatpush.bf16.msra.mxu0 %v1727
        %2453 = vmatmul.bf16.gmra.mxu0 %v1163
        %v2454 = vpop.f32.mrf.mxu0
        %v2455 = vadd.f32 %v1335, %v2454
        %v2456 = vpop.f32.mrf.mxu0
        %v2457 = vadd.f32 %v1335, %v2456
        %2458 = vmatmul.bf16.gmra.mxu0 %v1167
        %v2459 = vpop.f32.mrf.mxu0
        %v2460 = vadd.f32 %v1335, %v2459
        %v2461 = vpop.f32.mrf.mxu0
        %v2462 = vadd.f32 %v1335, %v2461
        %2463 = vmatmul.bf16.gmra.mxu0 %v1171
        %v2464 = vpop.f32.mrf.mxu0
        %v2465 = vadd.f32 %v1335, %v2464
        %v2466 = vpop.f32.mrf.mxu0
        %v2467 = vadd.f32 %v1335, %v2466
        %2468 = vmatmul.bf16.gmra.mxu0 %v1175
        %v2469 = vpop.f32.mrf.mxu0
        %v2470 = vadd.f32 %v1335, %v2469
        %v2471 = vpop.f32.mrf.mxu0
        %v2472 = vadd.f32 %v1335, %v2471
        %2473 = vmatmul.bf16.gmra.mxu0 %v1179
        %v2474 = vpop.f32.mrf.mxu0
        %v2475 = vadd.f32 %v1335, %v2474
        %v2476 = vpop.f32.mrf.mxu0
        %v2477 = vadd.f32 %v1335, %v2476
        %2478 = vmatmul.bf16.gmra.mxu0 %v1183
        %v2479 = vpop.f32.mrf.mxu0
        %v2480 = vadd.f32 %v1335, %v2479
        %v2481 = vpop.f32.mrf.mxu0
        %v2482 = vadd.f32 %v1335, %v2481
        %2483 = vmatmul.bf16.gmra.mxu0 %v1187
        %v2484 = vpop.f32.mrf.mxu0
        %v2485 = vadd.f32 %v1335, %v2484
        %v2486 = vpop.f32.mrf.mxu0
        %v2487 = vadd.f32 %v1335, %v2486
        %2488 = vmatmul.bf16.gmra.mxu0 %v1191
        %v2489 = vpop.f32.mrf.mxu0
        %v2490 = vadd.f32 %v1335, %v2489
        %v2491 = vpop.f32.mrf.mxu0
        %v2492 = vadd.f32 %v1335, %v2491
        %2493 = vmatmul.bf16.gmra.mxu0 %v1195
        %v2494 = vpop.f32.mrf.mxu0
        %v2495 = vadd.f32 %v1335, %v2494
        %v2496 = vpop.f32.mrf.mxu0
        %v2497 = vadd.f32 %v1335, %v2496
        %2498 = vmatmul.bf16.gmra.mxu0 %v1199
        %v2499 = vpop.f32.mrf.mxu0
        %v2500 = vadd.f32 %v1335, %v2499
        %v2501 = vpop.f32.mrf.mxu0
        %2502 = vdwg.mxu0
        %2503 = vmatpush.bf16.msra.mxu0 %v1787
        %2504 = vmatpush.bf16.msra.mxu0 %v1783
        %2505 = vmatpush.bf16.msra.mxu0 %v1779
        %2506 = vmatpush.bf16.msra.mxu0 %v1775
        %2507 = vmatpush.bf16.msra.mxu0 %v1771
        %2508 = vmatpush.bf16.msra.mxu0 %v1767
        %2509 = vmatpush.bf16.msra.mxu0 %v1763
        %2510 = vmatpush.bf16.msra.mxu0 %v1759
        %2511 = vmatmul.bf16.gmra.mxu0 %v1164
        %v2512 = vpop.f32.mrf.mxu0
        %v2513 = vadd.f32 %v2455, %v2512
        %v2514 = vpop.f32.mrf.mxu0
        %v2515 = vadd.f32 %v2457, %v2514
        %2516 = vmatmul.bf16.gmra.mxu0 %v1168
        %v2517 = vpop.f32.mrf.mxu0
        %v2518 = vadd.f32 %v2460, %v2517
        %v2519 = vpop.f32.mrf.mxu0
        %v2520 = vadd.f32 %v2462, %v2519
        %2521 = vmatmul.bf16.gmra.mxu0 %v1172
        %v2522 = vpop.f32.mrf.mxu0
        %v2523 = vadd.f32 %v2465, %v2522
        %v2524 = vpop.f32.mrf.mxu0
        %v2525 = vadd.f32 %v2467, %v2524
        %2526 = vmatmul.bf16.gmra.mxu0 %v1176
        %v2527 = vpop.f32.mrf.mxu0
        %v2528 = vadd.f32 %v2470, %v2527
        %v2529 = vpop.f32.mrf.mxu0
        %v2530 = vadd.f32 %v2472, %v2529
        %2531 = vmatmul.bf16.gmra.mxu0 %v1180
        %v2532 = vpop.f32.mrf.mxu0
        %v2533 = vadd.f32 %v2475, %v2532
        %v2534 = vpop.f32.mrf.mxu0
        %v2535 = vadd.f32 %v2477, %v2534
        %2536 = vmatmul.bf16.gmra.mxu0 %v1184
        %v2537 = vpop.f32.mrf.mxu0
        %v2538 = vadd.f32 %v2480, %v2537
        %v2539 = vpop.f32.mrf.mxu0
        %v2540 = vadd.f32 %v2482, %v2539
        %2541 = vmatmul.bf16.gmra.mxu0 %v1188
        %v2542 = vpop.f32.mrf.mxu0
        %v2543 = vadd.f32 %v2485, %v2542
        %v2544 = vpop.f32.mrf.mxu0
        %v2545 = vadd.f32 %v2487, %v2544
        %2546 = vmatmul.bf16.gmra.mxu0 %v1192
        %v2547 = vpop.f32.mrf.mxu0
        %v2548 = vadd.f32 %v2490, %v2547
        %v2549 = vpop.f32.mrf.mxu0
        %v2550 = vadd.f32 %v2492, %v2549
        %2551 = vmatmul.bf16.gmra.mxu0 %v1196
        %v2552 = vpop.f32.mrf.mxu0
        %v2553 = vadd.f32 %v2495, %v2552
        %v2554 = vpop.f32.mrf.mxu0
        %v2555 = vadd.f32 %v2497, %v2554
        %2556 = vmatmul.bf16.gmra.mxu0 %v1200
        %v2557 = vpop.f32.mrf.mxu0
        %v2558 = vadd.f32 %v2500, %v2557
        %v2559 = vpop.f32.mrf.mxu0
        %2560 = vdwg.mxu0
        %2561 = vmatpush.bf16.msra.mxu0 %v1819
        %2562 = vmatpush.bf16.msra.mxu0 %v1815
        %2563 = vmatpush.bf16.msra.mxu0 %v1811
        %2564 = vmatpush.bf16.msra.mxu0 %v1807
        %2565 = vmatpush.bf16.msra.mxu0 %v1803
        %2566 = vmatpush.bf16.msra.mxu0 %v1799
        %2567 = vmatpush.bf16.msra.mxu0 %v1795
        %2568 = vmatpush.bf16.msra.mxu0 %v1791
        %2569 = vmatmul.bf16.gmra.mxu0 %v1165
        %v2570 = vpop.f32.mrf.mxu0
        %v2571 = vadd.f32 %v2513, %v2570
        %v2572 = vpop.f32.mrf.mxu0
        %v2573 = vadd.f32 %v2515, %v2572
        %2574 = vmatmul.bf16.gmra.mxu0 %v1169
        %v2575 = vpop.f32.mrf.mxu0
        %v2576 = vadd.f32 %v2518, %v2575
        %v2577 = vpop.f32.mrf.mxu0
        %v2578 = vadd.f32 %v2520, %v2577
        %2579 = vmatmul.bf16.gmra.mxu0 %v1173
        %v2580 = vpop.f32.mrf.mxu0
        %v2581 = vadd.f32 %v2523, %v2580
        %v2582 = vpop.f32.mrf.mxu0
        %v2583 = vadd.f32 %v2525, %v2582
        %2584 = vmatmul.bf16.gmra.mxu0 %v1177
        %v2585 = vpop.f32.mrf.mxu0
        %v2586 = vadd.f32 %v2528, %v2585
        %v2587 = vpop.f32.mrf.mxu0
        %v2588 = vadd.f32 %v2530, %v2587
        %2589 = vmatmul.bf16.gmra.mxu0 %v1181
        %v2590 = vpop.f32.mrf.mxu0
        %v2591 = vadd.f32 %v2533, %v2590
        %v2592 = vpop.f32.mrf.mxu0
        %v2593 = vadd.f32 %v2535, %v2592
        %2594 = vmatmul.bf16.gmra.mxu0 %v1185
        %v2595 = vpop.f32.mrf.mxu0
        %v2596 = vadd.f32 %v2538, %v2595
        %v2597 = vpop.f32.mrf.mxu0
        %v2598 = vadd.f32 %v2540, %v2597
        %2599 = vmatmul.bf16.gmra.mxu0 %v1189
        %v2600 = vpop.f32.mrf.mxu0
        %v2601 = vadd.f32 %v2543, %v2600
        %v2602 = vpop.f32.mrf.mxu0
        %v2603 = vadd.f32 %v2545, %v2602
        %2604 = vmatmul.bf16.gmra.mxu0 %v1193
        %v2605 = vpop.f32.mrf.mxu0
        %v2606 = vadd.f32 %v2548, %v2605
        %v2607 = vpop.f32.mrf.mxu0
        %v2608 = vadd.f32 %v2550, %v2607
        %2609 = vmatmul.bf16.gmra.mxu0 %v1197
        %v2610 = vpop.f32.mrf.mxu0
        %v2611 = vadd.f32 %v2553, %v2610
        %v2612 = vpop.f32.mrf.mxu0
        %v2613 = vadd.f32 %v2555, %v2612
        %2614 = vmatmul.bf16.gmra.mxu0 %v1201
        %v2615 = vpop.f32.mrf.mxu0
        %v2616 = vadd.f32 %v2558, %v2615
        %v2617 = vpop.f32.mrf.mxu0
        %2618 = vdwg.mxu0
        %2619 = vmatpush.bf16.msra.mxu0 %v1851
        %2620 = vmatpush.bf16.msra.mxu0 %v1847
        %2621 = vmatpush.bf16.msra.mxu0 %v1843
        %2622 = vmatpush.bf16.msra.mxu0 %v1839
        %2623 = vmatpush.bf16.msra.mxu0 %v1835
        %2624 = vmatpush.bf16.msra.mxu0 %v1831
        %2625 = vmatpush.bf16.msra.mxu0 %v1827
        %2626 = vmatpush.bf16.msra.mxu0 %v1823
        %2627 = vmatmul.bf16.gmra.mxu0 %v1166
        %v2628 = vpop.f32.mrf.mxu0
        %v2629 = vadd.f32 %v2571, %v2628
        %v2630 = vpop.f32.mrf.mxu0
        %v2631 = vadd.f32 %v2573, %v2630
        %2632 = vmatmul.bf16.gmra.mxu0 %v1170
        %v2633 = vpop.f32.mrf.mxu0
        %v2634 = vadd.f32 %v2576, %v2633
        %v2635 = vpop.f32.mrf.mxu0
        %v2636 = vadd.f32 %v2578, %v2635
        %2637 = vmatmul.bf16.gmra.mxu0 %v1174
        %v2638 = vpop.f32.mrf.mxu0
        %v2639 = vadd.f32 %v2581, %v2638
        %v2640 = vpop.f32.mrf.mxu0
        %v2641 = vadd.f32 %v2583, %v2640
        %2642 = vmatmul.bf16.gmra.mxu0 %v1178
        %v2643 = vpop.f32.mrf.mxu0
        %v2644 = vadd.f32 %v2586, %v2643
        %v2645 = vpop.f32.mrf.mxu0
        %v2646 = vadd.f32 %v2588, %v2645
        %2647 = vmatmul.bf16.gmra.mxu0 %v1182
        %v2648 = vpop.f32.mrf.mxu0
        %v2649 = vadd.f32 %v2591, %v2648
        %v2650 = vpop.f32.mrf.mxu0
        %v2651 = vadd.f32 %v2593, %v2650
        %2652 = vmatmul.bf16.gmra.mxu0 %v1186
        %v2653 = vpop.f32.mrf.mxu0
        %v2654 = vadd.f32 %v2596, %v2653
        %v2655 = vpop.f32.mrf.mxu0
        %v2656 = vadd.f32 %v2598, %v2655
        %2657 = vmatmul.bf16.gmra.mxu0 %v1190
        %v2658 = vpop.f32.mrf.mxu0
        %v2659 = vadd.f32 %v2601, %v2658
        %v2660 = vpop.f32.mrf.mxu0
        %v2661 = vadd.f32 %v2603, %v2660
        %2662 = vmatmul.bf16.gmra.mxu0 %v1194
        %v2663 = vpop.f32.mrf.mxu0
        %v2664 = vadd.f32 %v2606, %v2663
        %v2665 = vpop.f32.mrf.mxu0
        %v2666 = vadd.f32 %v2608, %v2665
        %2667 = vmatmul.bf16.gmra.mxu0 %v1198
        %v2668 = vpop.f32.mrf.mxu0
        %v2669 = vadd.f32 %v2611, %v2668
        %v2670 = vpop.f32.mrf.mxu0
        %v2671 = vadd.f32 %v2613, %v2670
        %2672 = vmatmul.bf16.gmra.mxu0 %v1202
        %v2673 = vpop.f32.mrf.mxu0
        %v2674 = vadd.f32 %v2616, %v2673
        %v2675 = vpop.f32.mrf.mxu0
        %2676 = vdwg.mxu0
        %2677 = vmatpush.bf16.msra.mxu0 %v1756
        %2678 = vmatpush.bf16.msra.mxu0 %v1752
        %2679 = vmatpush.bf16.msra.mxu0 %v1748
        %2680 = vmatpush.bf16.msra.mxu0 %v1744
        %2681 = vmatpush.bf16.msra.mxu0 %v1740
        %2682 = vmatpush.bf16.msra.mxu0 %v1736
        %2683 = vmatpush.bf16.msra.mxu0 %v1732
        %2684 = vmatpush.bf16.msra.mxu0 %v1728
        %2685 = vmatmul.bf16.gmra.mxu0 %v1163
        %v2686 = vpop.f32.mrf.mxu0
        %v2687 = vadd.f32 %v1336, %v2686
        %v2688 = vpop.f32.mrf.mxu0
        %v2689 = vadd.f32 %v1336, %v2688
        %2690 = vmatmul.bf16.gmra.mxu0 %v1167
        %v2691 = vpop.f32.mrf.mxu0
        %v2692 = vadd.f32 %v1336, %v2691
        %v2693 = vpop.f32.mrf.mxu0
        %v2694 = vadd.f32 %v1336, %v2693
        %2695 = vmatmul.bf16.gmra.mxu0 %v1171
        %v2696 = vpop.f32.mrf.mxu0
        %v2697 = vadd.f32 %v1336, %v2696
        %v2698 = vpop.f32.mrf.mxu0
        %v2699 = vadd.f32 %v1336, %v2698
        %2700 = vmatmul.bf16.gmra.mxu0 %v1175
        %v2701 = vpop.f32.mrf.mxu0
        %v2702 = vadd.f32 %v1336, %v2701
        %v2703 = vpop.f32.mrf.mxu0
        %v2704 = vadd.f32 %v1336, %v2703
        %2705 = vmatmul.bf16.gmra.mxu0 %v1179
        %v2706 = vpop.f32.mrf.mxu0
        %v2707 = vadd.f32 %v1336, %v2706
        %v2708 = vpop.f32.mrf.mxu0
        %v2709 = vadd.f32 %v1336, %v2708
        %2710 = vmatmul.bf16.gmra.mxu0 %v1183
        %v2711 = vpop.f32.mrf.mxu0
        %v2712 = vadd.f32 %v1336, %v2711
        %v2713 = vpop.f32.mrf.mxu0
        %v2714 = vadd.f32 %v1336, %v2713
        %2715 = vmatmul.bf16.gmra.mxu0 %v1187
        %v2716 = vpop.f32.mrf.mxu0
        %v2717 = vadd.f32 %v1336, %v2716
        %v2718 = vpop.f32.mrf.mxu0
        %v2719 = vadd.f32 %v1336, %v2718
        %2720 = vmatmul.bf16.gmra.mxu0 %v1191
        %v2721 = vpop.f32.mrf.mxu0
        %v2722 = vadd.f32 %v1336, %v2721
        %v2723 = vpop.f32.mrf.mxu0
        %v2724 = vadd.f32 %v1336, %v2723
        %2725 = vmatmul.bf16.gmra.mxu0 %v1195
        %v2726 = vpop.f32.mrf.mxu0
        %v2727 = vadd.f32 %v1336, %v2726
        %v2728 = vpop.f32.mrf.mxu0
        %v2729 = vadd.f32 %v1336, %v2728
        %2730 = vmatmul.bf16.gmra.mxu0 %v1199
        %v2731 = vpop.f32.mrf.mxu0
        %v2732 = vadd.f32 %v1336, %v2731
        %v2733 = vpop.f32.mrf.mxu0
        %2734 = vdwg.mxu0
        %2735 = vmatpush.bf16.msra.mxu0 %v1788
        %2736 = vmatpush.bf16.msra.mxu0 %v1784
        %2737 = vmatpush.bf16.msra.mxu0 %v1780
        %2738 = vmatpush.bf16.msra.mxu0 %v1776
        %2739 = vmatpush.bf16.msra.mxu0 %v1772
        %2740 = vmatpush.bf16.msra.mxu0 %v1768
        %2741 = vmatpush.bf16.msra.mxu0 %v1764
        %2742 = vmatpush.bf16.msra.mxu0 %v1760
        %2743 = vmatmul.bf16.gmra.mxu0 %v1164
        %v2744 = vpop.f32.mrf.mxu0
        %v2745 = vadd.f32 %v2687, %v2744
        %v2746 = vpop.f32.mrf.mxu0
        %v2747 = vadd.f32 %v2689, %v2746
        %2748 = vmatmul.bf16.gmra.mxu0 %v1168
        %v2749 = vpop.f32.mrf.mxu0
        %v2750 = vadd.f32 %v2692, %v2749
        %v2751 = vpop.f32.mrf.mxu0
        %v2752 = vadd.f32 %v2694, %v2751
        %2753 = vmatmul.bf16.gmra.mxu0 %v1172
        %v2754 = vpop.f32.mrf.mxu0
        %v2755 = vadd.f32 %v2697, %v2754
        %v2756 = vpop.f32.mrf.mxu0
        %v2757 = vadd.f32 %v2699, %v2756
        %2758 = vmatmul.bf16.gmra.mxu0 %v1176
        %v2759 = vpop.f32.mrf.mxu0
        %v2760 = vadd.f32 %v2702, %v2759
        %v2761 = vpop.f32.mrf.mxu0
        %v2762 = vadd.f32 %v2704, %v2761
        %2763 = vmatmul.bf16.gmra.mxu0 %v1180
        %v2764 = vpop.f32.mrf.mxu0
        %v2765 = vadd.f32 %v2707, %v2764
        %v2766 = vpop.f32.mrf.mxu0
        %v2767 = vadd.f32 %v2709, %v2766
        %2768 = vmatmul.bf16.gmra.mxu0 %v1184
        %v2769 = vpop.f32.mrf.mxu0
        %v2770 = vadd.f32 %v2712, %v2769
        %v2771 = vpop.f32.mrf.mxu0
        %v2772 = vadd.f32 %v2714, %v2771
        %2773 = vmatmul.bf16.gmra.mxu0 %v1188
        %v2774 = vpop.f32.mrf.mxu0
        %v2775 = vadd.f32 %v2717, %v2774
        %v2776 = vpop.f32.mrf.mxu0
        %v2777 = vadd.f32 %v2719, %v2776
        %2778 = vmatmul.bf16.gmra.mxu0 %v1192
        %v2779 = vpop.f32.mrf.mxu0
        %v2780 = vadd.f32 %v2722, %v2779
        %v2781 = vpop.f32.mrf.mxu0
        %v2782 = vadd.f32 %v2724, %v2781
        %2783 = vmatmul.bf16.gmra.mxu0 %v1196
        %v2784 = vpop.f32.mrf.mxu0
        %v2785 = vadd.f32 %v2727, %v2784
        %v2786 = vpop.f32.mrf.mxu0
        %v2787 = vadd.f32 %v2729, %v2786
        %2788 = vmatmul.bf16.gmra.mxu0 %v1200
        %v2789 = vpop.f32.mrf.mxu0
        %v2790 = vadd.f32 %v2732, %v2789
        %v2791 = vpop.f32.mrf.mxu0
        %2792 = vdwg.mxu0
        %2793 = vmatpush.bf16.msra.mxu0 %v1820
        %2794 = vmatpush.bf16.msra.mxu0 %v1816
        %2795 = vmatpush.bf16.msra.mxu0 %v1812
        %2796 = vmatpush.bf16.msra.mxu0 %v1808
        %2797 = vmatpush.bf16.msra.mxu0 %v1804
        %2798 = vmatpush.bf16.msra.mxu0 %v1800
        %2799 = vmatpush.bf16.msra.mxu0 %v1796
        %2800 = vmatpush.bf16.msra.mxu0 %v1792
        %2801 = vmatmul.bf16.gmra.mxu0 %v1165
        %v2802 = vpop.f32.mrf.mxu0
        %v2803 = vadd.f32 %v2745, %v2802
        %v2804 = vpop.f32.mrf.mxu0
        %v2805 = vadd.f32 %v2747, %v2804
        %2806 = vmatmul.bf16.gmra.mxu0 %v1169
        %v2807 = vpop.f32.mrf.mxu0
        %v2808 = vadd.f32 %v2750, %v2807
        %v2809 = vpop.f32.mrf.mxu0
        %v2810 = vadd.f32 %v2752, %v2809
        %2811 = vmatmul.bf16.gmra.mxu0 %v1173
        %v2812 = vpop.f32.mrf.mxu0
        %v2813 = vadd.f32 %v2755, %v2812
        %v2814 = vpop.f32.mrf.mxu0
        %v2815 = vadd.f32 %v2757, %v2814
        %2816 = vmatmul.bf16.gmra.mxu0 %v1177
        %v2817 = vpop.f32.mrf.mxu0
        %v2818 = vadd.f32 %v2760, %v2817
        %v2819 = vpop.f32.mrf.mxu0
        %v2820 = vadd.f32 %v2762, %v2819
        %2821 = vmatmul.bf16.gmra.mxu0 %v1181
        %v2822 = vpop.f32.mrf.mxu0
        %v2823 = vadd.f32 %v2765, %v2822
        %v2824 = vpop.f32.mrf.mxu0
        %v2825 = vadd.f32 %v2767, %v2824
        %2826 = vmatmul.bf16.gmra.mxu0 %v1185
        %v2827 = vpop.f32.mrf.mxu0
        %v2828 = vadd.f32 %v2770, %v2827
        %v2829 = vpop.f32.mrf.mxu0
        %v2830 = vadd.f32 %v2772, %v2829
        %2831 = vmatmul.bf16.gmra.mxu0 %v1189
        %v2832 = vpop.f32.mrf.mxu0
        %v2833 = vadd.f32 %v2775, %v2832
        %v2834 = vpop.f32.mrf.mxu0
        %v2835 = vadd.f32 %v2777, %v2834
        %2836 = vmatmul.bf16.gmra.mxu0 %v1193
        %v2837 = vpop.f32.mrf.mxu0
        %v2838 = vadd.f32 %v2780, %v2837
        %v2839 = vpop.f32.mrf.mxu0
        %v2840 = vadd.f32 %v2782, %v2839
        %2841 = vmatmul.bf16.gmra.mxu0 %v1197
        %v2842 = vpop.f32.mrf.mxu0
        %v2843 = vadd.f32 %v2785, %v2842
        %v2844 = vpop.f32.mrf.mxu0
        %v2845 = vadd.f32 %v2787, %v2844
        %2846 = vmatmul.bf16.gmra.mxu0 %v1201
        %v2847 = vpop.f32.mrf.mxu0
        %v2848 = vadd.f32 %v2790, %v2847
        %v2849 = vpop.f32.mrf.mxu0
        %2850 = vdwg.mxu0
        %2851 = vmatpush.bf16.msra.mxu0 %v1852
        %2852 = vmatpush.bf16.msra.mxu0 %v1848
        %2853 = vmatpush.bf16.msra.mxu0 %v1844
        %2854 = vmatpush.bf16.msra.mxu0 %v1840
        %2855 = vmatpush.bf16.msra.mxu0 %v1836
        %2856 = vmatpush.bf16.msra.mxu0 %v1832
        %2857 = vmatpush.bf16.msra.mxu0 %v1828
        %2858 = vmatpush.bf16.msra.mxu0 %v1824
        %2859 = vmatmul.bf16.gmra.mxu0 %v1166
        %v2860 = vpop.f32.mrf.mxu0
        %v2861 = vadd.f32 %v2803, %v2860
        %v2862 = vpop.f32.mrf.mxu0
        %v2863 = vadd.f32 %v2805, %v2862
        %2864 = vmatmul.bf16.gmra.mxu0 %v1170
        %v2865 = vpop.f32.mrf.mxu0
        %v2866 = vadd.f32 %v2808, %v2865
        %v2867 = vpop.f32.mrf.mxu0
        %v2868 = vadd.f32 %v2810, %v2867
        %2869 = vmatmul.bf16.gmra.mxu0 %v1174
        %v2870 = vpop.f32.mrf.mxu0
        %v2871 = vadd.f32 %v2813, %v2870
        %v2872 = vpop.f32.mrf.mxu0
        %v2873 = vadd.f32 %v2815, %v2872
        %2874 = vmatmul.bf16.gmra.mxu0 %v1178
        %v2875 = vpop.f32.mrf.mxu0
        %v2876 = vadd.f32 %v2818, %v2875
        %v2877 = vpop.f32.mrf.mxu0
        %v2878 = vadd.f32 %v2820, %v2877
        %2879 = vmatmul.bf16.gmra.mxu0 %v1182
        %v2880 = vpop.f32.mrf.mxu0
        %v2881 = vadd.f32 %v2823, %v2880
        %v2882 = vpop.f32.mrf.mxu0
        %v2883 = vadd.f32 %v2825, %v2882
        %2884 = vmatmul.bf16.gmra.mxu0 %v1186
        %v2885 = vpop.f32.mrf.mxu0
        %v2886 = vadd.f32 %v2828, %v2885
        %v2887 = vpop.f32.mrf.mxu0
        %v2888 = vadd.f32 %v2830, %v2887
        %2889 = vmatmul.bf16.gmra.mxu0 %v1190
        %v2890 = vpop.f32.mrf.mxu0
        %v2891 = vadd.f32 %v2833, %v2890
        %v2892 = vpop.f32.mrf.mxu0
        %v2893 = vadd.f32 %v2835, %v2892
        %2894 = vmatmul.bf16.gmra.mxu0 %v1194
        %v2895 = vpop.f32.mrf.mxu0
        %v2896 = vadd.f32 %v2838, %v2895
        %v2897 = vpop.f32.mrf.mxu0
        %v2898 = vadd.f32 %v2840, %v2897
        %2899 = vmatmul.bf16.gmra.mxu0 %v1198
        %v2900 = vpop.f32.mrf.mxu0
        %v2901 = vadd.f32 %v2843, %v2900
        %v2902 = vpop.f32.mrf.mxu0
        %v2903 = vadd.f32 %v2845, %v2902
        %2904 = vmatmul.bf16.gmra.mxu0 %v1202
        %v2905 = vpop.f32.mrf.mxu0
        %v2906 = vadd.f32 %v2848, %v2905
        %v2907 = vpop.f32.mrf.mxu0
        %2908 = vdwg.mxu0
        %v2909 = vmax.f32 %v2165, 0.0
        %v2910 = vmax.f32 %v2397, 0.0
        %v2911 = vmax.f32 %v2629, 0.0
        %v2912 = vmax.f32 %v2861, 0.0
        %v2913 = vmax.f32 %v2167, 0.0
        %v2914 = vmax.f32 %v2399, 0.0
        %v2915 = vmax.f32 %v2631, 0.0
        %v2916 = vmax.f32 %v2863, 0.0
        %v2917 = vmax.f32 %v2170, 0.0
        %v2918 = vmax.f32 %v2402, 0.0
        %v2919 = vmax.f32 %v2634, 0.0
        %v2920 = vmax.f32 %v2866, 0.0
        %v2921 = vmax.f32 %v2172, 0.0
        %v2922 = vmax.f32 %v2404, 0.0
        %v2923 = vmax.f32 %v2636, 0.0
        %v2924 = vmax.f32 %v2868, 0.0
        %v2925 = vmax.f32 %v2175, 0.0
        %v2926 = vmax.f32 %v2407, 0.0
        %v2927 = vmax.f32 %v2639, 0.0
        %v2928 = vmax.f32 %v2871, 0.0
        %v2929 = vmax.f32 %v2177, 0.0
        %v2930 = vmax.f32 %v2409, 0.0
        %v2931 = vmax.f32 %v2641, 0.0
        %v2932 = vmax.f32 %v2873, 0.0
        %v2933 = vmax.f32 %v2180, 0.0
        %v2934 = vmax.f32 %v2412, 0.0
        %v2935 = vmax.f32 %v2644, 0.0
        %v2936 = vmax.f32 %v2876, 0.0
        %v2937 = vmax.f32 %v2182, 0.0
        %v2938 = vmax.f32 %v2414, 0.0
        %v2939 = vmax.f32 %v2646, 0.0
        %v2940 = vmax.f32 %v2878, 0.0
        %v2941 = vmax.f32 %v2185, 0.0
        %v2942 = vmax.f32 %v2417, 0.0
        %v2943 = vmax.f32 %v2649, 0.0
        %v2944 = vmax.f32 %v2881, 0.0
        %v2945 = vmax.f32 %v2187, 0.0
        %v2946 = vmax.f32 %v2419, 0.0
        %v2947 = vmax.f32 %v2651, 0.0
        %v2948 = vmax.f32 %v2883, 0.0
        %v2949 = vmax.f32 %v2190, 0.0
        %v2950 = vmax.f32 %v2422, 0.0
        %v2951 = vmax.f32 %v2654, 0.0
        %v2952 = vmax.f32 %v2886, 0.0
        %v2953 = vmax.f32 %v2192, 0.0
        %v2954 = vmax.f32 %v2424, 0.0
        %v2955 = vmax.f32 %v2656, 0.0
        %v2956 = vmax.f32 %v2888, 0.0
        %v2957 = vmax.f32 %v2195, 0.0
        %v2958 = vmax.f32 %v2427, 0.0
        %v2959 = vmax.f32 %v2659, 0.0
        %v2960 = vmax.f32 %v2891, 0.0
        %v2961 = vmax.f32 %v2197, 0.0
        %v2962 = vmax.f32 %v2429, 0.0
        %v2963 = vmax.f32 %v2661, 0.0
        %v2964 = vmax.f32 %v2893, 0.0
        %v2965 = vmax.f32 %v2200, 0.0
        %v2966 = vmax.f32 %v2432, 0.0
        %v2967 = vmax.f32 %v2664, 0.0
        %v2968 = vmax.f32 %v2896, 0.0
        %v2969 = vmax.f32 %v2202, 0.0
        %v2970 = vmax.f32 %v2434, 0.0
        %v2971 = vmax.f32 %v2666, 0.0
        %v2972 = vmax.f32 %v2898, 0.0
        %v2973 = vmax.f32 %v2205, 0.0
        %v2974 = vmax.f32 %v2437, 0.0
        %v2975 = vmax.f32 %v2669, 0.0
        %v2976 = vmax.f32 %v2901, 0.0
        %v2977 = vmax.f32 %v2207, 0.0
        %v2978 = vmax.f32 %v2439, 0.0
        %v2979 = vmax.f32 %v2671, 0.0
        %v2980 = vmax.f32 %v2903, 0.0
        %v2981 = vmax.f32 %v2210, 0.0
        %v2982 = vmax.f32 %v2442, 0.0
        %v2983 = vmax.f32 %v2674, 0.0
        %v2984 = vmax.f32 %v2906, 0.0
        %v2985 = vpack.c.bf16 %v2913, %v2909
        %v2986 = vpack.c.bf16 %v2914, %v2910
        %v2987 = vpack.c.bf16 %v2915, %v2911
        %v2988 = vpack.c.bf16 %v2916, %v2912
        %v2989 = vpack.c.bf16 %v2921, %v2917
        %v2990 = vpack.c.bf16 %v2922, %v2918
        %v2991 = vpack.c.bf16 %v2923, %v2919
        %v2992 = vpack.c.bf16 %v2924, %v2920
        %v2993 = vpack.c.bf16 %v2929, %v2925
        %v2994 = vpack.c.bf16 %v2930, %v2926
        %v2995 = vpack.c.bf16 %v2931, %v2927
        %v2996 = vpack.c.bf16 %v2932, %v2928
        %v2997 = vpack.c.bf16 %v2937, %v2933
        %v2998 = vpack.c.bf16 %v2938, %v2934
        %v2999 = vpack.c.bf16 %v2939, %v2935
        %v3000 = vpack.c.bf16 %v2940, %v2936
        %v3001 = vpack.c.bf16 %v2945, %v2941
        %v3002 = vpack.c.bf16 %v2946, %v2942
        %v3003 = vpack.c.bf16 %v2947, %v2943
        %v3004 = vpack.c.bf16 %v2948, %v2944
        %v3005 = vpack.c.bf16 %v2953, %v2949
        %v3006 = vpack.c.bf16 %v2954, %v2950
        %v3007 = vpack.c.bf16 %v2955, %v2951
        %v3008 = vpack.c.bf16 %v2956, %v2952
        %v3009 = vpack.c.bf16 %v2961, %v2957
        %v3010 = vpack.c.bf16 %v2962, %v2958
        %v3011 = vpack.c.bf16 %v2963, %v2959
        %v3012 = vpack.c.bf16 %v2964, %v2960
        %v3013 = vpack.c.bf16 %v2969, %v2965
        %v3014 = vpack.c.bf16 %v2970, %v2966
        %v3015 = vpack.c.bf16 %v2971, %v2967
        %v3016 = vpack.c.bf16 %v2972, %v2968
        %v3017 = vpack.c.bf16 %v2977, %v2973
        %v3018 = vpack.c.bf16 %v2978, %v2974
        %v3019 = vpack.c.bf16 %v2979, %v2975
        %v3020 = vpack.c.bf16 %v2980, %v2976
        %v3021 = vpack.c.bf16 %v2981, %v2981
        %v3022 = vpack.c.bf16 %v2982, %v2982
        %v3023 = vpack.c.bf16 %v2983, %v2983
        %v3024 = vpack.c.bf16 %v2984, %v2984
        %v3025 = vld [vmem:[#allocation5] sm:$0xff]
        %v3026 = vld [vmem:[#allocation5 + $0x8] sm:$0xff]
        %v3027 = vld [vmem:[#allocation5 + $0x10] sm:$0xff]
        %v3028 = vld [vmem:[#allocation5 + $0x18] sm:$0xff]
        %v3029 = vld [vmem:[#allocation5 + $0x20] sm:$0xff]
        %v3030 = vld [vmem:[#allocation5 + $0x28] sm:$0xff]
        %v3031 = vld [vmem:[#allocation5 + $0x30] sm:$0xff]
        %v3032 = vld [vmem:[#allocation5 + $0x38] sm:$0xff]
        %v3033 = vld [vmem:[#allocation5 + $0x40] sm:$0xff]
        %v3034 = vld [vmem:[#allocation5 + $0x48] sm:$0xff]
        %v3035 = vld [vmem:[#allocation5 + $0x50] sm:$0xff]
        %v3036 = vld [vmem:[#allocation5 + $0x58] sm:$0xff]
        %v3037 = vld [vmem:[#allocation5 + $0x60] sm:$0xff]
        %v3038 = vld [vmem:[#allocation5 + $0x68] sm:$0xff]
        %v3039 = vld [vmem:[#allocation5 + $0x70] sm:$0xff]
        %v3040 = vld [vmem:[#allocation5 + $0x78] sm:$0xff]
        %v3041 = vld [vmem:[#allocation5 + $0x80] sm:$0xff]
        %v3042 = vld [vmem:[#allocation5 + $0x88] sm:$0xff]
        %v3043 = vld [vmem:[#allocation5 + $0x90] sm:$0xff]
        %v3044 = vld [vmem:[#allocation5 + $0x98] sm:$0xff]
        %v3045 = vld [vmem:[#allocation5 + $0xa0] sm:$0xff]
        %v3046 = vld [vmem:[#allocation5 + $0xa8] sm:$0xff]
        %v3047 = vld [vmem:[#allocation5 + $0xb0] sm:$0xff]
        %v3048 = vld [vmem:[#allocation5 + $0xb8] sm:$0xff]
        %v3049 = vld [vmem:[#allocation5 + $0xc0] sm:$0xff]
        %v3050 = vld [vmem:[#allocation5 + $0xc8] sm:$0xff]
        %v3051 = vld [vmem:[#allocation5 + $0xd0] sm:$0xff]
        %v3052 = vld [vmem:[#allocation5 + $0xd8] sm:$0xff]
        %v3053 = vld [vmem:[#allocation5 + $0xe0] sm:$0xff]
        %v3054 = vld [vmem:[#allocation5 + $0xe8] sm:$0xff]
        %v3055 = vld [vmem:[#allocation5 + $0xf0] sm:$0xff]
        %v3056 = vld [vmem:[#allocation5 + $0xf8] sm:$0xff]
        %v3057 = vld [vmem:[#allocation5 + $0x100] sm:$0xff]
        %v3058 = vld [vmem:[#allocation5 + $0x108] sm:$0xff]
        %v3059 = vld [vmem:[#allocation5 + $0x110] sm:$0xff]
        %v3060 = vld [vmem:[#allocation5 + $0x118] sm:$0xff]
        %v3061 = vld [vmem:[#allocation5 + $0x120] sm:$0xff]
        %v3062 = vld [vmem:[#allocation5 + $0x128] sm:$0xff]
        %v3063 = vld [vmem:[#allocation5 + $0x130] sm:$0xff]
        %v3064 = vld [vmem:[#allocation5 + $0x138] sm:$0xff]
        %v3065 = vld [vmem:[#allocation5 + $0x140] sm:$0xff]
        %v3066 = vld [vmem:[#allocation5 + $0x148] sm:$0xff]
        %v3067 = vld [vmem:[#allocation5 + $0x150] sm:$0xff]
        %v3068 = vld [vmem:[#allocation5 + $0x158] sm:$0xff]
        %v3069 = vld [vmem:[#allocation5 + $0x160] sm:$0xff]
        %v3070 = vld [vmem:[#allocation5 + $0x168] sm:$0xff]
        %v3071 = vld [vmem:[#allocation5 + $0x170] sm:$0xff]
        %v3072 = vld [vmem:[#allocation5 + $0x178] sm:$0xff]
        %v3073 = vld [vmem:[#allocation5 + $0x180] sm:$0xff]
        %v3074 = vld [vmem:[#allocation5 + $0x188] sm:$0xff]
        %v3075 = vld [vmem:[#allocation5 + $0x190] sm:$0xff]
        %v3076 = vld [vmem:[#allocation5 + $0x198] sm:$0xff]
        %v3077 = vld [vmem:[#allocation5 + $0x1a0] sm:$0xff]
        %v3078 = vld [vmem:[#allocation5 + $0x1a8] sm:$0xff]
        %v3079 = vld [vmem:[#allocation5 + $0x1b0] sm:$0xff]
        %v3080 = vld [vmem:[#allocation5 + $0x1b8] sm:$0xff]
        %v3081 = vld [vmem:[#allocation5 + $0x1c0] sm:$0xff]
        %v3082 = vld [vmem:[#allocation5 + $0x1c8] sm:$0xff]
        %v3083 = vld [vmem:[#allocation5 + $0x1d0] sm:$0xff]
        %v3084 = vld [vmem:[#allocation5 + $0x1d8] sm:$0xff]
        %v3085 = vld [vmem:[#allocation5 + $0x1e0] sm:$0xff]
        %v3086 = vld [vmem:[#allocation5 + $0x1e8] sm:$0xff]
        %v3087 = vld [vmem:[#allocation5 + $0x1f0] sm:$0xff]
        %v3088 = vld [vmem:[#allocation5 + $0x1f8] sm:$0xff]
        %v3089 = vld [vmem:[#allocation5 + $0x200] sm:$0xff]
        %v3090 = vld [vmem:[#allocation5 + $0x208] sm:$0xff]
        %v3091 = vld [vmem:[#allocation5 + $0x210] sm:$0xff]
        %v3092 = vld [vmem:[#allocation5 + $0x218] sm:$0xff]
        %v3093 = vld [vmem:[#allocation5 + $0x220] sm:$0xff]
        %v3094 = vld [vmem:[#allocation5 + $0x228] sm:$0xff]
        %v3095 = vld [vmem:[#allocation5 + $0x230] sm:$0xff]
        %v3096 = vld [vmem:[#allocation5 + $0x238] sm:$0xff]
        %v3097 = vld [vmem:[#allocation5 + $0x240] sm:$0xff]
        %v3098 = vld [vmem:[#allocation5 + $0x248] sm:$0xff]
        %v3099 = vld [vmem:[#allocation5 + $0x250] sm:$0xff]
        %v3100 = vld [vmem:[#allocation5 + $0x258] sm:$0xff]
        %v3101 = vld [vmem:[#allocation5 + $0x260] sm:$0xff]
        %v3102 = vld [vmem:[#allocation5 + $0x268] sm:$0xff]
        %v3103 = vld [vmem:[#allocation5 + $0x270] sm:$0xff]
        %v3104 = vld [vmem:[#allocation5 + $0x278] sm:$0xff]
        %v3105 = vld [vmem:[#allocation5 + $0x280] sm:$0xff]
        %v3106 = vld [vmem:[#allocation5 + $0x288] sm:$0xff]
        %v3107 = vld [vmem:[#allocation5 + $0x290] sm:$0xff]
        %v3108 = vld [vmem:[#allocation5 + $0x298] sm:$0xff]
        %v3109 = vld [vmem:[#allocation5 + $0x2a0] sm:$0xff]
        %v3110 = vld [vmem:[#allocation5 + $0x2a8] sm:$0xff]
        %v3111 = vld [vmem:[#allocation5 + $0x2b0] sm:$0xff]
        %v3112 = vld [vmem:[#allocation5 + $0x2b8] sm:$0xff]
        %v3113 = vld [vmem:[#allocation5 + $0x2c0] sm:$0xff]
        %v3114 = vld [vmem:[#allocation5 + $0x2c8] sm:$0xff]
        %v3115 = vld [vmem:[#allocation5 + $0x2d0] sm:$0xff]
        %v3116 = vld [vmem:[#allocation5 + $0x2d8] sm:$0xff]
        %v3117 = vld [vmem:[#allocation5 + $0x2e0] sm:$0xff]
        %v3118 = vld [vmem:[#allocation5 + $0x2e8] sm:$0xff]
        %v3119 = vld [vmem:[#allocation5 + $0x2f0] sm:$0xff]
        %v3120 = vld [vmem:[#allocation5 + $0x2f8] sm:$0xff]
        %v3121 = vld [vmem:[#allocation5 + $0x300] sm:$0xff]
        %v3122 = vld [vmem:[#allocation5 + $0x308] sm:$0xff]
        %v3123 = vld [vmem:[#allocation5 + $0x310] sm:$0xff]
        %v3124 = vld [vmem:[#allocation5 + $0x318] sm:$0xff]
        %v3125 = vld [vmem:[#allocation5 + $0x320] sm:$0xff]
        %v3126 = vld [vmem:[#allocation5 + $0x328] sm:$0xff]
        %v3127 = vld [vmem:[#allocation5 + $0x330] sm:$0xff]
        %v3128 = vld [vmem:[#allocation5 + $0x338] sm:$0xff]
        %v3129 = vld [vmem:[#allocation5 + $0x340] sm:$0xff]
        %v3130 = vld [vmem:[#allocation5 + $0x348] sm:$0xff]
        %v3131 = vld [vmem:[#allocation5 + $0x350] sm:$0xff]
        %v3132 = vld [vmem:[#allocation5 + $0x358] sm:$0xff]
        %v3133 = vld [vmem:[#allocation5 + $0x360] sm:$0xff]
        %v3134 = vld [vmem:[#allocation5 + $0x368] sm:$0xff]
        %v3135 = vld [vmem:[#allocation5 + $0x370] sm:$0xff]
        %v3136 = vld [vmem:[#allocation5 + $0x378] sm:$0xff]
        %v3137 = vld [vmem:[#allocation5 + $0x380] sm:$0xff]
        %v3138 = vld [vmem:[#allocation5 + $0x388] sm:$0xff]
        %v3139 = vld [vmem:[#allocation5 + $0x390] sm:$0xff]
        %v3140 = vld [vmem:[#allocation5 + $0x398] sm:$0xff]
        %v3141 = vld [vmem:[#allocation5 + $0x3a0] sm:$0xff]
        %v3142 = vld [vmem:[#allocation5 + $0x3a8] sm:$0xff]
        %v3143 = vld [vmem:[#allocation5 + $0x3b0] sm:$0xff]
        %v3144 = vld [vmem:[#allocation5 + $0x3b8] sm:$0xff]
        %v3145 = vld [vmem:[#allocation5 + $0x3c0] sm:$0xff]
        %v3146 = vld [vmem:[#allocation5 + $0x3c8] sm:$0xff]
        %v3147 = vld [vmem:[#allocation5 + $0x3d0] sm:$0xff]
        %v3148 = vld [vmem:[#allocation5 + $0x3d8] sm:$0xff]
        %v3149 = vld [vmem:[#allocation5 + $0x3e0] sm:$0xff]
        %v3150 = vld [vmem:[#allocation5 + $0x3e8] sm:$0xff]
        %v3151 = vld [vmem:[#allocation5 + $0x3f0] sm:$0xff]
        %v3152 = vld [vmem:[#allocation5 + $0x3f8] sm:$0xff]
        %v3153 = vld [vmem:[%s6] sm:$0xf]
        %v3155 = vperm.slane %v3153, 0
        %v3156 = vperm.slane %v3153, 1
        %v3157 = vperm.slane %v3153, 2
        %v3158 = vperm.slane %v3153, 3
        %v3291 = vunpack.c.l.b16 %v3025
        %v3292 = vunpack.c.h.b16 %v3025
        %v3293 = vunpack.c.l.b16 %v3026
        %v3294 = vunpack.c.h.b16 %v3026
        %v3295 = vunpack.c.l.b16 %v3027
        %v3296 = vunpack.c.h.b16 %v3027
        %v3297 = vunpack.c.l.b16 %v3028
        %v3298 = vunpack.c.h.b16 %v3028
        %v3299 = vunpack.c.l.b16 %v3029
        %v3300 = vunpack.c.h.b16 %v3029
        %v3301 = vunpack.c.l.b16 %v3030
        %v3302 = vunpack.c.h.b16 %v3030
        %v3303 = vunpack.c.l.b16 %v3031
        %v3304 = vunpack.c.h.b16 %v3031
        %v3305 = vunpack.c.l.b16 %v3032
        %v3306 = vunpack.c.h.b16 %v3032
        %v3307 = vunpack.c.l.b16 %v3033
        %v3308 = vunpack.c.h.b16 %v3033
        %v3309 = vunpack.c.l.b16 %v3034
        %v3310 = vunpack.c.h.b16 %v3034
        %v3311 = vunpack.c.l.b16 %v3035
        %v3312 = vunpack.c.h.b16 %v3035
        %v3313 = vunpack.c.l.b16 %v3036
        %v3314 = vunpack.c.h.b16 %v3036
        %v3315 = vunpack.c.l.b16 %v3037
        %v3316 = vunpack.c.h.b16 %v3037
        %v3317 = vunpack.c.l.b16 %v3038
        %v3318 = vunpack.c.h.b16 %v3038
        %v3319 = vunpack.c.l.b16 %v3039
        %v3320 = vunpack.c.h.b16 %v3039
        %v3321 = vunpack.c.l.b16 %v3040
        %v3322 = vunpack.c.h.b16 %v3040
        %v3323 = vunpack.c.l.b16 %v3041
        %v3324 = vunpack.c.h.b16 %v3041
        %v3325 = vunpack.c.l.b16 %v3042
        %v3326 = vunpack.c.h.b16 %v3042
        %v3327 = vunpack.c.l.b16 %v3043
        %v3328 = vunpack.c.h.b16 %v3043
        %v3329 = vunpack.c.l.b16 %v3044
        %v3330 = vunpack.c.h.b16 %v3044
        %v3331 = vunpack.c.l.b16 %v3045
        %v3332 = vunpack.c.h.b16 %v3045
        %v3333 = vunpack.c.l.b16 %v3046
        %v3334 = vunpack.c.h.b16 %v3046
        %v3335 = vunpack.c.l.b16 %v3047
        %v3336 = vunpack.c.h.b16 %v3047
        %v3337 = vunpack.c.l.b16 %v3048
        %v3338 = vunpack.c.h.b16 %v3048
        %v3339 = vunpack.c.l.b16 %v3049
        %v3340 = vunpack.c.h.b16 %v3049
        %v3341 = vunpack.c.l.b16 %v3050
        %v3342 = vunpack.c.h.b16 %v3050
        %v3343 = vunpack.c.l.b16 %v3051
        %v3344 = vunpack.c.h.b16 %v3051
        %v3345 = vunpack.c.l.b16 %v3052
        %v3346 = vunpack.c.h.b16 %v3052
        %v3347 = vunpack.c.l.b16 %v3053
        %v3348 = vunpack.c.h.b16 %v3053
        %v3349 = vunpack.c.l.b16 %v3054
        %v3350 = vunpack.c.h.b16 %v3054
        %v3351 = vunpack.c.l.b16 %v3055
        %v3352 = vunpack.c.h.b16 %v3055
        %v3353 = vunpack.c.l.b16 %v3056
        %v3354 = vunpack.c.h.b16 %v3056
        %v3355 = vunpack.c.l.b16 %v3057
        %v3356 = vunpack.c.h.b16 %v3057
        %v3357 = vunpack.c.l.b16 %v3058
        %v3358 = vunpack.c.h.b16 %v3058
        %v3359 = vunpack.c.l.b16 %v3059
        %v3360 = vunpack.c.h.b16 %v3059
        %v3361 = vunpack.c.l.b16 %v3060
        %v3362 = vunpack.c.h.b16 %v3060
        %v3363 = vunpack.c.l.b16 %v3061
        %v3364 = vunpack.c.h.b16 %v3061
        %v3365 = vunpack.c.l.b16 %v3062
        %v3366 = vunpack.c.h.b16 %v3062
        %v3367 = vunpack.c.l.b16 %v3063
        %v3368 = vunpack.c.h.b16 %v3063
        %v3369 = vunpack.c.l.b16 %v3064
        %v3370 = vunpack.c.h.b16 %v3064
        %v3371 = vunpack.c.l.b16 %v3065
        %v3372 = vunpack.c.h.b16 %v3065
        %v3373 = vunpack.c.l.b16 %v3066
        %v3374 = vunpack.c.h.b16 %v3066
        %v3375 = vunpack.c.l.b16 %v3067
        %v3376 = vunpack.c.h.b16 %v3067
        %v3377 = vunpack.c.l.b16 %v3068
        %v3378 = vunpack.c.h.b16 %v3068
        %v3379 = vunpack.c.l.b16 %v3069
        %v3380 = vunpack.c.h.b16 %v3069
        %v3381 = vunpack.c.l.b16 %v3070
        %v3382 = vunpack.c.h.b16 %v3070
        %v3383 = vunpack.c.l.b16 %v3071
        %v3384 = vunpack.c.h.b16 %v3071
        %v3385 = vunpack.c.l.b16 %v3072
        %v3386 = vunpack.c.h.b16 %v3072
        %v3387 = vunpack.c.l.b16 %v3073
        %v3388 = vunpack.c.h.b16 %v3073
        %v3389 = vunpack.c.l.b16 %v3074
        %v3390 = vunpack.c.h.b16 %v3074
        %v3391 = vunpack.c.l.b16 %v3075
        %v3392 = vunpack.c.h.b16 %v3075
        %v3393 = vunpack.c.l.b16 %v3076
        %v3394 = vunpack.c.h.b16 %v3076
        %v3395 = vunpack.c.l.b16 %v3077
        %v3396 = vunpack.c.h.b16 %v3077
        %v3397 = vunpack.c.l.b16 %v3078
        %v3398 = vunpack.c.h.b16 %v3078
        %v3399 = vunpack.c.l.b16 %v3079
        %v3400 = vunpack.c.h.b16 %v3079
        %v3401 = vunpack.c.l.b16 %v3080
        %v3402 = vunpack.c.h.b16 %v3080
        %v3403 = vunpack.c.l.b16 %v3081
        %v3404 = vunpack.c.h.b16 %v3081
        %v3405 = vunpack.c.l.b16 %v3082
        %v3406 = vunpack.c.h.b16 %v3082
        %v3407 = vunpack.c.l.b16 %v3083
        %v3408 = vunpack.c.h.b16 %v3083
        %v3409 = vunpack.c.l.b16 %v3084
        %v3410 = vunpack.c.h.b16 %v3084
        %v3411 = vunpack.c.l.b16 %v3085
        %v3412 = vunpack.c.h.b16 %v3085
        %v3413 = vunpack.c.l.b16 %v3086
        %v3414 = vunpack.c.h.b16 %v3086
        %v3415 = vunpack.c.l.b16 %v3087
        %v3416 = vunpack.c.h.b16 %v3087
        %v3417 = vunpack.c.l.b16 %v3088
        %v3418 = vunpack.c.h.b16 %v3088
        %v3419 = vunpack.c.l.b16 %v3089
        %v3420 = vunpack.c.h.b16 %v3089
        %v3421 = vunpack.c.l.b16 %v3090
        %v3422 = vunpack.c.h.b16 %v3090
        %v3423 = vunpack.c.l.b16 %v3091
        %v3424 = vunpack.c.h.b16 %v3091
        %v3425 = vunpack.c.l.b16 %v3092
        %v3426 = vunpack.c.h.b16 %v3092
        %v3427 = vunpack.c.l.b16 %v3093
        %v3428 = vunpack.c.h.b16 %v3093
        %v3429 = vunpack.c.l.b16 %v3094
        %v3430 = vunpack.c.h.b16 %v3094
        %v3431 = vunpack.c.l.b16 %v3095
        %v3432 = vunpack.c.h.b16 %v3095
        %v3433 = vunpack.c.l.b16 %v3096
        %v3434 = vunpack.c.h.b16 %v3096
        %v3435 = vunpack.c.l.b16 %v3097
        %v3436 = vunpack.c.h.b16 %v3097
        %v3437 = vunpack.c.l.b16 %v3098
        %v3438 = vunpack.c.h.b16 %v3098
        %v3439 = vunpack.c.l.b16 %v3099
        %v3440 = vunpack.c.h.b16 %v3099
        %v3441 = vunpack.c.l.b16 %v3100
        %v3442 = vunpack.c.h.b16 %v3100
        %v3443 = vunpack.c.l.b16 %v3101
        %v3444 = vunpack.c.h.b16 %v3101
        %v3445 = vunpack.c.l.b16 %v3102
        %v3446 = vunpack.c.h.b16 %v3102
        %v3447 = vunpack.c.l.b16 %v3103
        %v3448 = vunpack.c.h.b16 %v3103
        %v3449 = vunpack.c.l.b16 %v3104
        %v3450 = vunpack.c.h.b16 %v3104
        %v3451 = vunpack.c.l.b16 %v3105
        %v3452 = vunpack.c.h.b16 %v3105
        %v3453 = vunpack.c.l.b16 %v3106
        %v3454 = vunpack.c.h.b16 %v3106
        %v3455 = vunpack.c.l.b16 %v3107
        %v3456 = vunpack.c.h.b16 %v3107
        %v3457 = vunpack.c.l.b16 %v3108
        %v3458 = vunpack.c.h.b16 %v3108
        %v3459 = vunpack.c.l.b16 %v3109
        %v3460 = vunpack.c.h.b16 %v3109
        %v3461 = vunpack.c.l.b16 %v3110
        %v3462 = vunpack.c.h.b16 %v3110
        %v3463 = vunpack.c.l.b16 %v3111
        %v3464 = vunpack.c.h.b16 %v3111
        %v3465 = vunpack.c.l.b16 %v3112
        %v3466 = vunpack.c.h.b16 %v3112
        %v3467 = vunpack.c.l.b16 %v3113
        %v3468 = vunpack.c.h.b16 %v3113
        %v3469 = vunpack.c.l.b16 %v3114
        %v3470 = vunpack.c.h.b16 %v3114
        %v3471 = vunpack.c.l.b16 %v3115
        %v3472 = vunpack.c.h.b16 %v3115
        %v3473 = vunpack.c.l.b16 %v3116
        %v3474 = vunpack.c.h.b16 %v3116
        %v3475 = vunpack.c.l.b16 %v3117
        %v3476 = vunpack.c.h.b16 %v3117
        %v3477 = vunpack.c.l.b16 %v3118
        %v3478 = vunpack.c.h.b16 %v3118
        %v3479 = vunpack.c.l.b16 %v3119
        %v3480 = vunpack.c.h.b16 %v3119
        %v3481 = vunpack.c.l.b16 %v3120
        %v3482 = vunpack.c.h.b16 %v3120
        %v3483 = vunpack.c.l.b16 %v3121
        %v3484 = vunpack.c.h.b16 %v3121
        %v3485 = vunpack.c.l.b16 %v3122
        %v3486 = vunpack.c.h.b16 %v3122
        %v3487 = vunpack.c.l.b16 %v3123
        %v3488 = vunpack.c.h.b16 %v3123
        %v3489 = vunpack.c.l.b16 %v3124
        %v3490 = vunpack.c.h.b16 %v3124
        %v3491 = vunpack.c.l.b16 %v3125
        %v3492 = vunpack.c.h.b16 %v3125
        %v3493 = vunpack.c.l.b16 %v3126
        %v3494 = vunpack.c.h.b16 %v3126
        %v3495 = vunpack.c.l.b16 %v3127
        %v3496 = vunpack.c.h.b16 %v3127
        %v3497 = vunpack.c.l.b16 %v3128
        %v3498 = vunpack.c.h.b16 %v3128
        %v3499 = vunpack.c.l.b16 %v3129
        %v3500 = vunpack.c.h.b16 %v3129
        %v3501 = vunpack.c.l.b16 %v3130
        %v3502 = vunpack.c.h.b16 %v3130
        %v3503 = vunpack.c.l.b16 %v3131
        %v3504 = vunpack.c.h.b16 %v3131
        %v3505 = vunpack.c.l.b16 %v3132
        %v3506 = vunpack.c.h.b16 %v3132
        %v3507 = vunpack.c.l.b16 %v3133
        %v3508 = vunpack.c.h.b16 %v3133
        %v3509 = vunpack.c.l.b16 %v3134
        %v3510 = vunpack.c.h.b16 %v3134
        %v3511 = vunpack.c.l.b16 %v3135
        %v3512 = vunpack.c.h.b16 %v3135
        %v3513 = vunpack.c.l.b16 %v3136
        %v3514 = vunpack.c.h.b16 %v3136
        %v3515 = vunpack.c.l.b16 %v3137
        %v3516 = vunpack.c.h.b16 %v3137
        %v3517 = vunpack.c.l.b16 %v3138
        %v3518 = vunpack.c.h.b16 %v3138
        %v3519 = vunpack.c.l.b16 %v3139
        %v3520 = vunpack.c.h.b16 %v3139
        %v3521 = vunpack.c.l.b16 %v3140
        %v3522 = vunpack.c.h.b16 %v3140
        %v3523 = vunpack.c.l.b16 %v3141
        %v3524 = vunpack.c.h.b16 %v3141
        %v3525 = vunpack.c.l.b16 %v3142
        %v3526 = vunpack.c.h.b16 %v3142
        %v3527 = vunpack.c.l.b16 %v3143
        %v3528 = vunpack.c.h.b16 %v3143
        %v3529 = vunpack.c.l.b16 %v3144
        %v3530 = vunpack.c.h.b16 %v3144
        %v3531 = vunpack.c.l.b16 %v3145
        %v3532 = vunpack.c.h.b16 %v3145
        %v3533 = vunpack.c.l.b16 %v3146
        %v3534 = vunpack.c.h.b16 %v3146
        %v3535 = vunpack.c.l.b16 %v3147
        %v3536 = vunpack.c.h.b16 %v3147
        %v3537 = vunpack.c.l.b16 %v3148
        %v3538 = vunpack.c.h.b16 %v3148
        %v3539 = vunpack.c.l.b16 %v3149
        %v3540 = vunpack.c.h.b16 %v3149
        %v3541 = vunpack.c.l.b16 %v3150
        %v3542 = vunpack.c.h.b16 %v3150
        %v3543 = vunpack.c.l.b16 %v3151
        %v3544 = vunpack.c.h.b16 %v3151
        %v3545 = vunpack.c.l.b16 %v3152
        %v3546 = vunpack.c.h.b16 %v3152
        %v3547 = vpack.c.b16 %v3295, %v3291
        %v3548 = vpack.c.b16 %v3296, %v3292
        %v3549 = vpack.c.b16 %v3297, %v3293
        %v3550 = vpack.c.b16 %v3298, %v3294
        %v3551 = vpack.c.b16 %v3303, %v3299
        %v3552 = vpack.c.b16 %v3304, %v3300
        %v3553 = vpack.c.b16 %v3305, %v3301
        %v3554 = vpack.c.b16 %v3306, %v3302
        %v3555 = vpack.c.b16 %v3311, %v3307
        %v3556 = vpack.c.b16 %v3312, %v3308
        %v3557 = vpack.c.b16 %v3313, %v3309
        %v3558 = vpack.c.b16 %v3314, %v3310
        %v3559 = vpack.c.b16 %v3319, %v3315
        %v3560 = vpack.c.b16 %v3320, %v3316
        %v3561 = vpack.c.b16 %v3321, %v3317
        %v3562 = vpack.c.b16 %v3322, %v3318
        %v3563 = vpack.c.b16 %v3327, %v3323
        %v3564 = vpack.c.b16 %v3328, %v3324
        %v3565 = vpack.c.b16 %v3329, %v3325
        %v3566 = vpack.c.b16 %v3330, %v3326
        %v3567 = vpack.c.b16 %v3335, %v3331
        %v3568 = vpack.c.b16 %v3336, %v3332
        %v3569 = vpack.c.b16 %v3337, %v3333
        %v3570 = vpack.c.b16 %v3338, %v3334
        %v3571 = vpack.c.b16 %v3343, %v3339
        %v3572 = vpack.c.b16 %v3344, %v3340
        %v3573 = vpack.c.b16 %v3345, %v3341
        %v3574 = vpack.c.b16 %v3346, %v3342
        %v3575 = vpack.c.b16 %v3351, %v3347
        %v3576 = vpack.c.b16 %v3352, %v3348
        %v3577 = vpack.c.b16 %v3353, %v3349
        %v3578 = vpack.c.b16 %v3354, %v3350
        %v3579 = vpack.c.b16 %v3359, %v3355
        %v3580 = vpack.c.b16 %v3360, %v3356
        %v3581 = vpack.c.b16 %v3361, %v3357
        %v3582 = vpack.c.b16 %v3362, %v3358
        %v3583 = vpack.c.b16 %v3367, %v3363
        %v3584 = vpack.c.b16 %v3368, %v3364
        %v3585 = vpack.c.b16 %v3369, %v3365
        %v3586 = vpack.c.b16 %v3370, %v3366
        %v3587 = vpack.c.b16 %v3375, %v3371
        %v3588 = vpack.c.b16 %v3376, %v3372
        %v3589 = vpack.c.b16 %v3377, %v3373
        %v3590 = vpack.c.b16 %v3378, %v3374
        %v3591 = vpack.c.b16 %v3383, %v3379
        %v3592 = vpack.c.b16 %v3384, %v3380
        %v3593 = vpack.c.b16 %v3385, %v3381
        %v3594 = vpack.c.b16 %v3386, %v3382
        %v3595 = vpack.c.b16 %v3391, %v3387
        %v3596 = vpack.c.b16 %v3392, %v3388
        %v3597 = vpack.c.b16 %v3393, %v3389
        %v3598 = vpack.c.b16 %v3394, %v3390
        %v3599 = vpack.c.b16 %v3399, %v3395
        %v3600 = vpack.c.b16 %v3400, %v3396
        %v3601 = vpack.c.b16 %v3401, %v3397
        %v3602 = vpack.c.b16 %v3402, %v3398
        %v3603 = vpack.c.b16 %v3407, %v3403
        %v3604 = vpack.c.b16 %v3408, %v3404
        %v3605 = vpack.c.b16 %v3409, %v3405
        %v3606 = vpack.c.b16 %v3410, %v3406
        %v3607 = vpack.c.b16 %v3415, %v3411
        %v3608 = vpack.c.b16 %v3416, %v3412
        %v3609 = vpack.c.b16 %v3417, %v3413
        %v3610 = vpack.c.b16 %v3418, %v3414
        %v3611 = vpack.c.b16 %v3423, %v3419
        %v3612 = vpack.c.b16 %v3424, %v3420
        %v3613 = vpack.c.b16 %v3425, %v3421
        %v3614 = vpack.c.b16 %v3426, %v3422
        %v3615 = vpack.c.b16 %v3431, %v3427
        %v3616 = vpack.c.b16 %v3432, %v3428
        %v3617 = vpack.c.b16 %v3433, %v3429
        %v3618 = vpack.c.b16 %v3434, %v3430
        %v3619 = vpack.c.b16 %v3439, %v3435
        %v3620 = vpack.c.b16 %v3440, %v3436
        %v3621 = vpack.c.b16 %v3441, %v3437
        %v3622 = vpack.c.b16 %v3442, %v3438
        %v3623 = vpack.c.b16 %v3447, %v3443
        %v3624 = vpack.c.b16 %v3448, %v3444
        %v3625 = vpack.c.b16 %v3449, %v3445
        %v3626 = vpack.c.b16 %v3450, %v3446
        %v3627 = vpack.c.b16 %v3455, %v3451
        %v3628 = vpack.c.b16 %v3456, %v3452
        %v3629 = vpack.c.b16 %v3457, %v3453
        %v3630 = vpack.c.b16 %v3458, %v3454
        %v3631 = vpack.c.b16 %v3463, %v3459
        %v3632 = vpack.c.b16 %v3464, %v3460
        %v3633 = vpack.c.b16 %v3465, %v3461
        %v3634 = vpack.c.b16 %v3466, %v3462
        %v3635 = vpack.c.b16 %v3471, %v3467
        %v3636 = vpack.c.b16 %v3472, %v3468
        %v3637 = vpack.c.b16 %v3473, %v3469
        %v3638 = vpack.c.b16 %v3474, %v3470
        %v3639 = vpack.c.b16 %v3479, %v3475
        %v3640 = vpack.c.b16 %v3480, %v3476
        %v3641 = vpack.c.b16 %v3481, %v3477
        %v3642 = vpack.c.b16 %v3482, %v3478
        %v3643 = vpack.c.b16 %v3487, %v3483
        %v3644 = vpack.c.b16 %v3488, %v3484
        %v3645 = vpack.c.b16 %v3489, %v3485
        %v3646 = vpack.c.b16 %v3490, %v3486
        %v3647 = vpack.c.b16 %v3495, %v3491
        %v3648 = vpack.c.b16 %v3496, %v3492
        %v3649 = vpack.c.b16 %v3497, %v3493
        %v3650 = vpack.c.b16 %v3498, %v3494
        %v3651 = vpack.c.b16 %v3503, %v3499
        %v3652 = vpack.c.b16 %v3504, %v3500
        %v3653 = vpack.c.b16 %v3505, %v3501
        %v3654 = vpack.c.b16 %v3506, %v3502
        %v3655 = vpack.c.b16 %v3511, %v3507
        %v3656 = vpack.c.b16 %v3512, %v3508
        %v3657 = vpack.c.b16 %v3513, %v3509
        %v3658 = vpack.c.b16 %v3514, %v3510
        %v3659 = vpack.c.b16 %v3519, %v3515
        %v3660 = vpack.c.b16 %v3520, %v3516
        %v3661 = vpack.c.b16 %v3521, %v3517
        %v3662 = vpack.c.b16 %v3522, %v3518
        %v3663 = vpack.c.b16 %v3527, %v3523
        %v3664 = vpack.c.b16 %v3528, %v3524
        %v3665 = vpack.c.b16 %v3529, %v3525
        %v3666 = vpack.c.b16 %v3530, %v3526
        %v3667 = vpack.c.b16 %v3535, %v3531
        %v3668 = vpack.c.b16 %v3536, %v3532
        %v3669 = vpack.c.b16 %v3537, %v3533
        %v3670 = vpack.c.b16 %v3538, %v3534
        %v3671 = vpack.c.b16 %v3543, %v3539
        %v3672 = vpack.c.b16 %v3544, %v3540
        %v3673 = vpack.c.b16 %v3545, %v3541
        %v3674 = vpack.c.b16 %v3546, %v3542
        %3803 = vmatpush.bf16.msra.mxu0 %v3575
        %3804 = vmatpush.bf16.msra.mxu0 %v3571
        %3805 = vmatpush.bf16.msra.mxu0 %v3567
        %3806 = vmatpush.bf16.msra.mxu0 %v3563
        %3807 = vmatpush.bf16.msra.mxu0 %v3559
        %3808 = vmatpush.bf16.msra.mxu0 %v3555
        %3809 = vmatpush.bf16.msra.mxu0 %v3551
        %3810 = vmatpush.bf16.msra.mxu0 %v3547
        %3811 = vmatmul.bf16.gmra.mxu0 %v2985
        %v3812 = vpop.f32.mrf.mxu0
        %v3813 = vadd.f32 %v3155, %v3812
        %v3814 = vpop.f32.mrf.mxu0
        %v3815 = vadd.f32 %v3155, %v3814
        %3816 = vmatmul.bf16.gmra.mxu0 %v2989
        %v3817 = vpop.f32.mrf.mxu0
        %v3818 = vadd.f32 %v3155, %v3817
        %v3819 = vpop.f32.mrf.mxu0
        %v3820 = vadd.f32 %v3155, %v3819
        %3821 = vmatmul.bf16.gmra.mxu0 %v2993
        %v3822 = vpop.f32.mrf.mxu0
        %v3823 = vadd.f32 %v3155, %v3822
        %v3824 = vpop.f32.mrf.mxu0
        %v3825 = vadd.f32 %v3155, %v3824
        %3826 = vmatmul.bf16.gmra.mxu0 %v2997
        %v3827 = vpop.f32.mrf.mxu0
        %v3828 = vadd.f32 %v3155, %v3827
        %v3829 = vpop.f32.mrf.mxu0
        %v3830 = vadd.f32 %v3155, %v3829
        %3831 = vmatmul.bf16.gmra.mxu0 %v3001
        %v3832 = vpop.f32.mrf.mxu0
        %v3833 = vadd.f32 %v3155, %v3832
        %v3834 = vpop.f32.mrf.mxu0
        %v3835 = vadd.f32 %v3155, %v3834
        %3836 = vmatmul.bf16.gmra.mxu0 %v3005
        %v3837 = vpop.f32.mrf.mxu0
        %v3838 = vadd.f32 %v3155, %v3837
        %v3839 = vpop.f32.mrf.mxu0
        %v3840 = vadd.f32 %v3155, %v3839
        %3841 = vmatmul.bf16.gmra.mxu0 %v3009
        %v3842 = vpop.f32.mrf.mxu0
        %v3843 = vadd.f32 %v3155, %v3842
        %v3844 = vpop.f32.mrf.mxu0
        %v3845 = vadd.f32 %v3155, %v3844
        %3846 = vmatmul.bf16.gmra.mxu0 %v3013
        %v3847 = vpop.f32.mrf.mxu0
        %v3848 = vadd.f32 %v3155, %v3847
        %v3849 = vpop.f32.mrf.mxu0
        %v3850 = vadd.f32 %v3155, %v3849
        %3851 = vmatmul.bf16.gmra.mxu0 %v3017
        %v3852 = vpop.f32.mrf.mxu0
        %v3853 = vadd.f32 %v3155, %v3852
        %v3854 = vpop.f32.mrf.mxu0
        %v3855 = vadd.f32 %v3155, %v3854
        %3856 = vmatmul.bf16.gmra.mxu0 %v3021
        %v3857 = vpop.f32.mrf.mxu0
        %v3858 = vadd.f32 %v3155, %v3857
        %v3859 = vpop.f32.mrf.mxu0
        %3860 = vdwg.mxu0
        %3861 = vmatpush.bf16.msra.mxu0 %v3607
        %3862 = vmatpush.bf16.msra.mxu0 %v3603
        %3863 = vmatpush.bf16.msra.mxu0 %v3599
        %3864 = vmatpush.bf16.msra.mxu0 %v3595
        %3865 = vmatpush.bf16.msra.mxu0 %v3591
        %3866 = vmatpush.bf16.msra.mxu0 %v3587
        %3867 = vmatpush.bf16.msra.mxu0 %v3583
        %3868 = vmatpush.bf16.msra.mxu0 %v3579
        %3869 = vmatmul.bf16.gmra.mxu0 %v2986
        %v3870 = vpop.f32.mrf.mxu0
        %v3871 = vadd.f32 %v3813, %v3870
        %v3872 = vpop.f32.mrf.mxu0
        %v3873 = vadd.f32 %v3815, %v3872
        %3874 = vmatmul.bf16.gmra.mxu0 %v2990
        %v3875 = vpop.f32.mrf.mxu0
        %v3876 = vadd.f32 %v3818, %v3875
        %v3877 = vpop.f32.mrf.mxu0
        %v3878 = vadd.f32 %v3820, %v3877
        %3879 = vmatmul.bf16.gmra.mxu0 %v2994
        %v3880 = vpop.f32.mrf.mxu0
        %v3881 = vadd.f32 %v3823, %v3880
        %v3882 = vpop.f32.mrf.mxu0
        %v3883 = vadd.f32 %v3825, %v3882
        %3884 = vmatmul.bf16.gmra.mxu0 %v2998
        %v3885 = vpop.f32.mrf.mxu0
        %v3886 = vadd.f32 %v3828, %v3885
        %v3887 = vpop.f32.mrf.mxu0
        %v3888 = vadd.f32 %v3830, %v3887
        %3889 = vmatmul.bf16.gmra.mxu0 %v3002
        %v3890 = vpop.f32.mrf.mxu0
        %v3891 = vadd.f32 %v3833, %v3890
        %v3892 = vpop.f32.mrf.mxu0
        %v3893 = vadd.f32 %v3835, %v3892
        %3894 = vmatmul.bf16.gmra.mxu0 %v3006
        %v3895 = vpop.f32.mrf.mxu0
        %v3896 = vadd.f32 %v3838, %v3895
        %v3897 = vpop.f32.mrf.mxu0
        %v3898 = vadd.f32 %v3840, %v3897
        %3899 = vmatmul.bf16.gmra.mxu0 %v3010
        %v3900 = vpop.f32.mrf.mxu0
        %v3901 = vadd.f32 %v3843, %v3900
        %v3902 = vpop.f32.mrf.mxu0
        %v3903 = vadd.f32 %v3845, %v3902
        %3904 = vmatmul.bf16.gmra.mxu0 %v3014
        %v3905 = vpop.f32.mrf.mxu0
        %v3906 = vadd.f32 %v3848, %v3905
        %v3907 = vpop.f32.mrf.mxu0
        %v3908 = vadd.f32 %v3850, %v3907
        %3909 = vmatmul.bf16.gmra.mxu0 %v3018
        %v3910 = vpop.f32.mrf.mxu0
        %v3911 = vadd.f32 %v3853, %v3910
        %v3912 = vpop.f32.mrf.mxu0
        %v3913 = vadd.f32 %v3855, %v3912
        %3914 = vmatmul.bf16.gmra.mxu0 %v3022
        %v3915 = vpop.f32.mrf.mxu0
        %v3916 = vadd.f32 %v3858, %v3915
        %v3917 = vpop.f32.mrf.mxu0
        %3918 = vdwg.mxu0
        %3919 = vmatpush.bf16.msra.mxu0 %v3639
        %3920 = vmatpush.bf16.msra.mxu0 %v3635
        %3921 = vmatpush.bf16.msra.mxu0 %v3631
        %3922 = vmatpush.bf16.msra.mxu0 %v3627
        %3923 = vmatpush.bf16.msra.mxu0 %v3623
        %3924 = vmatpush.bf16.msra.mxu0 %v3619
        %3925 = vmatpush.bf16.msra.mxu0 %v3615
        %3926 = vmatpush.bf16.msra.mxu0 %v3611
        %3927 = vmatmul.bf16.gmra.mxu0 %v2987
        %v3928 = vpop.f32.mrf.mxu0
        %v3929 = vadd.f32 %v3871, %v3928
        %v3930 = vpop.f32.mrf.mxu0
        %v3931 = vadd.f32 %v3873, %v3930
        %3932 = vmatmul.bf16.gmra.mxu0 %v2991
        %v3933 = vpop.f32.mrf.mxu0
        %v3934 = vadd.f32 %v3876, %v3933
        %v3935 = vpop.f32.mrf.mxu0
        %v3936 = vadd.f32 %v3878, %v3935
        %3937 = vmatmul.bf16.gmra.mxu0 %v2995
        %v3938 = vpop.f32.mrf.mxu0
        %v3939 = vadd.f32 %v3881, %v3938
        %v3940 = vpop.f32.mrf.mxu0
        %v3941 = vadd.f32 %v3883, %v3940
        %3942 = vmatmul.bf16.gmra.mxu0 %v2999
        %v3943 = vpop.f32.mrf.mxu0
        %v3944 = vadd.f32 %v3886, %v3943
        %v3945 = vpop.f32.mrf.mxu0
        %v3946 = vadd.f32 %v3888, %v3945
        %3947 = vmatmul.bf16.gmra.mxu0 %v3003
        %v3948 = vpop.f32.mrf.mxu0
        %v3949 = vadd.f32 %v3891, %v3948
        %v3950 = vpop.f32.mrf.mxu0
        %v3951 = vadd.f32 %v3893, %v3950
        %3952 = vmatmul.bf16.gmra.mxu0 %v3007
        %v3953 = vpop.f32.mrf.mxu0
        %v3954 = vadd.f32 %v3896, %v3953
        %v3955 = vpop.f32.mrf.mxu0
        %v3956 = vadd.f32 %v3898, %v3955
        %3957 = vmatmul.bf16.gmra.mxu0 %v3011
        %v3958 = vpop.f32.mrf.mxu0
        %v3959 = vadd.f32 %v3901, %v3958
        %v3960 = vpop.f32.mrf.mxu0
        %v3961 = vadd.f32 %v3903, %v3960
        %3962 = vmatmul.bf16.gmra.mxu0 %v3015
        %v3963 = vpop.f32.mrf.mxu0
        %v3964 = vadd.f32 %v3906, %v3963
        %v3965 = vpop.f32.mrf.mxu0
        %v3966 = vadd.f32 %v3908, %v3965
        %3967 = vmatmul.bf16.gmra.mxu0 %v3019
        %v3968 = vpop.f32.mrf.mxu0
        %v3969 = vadd.f32 %v3911, %v3968
        %v3970 = vpop.f32.mrf.mxu0
        %v3971 = vadd.f32 %v3913, %v3970
        %3972 = vmatmul.bf16.gmra.mxu0 %v3023
        %v3973 = vpop.f32.mrf.mxu0
        %v3974 = vadd.f32 %v3916, %v3973
        %v3975 = vpop.f32.mrf.mxu0
        %3976 = vdwg.mxu0
        %3977 = vmatpush.bf16.msra.mxu0 %v3671
        %3978 = vmatpush.bf16.msra.mxu0 %v3667
        %3979 = vmatpush.bf16.msra.mxu0 %v3663
        %3980 = vmatpush.bf16.msra.mxu0 %v3659
        %3981 = vmatpush.bf16.msra.mxu0 %v3655
        %3982 = vmatpush.bf16.msra.mxu0 %v3651
        %3983 = vmatpush.bf16.msra.mxu0 %v3647
        %3984 = vmatpush.bf16.msra.mxu0 %v3643
        %3985 = vmatmul.bf16.gmra.mxu0 %v2988
        %v3986 = vpop.f32.mrf.mxu0
        %v3987 = vadd.f32 %v3929, %v3986
        %v3988 = vpop.f32.mrf.mxu0
        %v3989 = vadd.f32 %v3931, %v3988
        %3990 = vmatmul.bf16.gmra.mxu0 %v2992
        %v3991 = vpop.f32.mrf.mxu0
        %v3992 = vadd.f32 %v3934, %v3991
        %v3993 = vpop.f32.mrf.mxu0
        %v3994 = vadd.f32 %v3936, %v3993
        %3995 = vmatmul.bf16.gmra.mxu0 %v2996
        %v3996 = vpop.f32.mrf.mxu0
        %v3997 = vadd.f32 %v3939, %v3996
        %v3998 = vpop.f32.mrf.mxu0
        %v3999 = vadd.f32 %v3941, %v3998
        %4000 = vmatmul.bf16.gmra.mxu0 %v3000
        %v4001 = vpop.f32.mrf.mxu0
        %v4002 = vadd.f32 %v3944, %v4001
        %v4003 = vpop.f32.mrf.mxu0
        %v4004 = vadd.f32 %v3946, %v4003
        %4005 = vmatmul.bf16.gmra.mxu0 %v3004
        %v4006 = vpop.f32.mrf.mxu0
        %v4007 = vadd.f32 %v3949, %v4006
        %v4008 = vpop.f32.mrf.mxu0
        %v4009 = vadd.f32 %v3951, %v4008
        %4010 = vmatmul.bf16.gmra.mxu0 %v3008
        %v4011 = vpop.f32.mrf.mxu0
        %v4012 = vadd.f32 %v3954, %v4011
        %v4013 = vpop.f32.mrf.mxu0
        %v4014 = vadd.f32 %v3956, %v4013
        %4015 = vmatmul.bf16.gmra.mxu0 %v3012
        %v4016 = vpop.f32.mrf.mxu0
        %v4017 = vadd.f32 %v3959, %v4016
        %v4018 = vpop.f32.mrf.mxu0
        %v4019 = vadd.f32 %v3961, %v4018
        %4020 = vmatmul.bf16.gmra.mxu0 %v3016
        %v4021 = vpop.f32.mrf.mxu0
        %v4022 = vadd.f32 %v3964, %v4021
        %v4023 = vpop.f32.mrf.mxu0
        %v4024 = vadd.f32 %v3966, %v4023
        %4025 = vmatmul.bf16.gmra.mxu0 %v3020
        %v4026 = vpop.f32.mrf.mxu0
        %v4027 = vadd.f32 %v3969, %v4026
        %v4028 = vpop.f32.mrf.mxu0
        %v4029 = vadd.f32 %v3971, %v4028
        %4030 = vmatmul.bf16.gmra.mxu0 %v3024
        %v4031 = vpop.f32.mrf.mxu0
        %v4032 = vadd.f32 %v3974, %v4031
        %v4033 = vpop.f32.mrf.mxu0
        %4034 = vdwg.mxu0
        %4035 = vmatpush.bf16.msra.mxu0 %v3576
        %4036 = vmatpush.bf16.msra.mxu0 %v3572
        %4037 = vmatpush.bf16.msra.mxu0 %v3568
        %4038 = vmatpush.bf16.msra.mxu0 %v3564
        %4039 = vmatpush.bf16.msra.mxu0 %v3560
        %4040 = vmatpush.bf16.msra.mxu0 %v3556
        %4041 = vmatpush.bf16.msra.mxu0 %v3552
        %4042 = vmatpush.bf16.msra.mxu0 %v3548
        %4043 = vmatmul.bf16.gmra.mxu0 %v2985
        %v4044 = vpop.f32.mrf.mxu0
        %v4045 = vadd.f32 %v3156, %v4044
        %v4046 = vpop.f32.mrf.mxu0
        %v4047 = vadd.f32 %v3156, %v4046
        %4048 = vmatmul.bf16.gmra.mxu0 %v2989
        %v4049 = vpop.f32.mrf.mxu0
        %v4050 = vadd.f32 %v3156, %v4049
        %v4051 = vpop.f32.mrf.mxu0
        %v4052 = vadd.f32 %v3156, %v4051
        %4053 = vmatmul.bf16.gmra.mxu0 %v2993
        %v4054 = vpop.f32.mrf.mxu0
        %v4055 = vadd.f32 %v3156, %v4054
        %v4056 = vpop.f32.mrf.mxu0
        %v4057 = vadd.f32 %v3156, %v4056
        %4058 = vmatmul.bf16.gmra.mxu0 %v2997
        %v4059 = vpop.f32.mrf.mxu0
        %v4060 = vadd.f32 %v3156, %v4059
        %v4061 = vpop.f32.mrf.mxu0
        %v4062 = vadd.f32 %v3156, %v4061
        %4063 = vmatmul.bf16.gmra.mxu0 %v3001
        %v4064 = vpop.f32.mrf.mxu0
        %v4065 = vadd.f32 %v3156, %v4064
        %v4066 = vpop.f32.mrf.mxu0
        %v4067 = vadd.f32 %v3156, %v4066
        %4068 = vmatmul.bf16.gmra.mxu0 %v3005
        %v4069 = vpop.f32.mrf.mxu0
        %v4070 = vadd.f32 %v3156, %v4069
        %v4071 = vpop.f32.mrf.mxu0
        %v4072 = vadd.f32 %v3156, %v4071
        %4073 = vmatmul.bf16.gmra.mxu0 %v3009
        %v4074 = vpop.f32.mrf.mxu0
        %v4075 = vadd.f32 %v3156, %v4074
        %v4076 = vpop.f32.mrf.mxu0
        %v4077 = vadd.f32 %v3156, %v4076
        %4078 = vmatmul.bf16.gmra.mxu0 %v3013
        %v4079 = vpop.f32.mrf.mxu0
        %v4080 = vadd.f32 %v3156, %v4079
        %v4081 = vpop.f32.mrf.mxu0
        %v4082 = vadd.f32 %v3156, %v4081
        %4083 = vmatmul.bf16.gmra.mxu0 %v3017
        %v4084 = vpop.f32.mrf.mxu0
        %v4085 = vadd.f32 %v3156, %v4084
        %v4086 = vpop.f32.mrf.mxu0
        %v4087 = vadd.f32 %v3156, %v4086
        %4088 = vmatmul.bf16.gmra.mxu0 %v3021
        %v4089 = vpop.f32.mrf.mxu0
        %v4090 = vadd.f32 %v3156, %v4089
        %v4091 = vpop.f32.mrf.mxu0
        %4092 = vdwg.mxu0
        %4093 = vmatpush.bf16.msra.mxu0 %v3608
        %4094 = vmatpush.bf16.msra.mxu0 %v3604
        %4095 = vmatpush.bf16.msra.mxu0 %v3600
        %4096 = vmatpush.bf16.msra.mxu0 %v3596
        %4097 = vmatpush.bf16.msra.mxu0 %v3592
        %4098 = vmatpush.bf16.msra.mxu0 %v3588
        %4099 = vmatpush.bf16.msra.mxu0 %v3584
        %4100 = vmatpush.bf16.msra.mxu0 %v3580
        %4101 = vmatmul.bf16.gmra.mxu0 %v2986
        %v4102 = vpop.f32.mrf.mxu0
        %v4103 = vadd.f32 %v4045, %v4102
        %v4104 = vpop.f32.mrf.mxu0
        %v4105 = vadd.f32 %v4047, %v4104
        %4106 = vmatmul.bf16.gmra.mxu0 %v2990
        %v4107 = vpop.f32.mrf.mxu0
        %v4108 = vadd.f32 %v4050, %v4107
        %v4109 = vpop.f32.mrf.mxu0
        %v4110 = vadd.f32 %v4052, %v4109
        %4111 = vmatmul.bf16.gmra.mxu0 %v2994
        %v4112 = vpop.f32.mrf.mxu0
        %v4113 = vadd.f32 %v4055, %v4112
        %v4114 = vpop.f32.mrf.mxu0
        %v4115 = vadd.f32 %v4057, %v4114
        %4116 = vmatmul.bf16.gmra.mxu0 %v2998
        %v4117 = vpop.f32.mrf.mxu0
        %v4118 = vadd.f32 %v4060, %v4117
        %v4119 = vpop.f32.mrf.mxu0
        %v4120 = vadd.f32 %v4062, %v4119
        %4121 = vmatmul.bf16.gmra.mxu0 %v3002
        %v4122 = vpop.f32.mrf.mxu0
        %v4123 = vadd.f32 %v4065, %v4122
        %v4124 = vpop.f32.mrf.mxu0
        %v4125 = vadd.f32 %v4067, %v4124
        %4126 = vmatmul.bf16.gmra.mxu0 %v3006
        %v4127 = vpop.f32.mrf.mxu0
        %v4128 = vadd.f32 %v4070, %v4127
        %v4129 = vpop.f32.mrf.mxu0
        %v4130 = vadd.f32 %v4072, %v4129
        %4131 = vmatmul.bf16.gmra.mxu0 %v3010
        %v4132 = vpop.f32.mrf.mxu0
        %v4133 = vadd.f32 %v4075, %v4132
        %v4134 = vpop.f32.mrf.mxu0
        %v4135 = vadd.f32 %v4077, %v4134
        %4136 = vmatmul.bf16.gmra.mxu0 %v3014
        %v4137 = vpop.f32.mrf.mxu0
        %v4138 = vadd.f32 %v4080, %v4137
        %v4139 = vpop.f32.mrf.mxu0
        %v4140 = vadd.f32 %v4082, %v4139
        %4141 = vmatmul.bf16.gmra.mxu0 %v3018
        %v4142 = vpop.f32.mrf.mxu0
        %v4143 = vadd.f32 %v4085, %v4142
        %v4144 = vpop.f32.mrf.mxu0
        %v4145 = vadd.f32 %v4087, %v4144
        %4146 = vmatmul.bf16.gmra.mxu0 %v3022
        %v4147 = vpop.f32.mrf.mxu0
        %v4148 = vadd.f32 %v4090, %v4147
        %v4149 = vpop.f32.mrf.mxu0
        %4150 = vdwg.mxu0
        %4151 = vmatpush.bf16.msra.mxu0 %v3640
        %4152 = vmatpush.bf16.msra.mxu0 %v3636
        %4153 = vmatpush.bf16.msra.mxu0 %v3632
        %4154 = vmatpush.bf16.msra.mxu0 %v3628
        %4155 = vmatpush.bf16.msra.mxu0 %v3624
        %4156 = vmatpush.bf16.msra.mxu0 %v3620
        %4157 = vmatpush.bf16.msra.mxu0 %v3616
        %4158 = vmatpush.bf16.msra.mxu0 %v3612
        %4159 = vmatmul.bf16.gmra.mxu0 %v2987
        %v4160 = vpop.f32.mrf.mxu0
        %v4161 = vadd.f32 %v4103, %v4160
        %v4162 = vpop.f32.mrf.mxu0
        %v4163 = vadd.f32 %v4105, %v4162
        %4164 = vmatmul.bf16.gmra.mxu0 %v2991
        %v4165 = vpop.f32.mrf.mxu0
        %v4166 = vadd.f32 %v4108, %v4165
        %v4167 = vpop.f32.mrf.mxu0
        %v4168 = vadd.f32 %v4110, %v4167
        %4169 = vmatmul.bf16.gmra.mxu0 %v2995
        %v4170 = vpop.f32.mrf.mxu0
        %v4171 = vadd.f32 %v4113, %v4170
        %v4172 = vpop.f32.mrf.mxu0
        %v4173 = vadd.f32 %v4115, %v4172
        %4174 = vmatmul.bf16.gmra.mxu0 %v2999
        %v4175 = vpop.f32.mrf.mxu0
        %v4176 = vadd.f32 %v4118, %v4175
        %v4177 = vpop.f32.mrf.mxu0
        %v4178 = vadd.f32 %v4120, %v4177
        %4179 = vmatmul.bf16.gmra.mxu0 %v3003
        %v4180 = vpop.f32.mrf.mxu0
        %v4181 = vadd.f32 %v4123, %v4180
        %v4182 = vpop.f32.mrf.mxu0
        %v4183 = vadd.f32 %v4125, %v4182
        %4184 = vmatmul.bf16.gmra.mxu0 %v3007
        %v4185 = vpop.f32.mrf.mxu0
        %v4186 = vadd.f32 %v4128, %v4185
        %v4187 = vpop.f32.mrf.mxu0
        %v4188 = vadd.f32 %v4130, %v4187
        %4189 = vmatmul.bf16.gmra.mxu0 %v3011
        %v4190 = vpop.f32.mrf.mxu0
        %v4191 = vadd.f32 %v4133, %v4190
        %v4192 = vpop.f32.mrf.mxu0
        %v4193 = vadd.f32 %v4135, %v4192
        %4194 = vmatmul.bf16.gmra.mxu0 %v3015
        %v4195 = vpop.f32.mrf.mxu0
        %v4196 = vadd.f32 %v4138, %v4195
        %v4197 = vpop.f32.mrf.mxu0
        %v4198 = vadd.f32 %v4140, %v4197
        %4199 = vmatmul.bf16.gmra.mxu0 %v3019
        %v4200 = vpop.f32.mrf.mxu0
        %v4201 = vadd.f32 %v4143, %v4200
        %v4202 = vpop.f32.mrf.mxu0
        %v4203 = vadd.f32 %v4145, %v4202
        %4204 = vmatmul.bf16.gmra.mxu0 %v3023
        %v4205 = vpop.f32.mrf.mxu0
        %v4206 = vadd.f32 %v4148, %v4205
        %v4207 = vpop.f32.mrf.mxu0
        %4208 = vdwg.mxu0
        %4209 = vmatpush.bf16.msra.mxu0 %v3672
        %4210 = vmatpush.bf16.msra.mxu0 %v3668
        %4211 = vmatpush.bf16.msra.mxu0 %v3664
        %4212 = vmatpush.bf16.msra.mxu0 %v3660
        %4213 = vmatpush.bf16.msra.mxu0 %v3656
        %4214 = vmatpush.bf16.msra.mxu0 %v3652
        %4215 = vmatpush.bf16.msra.mxu0 %v3648
        %4216 = vmatpush.bf16.msra.mxu0 %v3644
        %4217 = vmatmul.bf16.gmra.mxu0 %v2988
        %v4218 = vpop.f32.mrf.mxu0
        %v4219 = vadd.f32 %v4161, %v4218
        %v4220 = vpop.f32.mrf.mxu0
        %v4221 = vadd.f32 %v4163, %v4220
        %4222 = vmatmul.bf16.gmra.mxu0 %v2992
        %v4223 = vpop.f32.mrf.mxu0
        %v4224 = vadd.f32 %v4166, %v4223
        %v4225 = vpop.f32.mrf.mxu0
        %v4226 = vadd.f32 %v4168, %v4225
        %4227 = vmatmul.bf16.gmra.mxu0 %v2996
        %v4228 = vpop.f32.mrf.mxu0
        %v4229 = vadd.f32 %v4171, %v4228
        %v4230 = vpop.f32.mrf.mxu0
        %v4231 = vadd.f32 %v4173, %v4230
        %4232 = vmatmul.bf16.gmra.mxu0 %v3000
        %v4233 = vpop.f32.mrf.mxu0
        %v4234 = vadd.f32 %v4176, %v4233
        %v4235 = vpop.f32.mrf.mxu0
        %v4236 = vadd.f32 %v4178, %v4235
        %4237 = vmatmul.bf16.gmra.mxu0 %v3004
        %v4238 = vpop.f32.mrf.mxu0
        %v4239 = vadd.f32 %v4181, %v4238
        %v4240 = vpop.f32.mrf.mxu0
        %v4241 = vadd.f32 %v4183, %v4240
        %4242 = vmatmul.bf16.gmra.mxu0 %v3008
        %v4243 = vpop.f32.mrf.mxu0
        %v4244 = vadd.f32 %v4186, %v4243
        %v4245 = vpop.f32.mrf.mxu0
        %v4246 = vadd.f32 %v4188, %v4245
        %4247 = vmatmul.bf16.gmra.mxu0 %v3012
        %v4248 = vpop.f32.mrf.mxu0
        %v4249 = vadd.f32 %v4191, %v4248
        %v4250 = vpop.f32.mrf.mxu0
        %v4251 = vadd.f32 %v4193, %v4250
        %4252 = vmatmul.bf16.gmra.mxu0 %v3016
        %v4253 = vpop.f32.mrf.mxu0
        %v4254 = vadd.f32 %v4196, %v4253
        %v4255 = vpop.f32.mrf.mxu0
        %v4256 = vadd.f32 %v4198, %v4255
        %4257 = vmatmul.bf16.gmra.mxu0 %v3020
        %v4258 = vpop.f32.mrf.mxu0
        %v4259 = vadd.f32 %v4201, %v4258
        %v4260 = vpop.f32.mrf.mxu0
        %v4261 = vadd.f32 %v4203, %v4260
        %4262 = vmatmul.bf16.gmra.mxu0 %v3024
        %v4263 = vpop.f32.mrf.mxu0
        %v4264 = vadd.f32 %v4206, %v4263
        %v4265 = vpop.f32.mrf.mxu0
        %4266 = vdwg.mxu0
        %4267 = vmatpush.bf16.msra.mxu0 %v3577
        %4268 = vmatpush.bf16.msra.mxu0 %v3573
        %4269 = vmatpush.bf16.msra.mxu0 %v3569
        %4270 = vmatpush.bf16.msra.mxu0 %v3565
        %4271 = vmatpush.bf16.msra.mxu0 %v3561
        %4272 = vmatpush.bf16.msra.mxu0 %v3557
        %4273 = vmatpush.bf16.msra.mxu0 %v3553
        %4274 = vmatpush.bf16.msra.mxu0 %v3549
        %4275 = vmatmul.bf16.gmra.mxu0 %v2985
        %v4276 = vpop.f32.mrf.mxu0
        %v4277 = vadd.f32 %v3157, %v4276
        %v4278 = vpop.f32.mrf.mxu0
        %v4279 = vadd.f32 %v3157, %v4278
        %4280 = vmatmul.bf16.gmra.mxu0 %v2989
        %v4281 = vpop.f32.mrf.mxu0
        %v4282 = vadd.f32 %v3157, %v4281
        %v4283 = vpop.f32.mrf.mxu0
        %v4284 = vadd.f32 %v3157, %v4283
        %4285 = vmatmul.bf16.gmra.mxu0 %v2993
        %v4286 = vpop.f32.mrf.mxu0
        %v4287 = vadd.f32 %v3157, %v4286
        %v4288 = vpop.f32.mrf.mxu0
        %v4289 = vadd.f32 %v3157, %v4288
        %4290 = vmatmul.bf16.gmra.mxu0 %v2997
        %v4291 = vpop.f32.mrf.mxu0
        %v4292 = vadd.f32 %v3157, %v4291
        %v4293 = vpop.f32.mrf.mxu0
        %v4294 = vadd.f32 %v3157, %v4293
        %4295 = vmatmul.bf16.gmra.mxu0 %v3001
        %v4296 = vpop.f32.mrf.mxu0
        %v4297 = vadd.f32 %v3157, %v4296
        %v4298 = vpop.f32.mrf.mxu0
        %v4299 = vadd.f32 %v3157, %v4298
        %4300 = vmatmul.bf16.gmra.mxu0 %v3005
        %v4301 = vpop.f32.mrf.mxu0
        %v4302 = vadd.f32 %v3157, %v4301
        %v4303 = vpop.f32.mrf.mxu0
        %v4304 = vadd.f32 %v3157, %v4303
        %4305 = vmatmul.bf16.gmra.mxu0 %v3009
        %v4306 = vpop.f32.mrf.mxu0
        %v4307 = vadd.f32 %v3157, %v4306
        %v4308 = vpop.f32.mrf.mxu0
        %v4309 = vadd.f32 %v3157, %v4308
        %4310 = vmatmul.bf16.gmra.mxu0 %v3013
        %v4311 = vpop.f32.mrf.mxu0
        %v4312 = vadd.f32 %v3157, %v4311
        %v4313 = vpop.f32.mrf.mxu0
        %v4314 = vadd.f32 %v3157, %v4313
        %4315 = vmatmul.bf16.gmra.mxu0 %v3017
        %v4316 = vpop.f32.mrf.mxu0
        %v4317 = vadd.f32 %v3157, %v4316
        %v4318 = vpop.f32.mrf.mxu0
        %v4319 = vadd.f32 %v3157, %v4318
        %4320 = vmatmul.bf16.gmra.mxu0 %v3021
        %v4321 = vpop.f32.mrf.mxu0
        %v4322 = vadd.f32 %v3157, %v4321
        %v4323 = vpop.f32.mrf.mxu0
        %4324 = vdwg.mxu0
        %4325 = vmatpush.bf16.msra.mxu0 %v3609
        %4326 = vmatpush.bf16.msra.mxu0 %v3605
        %4327 = vmatpush.bf16.msra.mxu0 %v3601
        %4328 = vmatpush.bf16.msra.mxu0 %v3597
        %4329 = vmatpush.bf16.msra.mxu0 %v3593
        %4330 = vmatpush.bf16.msra.mxu0 %v3589
        %4331 = vmatpush.bf16.msra.mxu0 %v3585
        %4332 = vmatpush.bf16.msra.mxu0 %v3581
        %4333 = vmatmul.bf16.gmra.mxu0 %v2986
        %v4334 = vpop.f32.mrf.mxu0
        %v4335 = vadd.f32 %v4277, %v4334
        %v4336 = vpop.f32.mrf.mxu0
        %v4337 = vadd.f32 %v4279, %v4336
        %4338 = vmatmul.bf16.gmra.mxu0 %v2990
        %v4339 = vpop.f32.mrf.mxu0
        %v4340 = vadd.f32 %v4282, %v4339
        %v4341 = vpop.f32.mrf.mxu0
        %v4342 = vadd.f32 %v4284, %v4341
        %4343 = vmatmul.bf16.gmra.mxu0 %v2994
        %v4344 = vpop.f32.mrf.mxu0
        %v4345 = vadd.f32 %v4287, %v4344
        %v4346 = vpop.f32.mrf.mxu0
        %v4347 = vadd.f32 %v4289, %v4346
        %4348 = vmatmul.bf16.gmra.mxu0 %v2998
        %v4349 = vpop.f32.mrf.mxu0
        %v4350 = vadd.f32 %v4292, %v4349
        %v4351 = vpop.f32.mrf.mxu0
        %v4352 = vadd.f32 %v4294, %v4351
        %4353 = vmatmul.bf16.gmra.mxu0 %v3002
        %v4354 = vpop.f32.mrf.mxu0
        %v4355 = vadd.f32 %v4297, %v4354
        %v4356 = vpop.f32.mrf.mxu0
        %v4357 = vadd.f32 %v4299, %v4356
        %4358 = vmatmul.bf16.gmra.mxu0 %v3006
        %v4359 = vpop.f32.mrf.mxu0
        %v4360 = vadd.f32 %v4302, %v4359
        %v4361 = vpop.f32.mrf.mxu0
        %v4362 = vadd.f32 %v4304, %v4361
        %4363 = vmatmul.bf16.gmra.mxu0 %v3010
        %v4364 = vpop.f32.mrf.mxu0
        %v4365 = vadd.f32 %v4307, %v4364
        %v4366 = vpop.f32.mrf.mxu0
        %v4367 = vadd.f32 %v4309, %v4366
        %4368 = vmatmul.bf16.gmra.mxu0 %v3014
        %v4369 = vpop.f32.mrf.mxu0
        %v4370 = vadd.f32 %v4312, %v4369
        %v4371 = vpop.f32.mrf.mxu0
        %v4372 = vadd.f32 %v4314, %v4371
        %4373 = vmatmul.bf16.gmra.mxu0 %v3018
        %v4374 = vpop.f32.mrf.mxu0
        %v4375 = vadd.f32 %v4317, %v4374
        %v4376 = vpop.f32.mrf.mxu0
        %v4377 = vadd.f32 %v4319, %v4376
        %4378 = vmatmul.bf16.gmra.mxu0 %v3022
        %v4379 = vpop.f32.mrf.mxu0
        %v4380 = vadd.f32 %v4322, %v4379
        %v4381 = vpop.f32.mrf.mxu0
        %4382 = vdwg.mxu0
        %4383 = vmatpush.bf16.msra.mxu0 %v3641
        %4384 = vmatpush.bf16.msra.mxu0 %v3637
        %4385 = vmatpush.bf16.msra.mxu0 %v3633
        %4386 = vmatpush.bf16.msra.mxu0 %v3629
        %4387 = vmatpush.bf16.msra.mxu0 %v3625
        %4388 = vmatpush.bf16.msra.mxu0 %v3621
        %4389 = vmatpush.bf16.msra.mxu0 %v3617
        %4390 = vmatpush.bf16.msra.mxu0 %v3613
        %4391 = vmatmul.bf16.gmra.mxu0 %v2987
        %v4392 = vpop.f32.mrf.mxu0
        %v4393 = vadd.f32 %v4335, %v4392
        %v4394 = vpop.f32.mrf.mxu0
        %v4395 = vadd.f32 %v4337, %v4394
        %4396 = vmatmul.bf16.gmra.mxu0 %v2991
        %v4397 = vpop.f32.mrf.mxu0
        %v4398 = vadd.f32 %v4340, %v4397
        %v4399 = vpop.f32.mrf.mxu0
        %v4400 = vadd.f32 %v4342, %v4399
        %4401 = vmatmul.bf16.gmra.mxu0 %v2995
        %v4402 = vpop.f32.mrf.mxu0
        %v4403 = vadd.f32 %v4345, %v4402
        %v4404 = vpop.f32.mrf.mxu0
        %v4405 = vadd.f32 %v4347, %v4404
        %4406 = vmatmul.bf16.gmra.mxu0 %v2999
        %v4407 = vpop.f32.mrf.mxu0
        %v4408 = vadd.f32 %v4350, %v4407
        %v4409 = vpop.f32.mrf.mxu0
        %v4410 = vadd.f32 %v4352, %v4409
        %4411 = vmatmul.bf16.gmra.mxu0 %v3003
        %v4412 = vpop.f32.mrf.mxu0
        %v4413 = vadd.f32 %v4355, %v4412
        %v4414 = vpop.f32.mrf.mxu0
        %v4415 = vadd.f32 %v4357, %v4414
        %4416 = vmatmul.bf16.gmra.mxu0 %v3007
        %v4417 = vpop.f32.mrf.mxu0
        %v4418 = vadd.f32 %v4360, %v4417
        %v4419 = vpop.f32.mrf.mxu0
        %v4420 = vadd.f32 %v4362, %v4419
        %4421 = vmatmul.bf16.gmra.mxu0 %v3011
        %v4422 = vpop.f32.mrf.mxu0
        %v4423 = vadd.f32 %v4365, %v4422
        %v4424 = vpop.f32.mrf.mxu0
        %v4425 = vadd.f32 %v4367, %v4424
        %4426 = vmatmul.bf16.gmra.mxu0 %v3015
        %v4427 = vpop.f32.mrf.mxu0
        %v4428 = vadd.f32 %v4370, %v4427
        %v4429 = vpop.f32.mrf.mxu0
        %v4430 = vadd.f32 %v4372, %v4429
        %4431 = vmatmul.bf16.gmra.mxu0 %v3019
        %v4432 = vpop.f32.mrf.mxu0
        %v4433 = vadd.f32 %v4375, %v4432
        %v4434 = vpop.f32.mrf.mxu0
        %v4435 = vadd.f32 %v4377, %v4434
        %4436 = vmatmul.bf16.gmra.mxu0 %v3023
        %v4437 = vpop.f32.mrf.mxu0
        %v4438 = vadd.f32 %v4380, %v4437
        %v4439 = vpop.f32.mrf.mxu0
        %4440 = vdwg.mxu0
        %4441 = vmatpush.bf16.msra.mxu0 %v3673
        %4442 = vmatpush.bf16.msra.mxu0 %v3669
        %4443 = vmatpush.bf16.msra.mxu0 %v3665
        %4444 = vmatpush.bf16.msra.mxu0 %v3661
        %4445 = vmatpush.bf16.msra.mxu0 %v3657
        %4446 = vmatpush.bf16.msra.mxu0 %v3653
        %4447 = vmatpush.bf16.msra.mxu0 %v3649
        %4448 = vmatpush.bf16.msra.mxu0 %v3645
        %4449 = vmatmul.bf16.gmra.mxu0 %v2988
        %v4450 = vpop.f32.mrf.mxu0
        %v4451 = vadd.f32 %v4393, %v4450
        %v4452 = vpop.f32.mrf.mxu0
        %v4453 = vadd.f32 %v4395, %v4452
        %4454 = vmatmul.bf16.gmra.mxu0 %v2992
        %v4455 = vpop.f32.mrf.mxu0
        %v4456 = vadd.f32 %v4398, %v4455
        %v4457 = vpop.f32.mrf.mxu0
        %v4458 = vadd.f32 %v4400, %v4457
        %4459 = vmatmul.bf16.gmra.mxu0 %v2996
        %v4460 = vpop.f32.mrf.mxu0
        %v4461 = vadd.f32 %v4403, %v4460
        %v4462 = vpop.f32.mrf.mxu0
        %v4463 = vadd.f32 %v4405, %v4462
        %4464 = vmatmul.bf16.gmra.mxu0 %v3000
        %v4465 = vpop.f32.mrf.mxu0
        %v4466 = vadd.f32 %v4408, %v4465
        %v4467 = vpop.f32.mrf.mxu0
        %v4468 = vadd.f32 %v4410, %v4467
        %4469 = vmatmul.bf16.gmra.mxu0 %v3004
        %v4470 = vpop.f32.mrf.mxu0
        %v4471 = vadd.f32 %v4413, %v4470
        %v4472 = vpop.f32.mrf.mxu0
        %v4473 = vadd.f32 %v4415, %v4472
        %4474 = vmatmul.bf16.gmra.mxu0 %v3008
        %v4475 = vpop.f32.mrf.mxu0
        %v4476 = vadd.f32 %v4418, %v4475
        %v4477 = vpop.f32.mrf.mxu0
        %v4478 = vadd.f32 %v4420, %v4477
        %4479 = vmatmul.bf16.gmra.mxu0 %v3012
        %v4480 = vpop.f32.mrf.mxu0
        %v4481 = vadd.f32 %v4423, %v4480
        %v4482 = vpop.f32.mrf.mxu0
        %v4483 = vadd.f32 %v4425, %v4482
        %4484 = vmatmul.bf16.gmra.mxu0 %v3016
        %v4485 = vpop.f32.mrf.mxu0
        %v4486 = vadd.f32 %v4428, %v4485
        %v4487 = vpop.f32.mrf.mxu0
        %v4488 = vadd.f32 %v4430, %v4487
        %4489 = vmatmul.bf16.gmra.mxu0 %v3020
        %v4490 = vpop.f32.mrf.mxu0
        %v4491 = vadd.f32 %v4433, %v4490
        %v4492 = vpop.f32.mrf.mxu0
        %v4493 = vadd.f32 %v4435, %v4492
        %4494 = vmatmul.bf16.gmra.mxu0 %v3024
        %v4495 = vpop.f32.mrf.mxu0
        %v4496 = vadd.f32 %v4438, %v4495
        %v4497 = vpop.f32.mrf.mxu0
        %4498 = vdwg.mxu0
        %4499 = vmatpush.bf16.msra.mxu0 %v3578
        %4500 = vmatpush.bf16.msra.mxu0 %v3574
        %4501 = vmatpush.bf16.msra.mxu0 %v3570
        %4502 = vmatpush.bf16.msra.mxu0 %v3566
        %4503 = vmatpush.bf16.msra.mxu0 %v3562
        %4504 = vmatpush.bf16.msra.mxu0 %v3558
        %4505 = vmatpush.bf16.msra.mxu0 %v3554
        %4506 = vmatpush.bf16.msra.mxu0 %v3550
        %4507 = vmatmul.bf16.gmra.mxu0 %v2985
        %v4508 = vpop.f32.mrf.mxu0
        %v4509 = vadd.f32 %v3158, %v4508
        %v4510 = vpop.f32.mrf.mxu0
        %v4511 = vadd.f32 %v3158, %v4510
        %4512 = vmatmul.bf16.gmra.mxu0 %v2989
        %v4513 = vpop.f32.mrf.mxu0
        %v4514 = vadd.f32 %v3158, %v4513
        %v4515 = vpop.f32.mrf.mxu0
        %v4516 = vadd.f32 %v3158, %v4515
        %4517 = vmatmul.bf16.gmra.mxu0 %v2993
        %v4518 = vpop.f32.mrf.mxu0
        %v4519 = vadd.f32 %v3158, %v4518
        %v4520 = vpop.f32.mrf.mxu0
        %v4521 = vadd.f32 %v3158, %v4520
        %4522 = vmatmul.bf16.gmra.mxu0 %v2997
        %v4523 = vpop.f32.mrf.mxu0
        %v4524 = vadd.f32 %v3158, %v4523
        %v4525 = vpop.f32.mrf.mxu0
        %v4526 = vadd.f32 %v3158, %v4525
        %4527 = vmatmul.bf16.gmra.mxu0 %v3001
        %v4528 = vpop.f32.mrf.mxu0
        %v4529 = vadd.f32 %v3158, %v4528
        %v4530 = vpop.f32.mrf.mxu0
        %v4531 = vadd.f32 %v3158, %v4530
        %4532 = vmatmul.bf16.gmra.mxu0 %v3005
        %v4533 = vpop.f32.mrf.mxu0
        %v4534 = vadd.f32 %v3158, %v4533
        %v4535 = vpop.f32.mrf.mxu0
        %v4536 = vadd.f32 %v3158, %v4535
        %4537 = vmatmul.bf16.gmra.mxu0 %v3009
        %v4538 = vpop.f32.mrf.mxu0
        %v4539 = vadd.f32 %v3158, %v4538
        %v4540 = vpop.f32.mrf.mxu0
        %v4541 = vadd.f32 %v3158, %v4540
        %4542 = vmatmul.bf16.gmra.mxu0 %v3013
        %v4543 = vpop.f32.mrf.mxu0
        %v4544 = vadd.f32 %v3158, %v4543
        %v4545 = vpop.f32.mrf.mxu0
        %v4546 = vadd.f32 %v3158, %v4545
        %4547 = vmatmul.bf16.gmra.mxu0 %v3017
        %v4548 = vpop.f32.mrf.mxu0
        %v4549 = vadd.f32 %v3158, %v4548
        %v4550 = vpop.f32.mrf.mxu0
        %v4551 = vadd.f32 %v3158, %v4550
        %4552 = vmatmul.bf16.gmra.mxu0 %v3021
        %v4553 = vpop.f32.mrf.mxu0
        %v4554 = vadd.f32 %v3158, %v4553
        %v4555 = vpop.f32.mrf.mxu0
        %4556 = vdwg.mxu0
        %4557 = vmatpush.bf16.msra.mxu0 %v3610
        %4558 = vmatpush.bf16.msra.mxu0 %v3606
        %4559 = vmatpush.bf16.msra.mxu0 %v3602
        %4560 = vmatpush.bf16.msra.mxu0 %v3598
        %4561 = vmatpush.bf16.msra.mxu0 %v3594
        %4562 = vmatpush.bf16.msra.mxu0 %v3590
        %4563 = vmatpush.bf16.msra.mxu0 %v3586
        %4564 = vmatpush.bf16.msra.mxu0 %v3582
        %4565 = vmatmul.bf16.gmra.mxu0 %v2986
        %v4566 = vpop.f32.mrf.mxu0
        %v4567 = vadd.f32 %v4509, %v4566
        %v4568 = vpop.f32.mrf.mxu0
        %v4569 = vadd.f32 %v4511, %v4568
        %4570 = vmatmul.bf16.gmra.mxu0 %v2990
        %v4571 = vpop.f32.mrf.mxu0
        %v4572 = vadd.f32 %v4514, %v4571
        %v4573 = vpop.f32.mrf.mxu0
        %v4574 = vadd.f32 %v4516, %v4573
        %4575 = vmatmul.bf16.gmra.mxu0 %v2994
        %v4576 = vpop.f32.mrf.mxu0
        %v4577 = vadd.f32 %v4519, %v4576
        %v4578 = vpop.f32.mrf.mxu0
        %v4579 = vadd.f32 %v4521, %v4578
        %4580 = vmatmul.bf16.gmra.mxu0 %v2998
        %v4581 = vpop.f32.mrf.mxu0
        %v4582 = vadd.f32 %v4524, %v4581
        %v4583 = vpop.f32.mrf.mxu0
        %v4584 = vadd.f32 %v4526, %v4583
        %4585 = vmatmul.bf16.gmra.mxu0 %v3002
        %v4586 = vpop.f32.mrf.mxu0
        %v4587 = vadd.f32 %v4529, %v4586
        %v4588 = vpop.f32.mrf.mxu0
        %v4589 = vadd.f32 %v4531, %v4588
        %4590 = vmatmul.bf16.gmra.mxu0 %v3006
        %v4591 = vpop.f32.mrf.mxu0
        %v4592 = vadd.f32 %v4534, %v4591
        %v4593 = vpop.f32.mrf.mxu0
        %v4594 = vadd.f32 %v4536, %v4593
        %4595 = vmatmul.bf16.gmra.mxu0 %v3010
        %v4596 = vpop.f32.mrf.mxu0
        %v4597 = vadd.f32 %v4539, %v4596
        %v4598 = vpop.f32.mrf.mxu0
        %v4599 = vadd.f32 %v4541, %v4598
        %4600 = vmatmul.bf16.gmra.mxu0 %v3014
        %v4601 = vpop.f32.mrf.mxu0
        %v4602 = vadd.f32 %v4544, %v4601
        %v4603 = vpop.f32.mrf.mxu0
        %v4604 = vadd.f32 %v4546, %v4603
        %4605 = vmatmul.bf16.gmra.mxu0 %v3018
        %v4606 = vpop.f32.mrf.mxu0
        %v4607 = vadd.f32 %v4549, %v4606
        %v4608 = vpop.f32.mrf.mxu0
        %v4609 = vadd.f32 %v4551, %v4608
        %4610 = vmatmul.bf16.gmra.mxu0 %v3022
        %v4611 = vpop.f32.mrf.mxu0
        %v4612 = vadd.f32 %v4554, %v4611
        %v4613 = vpop.f32.mrf.mxu0
        %4614 = vdwg.mxu0
        %4615 = vmatpush.bf16.msra.mxu0 %v3642
        %4616 = vmatpush.bf16.msra.mxu0 %v3638
        %4617 = vmatpush.bf16.msra.mxu0 %v3634
        %4618 = vmatpush.bf16.msra.mxu0 %v3630
        %4619 = vmatpush.bf16.msra.mxu0 %v3626
        %4620 = vmatpush.bf16.msra.mxu0 %v3622
        %4621 = vmatpush.bf16.msra.mxu0 %v3618
        %4622 = vmatpush.bf16.msra.mxu0 %v3614
        %4623 = vmatmul.bf16.gmra.mxu0 %v2987
        %v4624 = vpop.f32.mrf.mxu0
        %v4625 = vadd.f32 %v4567, %v4624
        %v4626 = vpop.f32.mrf.mxu0
        %v4627 = vadd.f32 %v4569, %v4626
        %4628 = vmatmul.bf16.gmra.mxu0 %v2991
        %v4629 = vpop.f32.mrf.mxu0
        %v4630 = vadd.f32 %v4572, %v4629
        %v4631 = vpop.f32.mrf.mxu0
        %v4632 = vadd.f32 %v4574, %v4631
        %4633 = vmatmul.bf16.gmra.mxu0 %v2995
        %v4634 = vpop.f32.mrf.mxu0
        %v4635 = vadd.f32 %v4577, %v4634
        %v4636 = vpop.f32.mrf.mxu0
        %v4637 = vadd.f32 %v4579, %v4636
        %4638 = vmatmul.bf16.gmra.mxu0 %v2999
        %v4639 = vpop.f32.mrf.mxu0
        %v4640 = vadd.f32 %v4582, %v4639
        %v4641 = vpop.f32.mrf.mxu0
        %v4642 = vadd.f32 %v4584, %v4641
        %4643 = vmatmul.bf16.gmra.mxu0 %v3003
        %v4644 = vpop.f32.mrf.mxu0
        %v4645 = vadd.f32 %v4587, %v4644
        %v4646 = vpop.f32.mrf.mxu0
        %v4647 = vadd.f32 %v4589, %v4646
        %4648 = vmatmul.bf16.gmra.mxu0 %v3007
        %v4649 = vpop.f32.mrf.mxu0
        %v4650 = vadd.f32 %v4592, %v4649
        %v4651 = vpop.f32.mrf.mxu0
        %v4652 = vadd.f32 %v4594, %v4651
        %4653 = vmatmul.bf16.gmra.mxu0 %v3011
        %v4654 = vpop.f32.mrf.mxu0
        %v4655 = vadd.f32 %v4597, %v4654
        %v4656 = vpop.f32.mrf.mxu0
        %v4657 = vadd.f32 %v4599, %v4656
        %4658 = vmatmul.bf16.gmra.mxu0 %v3015
        %v4659 = vpop.f32.mrf.mxu0
        %v4660 = vadd.f32 %v4602, %v4659
        %v4661 = vpop.f32.mrf.mxu0
        %v4662 = vadd.f32 %v4604, %v4661
        %4663 = vmatmul.bf16.gmra.mxu0 %v3019
        %v4664 = vpop.f32.mrf.mxu0
        %v4665 = vadd.f32 %v4607, %v4664
        %v4666 = vpop.f32.mrf.mxu0
        %v4667 = vadd.f32 %v4609, %v4666
        %4668 = vmatmul.bf16.gmra.mxu0 %v3023
        %v4669 = vpop.f32.mrf.mxu0
        %v4670 = vadd.f32 %v4612, %v4669
        %v4671 = vpop.f32.mrf.mxu0
        %4672 = vdwg.mxu0
        %4673 = vmatpush.bf16.msra.mxu0 %v3674
        %4674 = vmatpush.bf16.msra.mxu0 %v3670
        %4675 = vmatpush.bf16.msra.mxu0 %v3666
        %4676 = vmatpush.bf16.msra.mxu0 %v3662
        %4677 = vmatpush.bf16.msra.mxu0 %v3658
        %4678 = vmatpush.bf16.msra.mxu0 %v3654
        %4679 = vmatpush.bf16.msra.mxu0 %v3650
        %4680 = vmatpush.bf16.msra.mxu0 %v3646
        %4681 = vmatmul.bf16.gmra.mxu0 %v2988
        %v4682 = vpop.f32.mrf.mxu0
        %v4683 = vadd.f32 %v4625, %v4682
        %v4684 = vpop.f32.mrf.mxu0
        %v4685 = vadd.f32 %v4627, %v4684
        %4686 = vmatmul.bf16.gmra.mxu0 %v2992
        %v4687 = vpop.f32.mrf.mxu0
        %v4688 = vadd.f32 %v4630, %v4687
        %v4689 = vpop.f32.mrf.mxu0
        %v4690 = vadd.f32 %v4632, %v4689
        %4691 = vmatmul.bf16.gmra.mxu0 %v2996
        %v4692 = vpop.f32.mrf.mxu0
        %v4693 = vadd.f32 %v4635, %v4692
        %v4694 = vpop.f32.mrf.mxu0
        %v4695 = vadd.f32 %v4637, %v4694
        %4696 = vmatmul.bf16.gmra.mxu0 %v3000
        %v4697 = vpop.f32.mrf.mxu0
        %v4698 = vadd.f32 %v4640, %v4697
        %v4699 = vpop.f32.mrf.mxu0
        %v4700 = vadd.f32 %v4642, %v4699
        %4701 = vmatmul.bf16.gmra.mxu0 %v3004
        %v4702 = vpop.f32.mrf.mxu0
        %v4703 = vadd.f32 %v4645, %v4702
        %v4704 = vpop.f32.mrf.mxu0
        %v4705 = vadd.f32 %v4647, %v4704
        %4706 = vmatmul.bf16.gmra.mxu0 %v3008
        %v4707 = vpop.f32.mrf.mxu0
        %v4708 = vadd.f32 %v4650, %v4707
        %v4709 = vpop.f32.mrf.mxu0
        %v4710 = vadd.f32 %v4652, %v4709
        %4711 = vmatmul.bf16.gmra.mxu0 %v3012
        %v4712 = vpop.f32.mrf.mxu0
        %v4713 = vadd.f32 %v4655, %v4712
        %v4714 = vpop.f32.mrf.mxu0
        %v4715 = vadd.f32 %v4657, %v4714
        %4716 = vmatmul.bf16.gmra.mxu0 %v3016
        %v4717 = vpop.f32.mrf.mxu0
        %v4718 = vadd.f32 %v4660, %v4717
        %v4719 = vpop.f32.mrf.mxu0
        %v4720 = vadd.f32 %v4662, %v4719
        %4721 = vmatmul.bf16.gmra.mxu0 %v3020
        %v4722 = vpop.f32.mrf.mxu0
        %v4723 = vadd.f32 %v4665, %v4722
        %v4724 = vpop.f32.mrf.mxu0
        %v4725 = vadd.f32 %v4667, %v4724
        %4726 = vmatmul.bf16.gmra.mxu0 %v3024
        %v4727 = vpop.f32.mrf.mxu0
        %v4728 = vadd.f32 %v4670, %v4727
        %v4729 = vpop.f32.mrf.mxu0
        %4730 = vdwg.mxu0
        %v4731 = vmax.f32 %v3987, 0.0
        %v4732 = vmax.f32 %v4219, 0.0
        %v4733 = vmax.f32 %v4451, 0.0
        %v4734 = vmax.f32 %v4683, 0.0
        %v4735 = vmax.f32 %v3989, 0.0
        %v4736 = vmax.f32 %v4221, 0.0
        %v4737 = vmax.f32 %v4453, 0.0
        %v4738 = vmax.f32 %v4685, 0.0
        %v4739 = vmax.f32 %v3992, 0.0
        %v4740 = vmax.f32 %v4224, 0.0
        %v4741 = vmax.f32 %v4456, 0.0
        %v4742 = vmax.f32 %v4688, 0.0
        %v4743 = vmax.f32 %v3994, 0.0
        %v4744 = vmax.f32 %v4226, 0.0
        %v4745 = vmax.f32 %v4458, 0.0
        %v4746 = vmax.f32 %v4690, 0.0
        %v4747 = vmax.f32 %v3997, 0.0
        %v4748 = vmax.f32 %v4229, 0.0
        %v4749 = vmax.f32 %v4461, 0.0
        %v4750 = vmax.f32 %v4693, 0.0
        %v4751 = vmax.f32 %v3999, 0.0
        %v4752 = vmax.f32 %v4231, 0.0
        %v4753 = vmax.f32 %v4463, 0.0
        %v4754 = vmax.f32 %v4695, 0.0
        %v4755 = vmax.f32 %v4002, 0.0
        %v4756 = vmax.f32 %v4234, 0.0
        %v4757 = vmax.f32 %v4466, 0.0
        %v4758 = vmax.f32 %v4698, 0.0
        %v4759 = vmax.f32 %v4004, 0.0
        %v4760 = vmax.f32 %v4236, 0.0
        %v4761 = vmax.f32 %v4468, 0.0
        %v4762 = vmax.f32 %v4700, 0.0
        %v4763 = vmax.f32 %v4007, 0.0
        %v4764 = vmax.f32 %v4239, 0.0
        %v4765 = vmax.f32 %v4471, 0.0
        %v4766 = vmax.f32 %v4703, 0.0
        %v4767 = vmax.f32 %v4009, 0.0
        %v4768 = vmax.f32 %v4241, 0.0
        %v4769 = vmax.f32 %v4473, 0.0
        %v4770 = vmax.f32 %v4705, 0.0
        %v4771 = vmax.f32 %v4012, 0.0
        %v4772 = vmax.f32 %v4244, 0.0
        %v4773 = vmax.f32 %v4476, 0.0
        %v4774 = vmax.f32 %v4708, 0.0
        %v4775 = vmax.f32 %v4014, 0.0
        %v4776 = vmax.f32 %v4246, 0.0
        %v4777 = vmax.f32 %v4478, 0.0
        %v4778 = vmax.f32 %v4710, 0.0
        %v4779 = vmax.f32 %v4017, 0.0
        %v4780 = vmax.f32 %v4249, 0.0
        %v4781 = vmax.f32 %v4481, 0.0
        %v4782 = vmax.f32 %v4713, 0.0
        %v4783 = vmax.f32 %v4019, 0.0
        %v4784 = vmax.f32 %v4251, 0.0
        %v4785 = vmax.f32 %v4483, 0.0
        %v4786 = vmax.f32 %v4715, 0.0
        %v4787 = vmax.f32 %v4022, 0.0
        %v4788 = vmax.f32 %v4254, 0.0
        %v4789 = vmax.f32 %v4486, 0.0
        %v4790 = vmax.f32 %v4718, 0.0
        %v4791 = vmax.f32 %v4024, 0.0
        %v4792 = vmax.f32 %v4256, 0.0
        %v4793 = vmax.f32 %v4488, 0.0
        %v4794 = vmax.f32 %v4720, 0.0
        %v4795 = vmax.f32 %v4027, 0.0
        %v4796 = vmax.f32 %v4259, 0.0
        %v4797 = vmax.f32 %v4491, 0.0
        %v4798 = vmax.f32 %v4723, 0.0
        %v4799 = vmax.f32 %v4029, 0.0
        %v4800 = vmax.f32 %v4261, 0.0
        %v4801 = vmax.f32 %v4493, 0.0
        %v4802 = vmax.f32 %v4725, 0.0
        %v4803 = vmax.f32 %v4032, 0.0
        %v4804 = vmax.f32 %v4264, 0.0
        %v4805 = vmax.f32 %v4496, 0.0
        %v4806 = vmax.f32 %v4728, 0.0
        %v4807 = vpack.c.bf16 %v4735, %v4731
        %v4808 = vpack.c.bf16 %v4736, %v4732
        %v4809 = vpack.c.bf16 %v4737, %v4733
        %v4810 = vpack.c.bf16 %v4738, %v4734
        %v4811 = vpack.c.bf16 %v4743, %v4739
        %v4812 = vpack.c.bf16 %v4744, %v4740
        %v4813 = vpack.c.bf16 %v4745, %v4741
        %v4814 = vpack.c.bf16 %v4746, %v4742
        %v4815 = vpack.c.bf16 %v4751, %v4747
        %v4816 = vpack.c.bf16 %v4752, %v4748
        %v4817 = vpack.c.bf16 %v4753, %v4749
        %v4818 = vpack.c.bf16 %v4754, %v4750
        %v4819 = vpack.c.bf16 %v4759, %v4755
        %v4820 = vpack.c.bf16 %v4760, %v4756
        %v4821 = vpack.c.bf16 %v4761, %v4757
        %v4822 = vpack.c.bf16 %v4762, %v4758
        %v4823 = vpack.c.bf16 %v4767, %v4763
        %v4824 = vpack.c.bf16 %v4768, %v4764
        %v4825 = vpack.c.bf16 %v4769, %v4765
        %v4826 = vpack.c.bf16 %v4770, %v4766
        %v4827 = vpack.c.bf16 %v4775, %v4771
        %v4828 = vpack.c.bf16 %v4776, %v4772
        %v4829 = vpack.c.bf16 %v4777, %v4773
        %v4830 = vpack.c.bf16 %v4778, %v4774
        %v4831 = vpack.c.bf16 %v4783, %v4779
        %v4832 = vpack.c.bf16 %v4784, %v4780
        %v4833 = vpack.c.bf16 %v4785, %v4781
        %v4834 = vpack.c.bf16 %v4786, %v4782
        %v4835 = vpack.c.bf16 %v4791, %v4787
        %v4836 = vpack.c.bf16 %v4792, %v4788
        %v4837 = vpack.c.bf16 %v4793, %v4789
        %v4838 = vpack.c.bf16 %v4794, %v4790
        %v4839 = vpack.c.bf16 %v4799, %v4795
        %v4840 = vpack.c.bf16 %v4800, %v4796
        %v4841 = vpack.c.bf16 %v4801, %v4797
        %v4842 = vpack.c.bf16 %v4802, %v4798
        %v4843 = vpack.c.bf16 %v4803, %v4803
        %v4844 = vpack.c.bf16 %v4804, %v4804
        %v4845 = vpack.c.bf16 %v4805, %v4805
        %v4846 = vpack.c.bf16 %v4806, %v4806
        %v4847 = vld [vmem:[#allocation7] sm:$0xff]
        %v4848 = vld [vmem:[#allocation7 + $0x8] sm:$0xff]
        %v4849 = vld [vmem:[#allocation7 + $0x10] sm:$0xff]
        %v4850 = vld [vmem:[#allocation7 + $0x18] sm:$0xff]
        %v4851 = vld [vmem:[#allocation7 + $0x20] sm:$0xff]
        %v4852 = vld [vmem:[#allocation7 + $0x28] sm:$0xff]
        %v4853 = vld [vmem:[#allocation7 + $0x30] sm:$0xff]
        %v4854 = vld [vmem:[#allocation7 + $0x38] sm:$0xff]
        %v4855 = vld [vmem:[#allocation7 + $0x40] sm:$0xff]
        %v4856 = vld [vmem:[#allocation7 + $0x48] sm:$0xff]
        %v4857 = vld [vmem:[#allocation7 + $0x50] sm:$0xff]
        %v4858 = vld [vmem:[#allocation7 + $0x58] sm:$0xff]
        %v4859 = vld [vmem:[#allocation7 + $0x60] sm:$0xff]
        %v4860 = vld [vmem:[#allocation7 + $0x68] sm:$0xff]
        %v4861 = vld [vmem:[#allocation7 + $0x70] sm:$0xff]
        %v4862 = vld [vmem:[#allocation7 + $0x78] sm:$0xff]
        %v4863 = vld [vmem:[#allocation7 + $0x80] sm:$0xff]
        %v4864 = vld [vmem:[#allocation7 + $0x88] sm:$0xff]
        %v4865 = vld [vmem:[#allocation7 + $0x90] sm:$0xff]
        %v4866 = vld [vmem:[#allocation7 + $0x98] sm:$0xff]
        %v4867 = vld [vmem:[#allocation7 + $0xa0] sm:$0xff]
        %v4868 = vld [vmem:[#allocation7 + $0xa8] sm:$0xff]
        %v4869 = vld [vmem:[#allocation7 + $0xb0] sm:$0xff]
        %v4870 = vld [vmem:[#allocation7 + $0xb8] sm:$0xff]
        %v4871 = vld [vmem:[#allocation7 + $0xc0] sm:$0xff]
        %v4872 = vld [vmem:[#allocation7 + $0xc8] sm:$0xff]
        %v4873 = vld [vmem:[#allocation7 + $0xd0] sm:$0xff]
        %v4874 = vld [vmem:[#allocation7 + $0xd8] sm:$0xff]
        %v4875 = vld [vmem:[#allocation7 + $0xe0] sm:$0xff]
        %v4876 = vld [vmem:[#allocation7 + $0xe8] sm:$0xff]
        %v4877 = vld [vmem:[#allocation7 + $0xf0] sm:$0xff]
        %v4878 = vld [vmem:[#allocation7 + $0xf8] sm:$0xff]
        %v4879 = vld [vmem:[#allocation7 + $0x100] sm:$0xff]
        %v4880 = vld [vmem:[#allocation7 + $0x108] sm:$0xff]
        %v4881 = vld [vmem:[#allocation7 + $0x110] sm:$0xff]
        %v4882 = vld [vmem:[#allocation7 + $0x118] sm:$0xff]
        %v4883 = vld [vmem:[#allocation7 + $0x120] sm:$0xff]
        %v4884 = vld [vmem:[#allocation7 + $0x128] sm:$0xff]
        %v4885 = vld [vmem:[#allocation7 + $0x130] sm:$0xff]
        %v4886 = vld [vmem:[#allocation7 + $0x138] sm:$0xff]
        %v4887 = vld [vmem:[#allocation7 + $0x140] sm:$0xff]
        %v4888 = vld [vmem:[#allocation7 + $0x148] sm:$0xff]
        %v4889 = vld [vmem:[#allocation7 + $0x150] sm:$0xff]
        %v4890 = vld [vmem:[#allocation7 + $0x158] sm:$0xff]
        %v4891 = vld [vmem:[#allocation7 + $0x160] sm:$0xff]
        %v4892 = vld [vmem:[#allocation7 + $0x168] sm:$0xff]
        %v4893 = vld [vmem:[#allocation7 + $0x170] sm:$0xff]
        %v4894 = vld [vmem:[#allocation7 + $0x178] sm:$0xff]
        %v4895 = vld [vmem:[#allocation7 + $0x180] sm:$0xff]
        %v4896 = vld [vmem:[#allocation7 + $0x188] sm:$0xff]
        %v4897 = vld [vmem:[#allocation7 + $0x190] sm:$0xff]
        %v4898 = vld [vmem:[#allocation7 + $0x198] sm:$0xff]
        %v4899 = vld [vmem:[#allocation7 + $0x1a0] sm:$0xff]
        %v4900 = vld [vmem:[#allocation7 + $0x1a8] sm:$0xff]
        %v4901 = vld [vmem:[#allocation7 + $0x1b0] sm:$0xff]
        %v4902 = vld [vmem:[#allocation7 + $0x1b8] sm:$0xff]
        %v4903 = vld [vmem:[#allocation7 + $0x1c0] sm:$0xff]
        %v4904 = vld [vmem:[#allocation7 + $0x1c8] sm:$0xff]
        %v4905 = vld [vmem:[#allocation7 + $0x1d0] sm:$0xff]
        %v4906 = vld [vmem:[#allocation7 + $0x1d8] sm:$0xff]
        %v4907 = vld [vmem:[#allocation7 + $0x1e0] sm:$0xff]
        %v4908 = vld [vmem:[#allocation7 + $0x1e8] sm:$0xff]
        %v4909 = vld [vmem:[#allocation7 + $0x1f0] sm:$0xff]
        %v4910 = vld [vmem:[#allocation7 + $0x1f8] sm:$0xff]
        %v4911 = vld [vmem:[#allocation7 + $0x200] sm:$0xff]
        %v4912 = vld [vmem:[#allocation7 + $0x208] sm:$0xff]
        %v4913 = vld [vmem:[#allocation7 + $0x210] sm:$0xff]
        %v4914 = vld [vmem:[#allocation7 + $0x218] sm:$0xff]
        %v4915 = vld [vmem:[#allocation7 + $0x220] sm:$0xff]
        %v4916 = vld [vmem:[#allocation7 + $0x228] sm:$0xff]
        %v4917 = vld [vmem:[#allocation7 + $0x230] sm:$0xff]
        %v4918 = vld [vmem:[#allocation7 + $0x238] sm:$0xff]
        %v4919 = vld [vmem:[#allocation7 + $0x240] sm:$0xff]
        %v4920 = vld [vmem:[#allocation7 + $0x248] sm:$0xff]
        %v4921 = vld [vmem:[#allocation7 + $0x250] sm:$0xff]
        %v4922 = vld [vmem:[#allocation7 + $0x258] sm:$0xff]
        %v4923 = vld [vmem:[#allocation7 + $0x260] sm:$0xff]
        %v4924 = vld [vmem:[#allocation7 + $0x268] sm:$0xff]
        %v4925 = vld [vmem:[#allocation7 + $0x270] sm:$0xff]
        %v4926 = vld [vmem:[#allocation7 + $0x278] sm:$0xff]
        %v4927 = vld [vmem:[#allocation7 + $0x280] sm:$0xff]
        %v4928 = vld [vmem:[#allocation7 + $0x288] sm:$0xff]
        %v4929 = vld [vmem:[#allocation7 + $0x290] sm:$0xff]
        %v4930 = vld [vmem:[#allocation7 + $0x298] sm:$0xff]
        %v4931 = vld [vmem:[#allocation7 + $0x2a0] sm:$0xff]
        %v4932 = vld [vmem:[#allocation7 + $0x2a8] sm:$0xff]
        %v4933 = vld [vmem:[#allocation7 + $0x2b0] sm:$0xff]
        %v4934 = vld [vmem:[#allocation7 + $0x2b8] sm:$0xff]
        %v4935 = vld [vmem:[#allocation7 + $0x2c0] sm:$0xff]
        %v4936 = vld [vmem:[#allocation7 + $0x2c8] sm:$0xff]
        %v4937 = vld [vmem:[#allocation7 + $0x2d0] sm:$0xff]
        %v4938 = vld [vmem:[#allocation7 + $0x2d8] sm:$0xff]
        %v4939 = vld [vmem:[#allocation7 + $0x2e0] sm:$0xff]
        %v4940 = vld [vmem:[#allocation7 + $0x2e8] sm:$0xff]
        %v4941 = vld [vmem:[#allocation7 + $0x2f0] sm:$0xff]
        %v4942 = vld [vmem:[#allocation7 + $0x2f8] sm:$0xff]
        %v4943 = vld [vmem:[#allocation7 + $0x300] sm:$0xff]
        %v4944 = vld [vmem:[#allocation7 + $0x308] sm:$0xff]
        %v4945 = vld [vmem:[#allocation7 + $0x310] sm:$0xff]
        %v4946 = vld [vmem:[#allocation7 + $0x318] sm:$0xff]
        %v4947 = vld [vmem:[#allocation7 + $0x320] sm:$0xff]
        %v4948 = vld [vmem:[#allocation7 + $0x328] sm:$0xff]
        %v4949 = vld [vmem:[#allocation7 + $0x330] sm:$0xff]
        %v4950 = vld [vmem:[#allocation7 + $0x338] sm:$0xff]
        %v4951 = vld [vmem:[#allocation7 + $0x340] sm:$0xff]
        %v4952 = vld [vmem:[#allocation7 + $0x348] sm:$0xff]
        %v4953 = vld [vmem:[#allocation7 + $0x350] sm:$0xff]
        %v4954 = vld [vmem:[#allocation7 + $0x358] sm:$0xff]
        %v4955 = vld [vmem:[#allocation7 + $0x360] sm:$0xff]
        %v4956 = vld [vmem:[#allocation7 + $0x368] sm:$0xff]
        %v4957 = vld [vmem:[#allocation7 + $0x370] sm:$0xff]
        %v4958 = vld [vmem:[#allocation7 + $0x378] sm:$0xff]
        %v4959 = vld [vmem:[#allocation7 + $0x380] sm:$0xff]
        %v4960 = vld [vmem:[#allocation7 + $0x388] sm:$0xff]
        %v4961 = vld [vmem:[#allocation7 + $0x390] sm:$0xff]
        %v4962 = vld [vmem:[#allocation7 + $0x398] sm:$0xff]
        %v4963 = vld [vmem:[#allocation7 + $0x3a0] sm:$0xff]
        %v4964 = vld [vmem:[#allocation7 + $0x3a8] sm:$0xff]
        %v4965 = vld [vmem:[#allocation7 + $0x3b0] sm:$0xff]
        %v4966 = vld [vmem:[#allocation7 + $0x3b8] sm:$0xff]
        %v4967 = vld [vmem:[#allocation7 + $0x3c0] sm:$0xff]
        %v4968 = vld [vmem:[#allocation7 + $0x3c8] sm:$0xff]
        %v4969 = vld [vmem:[#allocation7 + $0x3d0] sm:$0xff]
        %v4970 = vld [vmem:[#allocation7 + $0x3d8] sm:$0xff]
        %v4971 = vld [vmem:[#allocation7 + $0x3e0] sm:$0xff]
        %v4972 = vld [vmem:[#allocation7 + $0x3e8] sm:$0xff]
        %v4973 = vld [vmem:[#allocation7 + $0x3f0] sm:$0xff]
        %v4974 = vld [vmem:[#allocation7 + $0x3f8] sm:$0xff]
        %v4975 = vld [vmem:[%s8] sm:$0xf]
        %v4977 = vperm.slane %v4975, 0
        %v4978 = vperm.slane %v4975, 1
        %v4979 = vperm.slane %v4975, 2
        %v4980 = vperm.slane %v4975, 3
        %v5113 = vunpack.c.l.b16 %v4847
        %v5114 = vunpack.c.h.b16 %v4847
        %v5115 = vunpack.c.l.b16 %v4848
        %v5116 = vunpack.c.h.b16 %v4848
        %v5117 = vunpack.c.l.b16 %v4849
        %v5118 = vunpack.c.h.b16 %v4849
        %v5119 = vunpack.c.l.b16 %v4850
        %v5120 = vunpack.c.h.b16 %v4850
        %v5121 = vunpack.c.l.b16 %v4851
        %v5122 = vunpack.c.h.b16 %v4851
        %v5123 = vunpack.c.l.b16 %v4852
        %v5124 = vunpack.c.h.b16 %v4852
        %v5125 = vunpack.c.l.b16 %v4853
        %v5126 = vunpack.c.h.b16 %v4853
        %v5127 = vunpack.c.l.b16 %v4854
        %v5128 = vunpack.c.h.b16 %v4854
        %v5129 = vunpack.c.l.b16 %v4855
        %v5130 = vunpack.c.h.b16 %v4855
        %v5131 = vunpack.c.l.b16 %v4856
        %v5132 = vunpack.c.h.b16 %v4856
        %v5133 = vunpack.c.l.b16 %v4857
        %v5134 = vunpack.c.h.b16 %v4857
        %v5135 = vunpack.c.l.b16 %v4858
        %v5136 = vunpack.c.h.b16 %v4858
        %v5137 = vunpack.c.l.b16 %v4859
        %v5138 = vunpack.c.h.b16 %v4859
        %v5139 = vunpack.c.l.b16 %v4860
        %v5140 = vunpack.c.h.b16 %v4860
        %v5141 = vunpack.c.l.b16 %v4861
        %v5142 = vunpack.c.h.b16 %v4861
        %v5143 = vunpack.c.l.b16 %v4862
        %v5144 = vunpack.c.h.b16 %v4862
        %v5145 = vunpack.c.l.b16 %v4863
        %v5146 = vunpack.c.h.b16 %v4863
        %v5147 = vunpack.c.l.b16 %v4864
        %v5148 = vunpack.c.h.b16 %v4864
        %v5149 = vunpack.c.l.b16 %v4865
        %v5150 = vunpack.c.h.b16 %v4865
        %v5151 = vunpack.c.l.b16 %v4866
        %v5152 = vunpack.c.h.b16 %v4866
        %v5153 = vunpack.c.l.b16 %v4867
        %v5154 = vunpack.c.h.b16 %v4867
        %v5155 = vunpack.c.l.b16 %v4868
        %v5156 = vunpack.c.h.b16 %v4868
        %v5157 = vunpack.c.l.b16 %v4869
        %v5158 = vunpack.c.h.b16 %v4869
        %v5159 = vunpack.c.l.b16 %v4870
        %v5160 = vunpack.c.h.b16 %v4870
        %v5161 = vunpack.c.l.b16 %v4871
        %v5162 = vunpack.c.h.b16 %v4871
        %v5163 = vunpack.c.l.b16 %v4872
        %v5164 = vunpack.c.h.b16 %v4872
        %v5165 = vunpack.c.l.b16 %v4873
        %v5166 = vunpack.c.h.b16 %v4873
        %v5167 = vunpack.c.l.b16 %v4874
        %v5168 = vunpack.c.h.b16 %v4874
        %v5169 = vunpack.c.l.b16 %v4875
        %v5170 = vunpack.c.h.b16 %v4875
        %v5171 = vunpack.c.l.b16 %v4876
        %v5172 = vunpack.c.h.b16 %v4876
        %v5173 = vunpack.c.l.b16 %v4877
        %v5174 = vunpack.c.h.b16 %v4877
        %v5175 = vunpack.c.l.b16 %v4878
        %v5176 = vunpack.c.h.b16 %v4878
        %v5177 = vunpack.c.l.b16 %v4879
        %v5178 = vunpack.c.h.b16 %v4879
        %v5179 = vunpack.c.l.b16 %v4880
        %v5180 = vunpack.c.h.b16 %v4880
        %v5181 = vunpack.c.l.b16 %v4881
        %v5182 = vunpack.c.h.b16 %v4881
        %v5183 = vunpack.c.l.b16 %v4882
        %v5184 = vunpack.c.h.b16 %v4882
        %v5185 = vunpack.c.l.b16 %v4883
        %v5186 = vunpack.c.h.b16 %v4883
        %v5187 = vunpack.c.l.b16 %v4884
        %v5188 = vunpack.c.h.b16 %v4884
        %v5189 = vunpack.c.l.b16 %v4885
        %v5190 = vunpack.c.h.b16 %v4885
        %v5191 = vunpack.c.l.b16 %v4886
        %v5192 = vunpack.c.h.b16 %v4886
        %v5193 = vunpack.c.l.b16 %v4887
        %v5194 = vunpack.c.h.b16 %v4887
        %v5195 = vunpack.c.l.b16 %v4888
        %v5196 = vunpack.c.h.b16 %v4888
        %v5197 = vunpack.c.l.b16 %v4889
        %v5198 = vunpack.c.h.b16 %v4889
        %v5199 = vunpack.c.l.b16 %v4890
        %v5200 = vunpack.c.h.b16 %v4890
        %v5201 = vunpack.c.l.b16 %v4891
        %v5202 = vunpack.c.h.b16 %v4891
        %v5203 = vunpack.c.l.b16 %v4892
        %v5204 = vunpack.c.h.b16 %v4892
        %v5205 = vunpack.c.l.b16 %v4893
        %v5206 = vunpack.c.h.b16 %v4893
        %v5207 = vunpack.c.l.b16 %v4894
        %v5208 = vunpack.c.h.b16 %v4894
        %v5209 = vunpack.c.l.b16 %v4895
        %v5210 = vunpack.c.h.b16 %v4895
        %v5211 = vunpack.c.l.b16 %v4896
        %v5212 = vunpack.c.h.b16 %v4896
        %v5213 = vunpack.c.l.b16 %v4897
        %v5214 = vunpack.c.h.b16 %v4897
        %v5215 = vunpack.c.l.b16 %v4898
        %v5216 = vunpack.c.h.b16 %v4898
        %v5217 = vunpack.c.l.b16 %v4899
        %v5218 = vunpack.c.h.b16 %v4899
        %v5219 = vunpack.c.l.b16 %v4900
        %v5220 = vunpack.c.h.b16 %v4900
        %v5221 = vunpack.c.l.b16 %v4901
        %v5222 = vunpack.c.h.b16 %v4901
        %v5223 = vunpack.c.l.b16 %v4902
        %v5224 = vunpack.c.h.b16 %v4902
        %v5225 = vunpack.c.l.b16 %v4903
        %v5226 = vunpack.c.h.b16 %v4903
        %v5227 = vunpack.c.l.b16 %v4904
        %v5228 = vunpack.c.h.b16 %v4904
        %v5229 = vunpack.c.l.b16 %v4905
        %v5230 = vunpack.c.h.b16 %v4905
        %v5231 = vunpack.c.l.b16 %v4906
        %v5232 = vunpack.c.h.b16 %v4906
        %v5233 = vunpack.c.l.b16 %v4907
        %v5234 = vunpack.c.h.b16 %v4907
        %v5235 = vunpack.c.l.b16 %v4908
        %v5236 = vunpack.c.h.b16 %v4908
        %v5237 = vunpack.c.l.b16 %v4909
        %v5238 = vunpack.c.h.b16 %v4909
        %v5239 = vunpack.c.l.b16 %v4910
        %v5240 = vunpack.c.h.b16 %v4910
        %v5241 = vunpack.c.l.b16 %v4911
        %v5242 = vunpack.c.h.b16 %v4911
        %v5243 = vunpack.c.l.b16 %v4912
        %v5244 = vunpack.c.h.b16 %v4912
        %v5245 = vunpack.c.l.b16 %v4913
        %v5246 = vunpack.c.h.b16 %v4913
        %v5247 = vunpack.c.l.b16 %v4914
        %v5248 = vunpack.c.h.b16 %v4914
        %v5249 = vunpack.c.l.b16 %v4915
        %v5250 = vunpack.c.h.b16 %v4915
        %v5251 = vunpack.c.l.b16 %v4916
        %v5252 = vunpack.c.h.b16 %v4916
        %v5253 = vunpack.c.l.b16 %v4917
        %v5254 = vunpack.c.h.b16 %v4917
        %v5255 = vunpack.c.l.b16 %v4918
        %v5256 = vunpack.c.h.b16 %v4918
        %v5257 = vunpack.c.l.b16 %v4919
        %v5258 = vunpack.c.h.b16 %v4919
        %v5259 = vunpack.c.l.b16 %v4920
        %v5260 = vunpack.c.h.b16 %v4920
        %v5261 = vunpack.c.l.b16 %v4921
        %v5262 = vunpack.c.h.b16 %v4921
        %v5263 = vunpack.c.l.b16 %v4922
        %v5264 = vunpack.c.h.b16 %v4922
        %v5265 = vunpack.c.l.b16 %v4923
        %v5266 = vunpack.c.h.b16 %v4923
        %v5267 = vunpack.c.l.b16 %v4924
        %v5268 = vunpack.c.h.b16 %v4924
        %v5269 = vunpack.c.l.b16 %v4925
        %v5270 = vunpack.c.h.b16 %v4925
        %v5271 = vunpack.c.l.b16 %v4926
        %v5272 = vunpack.c.h.b16 %v4926
        %v5273 = vunpack.c.l.b16 %v4927
        %v5274 = vunpack.c.h.b16 %v4927
        %v5275 = vunpack.c.l.b16 %v4928
        %v5276 = vunpack.c.h.b16 %v4928
        %v5277 = vunpack.c.l.b16 %v4929
        %v5278 = vunpack.c.h.b16 %v4929
        %v5279 = vunpack.c.l.b16 %v4930
        %v5280 = vunpack.c.h.b16 %v4930
        %v5281 = vunpack.c.l.b16 %v4931
        %v5282 = vunpack.c.h.b16 %v4931
        %v5283 = vunpack.c.l.b16 %v4932
        %v5284 = vunpack.c.h.b16 %v4932
        %v5285 = vunpack.c.l.b16 %v4933
        %v5286 = vunpack.c.h.b16 %v4933
        %v5287 = vunpack.c.l.b16 %v4934
        %v5288 = vunpack.c.h.b16 %v4934
        %v5289 = vunpack.c.l.b16 %v4935
        %v5290 = vunpack.c.h.b16 %v4935
        %v5291 = vunpack.c.l.b16 %v4936
        %v5292 = vunpack.c.h.b16 %v4936
        %v5293 = vunpack.c.l.b16 %v4937
        %v5294 = vunpack.c.h.b16 %v4937
        %v5295 = vunpack.c.l.b16 %v4938
        %v5296 = vunpack.c.h.b16 %v4938
        %v5297 = vunpack.c.l.b16 %v4939
        %v5298 = vunpack.c.h.b16 %v4939
        %v5299 = vunpack.c.l.b16 %v4940
        %v5300 = vunpack.c.h.b16 %v4940
        %v5301 = vunpack.c.l.b16 %v4941
        %v5302 = vunpack.c.h.b16 %v4941
        %v5303 = vunpack.c.l.b16 %v4942
        %v5304 = vunpack.c.h.b16 %v4942
        %v5305 = vunpack.c.l.b16 %v4943
        %v5306 = vunpack.c.h.b16 %v4943
        %v5307 = vunpack.c.l.b16 %v4944
        %v5308 = vunpack.c.h.b16 %v4944
        %v5309 = vunpack.c.l.b16 %v4945
        %v5310 = vunpack.c.h.b16 %v4945
        %v5311 = vunpack.c.l.b16 %v4946
        %v5312 = vunpack.c.h.b16 %v4946
        %v5313 = vunpack.c.l.b16 %v4947
        %v5314 = vunpack.c.h.b16 %v4947
        %v5315 = vunpack.c.l.b16 %v4948
        %v5316 = vunpack.c.h.b16 %v4948
        %v5317 = vunpack.c.l.b16 %v4949
        %v5318 = vunpack.c.h.b16 %v4949
        %v5319 = vunpack.c.l.b16 %v4950
        %v5320 = vunpack.c.h.b16 %v4950
        %v5321 = vunpack.c.l.b16 %v4951
        %v5322 = vunpack.c.h.b16 %v4951
        %v5323 = vunpack.c.l.b16 %v4952
        %v5324 = vunpack.c.h.b16 %v4952
        %v5325 = vunpack.c.l.b16 %v4953
        %v5326 = vunpack.c.h.b16 %v4953
        %v5327 = vunpack.c.l.b16 %v4954
        %v5328 = vunpack.c.h.b16 %v4954
        %v5329 = vunpack.c.l.b16 %v4955
        %v5330 = vunpack.c.h.b16 %v4955
        %v5331 = vunpack.c.l.b16 %v4956
        %v5332 = vunpack.c.h.b16 %v4956
        %v5333 = vunpack.c.l.b16 %v4957
        %v5334 = vunpack.c.h.b16 %v4957
        %v5335 = vunpack.c.l.b16 %v4958
        %v5336 = vunpack.c.h.b16 %v4958
        %v5337 = vunpack.c.l.b16 %v4959
        %v5338 = vunpack.c.h.b16 %v4959
        %v5339 = vunpack.c.l.b16 %v4960
        %v5340 = vunpack.c.h.b16 %v4960
        %v5341 = vunpack.c.l.b16 %v4961
        %v5342 = vunpack.c.h.b16 %v4961
        %v5343 = vunpack.c.l.b16 %v4962
        %v5344 = vunpack.c.h.b16 %v4962
        %v5345 = vunpack.c.l.b16 %v4963
        %v5346 = vunpack.c.h.b16 %v4963
        %v5347 = vunpack.c.l.b16 %v4964
        %v5348 = vunpack.c.h.b16 %v4964
        %v5349 = vunpack.c.l.b16 %v4965
        %v5350 = vunpack.c.h.b16 %v4965
        %v5351 = vunpack.c.l.b16 %v4966
        %v5352 = vunpack.c.h.b16 %v4966
        %v5353 = vunpack.c.l.b16 %v4967
        %v5354 = vunpack.c.h.b16 %v4967
        %v5355 = vunpack.c.l.b16 %v4968
        %v5356 = vunpack.c.h.b16 %v4968
        %v5357 = vunpack.c.l.b16 %v4969
        %v5358 = vunpack.c.h.b16 %v4969
        %v5359 = vunpack.c.l.b16 %v4970
        %v5360 = vunpack.c.h.b16 %v4970
        %v5361 = vunpack.c.l.b16 %v4971
        %v5362 = vunpack.c.h.b16 %v4971
        %v5363 = vunpack.c.l.b16 %v4972
        %v5364 = vunpack.c.h.b16 %v4972
        %v5365 = vunpack.c.l.b16 %v4973
        %v5366 = vunpack.c.h.b16 %v4973
        %v5367 = vunpack.c.l.b16 %v4974
        %v5368 = vunpack.c.h.b16 %v4974
        %v5369 = vpack.c.b16 %v5117, %v5113
        %v5370 = vpack.c.b16 %v5118, %v5114
        %v5371 = vpack.c.b16 %v5119, %v5115
        %v5372 = vpack.c.b16 %v5120, %v5116
        %v5373 = vpack.c.b16 %v5125, %v5121
        %v5374 = vpack.c.b16 %v5126, %v5122
        %v5375 = vpack.c.b16 %v5127, %v5123
        %v5376 = vpack.c.b16 %v5128, %v5124
        %v5377 = vpack.c.b16 %v5133, %v5129
        %v5378 = vpack.c.b16 %v5134, %v5130
        %v5379 = vpack.c.b16 %v5135, %v5131
        %v5380 = vpack.c.b16 %v5136, %v5132
        %v5381 = vpack.c.b16 %v5141, %v5137
        %v5382 = vpack.c.b16 %v5142, %v5138
        %v5383 = vpack.c.b16 %v5143, %v5139
        %v5384 = vpack.c.b16 %v5144, %v5140
        %v5385 = vpack.c.b16 %v5149, %v5145
        %v5386 = vpack.c.b16 %v5150, %v5146
        %v5387 = vpack.c.b16 %v5151, %v5147
        %v5388 = vpack.c.b16 %v5152, %v5148
        %v5389 = vpack.c.b16 %v5157, %v5153
        %v5390 = vpack.c.b16 %v5158, %v5154
        %v5391 = vpack.c.b16 %v5159, %v5155
        %v5392 = vpack.c.b16 %v5160, %v5156
        %v5393 = vpack.c.b16 %v5165, %v5161
        %v5394 = vpack.c.b16 %v5166, %v5162
        %v5395 = vpack.c.b16 %v5167, %v5163
        %v5396 = vpack.c.b16 %v5168, %v5164
        %v5397 = vpack.c.b16 %v5173, %v5169
        %v5398 = vpack.c.b16 %v5174, %v5170
        %v5399 = vpack.c.b16 %v5175, %v5171
        %v5400 = vpack.c.b16 %v5176, %v5172
        %v5401 = vpack.c.b16 %v5181, %v5177
        %v5402 = vpack.c.b16 %v5182, %v5178
        %v5403 = vpack.c.b16 %v5183, %v5179
        %v5404 = vpack.c.b16 %v5184, %v5180
        %v5405 = vpack.c.b16 %v5189, %v5185
        %v5406 = vpack.c.b16 %v5190, %v5186
        %v5407 = vpack.c.b16 %v5191, %v5187
        %v5408 = vpack.c.b16 %v5192, %v5188
        %v5409 = vpack.c.b16 %v5197, %v5193
        %v5410 = vpack.c.b16 %v5198, %v5194
        %v5411 = vpack.c.b16 %v5199, %v5195
        %v5412 = vpack.c.b16 %v5200, %v5196
        %v5413 = vpack.c.b16 %v5205, %v5201
        %v5414 = vpack.c.b16 %v5206, %v5202
        %v5415 = vpack.c.b16 %v5207, %v5203
        %v5416 = vpack.c.b16 %v5208, %v5204
        %v5417 = vpack.c.b16 %v5213, %v5209
        %v5418 = vpack.c.b16 %v5214, %v5210
        %v5419 = vpack.c.b16 %v5215, %v5211
        %v5420 = vpack.c.b16 %v5216, %v5212
        %v5421 = vpack.c.b16 %v5221, %v5217
        %v5422 = vpack.c.b16 %v5222, %v5218
        %v5423 = vpack.c.b16 %v5223, %v5219
        %v5424 = vpack.c.b16 %v5224, %v5220
        %v5425 = vpack.c.b16 %v5229, %v5225
        %v5426 = vpack.c.b16 %v5230, %v5226
        %v5427 = vpack.c.b16 %v5231, %v5227
        %v5428 = vpack.c.b16 %v5232, %v5228
        %v5429 = vpack.c.b16 %v5237, %v5233
        %v5430 = vpack.c.b16 %v5238, %v5234
        %v5431 = vpack.c.b16 %v5239, %v5235
        %v5432 = vpack.c.b16 %v5240, %v5236
        %v5433 = vpack.c.b16 %v5245, %v5241
        %v5434 = vpack.c.b16 %v5246, %v5242
        %v5435 = vpack.c.b16 %v5247, %v5243
        %v5436 = vpack.c.b16 %v5248, %v5244
        %v5437 = vpack.c.b16 %v5253, %v5249
        %v5438 = vpack.c.b16 %v5254, %v5250
        %v5439 = vpack.c.b16 %v5255, %v5251
        %v5440 = vpack.c.b16 %v5256, %v5252
        %v5441 = vpack.c.b16 %v5261, %v5257
        %v5442 = vpack.c.b16 %v5262, %v5258
        %v5443 = vpack.c.b16 %v5263, %v5259
        %v5444 = vpack.c.b16 %v5264, %v5260
        %v5445 = vpack.c.b16 %v5269, %v5265
        %v5446 = vpack.c.b16 %v5270, %v5266
        %v5447 = vpack.c.b16 %v5271, %v5267
        %v5448 = vpack.c.b16 %v5272, %v5268
        %v5449 = vpack.c.b16 %v5277, %v5273
        %v5450 = vpack.c.b16 %v5278, %v5274
        %v5451 = vpack.c.b16 %v5279, %v5275
        %v5452 = vpack.c.b16 %v5280, %v5276
        %v5453 = vpack.c.b16 %v5285, %v5281
        %v5454 = vpack.c.b16 %v5286, %v5282
        %v5455 = vpack.c.b16 %v5287, %v5283
        %v5456 = vpack.c.b16 %v5288, %v5284
        %v5457 = vpack.c.b16 %v5293, %v5289
        %v5458 = vpack.c.b16 %v5294, %v5290
        %v5459 = vpack.c.b16 %v5295, %v5291
        %v5460 = vpack.c.b16 %v5296, %v5292
        %v5461 = vpack.c.b16 %v5301, %v5297
        %v5462 = vpack.c.b16 %v5302, %v5298
        %v5463 = vpack.c.b16 %v5303, %v5299
        %v5464 = vpack.c.b16 %v5304, %v5300
        %v5465 = vpack.c.b16 %v5309, %v5305
        %v5466 = vpack.c.b16 %v5310, %v5306
        %v5467 = vpack.c.b16 %v5311, %v5307
        %v5468 = vpack.c.b16 %v5312, %v5308
        %v5469 = vpack.c.b16 %v5317, %v5313
        %v5470 = vpack.c.b16 %v5318, %v5314
        %v5471 = vpack.c.b16 %v5319, %v5315
        %v5472 = vpack.c.b16 %v5320, %v5316
        %v5473 = vpack.c.b16 %v5325, %v5321
        %v5474 = vpack.c.b16 %v5326, %v5322
        %v5475 = vpack.c.b16 %v5327, %v5323
        %v5476 = vpack.c.b16 %v5328, %v5324
        %v5477 = vpack.c.b16 %v5333, %v5329
        %v5478 = vpack.c.b16 %v5334, %v5330
        %v5479 = vpack.c.b16 %v5335, %v5331
        %v5480 = vpack.c.b16 %v5336, %v5332
        %v5481 = vpack.c.b16 %v5341, %v5337
        %v5482 = vpack.c.b16 %v5342, %v5338
        %v5483 = vpack.c.b16 %v5343, %v5339
        %v5484 = vpack.c.b16 %v5344, %v5340
        %v5485 = vpack.c.b16 %v5349, %v5345
        %v5486 = vpack.c.b16 %v5350, %v5346
        %v5487 = vpack.c.b16 %v5351, %v5347
        %v5488 = vpack.c.b16 %v5352, %v5348
        %v5489 = vpack.c.b16 %v5357, %v5353
        %v5490 = vpack.c.b16 %v5358, %v5354
        %v5491 = vpack.c.b16 %v5359, %v5355
        %v5492 = vpack.c.b16 %v5360, %v5356
        %v5493 = vpack.c.b16 %v5365, %v5361
        %v5494 = vpack.c.b16 %v5366, %v5362
        %v5495 = vpack.c.b16 %v5367, %v5363
        %v5496 = vpack.c.b16 %v5368, %v5364
        %5625 = vmatpush.bf16.msra.mxu0 %v5397
        %5626 = vmatpush.bf16.msra.mxu0 %v5393
        %5627 = vmatpush.bf16.msra.mxu0 %v5389
        %5628 = vmatpush.bf16.msra.mxu0 %v5385
        %5629 = vmatpush.bf16.msra.mxu0 %v5381
        %5630 = vmatpush.bf16.msra.mxu0 %v5377
        %5631 = vmatpush.bf16.msra.mxu0 %v5373
        %5632 = vmatpush.bf16.msra.mxu0 %v5369
        %5633 = vmatmul.bf16.gmra.mxu0 %v4807
        %v5634 = vpop.f32.mrf.mxu0
        %v5635 = vadd.f32 %v4977, %v5634
        %v5636 = vpop.f32.mrf.mxu0
        %v5637 = vadd.f32 %v4977, %v5636
        %5638 = vmatmul.bf16.gmra.mxu0 %v4811
        %v5639 = vpop.f32.mrf.mxu0
        %v5640 = vadd.f32 %v4977, %v5639
        %v5641 = vpop.f32.mrf.mxu0
        %v5642 = vadd.f32 %v4977, %v5641
        %5643 = vmatmul.bf16.gmra.mxu0 %v4815
        %v5644 = vpop.f32.mrf.mxu0
        %v5645 = vadd.f32 %v4977, %v5644
        %v5646 = vpop.f32.mrf.mxu0
        %v5647 = vadd.f32 %v4977, %v5646
        %5648 = vmatmul.bf16.gmra.mxu0 %v4819
        %v5649 = vpop.f32.mrf.mxu0
        %v5650 = vadd.f32 %v4977, %v5649
        %v5651 = vpop.f32.mrf.mxu0
        %v5652 = vadd.f32 %v4977, %v5651
        %5653 = vmatmul.bf16.gmra.mxu0 %v4823
        %v5654 = vpop.f32.mrf.mxu0
        %v5655 = vadd.f32 %v4977, %v5654
        %v5656 = vpop.f32.mrf.mxu0
        %v5657 = vadd.f32 %v4977, %v5656
        %5658 = vmatmul.bf16.gmra.mxu0 %v4827
        %v5659 = vpop.f32.mrf.mxu0
        %v5660 = vadd.f32 %v4977, %v5659
        %v5661 = vpop.f32.mrf.mxu0
        %v5662 = vadd.f32 %v4977, %v5661
        %5663 = vmatmul.bf16.gmra.mxu0 %v4831
        %v5664 = vpop.f32.mrf.mxu0
        %v5665 = vadd.f32 %v4977, %v5664
        %v5666 = vpop.f32.mrf.mxu0
        %v5667 = vadd.f32 %v4977, %v5666
        %5668 = vmatmul.bf16.gmra.mxu0 %v4835
        %v5669 = vpop.f32.mrf.mxu0
        %v5670 = vadd.f32 %v4977, %v5669
        %v5671 = vpop.f32.mrf.mxu0
        %v5672 = vadd.f32 %v4977, %v5671
        %5673 = vmatmul.bf16.gmra.mxu0 %v4839
        %v5674 = vpop.f32.mrf.mxu0
        %v5675 = vadd.f32 %v4977, %v5674
        %v5676 = vpop.f32.mrf.mxu0
        %v5677 = vadd.f32 %v4977, %v5676
        %5678 = vmatmul.bf16.gmra.mxu0 %v4843
        %v5679 = vpop.f32.mrf.mxu0
        %v5680 = vadd.f32 %v4977, %v5679
        %v5681 = vpop.f32.mrf.mxu0
        %5682 = vdwg.mxu0
        %5683 = vmatpush.bf16.msra.mxu0 %v5429
        %5684 = vmatpush.bf16.msra.mxu0 %v5425
        %5685 = vmatpush.bf16.msra.mxu0 %v5421
        %5686 = vmatpush.bf16.msra.mxu0 %v5417
        %5687 = vmatpush.bf16.msra.mxu0 %v5413
        %5688 = vmatpush.bf16.msra.mxu0 %v5409
        %5689 = vmatpush.bf16.msra.mxu0 %v5405
        %5690 = vmatpush.bf16.msra.mxu0 %v5401
        %5691 = vmatmul.bf16.gmra.mxu0 %v4808
        %v5692 = vpop.f32.mrf.mxu0
        %v5693 = vadd.f32 %v5635, %v5692
        %v5694 = vpop.f32.mrf.mxu0
        %v5695 = vadd.f32 %v5637, %v5694
        %5696 = vmatmul.bf16.gmra.mxu0 %v4812
        %v5697 = vpop.f32.mrf.mxu0
        %v5698 = vadd.f32 %v5640, %v5697
        %v5699 = vpop.f32.mrf.mxu0
        %v5700 = vadd.f32 %v5642, %v5699
        %5701 = vmatmul.bf16.gmra.mxu0 %v4816
        %v5702 = vpop.f32.mrf.mxu0
        %v5703 = vadd.f32 %v5645, %v5702
        %v5704 = vpop.f32.mrf.mxu0
        %v5705 = vadd.f32 %v5647, %v5704
        %5706 = vmatmul.bf16.gmra.mxu0 %v4820
        %v5707 = vpop.f32.mrf.mxu0
        %v5708 = vadd.f32 %v5650, %v5707
        %v5709 = vpop.f32.mrf.mxu0
        %v5710 = vadd.f32 %v5652, %v5709
        %5711 = vmatmul.bf16.gmra.mxu0 %v4824
        %v5712 = vpop.f32.mrf.mxu0
        %v5713 = vadd.f32 %v5655, %v5712
        %v5714 = vpop.f32.mrf.mxu0
        %v5715 = vadd.f32 %v5657, %v5714
        %5716 = vmatmul.bf16.gmra.mxu0 %v4828
        %v5717 = vpop.f32.mrf.mxu0
        %v5718 = vadd.f32 %v5660, %v5717
        %v5719 = vpop.f32.mrf.mxu0
        %v5720 = vadd.f32 %v5662, %v5719
        %5721 = vmatmul.bf16.gmra.mxu0 %v4832
        %v5722 = vpop.f32.mrf.mxu0
        %v5723 = vadd.f32 %v5665, %v5722
        %v5724 = vpop.f32.mrf.mxu0
        %v5725 = vadd.f32 %v5667, %v5724
        %5726 = vmatmul.bf16.gmra.mxu0 %v4836
        %v5727 = vpop.f32.mrf.mxu0
        %v5728 = vadd.f32 %v5670, %v5727
        %v5729 = vpop.f32.mrf.mxu0
        %v5730 = vadd.f32 %v5672, %v5729
        %5731 = vmatmul.bf16.gmra.mxu0 %v4840
        %v5732 = vpop.f32.mrf.mxu0
        %v5733 = vadd.f32 %v5675, %v5732
        %v5734 = vpop.f32.mrf.mxu0
        %v5735 = vadd.f32 %v5677, %v5734
        %5736 = vmatmul.bf16.gmra.mxu0 %v4844
        %v5737 = vpop.f32.mrf.mxu0
        %v5738 = vadd.f32 %v5680, %v5737
        %v5739 = vpop.f32.mrf.mxu0
        %5740 = vdwg.mxu0
        %5741 = vmatpush.bf16.msra.mxu0 %v5461
        %5742 = vmatpush.bf16.msra.mxu0 %v5457
        %5743 = vmatpush.bf16.msra.mxu0 %v5453
        %5744 = vmatpush.bf16.msra.mxu0 %v5449
        %5745 = vmatpush.bf16.msra.mxu0 %v5445
        %5746 = vmatpush.bf16.msra.mxu0 %v5441
        %5747 = vmatpush.bf16.msra.mxu0 %v5437
        %5748 = vmatpush.bf16.msra.mxu0 %v5433
        %5749 = vmatmul.bf16.gmra.mxu0 %v4809
        %v5750 = vpop.f32.mrf.mxu0
        %v5751 = vadd.f32 %v5693, %v5750
        %v5752 = vpop.f32.mrf.mxu0
        %v5753 = vadd.f32 %v5695, %v5752
        %5754 = vmatmul.bf16.gmra.mxu0 %v4813
        %v5755 = vpop.f32.mrf.mxu0
        %v5756 = vadd.f32 %v5698, %v5755
        %v5757 = vpop.f32.mrf.mxu0
        %v5758 = vadd.f32 %v5700, %v5757
        %5759 = vmatmul.bf16.gmra.mxu0 %v4817
        %v5760 = vpop.f32.mrf.mxu0
        %v5761 = vadd.f32 %v5703, %v5760
        %v5762 = vpop.f32.mrf.mxu0
        %v5763 = vadd.f32 %v5705, %v5762
        %5764 = vmatmul.bf16.gmra.mxu0 %v4821
        %v5765 = vpop.f32.mrf.mxu0
        %v5766 = vadd.f32 %v5708, %v5765
        %v5767 = vpop.f32.mrf.mxu0
        %v5768 = vadd.f32 %v5710, %v5767
        %5769 = vmatmul.bf16.gmra.mxu0 %v4825
        %v5770 = vpop.f32.mrf.mxu0
        %v5771 = vadd.f32 %v5713, %v5770
        %v5772 = vpop.f32.mrf.mxu0
        %v5773 = vadd.f32 %v5715, %v5772
        %5774 = vmatmul.bf16.gmra.mxu0 %v4829
        %v5775 = vpop.f32.mrf.mxu0
        %v5776 = vadd.f32 %v5718, %v5775
        %v5777 = vpop.f32.mrf.mxu0
        %v5778 = vadd.f32 %v5720, %v5777
        %5779 = vmatmul.bf16.gmra.mxu0 %v4833
        %v5780 = vpop.f32.mrf.mxu0
        %v5781 = vadd.f32 %v5723, %v5780
        %v5782 = vpop.f32.mrf.mxu0
        %v5783 = vadd.f32 %v5725, %v5782
        %5784 = vmatmul.bf16.gmra.mxu0 %v4837
        %v5785 = vpop.f32.mrf.mxu0
        %v5786 = vadd.f32 %v5728, %v5785
        %v5787 = vpop.f32.mrf.mxu0
        %v5788 = vadd.f32 %v5730, %v5787
        %5789 = vmatmul.bf16.gmra.mxu0 %v4841
        %v5790 = vpop.f32.mrf.mxu0
        %v5791 = vadd.f32 %v5733, %v5790
        %v5792 = vpop.f32.mrf.mxu0
        %v5793 = vadd.f32 %v5735, %v5792
        %5794 = vmatmul.bf16.gmra.mxu0 %v4845
        %v5795 = vpop.f32.mrf.mxu0
        %v5796 = vadd.f32 %v5738, %v5795
        %v5797 = vpop.f32.mrf.mxu0
        %5798 = vdwg.mxu0
        %5799 = vmatpush.bf16.msra.mxu0 %v5493
        %5800 = vmatpush.bf16.msra.mxu0 %v5489
        %5801 = vmatpush.bf16.msra.mxu0 %v5485
        %5802 = vmatpush.bf16.msra.mxu0 %v5481
        %5803 = vmatpush.bf16.msra.mxu0 %v5477
        %5804 = vmatpush.bf16.msra.mxu0 %v5473
        %5805 = vmatpush.bf16.msra.mxu0 %v5469
        %5806 = vmatpush.bf16.msra.mxu0 %v5465
        %5807 = vmatmul.bf16.gmra.mxu0 %v4810
        %v5808 = vpop.f32.mrf.mxu0
        %v5809 = vadd.f32 %v5751, %v5808
        %v5810 = vpop.f32.mrf.mxu0
        %v5811 = vadd.f32 %v5753, %v5810
        %5812 = vmatmul.bf16.gmra.mxu0 %v4814
        %v5813 = vpop.f32.mrf.mxu0
        %v5814 = vadd.f32 %v5756, %v5813
        %v5815 = vpop.f32.mrf.mxu0
        %v5816 = vadd.f32 %v5758, %v5815
        %5817 = vmatmul.bf16.gmra.mxu0 %v4818
        %v5818 = vpop.f32.mrf.mxu0
        %v5819 = vadd.f32 %v5761, %v5818
        %v5820 = vpop.f32.mrf.mxu0
        %v5821 = vadd.f32 %v5763, %v5820
        %5822 = vmatmul.bf16.gmra.mxu0 %v4822
        %v5823 = vpop.f32.mrf.mxu0
        %v5824 = vadd.f32 %v5766, %v5823
        %v5825 = vpop.f32.mrf.mxu0
        %v5826 = vadd.f32 %v5768, %v5825
        %5827 = vmatmul.bf16.gmra.mxu0 %v4826
        %v5828 = vpop.f32.mrf.mxu0
        %v5829 = vadd.f32 %v5771, %v5828
        %v5830 = vpop.f32.mrf.mxu0
        %v5831 = vadd.f32 %v5773, %v5830
        %5832 = vmatmul.bf16.gmra.mxu0 %v4830
        %v5833 = vpop.f32.mrf.mxu0
        %v5834 = vadd.f32 %v5776, %v5833
        %v5835 = vpop.f32.mrf.mxu0
        %v5836 = vadd.f32 %v5778, %v5835
        %5837 = vmatmul.bf16.gmra.mxu0 %v4834
        %v5838 = vpop.f32.mrf.mxu0
        %v5839 = vadd.f32 %v5781, %v5838
        %v5840 = vpop.f32.mrf.mxu0
        %v5841 = vadd.f32 %v5783, %v5840
        %5842 = vmatmul.bf16.gmra.mxu0 %v4838
        %v5843 = vpop.f32.mrf.mxu0
        %v5844 = vadd.f32 %v5786, %v5843
        %v5845 = vpop.f32.mrf.mxu0
        %v5846 = vadd.f32 %v5788, %v5845
        %5847 = vmatmul.bf16.gmra.mxu0 %v4842
        %v5848 = vpop.f32.mrf.mxu0
        %v5849 = vadd.f32 %v5791, %v5848
        %v5850 = vpop.f32.mrf.mxu0
        %v5851 = vadd.f32 %v5793, %v5850
        %5852 = vmatmul.bf16.gmra.mxu0 %v4846
        %v5853 = vpop.f32.mrf.mxu0
        %v5854 = vadd.f32 %v5796, %v5853
        %v5855 = vpop.f32.mrf.mxu0
        %5856 = vdwg.mxu0
        %5857 = vmatpush.bf16.msra.mxu0 %v5398
        %5858 = vmatpush.bf16.msra.mxu0 %v5394
        %5859 = vmatpush.bf16.msra.mxu0 %v5390
        %5860 = vmatpush.bf16.msra.mxu0 %v5386
        %5861 = vmatpush.bf16.msra.mxu0 %v5382
        %5862 = vmatpush.bf16.msra.mxu0 %v5378
        %5863 = vmatpush.bf16.msra.mxu0 %v5374
        %5864 = vmatpush.bf16.msra.mxu0 %v5370
        %5865 = vmatmul.bf16.gmra.mxu0 %v4807
        %v5866 = vpop.f32.mrf.mxu0
        %v5867 = vadd.f32 %v4978, %v5866
        %v5868 = vpop.f32.mrf.mxu0
        %v5869 = vadd.f32 %v4978, %v5868
        %5870 = vmatmul.bf16.gmra.mxu0 %v4811
        %v5871 = vpop.f32.mrf.mxu0
        %v5872 = vadd.f32 %v4978, %v5871
        %v5873 = vpop.f32.mrf.mxu0
        %v5874 = vadd.f32 %v4978, %v5873
        %5875 = vmatmul.bf16.gmra.mxu0 %v4815
        %v5876 = vpop.f32.mrf.mxu0
        %v5877 = vadd.f32 %v4978, %v5876
        %v5878 = vpop.f32.mrf.mxu0
        %v5879 = vadd.f32 %v4978, %v5878
        %5880 = vmatmul.bf16.gmra.mxu0 %v4819
        %v5881 = vpop.f32.mrf.mxu0
        %v5882 = vadd.f32 %v4978, %v5881
        %v5883 = vpop.f32.mrf.mxu0
        %v5884 = vadd.f32 %v4978, %v5883
        %5885 = vmatmul.bf16.gmra.mxu0 %v4823
        %v5886 = vpop.f32.mrf.mxu0
        %v5887 = vadd.f32 %v4978, %v5886
        %v5888 = vpop.f32.mrf.mxu0
        %v5889 = vadd.f32 %v4978, %v5888
        %5890 = vmatmul.bf16.gmra.mxu0 %v4827
        %v5891 = vpop.f32.mrf.mxu0
        %v5892 = vadd.f32 %v4978, %v5891
        %v5893 = vpop.f32.mrf.mxu0
        %v5894 = vadd.f32 %v4978, %v5893
        %5895 = vmatmul.bf16.gmra.mxu0 %v4831
        %v5896 = vpop.f32.mrf.mxu0
        %v5897 = vadd.f32 %v4978, %v5896
        %v5898 = vpop.f32.mrf.mxu0
        %v5899 = vadd.f32 %v4978, %v5898
        %5900 = vmatmul.bf16.gmra.mxu0 %v4835
        %v5901 = vpop.f32.mrf.mxu0
        %v5902 = vadd.f32 %v4978, %v5901
        %v5903 = vpop.f32.mrf.mxu0
        %v5904 = vadd.f32 %v4978, %v5903
        %5905 = vmatmul.bf16.gmra.mxu0 %v4839
        %v5906 = vpop.f32.mrf.mxu0
        %v5907 = vadd.f32 %v4978, %v5906
        %v5908 = vpop.f32.mrf.mxu0
        %v5909 = vadd.f32 %v4978, %v5908
        %5910 = vmatmul.bf16.gmra.mxu0 %v4843
        %v5911 = vpop.f32.mrf.mxu0
        %v5912 = vadd.f32 %v4978, %v5911
        %v5913 = vpop.f32.mrf.mxu0
        %5914 = vdwg.mxu0
        %5915 = vmatpush.bf16.msra.mxu0 %v5430
        %5916 = vmatpush.bf16.msra.mxu0 %v5426
        %5917 = vmatpush.bf16.msra.mxu0 %v5422
        %5918 = vmatpush.bf16.msra.mxu0 %v5418
        %5919 = vmatpush.bf16.msra.mxu0 %v5414
        %5920 = vmatpush.bf16.msra.mxu0 %v5410
        %5921 = vmatpush.bf16.msra.mxu0 %v5406
        %5922 = vmatpush.bf16.msra.mxu0 %v5402
        %5923 = vmatmul.bf16.gmra.mxu0 %v4808
        %v5924 = vpop.f32.mrf.mxu0
        %v5925 = vadd.f32 %v5867, %v5924
        %v5926 = vpop.f32.mrf.mxu0
        %v5927 = vadd.f32 %v5869, %v5926
        %5928 = vmatmul.bf16.gmra.mxu0 %v4812
        %v5929 = vpop.f32.mrf.mxu0
        %v5930 = vadd.f32 %v5872, %v5929
        %v5931 = vpop.f32.mrf.mxu0
        %v5932 = vadd.f32 %v5874, %v5931
        %5933 = vmatmul.bf16.gmra.mxu0 %v4816
        %v5934 = vpop.f32.mrf.mxu0
        %v5935 = vadd.f32 %v5877, %v5934
        %v5936 = vpop.f32.mrf.mxu0
        %v5937 = vadd.f32 %v5879, %v5936
        %5938 = vmatmul.bf16.gmra.mxu0 %v4820
        %v5939 = vpop.f32.mrf.mxu0
        %v5940 = vadd.f32 %v5882, %v5939
        %v5941 = vpop.f32.mrf.mxu0
        %v5942 = vadd.f32 %v5884, %v5941
        %5943 = vmatmul.bf16.gmra.mxu0 %v4824
        %v5944 = vpop.f32.mrf.mxu0
        %v5945 = vadd.f32 %v5887, %v5944
        %v5946 = vpop.f32.mrf.mxu0
        %v5947 = vadd.f32 %v5889, %v5946
        %5948 = vmatmul.bf16.gmra.mxu0 %v4828
        %v5949 = vpop.f32.mrf.mxu0
        %v5950 = vadd.f32 %v5892, %v5949
        %v5951 = vpop.f32.mrf.mxu0
        %v5952 = vadd.f32 %v5894, %v5951
        %5953 = vmatmul.bf16.gmra.mxu0 %v4832
        %v5954 = vpop.f32.mrf.mxu0
        %v5955 = vadd.f32 %v5897, %v5954
        %v5956 = vpop.f32.mrf.mxu0
        %v5957 = vadd.f32 %v5899, %v5956
        %5958 = vmatmul.bf16.gmra.mxu0 %v4836
        %v5959 = vpop.f32.mrf.mxu0
        %v5960 = vadd.f32 %v5902, %v5959
        %v5961 = vpop.f32.mrf.mxu0
        %v5962 = vadd.f32 %v5904, %v5961
        %5963 = vmatmul.bf16.gmra.mxu0 %v4840
        %v5964 = vpop.f32.mrf.mxu0
        %v5965 = vadd.f32 %v5907, %v5964
        %v5966 = vpop.f32.mrf.mxu0
        %v5967 = vadd.f32 %v5909, %v5966
        %5968 = vmatmul.bf16.gmra.mxu0 %v4844
        %v5969 = vpop.f32.mrf.mxu0
        %v5970 = vadd.f32 %v5912, %v5969
        %v5971 = vpop.f32.mrf.mxu0
        %5972 = vdwg.mxu0
        %5973 = vmatpush.bf16.msra.mxu0 %v5462
        %5974 = vmatpush.bf16.msra.mxu0 %v5458
        %5975 = vmatpush.bf16.msra.mxu0 %v5454
        %5976 = vmatpush.bf16.msra.mxu0 %v5450
        %5977 = vmatpush.bf16.msra.mxu0 %v5446
        %5978 = vmatpush.bf16.msra.mxu0 %v5442
        %5979 = vmatpush.bf16.msra.mxu0 %v5438
        %5980 = vmatpush.bf16.msra.mxu0 %v5434
        %5981 = vmatmul.bf16.gmra.mxu0 %v4809
        %v5982 = vpop.f32.mrf.mxu0
        %v5983 = vadd.f32 %v5925, %v5982
        %v5984 = vpop.f32.mrf.mxu0
        %v5985 = vadd.f32 %v5927, %v5984
        %5986 = vmatmul.bf16.gmra.mxu0 %v4813
        %v5987 = vpop.f32.mrf.mxu0
        %v5988 = vadd.f32 %v5930, %v5987
        %v5989 = vpop.f32.mrf.mxu0
        %v5990 = vadd.f32 %v5932, %v5989
        %5991 = vmatmul.bf16.gmra.mxu0 %v4817
        %v5992 = vpop.f32.mrf.mxu0
        %v5993 = vadd.f32 %v5935, %v5992
        %v5994 = vpop.f32.mrf.mxu0
        %v5995 = vadd.f32 %v5937, %v5994
        %5996 = vmatmul.bf16.gmra.mxu0 %v4821
        %v5997 = vpop.f32.mrf.mxu0
        %v5998 = vadd.f32 %v5940, %v5997
        %v5999 = vpop.f32.mrf.mxu0
        %v6000 = vadd.f32 %v5942, %v5999
        %6001 = vmatmul.bf16.gmra.mxu0 %v4825
        %v6002 = vpop.f32.mrf.mxu0
        %v6003 = vadd.f32 %v5945, %v6002
        %v6004 = vpop.f32.mrf.mxu0
        %v6005 = vadd.f32 %v5947, %v6004
        %6006 = vmatmul.bf16.gmra.mxu0 %v4829
        %v6007 = vpop.f32.mrf.mxu0
        %v6008 = vadd.f32 %v5950, %v6007
        %v6009 = vpop.f32.mrf.mxu0
        %v6010 = vadd.f32 %v5952, %v6009
        %6011 = vmatmul.bf16.gmra.mxu0 %v4833
        %v6012 = vpop.f32.mrf.mxu0
        %v6013 = vadd.f32 %v5955, %v6012
        %v6014 = vpop.f32.mrf.mxu0
        %v6015 = vadd.f32 %v5957, %v6014
        %6016 = vmatmul.bf16.gmra.mxu0 %v4837
        %v6017 = vpop.f32.mrf.mxu0
        %v6018 = vadd.f32 %v5960, %v6017
        %v6019 = vpop.f32.mrf.mxu0
        %v6020 = vadd.f32 %v5962, %v6019
        %6021 = vmatmul.bf16.gmra.mxu0 %v4841
        %v6022 = vpop.f32.mrf.mxu0
        %v6023 = vadd.f32 %v5965, %v6022
        %v6024 = vpop.f32.mrf.mxu0
        %v6025 = vadd.f32 %v5967, %v6024
        %6026 = vmatmul.bf16.gmra.mxu0 %v4845
        %v6027 = vpop.f32.mrf.mxu0
        %v6028 = vadd.f32 %v5970, %v6027
        %v6029 = vpop.f32.mrf.mxu0
        %6030 = vdwg.mxu0
        %6031 = vmatpush.bf16.msra.mxu0 %v5494
        %6032 = vmatpush.bf16.msra.mxu0 %v5490
        %6033 = vmatpush.bf16.msra.mxu0 %v5486
        %6034 = vmatpush.bf16.msra.mxu0 %v5482
        %6035 = vmatpush.bf16.msra.mxu0 %v5478
        %6036 = vmatpush.bf16.msra.mxu0 %v5474
        %6037 = vmatpush.bf16.msra.mxu0 %v5470
        %6038 = vmatpush.bf16.msra.mxu0 %v5466
        %6039 = vmatmul.bf16.gmra.mxu0 %v4810
        %v6040 = vpop.f32.mrf.mxu0
        %v6041 = vadd.f32 %v5983, %v6040
        %v6042 = vpop.f32.mrf.mxu0
        %v6043 = vadd.f32 %v5985, %v6042
        %6044 = vmatmul.bf16.gmra.mxu0 %v4814
        %v6045 = vpop.f32.mrf.mxu0
        %v6046 = vadd.f32 %v5988, %v6045
        %v6047 = vpop.f32.mrf.mxu0
        %v6048 = vadd.f32 %v5990, %v6047
        %6049 = vmatmul.bf16.gmra.mxu0 %v4818
        %v6050 = vpop.f32.mrf.mxu0
        %v6051 = vadd.f32 %v5993, %v6050
        %v6052 = vpop.f32.mrf.mxu0
        %v6053 = vadd.f32 %v5995, %v6052
        %6054 = vmatmul.bf16.gmra.mxu0 %v4822
        %v6055 = vpop.f32.mrf.mxu0
        %v6056 = vadd.f32 %v5998, %v6055
        %v6057 = vpop.f32.mrf.mxu0
        %v6058 = vadd.f32 %v6000, %v6057
        %6059 = vmatmul.bf16.gmra.mxu0 %v4826
        %v6060 = vpop.f32.mrf.mxu0
        %v6061 = vadd.f32 %v6003, %v6060
        %v6062 = vpop.f32.mrf.mxu0
        %v6063 = vadd.f32 %v6005, %v6062
        %6064 = vmatmul.bf16.gmra.mxu0 %v4830
        %v6065 = vpop.f32.mrf.mxu0
        %v6066 = vadd.f32 %v6008, %v6065
        %v6067 = vpop.f32.mrf.mxu0
        %v6068 = vadd.f32 %v6010, %v6067
        %6069 = vmatmul.bf16.gmra.mxu0 %v4834
        %v6070 = vpop.f32.mrf.mxu0
        %v6071 = vadd.f32 %v6013, %v6070
        %v6072 = vpop.f32.mrf.mxu0
        %v6073 = vadd.f32 %v6015, %v6072
        %6074 = vmatmul.bf16.gmra.mxu0 %v4838
        %v6075 = vpop.f32.mrf.mxu0
        %v6076 = vadd.f32 %v6018, %v6075
        %v6077 = vpop.f32.mrf.mxu0
        %v6078 = vadd.f32 %v6020, %v6077
        %6079 = vmatmul.bf16.gmra.mxu0 %v4842
        %v6080 = vpop.f32.mrf.mxu0
        %v6081 = vadd.f32 %v6023, %v6080
        %v6082 = vpop.f32.mrf.mxu0
        %v6083 = vadd.f32 %v6025, %v6082
        %6084 = vmatmul.bf16.gmra.mxu0 %v4846
        %v6085 = vpop.f32.mrf.mxu0
        %v6086 = vadd.f32 %v6028, %v6085
        %v6087 = vpop.f32.mrf.mxu0
        %6088 = vdwg.mxu0
        %6089 = vmatpush.bf16.msra.mxu0 %v5399
        %6090 = vmatpush.bf16.msra.mxu0 %v5395
        %6091 = vmatpush.bf16.msra.mxu0 %v5391
        %6092 = vmatpush.bf16.msra.mxu0 %v5387
        %6093 = vmatpush.bf16.msra.mxu0 %v5383
        %6094 = vmatpush.bf16.msra.mxu0 %v5379
        %6095 = vmatpush.bf16.msra.mxu0 %v5375
        %6096 = vmatpush.bf16.msra.mxu0 %v5371
        %6097 = vmatmul.bf16.gmra.mxu0 %v4807
        %v6098 = vpop.f32.mrf.mxu0
        %v6099 = vadd.f32 %v4979, %v6098
        %v6100 = vpop.f32.mrf.mxu0
        %v6101 = vadd.f32 %v4979, %v6100
        %6102 = vmatmul.bf16.gmra.mxu0 %v4811
        %v6103 = vpop.f32.mrf.mxu0
        %v6104 = vadd.f32 %v4979, %v6103
        %v6105 = vpop.f32.mrf.mxu0
        %v6106 = vadd.f32 %v4979, %v6105
        %6107 = vmatmul.bf16.gmra.mxu0 %v4815
        %v6108 = vpop.f32.mrf.mxu0
        %v6109 = vadd.f32 %v4979, %v6108
        %v6110 = vpop.f32.mrf.mxu0
        %v6111 = vadd.f32 %v4979, %v6110
        %6112 = vmatmul.bf16.gmra.mxu0 %v4819
        %v6113 = vpop.f32.mrf.mxu0
        %v6114 = vadd.f32 %v4979, %v6113
        %v6115 = vpop.f32.mrf.mxu0
        %v6116 = vadd.f32 %v4979, %v6115
        %6117 = vmatmul.bf16.gmra.mxu0 %v4823
        %v6118 = vpop.f32.mrf.mxu0
        %v6119 = vadd.f32 %v4979, %v6118
        %v6120 = vpop.f32.mrf.mxu0
        %v6121 = vadd.f32 %v4979, %v6120
        %6122 = vmatmul.bf16.gmra.mxu0 %v4827
        %v6123 = vpop.f32.mrf.mxu0
        %v6124 = vadd.f32 %v4979, %v6123
        %v6125 = vpop.f32.mrf.mxu0
        %v6126 = vadd.f32 %v4979, %v6125
        %6127 = vmatmul.bf16.gmra.mxu0 %v4831
        %v6128 = vpop.f32.mrf.mxu0
        %v6129 = vadd.f32 %v4979, %v6128
        %v6130 = vpop.f32.mrf.mxu0
        %v6131 = vadd.f32 %v4979, %v6130
        %6132 = vmatmul.bf16.gmra.mxu0 %v4835
        %v6133 = vpop.f32.mrf.mxu0
        %v6134 = vadd.f32 %v4979, %v6133
        %v6135 = vpop.f32.mrf.mxu0
        %v6136 = vadd.f32 %v4979, %v6135
        %6137 = vmatmul.bf16.gmra.mxu0 %v4839
        %v6138 = vpop.f32.mrf.mxu0
        %v6139 = vadd.f32 %v4979, %v6138
        %v6140 = vpop.f32.mrf.mxu0
        %v6141 = vadd.f32 %v4979, %v6140
        %6142 = vmatmul.bf16.gmra.mxu0 %v4843
        %v6143 = vpop.f32.mrf.mxu0
        %v6144 = vadd.f32 %v4979, %v6143
        %v6145 = vpop.f32.mrf.mxu0
        %6146 = vdwg.mxu0
        %6147 = vmatpush.bf16.msra.mxu0 %v5431
        %6148 = vmatpush.bf16.msra.mxu0 %v5427
        %6149 = vmatpush.bf16.msra.mxu0 %v5423
        %6150 = vmatpush.bf16.msra.mxu0 %v5419
        %6151 = vmatpush.bf16.msra.mxu0 %v5415
        %6152 = vmatpush.bf16.msra.mxu0 %v5411
        %6153 = vmatpush.bf16.msra.mxu0 %v5407
        %6154 = vmatpush.bf16.msra.mxu0 %v5403
        %6155 = vmatmul.bf16.gmra.mxu0 %v4808
        %v6156 = vpop.f32.mrf.mxu0
        %v6157 = vadd.f32 %v6099, %v6156
        %v6158 = vpop.f32.mrf.mxu0
        %v6159 = vadd.f32 %v6101, %v6158
        %6160 = vmatmul.bf16.gmra.mxu0 %v4812
        %v6161 = vpop.f32.mrf.mxu0
        %v6162 = vadd.f32 %v6104, %v6161
        %v6163 = vpop.f32.mrf.mxu0
        %v6164 = vadd.f32 %v6106, %v6163
        %6165 = vmatmul.bf16.gmra.mxu0 %v4816
        %v6166 = vpop.f32.mrf.mxu0
        %v6167 = vadd.f32 %v6109, %v6166
        %v6168 = vpop.f32.mrf.mxu0
        %v6169 = vadd.f32 %v6111, %v6168
        %6170 = vmatmul.bf16.gmra.mxu0 %v4820
        %v6171 = vpop.f32.mrf.mxu0
        %v6172 = vadd.f32 %v6114, %v6171
        %v6173 = vpop.f32.mrf.mxu0
        %v6174 = vadd.f32 %v6116, %v6173
        %6175 = vmatmul.bf16.gmra.mxu0 %v4824
        %v6176 = vpop.f32.mrf.mxu0
        %v6177 = vadd.f32 %v6119, %v6176
        %v6178 = vpop.f32.mrf.mxu0
        %v6179 = vadd.f32 %v6121, %v6178
        %6180 = vmatmul.bf16.gmra.mxu0 %v4828
        %v6181 = vpop.f32.mrf.mxu0
        %v6182 = vadd.f32 %v6124, %v6181
        %v6183 = vpop.f32.mrf.mxu0
        %v6184 = vadd.f32 %v6126, %v6183
        %6185 = vmatmul.bf16.gmra.mxu0 %v4832
        %v6186 = vpop.f32.mrf.mxu0
        %v6187 = vadd.f32 %v6129, %v6186
        %v6188 = vpop.f32.mrf.mxu0
        %v6189 = vadd.f32 %v6131, %v6188
        %6190 = vmatmul.bf16.gmra.mxu0 %v4836
        %v6191 = vpop.f32.mrf.mxu0
        %v6192 = vadd.f32 %v6134, %v6191
        %v6193 = vpop.f32.mrf.mxu0
        %v6194 = vadd.f32 %v6136, %v6193
        %6195 = vmatmul.bf16.gmra.mxu0 %v4840
        %v6196 = vpop.f32.mrf.mxu0
        %v6197 = vadd.f32 %v6139, %v6196
        %v6198 = vpop.f32.mrf.mxu0
        %v6199 = vadd.f32 %v6141, %v6198
        %6200 = vmatmul.bf16.gmra.mxu0 %v4844
        %v6201 = vpop.f32.mrf.mxu0
        %v6202 = vadd.f32 %v6144, %v6201
        %v6203 = vpop.f32.mrf.mxu0
        %6204 = vdwg.mxu0
        %6205 = vmatpush.bf16.msra.mxu0 %v5463
        %6206 = vmatpush.bf16.msra.mxu0 %v5459
        %6207 = vmatpush.bf16.msra.mxu0 %v5455
        %6208 = vmatpush.bf16.msra.mxu0 %v5451
        %6209 = vmatpush.bf16.msra.mxu0 %v5447
        %6210 = vmatpush.bf16.msra.mxu0 %v5443
        %6211 = vmatpush.bf16.msra.mxu0 %v5439
        %6212 = vmatpush.bf16.msra.mxu0 %v5435
        %6213 = vmatmul.bf16.gmra.mxu0 %v4809
        %v6214 = vpop.f32.mrf.mxu0
        %v6215 = vadd.f32 %v6157, %v6214
        %v6216 = vpop.f32.mrf.mxu0
        %v6217 = vadd.f32 %v6159, %v6216
        %6218 = vmatmul.bf16.gmra.mxu0 %v4813
        %v6219 = vpop.f32.mrf.mxu0
        %v6220 = vadd.f32 %v6162, %v6219
        %v6221 = vpop.f32.mrf.mxu0
        %v6222 = vadd.f32 %v6164, %v6221
        %6223 = vmatmul.bf16.gmra.mxu0 %v4817
        %v6224 = vpop.f32.mrf.mxu0
        %v6225 = vadd.f32 %v6167, %v6224
        %v6226 = vpop.f32.mrf.mxu0
        %v6227 = vadd.f32 %v6169, %v6226
        %6228 = vmatmul.bf16.gmra.mxu0 %v4821
        %v6229 = vpop.f32.mrf.mxu0
        %v6230 = vadd.f32 %v6172, %v6229
        %v6231 = vpop.f32.mrf.mxu0
        %v6232 = vadd.f32 %v6174, %v6231
        %6233 = vmatmul.bf16.gmra.mxu0 %v4825
        %v6234 = vpop.f32.mrf.mxu0
        %v6235 = vadd.f32 %v6177, %v6234
        %v6236 = vpop.f32.mrf.mxu0
        %v6237 = vadd.f32 %v6179, %v6236
        %6238 = vmatmul.bf16.gmra.mxu0 %v4829
        %v6239 = vpop.f32.mrf.mxu0
        %v6240 = vadd.f32 %v6182, %v6239
        %v6241 = vpop.f32.mrf.mxu0
        %v6242 = vadd.f32 %v6184, %v6241
        %6243 = vmatmul.bf16.gmra.mxu0 %v4833
        %v6244 = vpop.f32.mrf.mxu0
        %v6245 = vadd.f32 %v6187, %v6244
        %v6246 = vpop.f32.mrf.mxu0
        %v6247 = vadd.f32 %v6189, %v6246
        %6248 = vmatmul.bf16.gmra.mxu0 %v4837
        %v6249 = vpop.f32.mrf.mxu0
        %v6250 = vadd.f32 %v6192, %v6249
        %v6251 = vpop.f32.mrf.mxu0
        %v6252 = vadd.f32 %v6194, %v6251
        %6253 = vmatmul.bf16.gmra.mxu0 %v4841
        %v6254 = vpop.f32.mrf.mxu0
        %v6255 = vadd.f32 %v6197, %v6254
        %v6256 = vpop.f32.mrf.mxu0
        %v6257 = vadd.f32 %v6199, %v6256
        %6258 = vmatmul.bf16.gmra.mxu0 %v4845
        %v6259 = vpop.f32.mrf.mxu0
        %v6260 = vadd.f32 %v6202, %v6259
        %v6261 = vpop.f32.mrf.mxu0
        %6262 = vdwg.mxu0
        %6263 = vmatpush.bf16.msra.mxu0 %v5495
        %6264 = vmatpush.bf16.msra.mxu0 %v5491
        %6265 = vmatpush.bf16.msra.mxu0 %v5487
        %6266 = vmatpush.bf16.msra.mxu0 %v5483
        %6267 = vmatpush.bf16.msra.mxu0 %v5479
        %6268 = vmatpush.bf16.msra.mxu0 %v5475
        %6269 = vmatpush.bf16.msra.mxu0 %v5471
        %6270 = vmatpush.bf16.msra.mxu0 %v5467
        %6271 = vmatmul.bf16.gmra.mxu0 %v4810
        %v6272 = vpop.f32.mrf.mxu0
        %v6273 = vadd.f32 %v6215, %v6272
        %v6274 = vpop.f32.mrf.mxu0
        %v6275 = vadd.f32 %v6217, %v6274
        %6276 = vmatmul.bf16.gmra.mxu0 %v4814
        %v6277 = vpop.f32.mrf.mxu0
        %v6278 = vadd.f32 %v6220, %v6277
        %v6279 = vpop.f32.mrf.mxu0
        %v6280 = vadd.f32 %v6222, %v6279
        %6281 = vmatmul.bf16.gmra.mxu0 %v4818
        %v6282 = vpop.f32.mrf.mxu0
        %v6283 = vadd.f32 %v6225, %v6282
        %v6284 = vpop.f32.mrf.mxu0
        %v6285 = vadd.f32 %v6227, %v6284
        %6286 = vmatmul.bf16.gmra.mxu0 %v4822
        %v6287 = vpop.f32.mrf.mxu0
        %v6288 = vadd.f32 %v6230, %v6287
        %v6289 = vpop.f32.mrf.mxu0
        %v6290 = vadd.f32 %v6232, %v6289
        %6291 = vmatmul.bf16.gmra.mxu0 %v4826
        %v6292 = vpop.f32.mrf.mxu0
        %v6293 = vadd.f32 %v6235, %v6292
        %v6294 = vpop.f32.mrf.mxu0
        %v6295 = vadd.f32 %v6237, %v6294
        %6296 = vmatmul.bf16.gmra.mxu0 %v4830
        %v6297 = vpop.f32.mrf.mxu0
        %v6298 = vadd.f32 %v6240, %v6297
        %v6299 = vpop.f32.mrf.mxu0
        %v6300 = vadd.f32 %v6242, %v6299
        %6301 = vmatmul.bf16.gmra.mxu0 %v4834
        %v6302 = vpop.f32.mrf.mxu0
        %v6303 = vadd.f32 %v6245, %v6302
        %v6304 = vpop.f32.mrf.mxu0
        %v6305 = vadd.f32 %v6247, %v6304
        %6306 = vmatmul.bf16.gmra.mxu0 %v4838
        %v6307 = vpop.f32.mrf.mxu0
        %v6308 = vadd.f32 %v6250, %v6307
        %v6309 = vpop.f32.mrf.mxu0
        %v6310 = vadd.f32 %v6252, %v6309
        %6311 = vmatmul.bf16.gmra.mxu0 %v4842
        %v6312 = vpop.f32.mrf.mxu0
        %v6313 = vadd.f32 %v6255, %v6312
        %v6314 = vpop.f32.mrf.mxu0
        %v6315 = vadd.f32 %v6257, %v6314
        %6316 = vmatmul.bf16.gmra.mxu0 %v4846
        %v6317 = vpop.f32.mrf.mxu0
        %v6318 = vadd.f32 %v6260, %v6317
        %v6319 = vpop.f32.mrf.mxu0
        %6320 = vdwg.mxu0
        %6321 = vmatpush.bf16.msra.mxu0 %v5400
        %6322 = vmatpush.bf16.msra.mxu0 %v5396
        %6323 = vmatpush.bf16.msra.mxu0 %v5392
        %6324 = vmatpush.bf16.msra.mxu0 %v5388
        %6325 = vmatpush.bf16.msra.mxu0 %v5384
        %6326 = vmatpush.bf16.msra.mxu0 %v5380
        %6327 = vmatpush.bf16.msra.mxu0 %v5376
        %6328 = vmatpush.bf16.msra.mxu0 %v5372
        %6329 = vmatmul.bf16.gmra.mxu0 %v4807
        %v6330 = vpop.f32.mrf.mxu0
        %v6331 = vadd.f32 %v4980, %v6330
        %v6332 = vpop.f32.mrf.mxu0
        %v6333 = vadd.f32 %v4980, %v6332
        %6334 = vmatmul.bf16.gmra.mxu0 %v4811
        %v6335 = vpop.f32.mrf.mxu0
        %v6336 = vadd.f32 %v4980, %v6335
        %v6337 = vpop.f32.mrf.mxu0
        %v6338 = vadd.f32 %v4980, %v6337
        %6339 = vmatmul.bf16.gmra.mxu0 %v4815
        %v6340 = vpop.f32.mrf.mxu0
        %v6341 = vadd.f32 %v4980, %v6340
        %v6342 = vpop.f32.mrf.mxu0
        %v6343 = vadd.f32 %v4980, %v6342
        %6344 = vmatmul.bf16.gmra.mxu0 %v4819
        %v6345 = vpop.f32.mrf.mxu0
        %v6346 = vadd.f32 %v4980, %v6345
        %v6347 = vpop.f32.mrf.mxu0
        %v6348 = vadd.f32 %v4980, %v6347
        %6349 = vmatmul.bf16.gmra.mxu0 %v4823
        %v6350 = vpop.f32.mrf.mxu0
        %v6351 = vadd.f32 %v4980, %v6350
        %v6352 = vpop.f32.mrf.mxu0
        %v6353 = vadd.f32 %v4980, %v6352
        %6354 = vmatmul.bf16.gmra.mxu0 %v4827
        %v6355 = vpop.f32.mrf.mxu0
        %v6356 = vadd.f32 %v4980, %v6355
        %v6357 = vpop.f32.mrf.mxu0
        %v6358 = vadd.f32 %v4980, %v6357
        %6359 = vmatmul.bf16.gmra.mxu0 %v4831
        %v6360 = vpop.f32.mrf.mxu0
        %v6361 = vadd.f32 %v4980, %v6360
        %v6362 = vpop.f32.mrf.mxu0
        %v6363 = vadd.f32 %v4980, %v6362
        %6364 = vmatmul.bf16.gmra.mxu0 %v4835
        %v6365 = vpop.f32.mrf.mxu0
        %v6366 = vadd.f32 %v4980, %v6365
        %v6367 = vpop.f32.mrf.mxu0
        %v6368 = vadd.f32 %v4980, %v6367
        %6369 = vmatmul.bf16.gmra.mxu0 %v4839
        %v6370 = vpop.f32.mrf.mxu0
        %v6371 = vadd.f32 %v4980, %v6370
        %v6372 = vpop.f32.mrf.mxu0
        %v6373 = vadd.f32 %v4980, %v6372
        %6374 = vmatmul.bf16.gmra.mxu0 %v4843
        %v6375 = vpop.f32.mrf.mxu0
        %v6376 = vadd.f32 %v4980, %v6375
        %v6377 = vpop.f32.mrf.mxu0
        %6378 = vdwg.mxu0
        %6379 = vmatpush.bf16.msra.mxu0 %v5432
        %6380 = vmatpush.bf16.msra.mxu0 %v5428
        %6381 = vmatpush.bf16.msra.mxu0 %v5424
        %6382 = vmatpush.bf16.msra.mxu0 %v5420
        %6383 = vmatpush.bf16.msra.mxu0 %v5416
        %6384 = vmatpush.bf16.msra.mxu0 %v5412
        %6385 = vmatpush.bf16.msra.mxu0 %v5408
        %6386 = vmatpush.bf16.msra.mxu0 %v5404
        %6387 = vmatmul.bf16.gmra.mxu0 %v4808
        %v6388 = vpop.f32.mrf.mxu0
        %v6389 = vadd.f32 %v6331, %v6388
        %v6390 = vpop.f32.mrf.mxu0
        %v6391 = vadd.f32 %v6333, %v6390
        %6392 = vmatmul.bf16.gmra.mxu0 %v4812
        %v6393 = vpop.f32.mrf.mxu0
        %v6394 = vadd.f32 %v6336, %v6393
        %v6395 = vpop.f32.mrf.mxu0
        %v6396 = vadd.f32 %v6338, %v6395
        %6397 = vmatmul.bf16.gmra.mxu0 %v4816
        %v6398 = vpop.f32.mrf.mxu0
        %v6399 = vadd.f32 %v6341, %v6398
        %v6400 = vpop.f32.mrf.mxu0
        %v6401 = vadd.f32 %v6343, %v6400
        %6402 = vmatmul.bf16.gmra.mxu0 %v4820
        %v6403 = vpop.f32.mrf.mxu0
        %v6404 = vadd.f32 %v6346, %v6403
        %v6405 = vpop.f32.mrf.mxu0
        %v6406 = vadd.f32 %v6348, %v6405
        %6407 = vmatmul.bf16.gmra.mxu0 %v4824
        %v6408 = vpop.f32.mrf.mxu0
        %v6409 = vadd.f32 %v6351, %v6408
        %v6410 = vpop.f32.mrf.mxu0
        %v6411 = vadd.f32 %v6353, %v6410
        %6412 = vmatmul.bf16.gmra.mxu0 %v4828
        %v6413 = vpop.f32.mrf.mxu0
        %v6414 = vadd.f32 %v6356, %v6413
        %v6415 = vpop.f32.mrf.mxu0
        %v6416 = vadd.f32 %v6358, %v6415
        %6417 = vmatmul.bf16.gmra.mxu0 %v4832
        %v6418 = vpop.f32.mrf.mxu0
        %v6419 = vadd.f32 %v6361, %v6418
        %v6420 = vpop.f32.mrf.mxu0
        %v6421 = vadd.f32 %v6363, %v6420
        %6422 = vmatmul.bf16.gmra.mxu0 %v4836
        %v6423 = vpop.f32.mrf.mxu0
        %v6424 = vadd.f32 %v6366, %v6423
        %v6425 = vpop.f32.mrf.mxu0
        %v6426 = vadd.f32 %v6368, %v6425
        %6427 = vmatmul.bf16.gmra.mxu0 %v4840
        %v6428 = vpop.f32.mrf.mxu0
        %v6429 = vadd.f32 %v6371, %v6428
        %v6430 = vpop.f32.mrf.mxu0
        %v6431 = vadd.f32 %v6373, %v6430
        %6432 = vmatmul.bf16.gmra.mxu0 %v4844
        %v6433 = vpop.f32.mrf.mxu0
        %v6434 = vadd.f32 %v6376, %v6433
        %v6435 = vpop.f32.mrf.mxu0
        %6436 = vdwg.mxu0
        %6437 = vmatpush.bf16.msra.mxu0 %v5464
        %6438 = vmatpush.bf16.msra.mxu0 %v5460
        %6439 = vmatpush.bf16.msra.mxu0 %v5456
        %6440 = vmatpush.bf16.msra.mxu0 %v5452
        %6441 = vmatpush.bf16.msra.mxu0 %v5448
        %6442 = vmatpush.bf16.msra.mxu0 %v5444
        %6443 = vmatpush.bf16.msra.mxu0 %v5440
        %6444 = vmatpush.bf16.msra.mxu0 %v5436
        %6445 = vmatmul.bf16.gmra.mxu0 %v4809
        %v6446 = vpop.f32.mrf.mxu0
        %v6447 = vadd.f32 %v6389, %v6446
        %v6448 = vpop.f32.mrf.mxu0
        %v6449 = vadd.f32 %v6391, %v6448
        %6450 = vmatmul.bf16.gmra.mxu0 %v4813
        %v6451 = vpop.f32.mrf.mxu0
        %v6452 = vadd.f32 %v6394, %v6451
        %v6453 = vpop.f32.mrf.mxu0
        %v6454 = vadd.f32 %v6396, %v6453
        %6455 = vmatmul.bf16.gmra.mxu0 %v4817
        %v6456 = vpop.f32.mrf.mxu0
        %v6457 = vadd.f32 %v6399, %v6456
        %v6458 = vpop.f32.mrf.mxu0
        %v6459 = vadd.f32 %v6401, %v6458
        %6460 = vmatmul.bf16.gmra.mxu0 %v4821
        %v6461 = vpop.f32.mrf.mxu0
        %v6462 = vadd.f32 %v6404, %v6461
        %v6463 = vpop.f32.mrf.mxu0
        %v6464 = vadd.f32 %v6406, %v6463
        %6465 = vmatmul.bf16.gmra.mxu0 %v4825
        %v6466 = vpop.f32.mrf.mxu0
        %v6467 = vadd.f32 %v6409, %v6466
        %v6468 = vpop.f32.mrf.mxu0
        %v6469 = vadd.f32 %v6411, %v6468
        %6470 = vmatmul.bf16.gmra.mxu0 %v4829
        %v6471 = vpop.f32.mrf.mxu0
        %v6472 = vadd.f32 %v6414, %v6471
        %v6473 = vpop.f32.mrf.mxu0
        %v6474 = vadd.f32 %v6416, %v6473
        %6475 = vmatmul.bf16.gmra.mxu0 %v4833
        %v6476 = vpop.f32.mrf.mxu0
        %v6477 = vadd.f32 %v6419, %v6476
        %v6478 = vpop.f32.mrf.mxu0
        %v6479 = vadd.f32 %v6421, %v6478
        %6480 = vmatmul.bf16.gmra.mxu0 %v4837
        %v6481 = vpop.f32.mrf.mxu0
        %v6482 = vadd.f32 %v6424, %v6481
        %v6483 = vpop.f32.mrf.mxu0
        %v6484 = vadd.f32 %v6426, %v6483
        %6485 = vmatmul.bf16.gmra.mxu0 %v4841
        %v6486 = vpop.f32.mrf.mxu0
        %v6487 = vadd.f32 %v6429, %v6486
        %v6488 = vpop.f32.mrf.mxu0
        %v6489 = vadd.f32 %v6431, %v6488
        %6490 = vmatmul.bf16.gmra.mxu0 %v4845
        %v6491 = vpop.f32.mrf.mxu0
        %v6492 = vadd.f32 %v6434, %v6491
        %v6493 = vpop.f32.mrf.mxu0
        %6494 = vdwg.mxu0
        %6495 = vmatpush.bf16.msra.mxu0 %v5496
        %6496 = vmatpush.bf16.msra.mxu0 %v5492
        %6497 = vmatpush.bf16.msra.mxu0 %v5488
        %6498 = vmatpush.bf16.msra.mxu0 %v5484
        %6499 = vmatpush.bf16.msra.mxu0 %v5480
        %6500 = vmatpush.bf16.msra.mxu0 %v5476
        %6501 = vmatpush.bf16.msra.mxu0 %v5472
        %6502 = vmatpush.bf16.msra.mxu0 %v5468
        %6503 = vmatmul.bf16.gmra.mxu0 %v4810
        %v6504 = vpop.f32.mrf.mxu0
        %v6505 = vadd.f32 %v6447, %v6504
        %v6506 = vpop.f32.mrf.mxu0
        %v6507 = vadd.f32 %v6449, %v6506
        %6508 = vmatmul.bf16.gmra.mxu0 %v4814
        %v6509 = vpop.f32.mrf.mxu0
        %v6510 = vadd.f32 %v6452, %v6509
        %v6511 = vpop.f32.mrf.mxu0
        %v6512 = vadd.f32 %v6454, %v6511
        %6513 = vmatmul.bf16.gmra.mxu0 %v4818
        %v6514 = vpop.f32.mrf.mxu0
        %v6515 = vadd.f32 %v6457, %v6514
        %v6516 = vpop.f32.mrf.mxu0
        %v6517 = vadd.f32 %v6459, %v6516
        %6518 = vmatmul.bf16.gmra.mxu0 %v4822
        %v6519 = vpop.f32.mrf.mxu0
        %v6520 = vadd.f32 %v6462, %v6519
        %v6521 = vpop.f32.mrf.mxu0
        %v6522 = vadd.f32 %v6464, %v6521
        %6523 = vmatmul.bf16.gmra.mxu0 %v4826
        %v6524 = vpop.f32.mrf.mxu0
        %v6525 = vadd.f32 %v6467, %v6524
        %v6526 = vpop.f32.mrf.mxu0
        %v6527 = vadd.f32 %v6469, %v6526
        %6528 = vmatmul.bf16.gmra.mxu0 %v4830
        %v6529 = vpop.f32.mrf.mxu0
        %v6530 = vadd.f32 %v6472, %v6529
        %v6531 = vpop.f32.mrf.mxu0
        %v6532 = vadd.f32 %v6474, %v6531
        %6533 = vmatmul.bf16.gmra.mxu0 %v4834
        %v6534 = vpop.f32.mrf.mxu0
        %v6535 = vadd.f32 %v6477, %v6534
        %v6536 = vpop.f32.mrf.mxu0
        %v6537 = vadd.f32 %v6479, %v6536
        %6538 = vmatmul.bf16.gmra.mxu0 %v4838
        %v6539 = vpop.f32.mrf.mxu0
        %v6540 = vadd.f32 %v6482, %v6539
        %v6541 = vpop.f32.mrf.mxu0
        %v6542 = vadd.f32 %v6484, %v6541
        %6543 = vmatmul.bf16.gmra.mxu0 %v4842
        %v6544 = vpop.f32.mrf.mxu0
        %v6545 = vadd.f32 %v6487, %v6544
        %v6546 = vpop.f32.mrf.mxu0
        %v6547 = vadd.f32 %v6489, %v6546
        %6548 = vmatmul.bf16.gmra.mxu0 %v4846
        %v6549 = vpop.f32.mrf.mxu0
        %v6550 = vadd.f32 %v6492, %v6549
        %v6551 = vpop.f32.mrf.mxu0
        %6552 = vdwg.mxu0
        %v6553 = vmax.f32 %v5809, 0.0
        %v6554 = vmax.f32 %v6041, 0.0
        %v6555 = vmax.f32 %v6273, 0.0
        %v6556 = vmax.f32 %v6505, 0.0
        %v6557 = vmax.f32 %v5811, 0.0
        %v6558 = vmax.f32 %v6043, 0.0
        %v6559 = vmax.f32 %v6275, 0.0
        %v6560 = vmax.f32 %v6507, 0.0
        %v6561 = vmax.f32 %v5814, 0.0
        %v6562 = vmax.f32 %v6046, 0.0
        %v6563 = vmax.f32 %v6278, 0.0
        %v6564 = vmax.f32 %v6510, 0.0
        %v6565 = vmax.f32 %v5816, 0.0
        %v6566 = vmax.f32 %v6048, 0.0
        %v6567 = vmax.f32 %v6280, 0.0
        %v6568 = vmax.f32 %v6512, 0.0
        %v6569 = vmax.f32 %v5819, 0.0
        %v6570 = vmax.f32 %v6051, 0.0
        %v6571 = vmax.f32 %v6283, 0.0
        %v6572 = vmax.f32 %v6515, 0.0
        %v6573 = vmax.f32 %v5821, 0.0
        %v6574 = vmax.f32 %v6053, 0.0
        %v6575 = vmax.f32 %v6285, 0.0
        %v6576 = vmax.f32 %v6517, 0.0
        %v6577 = vmax.f32 %v5824, 0.0
        %v6578 = vmax.f32 %v6056, 0.0
        %v6579 = vmax.f32 %v6288, 0.0
        %v6580 = vmax.f32 %v6520, 0.0
        %v6581 = vmax.f32 %v5826, 0.0
        %v6582 = vmax.f32 %v6058, 0.0
        %v6583 = vmax.f32 %v6290, 0.0
        %v6584 = vmax.f32 %v6522, 0.0
        %v6585 = vmax.f32 %v5829, 0.0
        %v6586 = vmax.f32 %v6061, 0.0
        %v6587 = vmax.f32 %v6293, 0.0
        %v6588 = vmax.f32 %v6525, 0.0
        %v6589 = vmax.f32 %v5831, 0.0
        %v6590 = vmax.f32 %v6063, 0.0
        %v6591 = vmax.f32 %v6295, 0.0
        %v6592 = vmax.f32 %v6527, 0.0
        %v6593 = vmax.f32 %v5834, 0.0
        %v6594 = vmax.f32 %v6066, 0.0
        %v6595 = vmax.f32 %v6298, 0.0
        %v6596 = vmax.f32 %v6530, 0.0
        %v6597 = vmax.f32 %v5836, 0.0
        %v6598 = vmax.f32 %v6068, 0.0
        %v6599 = vmax.f32 %v6300, 0.0
        %v6600 = vmax.f32 %v6532, 0.0
        %v6601 = vmax.f32 %v5839, 0.0
        %v6602 = vmax.f32 %v6071, 0.0
        %v6603 = vmax.f32 %v6303, 0.0
        %v6604 = vmax.f32 %v6535, 0.0
        %v6605 = vmax.f32 %v5841, 0.0
        %v6606 = vmax.f32 %v6073, 0.0
        %v6607 = vmax.f32 %v6305, 0.0
        %v6608 = vmax.f32 %v6537, 0.0
        %v6609 = vmax.f32 %v5844, 0.0
        %v6610 = vmax.f32 %v6076, 0.0
        %v6611 = vmax.f32 %v6308, 0.0
        %v6612 = vmax.f32 %v6540, 0.0
        %v6613 = vmax.f32 %v5846, 0.0
        %v6614 = vmax.f32 %v6078, 0.0
        %v6615 = vmax.f32 %v6310, 0.0
        %v6616 = vmax.f32 %v6542, 0.0
        %v6617 = vmax.f32 %v5849, 0.0
        %v6618 = vmax.f32 %v6081, 0.0
        %v6619 = vmax.f32 %v6313, 0.0
        %v6620 = vmax.f32 %v6545, 0.0
        %v6621 = vmax.f32 %v5851, 0.0
        %v6622 = vmax.f32 %v6083, 0.0
        %v6623 = vmax.f32 %v6315, 0.0
        %v6624 = vmax.f32 %v6547, 0.0
        %v6625 = vmax.f32 %v5854, 0.0
        %v6626 = vmax.f32 %v6086, 0.0
        %v6627 = vmax.f32 %v6318, 0.0
        %v6628 = vmax.f32 %v6550, 0.0
        %v6629 = vpack.c.bf16 %v6557, %v6553
        %v6630 = vpack.c.bf16 %v6558, %v6554
        %v6631 = vpack.c.bf16 %v6559, %v6555
        %v6632 = vpack.c.bf16 %v6560, %v6556
        %v6633 = vpack.c.bf16 %v6565, %v6561
        %v6634 = vpack.c.bf16 %v6566, %v6562
        %v6635 = vpack.c.bf16 %v6567, %v6563
        %v6636 = vpack.c.bf16 %v6568, %v6564
        %v6637 = vpack.c.bf16 %v6573, %v6569
        %v6638 = vpack.c.bf16 %v6574, %v6570
        %v6639 = vpack.c.bf16 %v6575, %v6571
        %v6640 = vpack.c.bf16 %v6576, %v6572
        %v6641 = vpack.c.bf16 %v6581, %v6577
        %v6642 = vpack.c.bf16 %v6582, %v6578
        %v6643 = vpack.c.bf16 %v6583, %v6579
        %v6644 = vpack.c.bf16 %v6584, %v6580
        %v6645 = vpack.c.bf16 %v6589, %v6585
        %v6646 = vpack.c.bf16 %v6590, %v6586
        %v6647 = vpack.c.bf16 %v6591, %v6587
        %v6648 = vpack.c.bf16 %v6592, %v6588
        %v6649 = vpack.c.bf16 %v6597, %v6593
        %v6650 = vpack.c.bf16 %v6598, %v6594
        %v6651 = vpack.c.bf16 %v6599, %v6595
        %v6652 = vpack.c.bf16 %v6600, %v6596
        %v6653 = vpack.c.bf16 %v6605, %v6601
        %v6654 = vpack.c.bf16 %v6606, %v6602
        %v6655 = vpack.c.bf16 %v6607, %v6603
        %v6656 = vpack.c.bf16 %v6608, %v6604
        %v6657 = vpack.c.bf16 %v6613, %v6609
        %v6658 = vpack.c.bf16 %v6614, %v6610
        %v6659 = vpack.c.bf16 %v6615, %v6611
        %v6660 = vpack.c.bf16 %v6616, %v6612
        %v6661 = vpack.c.bf16 %v6621, %v6617
        %v6662 = vpack.c.bf16 %v6622, %v6618
        %v6663 = vpack.c.bf16 %v6623, %v6619
        %v6664 = vpack.c.bf16 %v6624, %v6620
        %v6665 = vpack.c.bf16 %v6625, %v6625
        %v6666 = vpack.c.bf16 %v6626, %v6626
        %v6667 = vpack.c.bf16 %v6627, %v6627
        %v6668 = vpack.c.bf16 %v6628, %v6628
        %v6669 = vld [vmem:[#allocation8] sm:$0xf]
        %v6670 = vld [vmem:[#allocation8 + $0x4] sm:$0xf]
        %v6671 = vld [vmem:[#allocation8 + $0x8] sm:$0xf]
        %v6672 = vld [vmem:[#allocation8 + $0xc] sm:$0xf]
        %v6673 = vld [vmem:[#allocation8 + $0x10] sm:$0xf]
        %v6674 = vld [vmem:[#allocation8 + $0x14] sm:$0xf]
        %v6675 = vld [vmem:[#allocation8 + $0x18] sm:$0xf]
        %v6676 = vld [vmem:[#allocation8 + $0x1c] sm:$0xf]
        %v6677 = vld [vmem:[#allocation8 + $0x20] sm:$0xf]
        %v6678 = vld [vmem:[#allocation8 + $0x24] sm:$0xf]
        %v6679 = vld [vmem:[#allocation8 + $0x28] sm:$0xf]
        %v6680 = vld [vmem:[#allocation8 + $0x2c] sm:$0xf]
        %v6681 = vld [vmem:[#allocation8 + $0x30] sm:$0xf]
        %v6682 = vld [vmem:[#allocation8 + $0x34] sm:$0xf]
        %v6683 = vld [vmem:[#allocation8 + $0x38] sm:$0xf]
        %v6684 = vld [vmem:[#allocation8 + $0x3c] sm:$0xf]
        %v6685 = vld [vmem:[#allocation8 + $0x40] sm:$0xf]
        %v6686 = vld [vmem:[#allocation8 + $0x44] sm:$0xf]
        %v6687 = vld [vmem:[#allocation8 + $0x48] sm:$0xf]
        %v6688 = vld [vmem:[#allocation8 + $0x4c] sm:$0xf]
        %v6689 = vld [vmem:[#allocation8 + $0x50] sm:$0xf]
        %v6690 = vld [vmem:[#allocation8 + $0x54] sm:$0xf]
        %v6691 = vld [vmem:[#allocation8 + $0x58] sm:$0xf]
        %v6692 = vld [vmem:[#allocation8 + $0x5c] sm:$0xf]
        %v6693 = vld [vmem:[#allocation8 + $0x60] sm:$0xf]
        %v6694 = vld [vmem:[#allocation8 + $0x64] sm:$0xf]
        %v6695 = vld [vmem:[#allocation8 + $0x68] sm:$0xf]
        %v6696 = vld [vmem:[#allocation8 + $0x6c] sm:$0xf]
        %v6697 = vld [vmem:[#allocation8 + $0x70] sm:$0xf]
        %v6698 = vld [vmem:[#allocation8 + $0x74] sm:$0xf]
        %v6699 = vld [vmem:[#allocation8 + $0x78] sm:$0xf]
        %v6700 = vld [vmem:[#allocation8 + $0x7c] sm:$0xf]
        %v6701 = vld [vmem:[#allocation8 + $0x80] sm:$0xf]
        %v6702 = vld [vmem:[#allocation8 + $0x84] sm:$0xf]
        %v6703 = vld [vmem:[#allocation8 + $0x88] sm:$0xf]
        %v6704 = vld [vmem:[#allocation8 + $0x8c] sm:$0xf]
        %v6705 = vld [vmem:[#allocation8 + $0x90] sm:$0xf]
        %v6706 = vld [vmem:[#allocation8 + $0x94] sm:$0xf]
        %v6707 = vld [vmem:[#allocation8 + $0x98] sm:$0xf]
        %v6708 = vld [vmem:[#allocation8 + $0x9c] sm:$0xf]
        %v6709 = vld [vmem:[#allocation8 + $0xa0] sm:$0xf]
        %v6710 = vld [vmem:[#allocation8 + $0xa4] sm:$0xf]
        %v6711 = vld [vmem:[#allocation8 + $0xa8] sm:$0xf]
        %v6712 = vld [vmem:[#allocation8 + $0xac] sm:$0xf]
        %v6713 = vld [vmem:[#allocation8 + $0xb0] sm:$0xf]
        %v6714 = vld [vmem:[#allocation8 + $0xb4] sm:$0xf]
        %v6715 = vld [vmem:[#allocation8 + $0xb8] sm:$0xf]
        %v6716 = vld [vmem:[#allocation8 + $0xbc] sm:$0xf]
        %v6717 = vld [vmem:[#allocation8 + $0xc0] sm:$0xf]
        %v6718 = vld [vmem:[#allocation8 + $0xc4] sm:$0xf]
        %v6719 = vld [vmem:[#allocation8 + $0xc8] sm:$0xf]
        %v6720 = vld [vmem:[#allocation8 + $0xcc] sm:$0xf]
        %v6721 = vld [vmem:[#allocation8 + $0xd0] sm:$0xf]
        %v6722 = vld [vmem:[#allocation8 + $0xd4] sm:$0xf]
        %v6723 = vld [vmem:[#allocation8 + $0xd8] sm:$0xf]
        %v6724 = vld [vmem:[#allocation8 + $0xdc] sm:$0xf]
        %v6725 = vld [vmem:[#allocation8 + $0xe0] sm:$0xf]
        %v6726 = vld [vmem:[#allocation8 + $0xe4] sm:$0xf]
        %v6727 = vld [vmem:[#allocation8 + $0xe8] sm:$0xf]
        %v6728 = vld [vmem:[#allocation8 + $0xec] sm:$0xf]
        %v6729 = vld [vmem:[#allocation8 + $0xf0] sm:$0xf]
        %v6730 = vld [vmem:[#allocation8 + $0xf4] sm:$0xf]
        %v6731 = vld [vmem:[#allocation8 + $0xf8] sm:$0xf]
        %v6732 = vld [vmem:[#allocation8 + $0xfc] sm:$0xf]
        %v6733 = vld [vmem:[%s10] sm:$0x1]
        %v6735 = vperm.slane %v6733, 0
        %v6801 = vunpack.c.l.b16 %v6669
        %v6802 = vunpack.c.l.b16 %v6670
        %v6803 = vunpack.c.l.b16 %v6671
        %v6804 = vunpack.c.l.b16 %v6672
        %v6805 = vunpack.c.l.b16 %v6673
        %v6806 = vunpack.c.l.b16 %v6674
        %v6807 = vunpack.c.l.b16 %v6675
        %v6808 = vunpack.c.l.b16 %v6676
        %v6809 = vunpack.c.l.b16 %v6677
        %v6810 = vunpack.c.l.b16 %v6678
        %v6811 = vunpack.c.l.b16 %v6679
        %v6812 = vunpack.c.l.b16 %v6680
        %v6813 = vunpack.c.l.b16 %v6681
        %v6814 = vunpack.c.l.b16 %v6682
        %v6815 = vunpack.c.l.b16 %v6683
        %v6816 = vunpack.c.l.b16 %v6684
        %v6817 = vunpack.c.l.b16 %v6685
        %v6818 = vunpack.c.l.b16 %v6686
        %v6819 = vunpack.c.l.b16 %v6687
        %v6820 = vunpack.c.l.b16 %v6688
        %v6821 = vunpack.c.l.b16 %v6689
        %v6822 = vunpack.c.l.b16 %v6690
        %v6823 = vunpack.c.l.b16 %v6691
        %v6824 = vunpack.c.l.b16 %v6692
        %v6825 = vunpack.c.l.b16 %v6693
        %v6826 = vunpack.c.l.b16 %v6694
        %v6827 = vunpack.c.l.b16 %v6695
        %v6828 = vunpack.c.l.b16 %v6696
        %v6829 = vunpack.c.l.b16 %v6697
        %v6830 = vunpack.c.l.b16 %v6698
        %v6831 = vunpack.c.l.b16 %v6699
        %v6832 = vunpack.c.l.b16 %v6700
        %v6833 = vunpack.c.l.b16 %v6701
        %v6834 = vunpack.c.l.b16 %v6702
        %v6835 = vunpack.c.l.b16 %v6703
        %v6836 = vunpack.c.l.b16 %v6704
        %v6837 = vunpack.c.l.b16 %v6705
        %v6838 = vunpack.c.l.b16 %v6706
        %v6839 = vunpack.c.l.b16 %v6707
        %v6840 = vunpack.c.l.b16 %v6708
        %v6841 = vunpack.c.l.b16 %v6709
        %v6842 = vunpack.c.l.b16 %v6710
        %v6843 = vunpack.c.l.b16 %v6711
        %v6844 = vunpack.c.l.b16 %v6712
        %v6845 = vunpack.c.l.b16 %v6713
        %v6846 = vunpack.c.l.b16 %v6714
        %v6847 = vunpack.c.l.b16 %v6715
        %v6848 = vunpack.c.l.b16 %v6716
        %v6849 = vunpack.c.l.b16 %v6717
        %v6850 = vunpack.c.l.b16 %v6718
        %v6851 = vunpack.c.l.b16 %v6719
        %v6852 = vunpack.c.l.b16 %v6720
        %v6853 = vunpack.c.l.b16 %v6721
        %v6854 = vunpack.c.l.b16 %v6722
        %v6855 = vunpack.c.l.b16 %v6723
        %v6856 = vunpack.c.l.b16 %v6724
        %v6857 = vunpack.c.l.b16 %v6725
        %v6858 = vunpack.c.l.b16 %v6726
        %v6859 = vunpack.c.l.b16 %v6727
        %v6860 = vunpack.c.l.b16 %v6728
        %v6861 = vunpack.c.l.b16 %v6729
        %v6862 = vunpack.c.l.b16 %v6730
        %v6863 = vunpack.c.l.b16 %v6731
        %v6864 = vunpack.c.l.b16 %v6732
        %v6865 = vpack.c.b16 %v6802, %v6801
        %v6866 = vpack.c.b16 %v6804, %v6803
        %v6867 = vpack.c.b16 %v6806, %v6805
        %v6868 = vpack.c.b16 %v6808, %v6807
        %v6869 = vpack.c.b16 %v6810, %v6809
        %v6870 = vpack.c.b16 %v6812, %v6811
        %v6871 = vpack.c.b16 %v6814, %v6813
        %v6872 = vpack.c.b16 %v6816, %v6815
        %v6873 = vpack.c.b16 %v6818, %v6817
        %v6874 = vpack.c.b16 %v6820, %v6819
        %v6875 = vpack.c.b16 %v6822, %v6821
        %v6876 = vpack.c.b16 %v6824, %v6823
        %v6877 = vpack.c.b16 %v6826, %v6825
        %v6878 = vpack.c.b16 %v6828, %v6827
        %v6879 = vpack.c.b16 %v6830, %v6829
        %v6880 = vpack.c.b16 %v6832, %v6831
        %v6881 = vpack.c.b16 %v6834, %v6833
        %v6882 = vpack.c.b16 %v6836, %v6835
        %v6883 = vpack.c.b16 %v6838, %v6837
        %v6884 = vpack.c.b16 %v6840, %v6839
        %v6885 = vpack.c.b16 %v6842, %v6841
        %v6886 = vpack.c.b16 %v6844, %v6843
        %v6887 = vpack.c.b16 %v6846, %v6845
        %v6888 = vpack.c.b16 %v6848, %v6847
        %v6889 = vpack.c.b16 %v6850, %v6849
        %v6890 = vpack.c.b16 %v6852, %v6851
        %v6891 = vpack.c.b16 %v6854, %v6853
        %v6892 = vpack.c.b16 %v6856, %v6855
        %v6893 = vpack.c.b16 %v6858, %v6857
        %v6894 = vpack.c.b16 %v6860, %v6859
        %v6895 = vpack.c.b16 %v6862, %v6861
        %v6896 = vpack.c.b16 %v6864, %v6863
        %6929 = vmatpush.bf16.msra.mxu0 %v6872
        %6930 = vmatpush.bf16.msra.mxu0 %v6871
        %6931 = vmatpush.bf16.msra.mxu0 %v6870
        %6932 = vmatpush.bf16.msra.mxu0 %v6869
        %6933 = vmatpush.bf16.msra.mxu0 %v6868
        %6934 = vmatpush.bf16.msra.mxu0 %v6867
        %6935 = vmatpush.bf16.msra.mxu0 %v6866
        %6936 = vmatpush.bf16.msra.mxu0 %v6865
        %6937 = vmatmul.bf16.gmra.mxu0 %v6629
        %v6938 = vpop.f32.mrf.mxu0
        %v6939 = vadd.f32 %v6735, %v6938
        %v6940 = vpop.f32.mrf.mxu0
        %v6941 = vadd.f32 %v6735, %v6940
        %6942 = vmatmul.bf16.gmra.mxu0 %v6633
        %v6943 = vpop.f32.mrf.mxu0
        %v6944 = vadd.f32 %v6735, %v6943
        %v6945 = vpop.f32.mrf.mxu0
        %v6946 = vadd.f32 %v6735, %v6945
        %6947 = vmatmul.bf16.gmra.mxu0 %v6637
        %v6948 = vpop.f32.mrf.mxu0
        %v6949 = vadd.f32 %v6735, %v6948
        %v6950 = vpop.f32.mrf.mxu0
        %v6951 = vadd.f32 %v6735, %v6950
        %6952 = vmatmul.bf16.gmra.mxu0 %v6641
        %v6953 = vpop.f32.mrf.mxu0
        %v6954 = vadd.f32 %v6735, %v6953
        %v6955 = vpop.f32.mrf.mxu0
        %v6956 = vadd.f32 %v6735, %v6955
        %6957 = vmatmul.bf16.gmra.mxu0 %v6645
        %v6958 = vpop.f32.mrf.mxu0
        %v6959 = vadd.f32 %v6735, %v6958
        %v6960 = vpop.f32.mrf.mxu0
        %v6961 = vadd.f32 %v6735, %v6960
        %6962 = vmatmul.bf16.gmra.mxu0 %v6649
        %v6963 = vpop.f32.mrf.mxu0
        %v6964 = vadd.f32 %v6735, %v6963
        %v6965 = vpop.f32.mrf.mxu0
        %v6966 = vadd.f32 %v6735, %v6965
        %6967 = vmatmul.bf16.gmra.mxu0 %v6653
        %v6968 = vpop.f32.mrf.mxu0
        %v6969 = vadd.f32 %v6735, %v6968
        %v6970 = vpop.f32.mrf.mxu0
        %v6971 = vadd.f32 %v6735, %v6970
        %6972 = vmatmul.bf16.gmra.mxu0 %v6657
        %v6973 = vpop.f32.mrf.mxu0
        %v6974 = vadd.f32 %v6735, %v6973
        %v6975 = vpop.f32.mrf.mxu0
        %v6976 = vadd.f32 %v6735, %v6975
        %6977 = vmatmul.bf16.gmra.mxu0 %v6661
        %v6978 = vpop.f32.mrf.mxu0
        %v6979 = vadd.f32 %v6735, %v6978
        %v6980 = vpop.f32.mrf.mxu0
        %v6981 = vadd.f32 %v6735, %v6980
        %6982 = vmatmul.bf16.gmra.mxu0 %v6665
        %v6983 = vpop.f32.mrf.mxu0
        %v6984 = vadd.f32 %v6735, %v6983
        %v6985 = vpop.f32.mrf.mxu0
        %6986 = vdwg.mxu0
        %6987 = vmatpush.bf16.msra.mxu0 %v6880
        %6988 = vmatpush.bf16.msra.mxu0 %v6879
        %6989 = vmatpush.bf16.msra.mxu0 %v6878
        %6990 = vmatpush.bf16.msra.mxu0 %v6877
        %6991 = vmatpush.bf16.msra.mxu0 %v6876
        %6992 = vmatpush.bf16.msra.mxu0 %v6875
        %6993 = vmatpush.bf16.msra.mxu0 %v6874
        %6994 = vmatpush.bf16.msra.mxu0 %v6873
        %6995 = vmatmul.bf16.gmra.mxu0 %v6630
        %v6996 = vpop.f32.mrf.mxu0
        %v6997 = vadd.f32 %v6939, %v6996
        %v6998 = vpop.f32.mrf.mxu0
        %v6999 = vadd.f32 %v6941, %v6998
        %7000 = vmatmul.bf16.gmra.mxu0 %v6634
        %v7001 = vpop.f32.mrf.mxu0
        %v7002 = vadd.f32 %v6944, %v7001
        %v7003 = vpop.f32.mrf.mxu0
        %v7004 = vadd.f32 %v6946, %v7003
        %7005 = vmatmul.bf16.gmra.mxu0 %v6638
        %v7006 = vpop.f32.mrf.mxu0
        %v7007 = vadd.f32 %v6949, %v7006
        %v7008 = vpop.f32.mrf.mxu0
        %v7009 = vadd.f32 %v6951, %v7008
        %7010 = vmatmul.bf16.gmra.mxu0 %v6642
        %v7011 = vpop.f32.mrf.mxu0
        %v7012 = vadd.f32 %v6954, %v7011
        %v7013 = vpop.f32.mrf.mxu0
        %v7014 = vadd.f32 %v6956, %v7013
        %7015 = vmatmul.bf16.gmra.mxu0 %v6646
        %v7016 = vpop.f32.mrf.mxu0
        %v7017 = vadd.f32 %v6959, %v7016
        %v7018 = vpop.f32.mrf.mxu0
        %v7019 = vadd.f32 %v6961, %v7018
        %7020 = vmatmul.bf16.gmra.mxu0 %v6650
        %v7021 = vpop.f32.mrf.mxu0
        %v7022 = vadd.f32 %v6964, %v7021
        %v7023 = vpop.f32.mrf.mxu0
        %v7024 = vadd.f32 %v6966, %v7023
        %7025 = vmatmul.bf16.gmra.mxu0 %v6654
        %v7026 = vpop.f32.mrf.mxu0
        %v7027 = vadd.f32 %v6969, %v7026
        %v7028 = vpop.f32.mrf.mxu0
        %v7029 = vadd.f32 %v6971, %v7028
        %7030 = vmatmul.bf16.gmra.mxu0 %v6658
        %v7031 = vpop.f32.mrf.mxu0
        %v7032 = vadd.f32 %v6974, %v7031
        %v7033 = vpop.f32.mrf.mxu0
        %v7034 = vadd.f32 %v6976, %v7033
        %7035 = vmatmul.bf16.gmra.mxu0 %v6662
        %v7036 = vpop.f32.mrf.mxu0
        %v7037 = vadd.f32 %v6979, %v7036
        %v7038 = vpop.f32.mrf.mxu0
        %v7039 = vadd.f32 %v6981, %v7038
        %7040 = vmatmul.bf16.gmra.mxu0 %v6666
        %v7041 = vpop.f32.mrf.mxu0
        %v7042 = vadd.f32 %v6984, %v7041
        %v7043 = vpop.f32.mrf.mxu0
        %7044 = vdwg.mxu0
        %7045 = vmatpush.bf16.msra.mxu0 %v6888
        %7046 = vmatpush.bf16.msra.mxu0 %v6887
        %7047 = vmatpush.bf16.msra.mxu0 %v6886
        %7048 = vmatpush.bf16.msra.mxu0 %v6885
        %7049 = vmatpush.bf16.msra.mxu0 %v6884
        %7050 = vmatpush.bf16.msra.mxu0 %v6883
        %7051 = vmatpush.bf16.msra.mxu0 %v6882
        %7052 = vmatpush.bf16.msra.mxu0 %v6881
        %7053 = vmatmul.bf16.gmra.mxu0 %v6631
        %v7054 = vpop.f32.mrf.mxu0
        %v7055 = vadd.f32 %v6997, %v7054
        %v7056 = vpop.f32.mrf.mxu0
        %v7057 = vadd.f32 %v6999, %v7056
        %7058 = vmatmul.bf16.gmra.mxu0 %v6635
        %v7059 = vpop.f32.mrf.mxu0
        %v7060 = vadd.f32 %v7002, %v7059
        %v7061 = vpop.f32.mrf.mxu0
        %v7062 = vadd.f32 %v7004, %v7061
        %7063 = vmatmul.bf16.gmra.mxu0 %v6639
        %v7064 = vpop.f32.mrf.mxu0
        %v7065 = vadd.f32 %v7007, %v7064
        %v7066 = vpop.f32.mrf.mxu0
        %v7067 = vadd.f32 %v7009, %v7066
        %7068 = vmatmul.bf16.gmra.mxu0 %v6643
        %v7069 = vpop.f32.mrf.mxu0
        %v7070 = vadd.f32 %v7012, %v7069
        %v7071 = vpop.f32.mrf.mxu0
        %v7072 = vadd.f32 %v7014, %v7071
        %7073 = vmatmul.bf16.gmra.mxu0 %v6647
        %v7074 = vpop.f32.mrf.mxu0
        %v7075 = vadd.f32 %v7017, %v7074
        %v7076 = vpop.f32.mrf.mxu0
        %v7077 = vadd.f32 %v7019, %v7076
        %7078 = vmatmul.bf16.gmra.mxu0 %v6651
        %v7079 = vpop.f32.mrf.mxu0
        %v7080 = vadd.f32 %v7022, %v7079
        %v7081 = vpop.f32.mrf.mxu0
        %v7082 = vadd.f32 %v7024, %v7081
        %7083 = vmatmul.bf16.gmra.mxu0 %v6655
        %v7084 = vpop.f32.mrf.mxu0
        %v7085 = vadd.f32 %v7027, %v7084
        %v7086 = vpop.f32.mrf.mxu0
        %v7087 = vadd.f32 %v7029, %v7086
        %7088 = vmatmul.bf16.gmra.mxu0 %v6659
        %v7089 = vpop.f32.mrf.mxu0
        %v7090 = vadd.f32 %v7032, %v7089
        %v7091 = vpop.f32.mrf.mxu0
        %v7092 = vadd.f32 %v7034, %v7091
        %7093 = vmatmul.bf16.gmra.mxu0 %v6663
        %v7094 = vpop.f32.mrf.mxu0
        %v7095 = vadd.f32 %v7037, %v7094
        %v7096 = vpop.f32.mrf.mxu0
        %v7097 = vadd.f32 %v7039, %v7096
        %7098 = vmatmul.bf16.gmra.mxu0 %v6667
        %v7099 = vpop.f32.mrf.mxu0
        %v7100 = vadd.f32 %v7042, %v7099
        %v7101 = vpop.f32.mrf.mxu0
        %7102 = vdwg.mxu0
        %7103 = vmatpush.bf16.msra.mxu0 %v6896
        %7104 = vmatpush.bf16.msra.mxu0 %v6895
        %7105 = vmatpush.bf16.msra.mxu0 %v6894
        %7106 = vmatpush.bf16.msra.mxu0 %v6893
        %7107 = vmatpush.bf16.msra.mxu0 %v6892
        %7108 = vmatpush.bf16.msra.mxu0 %v6891
        %7109 = vmatpush.bf16.msra.mxu0 %v6890
        %7110 = vmatpush.bf16.msra.mxu0 %v6889
        %7111 = vmatmul.bf16.gmra.mxu0 %v6632
        %v7112 = vpop.f32.mrf.mxu0
        %v7113 = vadd.f32 %v7055, %v7112
        %v7114 = vpop.f32.mrf.mxu0
        %v7115 = vadd.f32 %v7057, %v7114
        %7116 = vmatmul.bf16.gmra.mxu0 %v6636
        %v7117 = vpop.f32.mrf.mxu0
        %v7118 = vadd.f32 %v7060, %v7117
        %v7119 = vpop.f32.mrf.mxu0
        %v7120 = vadd.f32 %v7062, %v7119
        %7121 = vmatmul.bf16.gmra.mxu0 %v6640
        %v7122 = vpop.f32.mrf.mxu0
        %v7123 = vadd.f32 %v7065, %v7122
        %v7124 = vpop.f32.mrf.mxu0
        %v7125 = vadd.f32 %v7067, %v7124
        %7126 = vmatmul.bf16.gmra.mxu0 %v6644
        %v7127 = vpop.f32.mrf.mxu0
        %v7128 = vadd.f32 %v7070, %v7127
        %v7129 = vpop.f32.mrf.mxu0
        %v7130 = vadd.f32 %v7072, %v7129
        %7131 = vmatmul.bf16.gmra.mxu0 %v6648
        %v7132 = vpop.f32.mrf.mxu0
        %v7133 = vadd.f32 %v7075, %v7132
        %v7134 = vpop.f32.mrf.mxu0
        %v7135 = vadd.f32 %v7077, %v7134
        %7136 = vmatmul.bf16.gmra.mxu0 %v6652
        %v7137 = vpop.f32.mrf.mxu0
        %v7138 = vadd.f32 %v7080, %v7137
        %v7139 = vpop.f32.mrf.mxu0
        %v7140 = vadd.f32 %v7082, %v7139
        %7141 = vmatmul.bf16.gmra.mxu0 %v6656
        %v7142 = vpop.f32.mrf.mxu0
        %v7143 = vadd.f32 %v7085, %v7142
        %v7144 = vpop.f32.mrf.mxu0
        %v7145 = vadd.f32 %v7087, %v7144
        %7146 = vmatmul.bf16.gmra.mxu0 %v6660
        %v7147 = vpop.f32.mrf.mxu0
        %v7148 = vadd.f32 %v7090, %v7147
        %v7149 = vpop.f32.mrf.mxu0
        %v7150 = vadd.f32 %v7092, %v7149
        %7151 = vmatmul.bf16.gmra.mxu0 %v6664
        %v7152 = vpop.f32.mrf.mxu0
        %v7153 = vadd.f32 %v7095, %v7152
        %v7154 = vpop.f32.mrf.mxu0
        %v7155 = vadd.f32 %v7097, %v7154
        %7156 = vmatmul.bf16.gmra.mxu0 %v6668
        %v7157 = vpop.f32.mrf.mxu0
        %v7158 = vadd.f32 %v7100, %v7157
        %v7159 = vpop.f32.mrf.mxu0
        %7160 = vdwg.mxu0
        %7161 = vmax.xlane.f32.xlu0 %v7113
        %v7162 = vpop.xlane.xlu0 %7161
        %7163 = vmax.xlane.f32.xlu0 %v7115
        %v7164 = vpop.xlane.xlu0 %7163
        %7165 = vmax.xlane.f32.xlu0 %v7118
        %v7166 = vpop.xlane.xlu0 %7165
        %7167 = vmax.xlane.f32.xlu0 %v7120
        %v7168 = vpop.xlane.xlu0 %7167
        %7169 = vmax.xlane.f32.xlu0 %v7123
        %v7170 = vpop.xlane.xlu0 %7169
        %7171 = vmax.xlane.f32.xlu0 %v7125
        %v7172 = vpop.xlane.xlu0 %7171
        %7173 = vmax.xlane.f32.xlu0 %v7128
        %v7174 = vpop.xlane.xlu0 %7173
        %7175 = vmax.xlane.f32.xlu0 %v7130
        %v7176 = vpop.xlane.xlu0 %7175
        %7177 = vmax.xlane.f32.xlu0 %v7133
        %v7178 = vpop.xlane.xlu0 %7177
        %7179 = vmax.xlane.f32.xlu0 %v7135
        %v7180 = vpop.xlane.xlu0 %7179
        %7181 = vmax.xlane.f32.xlu0 %v7138
        %v7182 = vpop.xlane.xlu0 %7181
        %7183 = vmax.xlane.f32.xlu0 %v7140
        %v7184 = vpop.xlane.xlu0 %7183
        %7185 = vmax.xlane.f32.xlu0 %v7143
        %v7186 = vpop.xlane.xlu0 %7185
        %7187 = vmax.xlane.f32.xlu0 %v7145
        %v7188 = vpop.xlane.xlu0 %7187
        %7189 = vmax.xlane.f32.xlu0 %v7148
        %v7190 = vpop.xlane.xlu0 %7189
        %7191 = vmax.xlane.f32.xlu0 %v7150
        %v7192 = vpop.xlane.xlu0 %7191
        %7193 = vmax.xlane.f32.xlu0 %v7153
        %v7194 = vpop.xlane.xlu0 %7193
        %7195 = vmax.xlane.f32.xlu0 %v7155
        %v7196 = vpop.xlane.xlu0 %7195
        %7197 = vmax.xlane.f32.xlu0 %v7158
        %v7198 = vpop.xlane.xlu0 %7197
        %v7199 = vsub.f32 %v7113, %v7162
        %v7200 = vsub.f32 %v7115, %v7164
        %v7201 = vsub.f32 %v7118, %v7166
        %v7202 = vsub.f32 %v7120, %v7168
        %v7203 = vsub.f32 %v7123, %v7170
        %v7204 = vsub.f32 %v7125, %v7172
        %v7205 = vsub.f32 %v7128, %v7174
        %v7206 = vsub.f32 %v7130, %v7176
        %v7207 = vsub.f32 %v7133, %v7178
        %v7208 = vsub.f32 %v7135, %v7180
        %v7209 = vsub.f32 %v7138, %v7182
        %v7210 = vsub.f32 %v7140, %v7184
        %v7211 = vsub.f32 %v7143, %v7186
        %v7212 = vsub.f32 %v7145, %v7188
        %v7213 = vsub.f32 %v7148, %v7190
        %v7214 = vsub.f32 %v7150, %v7192
        %v7215 = vsub.f32 %v7153, %v7194
        %v7216 = vsub.f32 %v7155, %v7196
        %v7217 = vsub.f32 %v7158, %v7198
        %v7218 = vmul.f32 %v7199, 1.442695
        %v7219 = vpow.pop %v7218
        %v7220 = vmul.f32 %v7200, 1.442695
        %v7221 = vpow.pop %v7220
        %v7222 = vmul.f32 %v7201, 1.442695
        %v7223 = vpow.pop %v7222
        %v7224 = vmul.f32 %v7202, 1.442695
        %v7225 = vpow.pop %v7224
        %v7226 = vmul.f32 %v7203, 1.442695
        %v7227 = vpow.pop %v7226
        %v7228 = vmul.f32 %v7204, 1.442695
        %v7229 = vpow.pop %v7228
        %v7230 = vmul.f32 %v7205, 1.442695
        %v7231 = vpow.pop %v7230
        %v7232 = vmul.f32 %v7206, 1.442695
        %v7233 = vpow.pop %v7232
        %v7234 = vmul.f32 %v7207, 1.442695
        %v7235 = vpow.pop %v7234
        %v7236 = vmul.f32 %v7208, 1.442695
        %v7237 = vpow.pop %v7236
        %v7238 = vmul.f32 %v7209, 1.442695
        %v7239 = vpow.pop %v7238
        %v7240 = vmul.f32 %v7210, 1.442695
        %v7241 = vpow.pop %v7240
        %v7242 = vmul.f32 %v7211, 1.442695
        %v7243 = vpow.pop %v7242
        %v7244 = vmul.f32 %v7212, 1.442695
        %v7245 = vpow.pop %v7244
        %v7246 = vmul.f32 %v7213, 1.442695
        %v7247 = vpow.pop %v7246
        %v7248 = vmul.f32 %v7214, 1.442695
        %v7249 = vpow.pop %v7248
        %v7250 = vmul.f32 %v7215, 1.442695
        %v7251 = vpow.pop %v7250
        %v7252 = vmul.f32 %v7216, 1.442695
        %v7253 = vpow.pop %v7252
        %v7254 = vmul.f32 %v7217, 1.442695
        %v7255 = vpow.pop %v7254
        %7256 = vadd.xlane.f32.xlu0 %v7219
        %v7257 = vpop.xlane.xlu0 %7256
        %7258 = vadd.xlane.f32.xlu0 %v7221
        %v7259 = vpop.xlane.xlu0 %7258
        %7260 = vadd.xlane.f32.xlu0 %v7223
        %v7261 = vpop.xlane.xlu0 %7260
        %7262 = vadd.xlane.f32.xlu0 %v7225
        %v7263 = vpop.xlane.xlu0 %7262
        %7264 = vadd.xlane.f32.xlu0 %v7227
        %v7265 = vpop.xlane.xlu0 %7264
        %7266 = vadd.xlane.f32.xlu0 %v7229
        %v7267 = vpop.xlane.xlu0 %7266
        %7268 = vadd.xlane.f32.xlu0 %v7231
        %v7269 = vpop.xlane.xlu0 %7268
        %7270 = vadd.xlane.f32.xlu0 %v7233
        %v7271 = vpop.xlane.xlu0 %7270
        %7272 = vadd.xlane.f32.xlu0 %v7235
        %v7273 = vpop.xlane.xlu0 %7272
        %7274 = vadd.xlane.f32.xlu0 %v7237
        %v7275 = vpop.xlane.xlu0 %7274
        %7276 = vadd.xlane.f32.xlu0 %v7239
        %v7277 = vpop.xlane.xlu0 %7276
        %7278 = vadd.xlane.f32.xlu0 %v7241
        %v7279 = vpop.xlane.xlu0 %7278
        %7280 = vadd.xlane.f32.xlu0 %v7243
        %v7281 = vpop.xlane.xlu0 %7280
        %7282 = vadd.xlane.f32.xlu0 %v7245
        %v7283 = vpop.xlane.xlu0 %7282
        %7284 = vadd.xlane.f32.xlu0 %v7247
        %v7285 = vpop.xlane.xlu0 %7284
        %7286 = vadd.xlane.f32.xlu0 %v7249
        %v7287 = vpop.xlane.xlu0 %7286
        %7288 = vadd.xlane.f32.xlu0 %v7251
        %v7289 = vpop.xlane.xlu0 %7288
        %7290 = vadd.xlane.f32.xlu0 %v7253
        %v7291 = vpop.xlane.xlu0 %7290
        %7292 = vadd.xlane.f32.xlu0 %v7255
        %v7293 = vpop.xlane.xlu0 %7292
        %v7294 = vrcp.pop %v7257
        %v7295 = vmul.f32 %v7257, %v7294
        %v7296 = vsub.f32 1.0, %v7295
        %v7297 = vmul.f32 %v7294, %v7296
        %v7298 = vadd.f32 %v7294, %v7297
        %vm7299 = vweird.f32 %v7257
        %vm7300 = vweird.f32 %v7294
        %vm7301 = vmor %vm7299, %vm7300
        %v7302 = vsel %vm7301, %v7294, %v7298
        %v7303 = vand.u32 2147483647, %v7257
        %vm7304 = vcmp.eq.f32.partialorder %v7303, 8.507059e+37
        %v7305 = vand.u32 %v7257, 2147483648
        %v7306 = vor.u32 1.1754944e-38, %v7305
        %v7307 = vsel %vm7304, %v7306, %v7302
        %v7308 = vmul.f32 %v7219, %v7307
        %v7309 = vrcp.pop %v7259
        %v7310 = vmul.f32 %v7259, %v7309
        %v7311 = vsub.f32 1.0, %v7310
        %v7312 = vmul.f32 %v7309, %v7311
        %v7313 = vadd.f32 %v7309, %v7312
        %vm7314 = vweird.f32 %v7259
        %vm7315 = vweird.f32 %v7309
        %vm7316 = vmor %vm7314, %vm7315
        %v7317 = vsel %vm7316, %v7309, %v7313
        %v7318 = vand.u32 2147483647, %v7259
        %vm7319 = vcmp.eq.f32.partialorder %v7318, 8.507059e+37
        %v7320 = vand.u32 %v7259, 2147483648
        %v7321 = vor.u32 1.1754944e-38, %v7320
        %v7322 = vsel %vm7319, %v7321, %v7317
        %v7323 = vmul.f32 %v7221, %v7322
        %v7324 = vrcp.pop %v7261
        %v7325 = vmul.f32 %v7261, %v7324
        %v7326 = vsub.f32 1.0, %v7325
        %v7327 = vmul.f32 %v7324, %v7326
        %v7328 = vadd.f32 %v7324, %v7327
        %vm7329 = vweird.f32 %v7261
        %vm7330 = vweird.f32 %v7324
        %vm7331 = vmor %vm7329, %vm7330
        %v7332 = vsel %vm7331, %v7324, %v7328
        %v7333 = vand.u32 2147483647, %v7261
        %vm7334 = vcmp.eq.f32.partialorder %v7333, 8.507059e+37
        %v7335 = vand.u32 %v7261, 2147483648
        %v7336 = vor.u32 1.1754944e-38, %v7335
        %v7337 = vsel %vm7334, %v7336, %v7332
        %v7338 = vmul.f32 %v7223, %v7337
        %v7339 = vrcp.pop %v7263
        %v7340 = vmul.f32 %v7263, %v7339
        %v7341 = vsub.f32 1.0, %v7340
        %v7342 = vmul.f32 %v7339, %v7341
        %v7343 = vadd.f32 %v7339, %v7342
        %vm7344 = vweird.f32 %v7263
        %vm7345 = vweird.f32 %v7339
        %vm7346 = vmor %vm7344, %vm7345
        %v7347 = vsel %vm7346, %v7339, %v7343
        %v7348 = vand.u32 2147483647, %v7263
        %vm7349 = vcmp.eq.f32.partialorder %v7348, 8.507059e+37
        %v7350 = vand.u32 %v7263, 2147483648
        %v7351 = vor.u32 1.1754944e-38, %v7350
        %v7352 = vsel %vm7349, %v7351, %v7347
        %v7353 = vmul.f32 %v7225, %v7352
        %v7354 = vrcp.pop %v7265
        %v7355 = vmul.f32 %v7265, %v7354
        %v7356 = vsub.f32 1.0, %v7355
        %v7357 = vmul.f32 %v7354, %v7356
        %v7358 = vadd.f32 %v7354, %v7357
        %vm7359 = vweird.f32 %v7265
        %vm7360 = vweird.f32 %v7354
        %vm7361 = vmor %vm7359, %vm7360
        %v7362 = vsel %vm7361, %v7354, %v7358
        %v7363 = vand.u32 2147483647, %v7265
        %vm7364 = vcmp.eq.f32.partialorder %v7363, 8.507059e+37
        %v7365 = vand.u32 %v7265, 2147483648
        %v7366 = vor.u32 1.1754944e-38, %v7365
        %v7367 = vsel %vm7364, %v7366, %v7362
        %v7368 = vmul.f32 %v7227, %v7367
        %v7369 = vrcp.pop %v7267
        %v7370 = vmul.f32 %v7267, %v7369
        %v7371 = vsub.f32 1.0, %v7370
        %v7372 = vmul.f32 %v7369, %v7371
        %v7373 = vadd.f32 %v7369, %v7372
        %vm7374 = vweird.f32 %v7267
        %vm7375 = vweird.f32 %v7369
        %vm7376 = vmor %vm7374, %vm7375
        %v7377 = vsel %vm7376, %v7369, %v7373
        %v7378 = vand.u32 2147483647, %v7267
        %vm7379 = vcmp.eq.f32.partialorder %v7378, 8.507059e+37
        %v7380 = vand.u32 %v7267, 2147483648
        %v7381 = vor.u32 1.1754944e-38, %v7380
        %v7382 = vsel %vm7379, %v7381, %v7377
        %v7383 = vmul.f32 %v7229, %v7382
        %v7384 = vrcp.pop %v7269
        %v7385 = vmul.f32 %v7269, %v7384
        %v7386 = vsub.f32 1.0, %v7385
        %v7387 = vmul.f32 %v7384, %v7386
        %v7388 = vadd.f32 %v7384, %v7387
        %vm7389 = vweird.f32 %v7269
        %vm7390 = vweird.f32 %v7384
        %vm7391 = vmor %vm7389, %vm7390
        %v7392 = vsel %vm7391, %v7384, %v7388
        %v7393 = vand.u32 2147483647, %v7269
        %vm7394 = vcmp.eq.f32.partialorder %v7393, 8.507059e+37
        %v7395 = vand.u32 %v7269, 2147483648
        %v7396 = vor.u32 1.1754944e-38, %v7395
        %v7397 = vsel %vm7394, %v7396, %v7392
        %v7398 = vmul.f32 %v7231, %v7397
        %v7399 = vrcp.pop %v7271
        %v7400 = vmul.f32 %v7271, %v7399
        %v7401 = vsub.f32 1.0, %v7400
        %v7402 = vmul.f32 %v7399, %v7401
        %v7403 = vadd.f32 %v7399, %v7402
        %vm7404 = vweird.f32 %v7271
        %vm7405 = vweird.f32 %v7399
        %vm7406 = vmor %vm7404, %vm7405
        %v7407 = vsel %vm7406, %v7399, %v7403
        %v7408 = vand.u32 2147483647, %v7271
        %vm7409 = vcmp.eq.f32.partialorder %v7408, 8.507059e+37
        %v7410 = vand.u32 %v7271, 2147483648
        %v7411 = vor.u32 1.1754944e-38, %v7410
        %v7412 = vsel %vm7409, %v7411, %v7407
        %v7413 = vmul.f32 %v7233, %v7412
        %v7414 = vrcp.pop %v7273
        %v7415 = vmul.f32 %v7273, %v7414
        %v7416 = vsub.f32 1.0, %v7415
        %v7417 = vmul.f32 %v7414, %v7416
        %v7418 = vadd.f32 %v7414, %v7417
        %vm7419 = vweird.f32 %v7273
        %vm7420 = vweird.f32 %v7414
        %vm7421 = vmor %vm7419, %vm7420
        %v7422 = vsel %vm7421, %v7414, %v7418
        %v7423 = vand.u32 2147483647, %v7273
        %vm7424 = vcmp.eq.f32.partialorder %v7423, 8.507059e+37
        %v7425 = vand.u32 %v7273, 2147483648
        %v7426 = vor.u32 1.1754944e-38, %v7425
        %v7427 = vsel %vm7424, %v7426, %v7422
        %v7428 = vmul.f32 %v7235, %v7427
        %v7429 = vrcp.pop %v7275
        %v7430 = vmul.f32 %v7275, %v7429
        %v7431 = vsub.f32 1.0, %v7430
        %v7432 = vmul.f32 %v7429, %v7431
        %v7433 = vadd.f32 %v7429, %v7432
        %vm7434 = vweird.f32 %v7275
        %vm7435 = vweird.f32 %v7429
        %vm7436 = vmor %vm7434, %vm7435
        %v7437 = vsel %vm7436, %v7429, %v7433
        %v7438 = vand.u32 2147483647, %v7275
        %vm7439 = vcmp.eq.f32.partialorder %v7438, 8.507059e+37
        %v7440 = vand.u32 %v7275, 2147483648
        %v7441 = vor.u32 1.1754944e-38, %v7440
        %v7442 = vsel %vm7439, %v7441, %v7437
        %v7443 = vmul.f32 %v7237, %v7442
        %v7444 = vrcp.pop %v7277
        %v7445 = vmul.f32 %v7277, %v7444
        %v7446 = vsub.f32 1.0, %v7445
        %v7447 = vmul.f32 %v7444, %v7446
        %v7448 = vadd.f32 %v7444, %v7447
        %vm7449 = vweird.f32 %v7277
        %vm7450 = vweird.f32 %v7444
        %vm7451 = vmor %vm7449, %vm7450
        %v7452 = vsel %vm7451, %v7444, %v7448
        %v7453 = vand.u32 2147483647, %v7277
        %vm7454 = vcmp.eq.f32.partialorder %v7453, 8.507059e+37
        %v7455 = vand.u32 %v7277, 2147483648
        %v7456 = vor.u32 1.1754944e-38, %v7455
        %v7457 = vsel %vm7454, %v7456, %v7452
        %v7458 = vmul.f32 %v7239, %v7457
        %v7459 = vrcp.pop %v7279
        %v7460 = vmul.f32 %v7279, %v7459
        %v7461 = vsub.f32 1.0, %v7460
        %v7462 = vmul.f32 %v7459, %v7461
        %v7463 = vadd.f32 %v7459, %v7462
        %vm7464 = vweird.f32 %v7279
        %vm7465 = vweird.f32 %v7459
        %vm7466 = vmor %vm7464, %vm7465
        %v7467 = vsel %vm7466, %v7459, %v7463
        %v7468 = vand.u32 2147483647, %v7279
        %vm7469 = vcmp.eq.f32.partialorder %v7468, 8.507059e+37
        %v7470 = vand.u32 %v7279, 2147483648
        %v7471 = vor.u32 1.1754944e-38, %v7470
        %v7472 = vsel %vm7469, %v7471, %v7467
        %v7473 = vmul.f32 %v7241, %v7472
        %v7474 = vrcp.pop %v7281
        %v7475 = vmul.f32 %v7281, %v7474
        %v7476 = vsub.f32 1.0, %v7475
        %v7477 = vmul.f32 %v7474, %v7476
        %v7478 = vadd.f32 %v7474, %v7477
        %vm7479 = vweird.f32 %v7281
        %vm7480 = vweird.f32 %v7474
        %vm7481 = vmor %vm7479, %vm7480
        %v7482 = vsel %vm7481, %v7474, %v7478
        %v7483 = vand.u32 2147483647, %v7281
        %vm7484 = vcmp.eq.f32.partialorder %v7483, 8.507059e+37
        %v7485 = vand.u32 %v7281, 2147483648
        %v7486 = vor.u32 1.1754944e-38, %v7485
        %v7487 = vsel %vm7484, %v7486, %v7482
        %v7488 = vmul.f32 %v7243, %v7487
        %v7489 = vrcp.pop %v7283
        %v7490 = vmul.f32 %v7283, %v7489
        %v7491 = vsub.f32 1.0, %v7490
        %v7492 = vmul.f32 %v7489, %v7491
        %v7493 = vadd.f32 %v7489, %v7492
        %vm7494 = vweird.f32 %v7283
        %vm7495 = vweird.f32 %v7489
        %vm7496 = vmor %vm7494, %vm7495
        %v7497 = vsel %vm7496, %v7489, %v7493
        %v7498 = vand.u32 2147483647, %v7283
        %vm7499 = vcmp.eq.f32.partialorder %v7498, 8.507059e+37
        %v7500 = vand.u32 %v7283, 2147483648
        %v7501 = vor.u32 1.1754944e-38, %v7500
        %v7502 = vsel %vm7499, %v7501, %v7497
        %v7503 = vmul.f32 %v7245, %v7502
        %v7504 = vrcp.pop %v7285
        %v7505 = vmul.f32 %v7285, %v7504
        %v7506 = vsub.f32 1.0, %v7505
        %v7507 = vmul.f32 %v7504, %v7506
        %v7508 = vadd.f32 %v7504, %v7507
        %vm7509 = vweird.f32 %v7285
        %vm7510 = vweird.f32 %v7504
        %vm7511 = vmor %vm7509, %vm7510
        %v7512 = vsel %vm7511, %v7504, %v7508
        %v7513 = vand.u32 2147483647, %v7285
        %vm7514 = vcmp.eq.f32.partialorder %v7513, 8.507059e+37
        %v7515 = vand.u32 %v7285, 2147483648
        %v7516 = vor.u32 1.1754944e-38, %v7515
        %v7517 = vsel %vm7514, %v7516, %v7512
        %v7518 = vmul.f32 %v7247, %v7517
        %v7519 = vrcp.pop %v7287
        %v7520 = vmul.f32 %v7287, %v7519
        %v7521 = vsub.f32 1.0, %v7520
        %v7522 = vmul.f32 %v7519, %v7521
        %v7523 = vadd.f32 %v7519, %v7522
        %vm7524 = vweird.f32 %v7287
        %vm7525 = vweird.f32 %v7519
        %vm7526 = vmor %vm7524, %vm7525
        %v7527 = vsel %vm7526, %v7519, %v7523
        %v7528 = vand.u32 2147483647, %v7287
        %vm7529 = vcmp.eq.f32.partialorder %v7528, 8.507059e+37
        %v7530 = vand.u32 %v7287, 2147483648
        %v7531 = vor.u32 1.1754944e-38, %v7530
        %v7532 = vsel %vm7529, %v7531, %v7527
        %v7533 = vmul.f32 %v7249, %v7532
        %v7534 = vrcp.pop %v7289
        %v7535 = vmul.f32 %v7289, %v7534
        %v7536 = vsub.f32 1.0, %v7535
        %v7537 = vmul.f32 %v7534, %v7536
        %v7538 = vadd.f32 %v7534, %v7537
        %vm7539 = vweird.f32 %v7289
        %vm7540 = vweird.f32 %v7534
        %vm7541 = vmor %vm7539, %vm7540
        %v7542 = vsel %vm7541, %v7534, %v7538
        %v7543 = vand.u32 2147483647, %v7289
        %vm7544 = vcmp.eq.f32.partialorder %v7543, 8.507059e+37
        %v7545 = vand.u32 %v7289, 2147483648
        %v7546 = vor.u32 1.1754944e-38, %v7545
        %v7547 = vsel %vm7544, %v7546, %v7542
        %v7548 = vmul.f32 %v7251, %v7547
        %v7549 = vrcp.pop %v7291
        %v7550 = vmul.f32 %v7291, %v7549
        %v7551 = vsub.f32 1.0, %v7550
        %v7552 = vmul.f32 %v7549, %v7551
        %v7553 = vadd.f32 %v7549, %v7552
        %vm7554 = vweird.f32 %v7291
        %vm7555 = vweird.f32 %v7549
        %vm7556 = vmor %vm7554, %vm7555
        %v7557 = vsel %vm7556, %v7549, %v7553
        %v7558 = vand.u32 2147483647, %v7291
        %vm7559 = vcmp.eq.f32.partialorder %v7558, 8.507059e+37
        %v7560 = vand.u32 %v7291, 2147483648
        %v7561 = vor.u32 1.1754944e-38, %v7560
        %v7562 = vsel %vm7559, %v7561, %v7557
        %v7563 = vmul.f32 %v7253, %v7562
        %v7564 = vrcp.pop %v7293
        %v7565 = vmul.f32 %v7293, %v7564
        %v7566 = vsub.f32 1.0, %v7565
        %v7567 = vmul.f32 %v7564, %v7566
        %v7568 = vadd.f32 %v7564, %v7567
        %vm7569 = vweird.f32 %v7293
        %vm7570 = vweird.f32 %v7564
        %vm7571 = vmor %vm7569, %vm7570
        %v7572 = vsel %vm7571, %v7564, %v7568
        %v7573 = vand.u32 2147483647, %v7293
        %vm7574 = vcmp.eq.f32.partialorder %v7573, 8.507059e+37
        %v7575 = vand.u32 %v7293, 2147483648
        %v7576 = vor.u32 1.1754944e-38, %v7575
        %v7577 = vsel %vm7574, %v7576, %v7572
        %v7578 = vmul.f32 %v7255, %v7577
        %vm7579 = vcmask 97280
        %7580 = vst.msk [vmem:[%s490] sm:$0xff] %vm7579, %v7113
        %7581 = vst.msk [vmem:[%s490 + $0x8] sm:$0xff] %vm7579, %v7115
        %7582 = vst.msk [vmem:[%s490 + $0x10] sm:$0xff] %vm7579, %v7118
        %7583 = vst.msk [vmem:[%s490 + $0x18] sm:$0xff] %vm7579, %v7120
        %7584 = vst.msk [vmem:[%s490 + $0x20] sm:$0xff] %vm7579, %v7123
        %7585 = vst.msk [vmem:[%s490 + $0x28] sm:$0xff] %vm7579, %v7125
        %7586 = vst.msk [vmem:[%s490 + $0x30] sm:$0xff] %vm7579, %v7128
        %7587 = vst.msk [vmem:[%s490 + $0x38] sm:$0xff] %vm7579, %v7130
        %7588 = vst.msk [vmem:[%s490 + $0x40] sm:$0xff] %vm7579, %v7133
        %7589 = vst.msk [vmem:[%s490 + $0x48] sm:$0xff] %vm7579, %v7135
        %7590 = vst.msk [vmem:[%s490 + $0x50] sm:$0xff] %vm7579, %v7138
        %7591 = vst.msk [vmem:[%s490 + $0x58] sm:$0xff] %vm7579, %v7140
        %7592 = vst.msk [vmem:[%s490 + $0x60] sm:$0xff] %vm7579, %v7143
        %7593 = vst.msk [vmem:[%s490 + $0x68] sm:$0xff] %vm7579, %v7145
        %7594 = vst.msk [vmem:[%s490 + $0x70] sm:$0xff] %vm7579, %v7148
        %7595 = vst.msk [vmem:[%s490 + $0x78] sm:$0xff] %vm7579, %v7150
        %7596 = vst.msk [vmem:[%s490 + $0x80] sm:$0xff] %vm7579, %v7153
        %7597 = vst.msk [vmem:[%s490 + $0x88] sm:$0xff] %vm7579, %v7155
        %7598 = vst.msk [vmem:[%s490 + $0x90] sm:$0xff] %vm7579, %v7158
        %7599 = vst.msk [vmem:[%s496] sm:$0xff] %vm7579, %v7308
        %7600 = vst.msk [vmem:[%s496 + $0x8] sm:$0xff] %vm7579, %v7323
        %7601 = vst.msk [vmem:[%s496 + $0x10] sm:$0xff] %vm7579, %v7338
        %7602 = vst.msk [vmem:[%s496 + $0x18] sm:$0xff] %vm7579, %v7353
        %7603 = vst.msk [vmem:[%s496 + $0x20] sm:$0xff] %vm7579, %v7368
        %7604 = vst.msk [vmem:[%s496 + $0x28] sm:$0xff] %vm7579, %v7383
        %7605 = vst.msk [vmem:[%s496 + $0x30] sm:$0xff] %vm7579, %v7398
        %7606 = vst.msk [vmem:[%s496 + $0x38] sm:$0xff] %vm7579, %v7413
        %7607 = vst.msk [vmem:[%s496 + $0x40] sm:$0xff] %vm7579, %v7428
        %7608 = vst.msk [vmem:[%s496 + $0x48] sm:$0xff] %vm7579, %v7443
        %7609 = vst.msk [vmem:[%s496 + $0x50] sm:$0xff] %vm7579, %v7458
        %7610 = vst.msk [vmem:[%s496 + $0x58] sm:$0xff] %vm7579, %v7473
        %7611 = vst.msk [vmem:[%s496 + $0x60] sm:$0xff] %vm7579, %v7488
        %7612 = vst.msk [vmem:[%s496 + $0x68] sm:$0xff] %vm7579, %v7503
        %7613 = vst.msk [vmem:[%s496 + $0x70] sm:$0xff] %vm7579, %v7518
        %7614 = vst.msk [vmem:[%s496 + $0x78] sm:$0xff] %vm7579, %v7533
        %7615 = vst.msk [vmem:[%s496 + $0x80] sm:$0xff] %vm7579, %v7548
        %7616 = vst.msk [vmem:[%s496 + $0x88] sm:$0xff] %vm7579, %v7563
        %7617 = vst.msk [vmem:[%s496 + $0x90] sm:$0xff] %vm7579, %v7578
        %s7618 = smul.u32 19, %s27
        %p7619 = scmp.lt.s32.totalorder %s7618, 37
        %s7620 = scalar_select %p7619, %s7618, 37
        %s7621 = smul.addr %s7620, 8
        %s7622 = scalar_lea.vmem %s11, %s7621
        %s7623 = smul.u32 19, %s27
        %p7624 = scmp.lt.s32.totalorder %s7623, 37
        %s7625 = scalar_select %p7624, %s7623, 37
        %s7626 = smul.addr %s7625, 8
        %s7627 = scalar_lea.vmem %s12, %s7626
        // Predicated region
        $region81: #{_mlp_forward.1} parent=63 // pred_check
          %p7628 = pneg %p281
        $region82: #{_mlp_forward.1} parent=63 // pred_check_branch
          %7630 = sbr.rel (%p7628) target = $region84
        $region83: #{_mlp_forward.1} parent=63 // pred_region
          %s7631 = smul.u32 19, %s27
        $region84: #{_mlp_forward.1} parent=63 // pred_fallthru
          _
        // Predicated region
        $region85: #{_mlp_forward.1} parent=63 // pred_check
          %p7632 = pneg %p307
        $region86: #{_mlp_forward.1} parent=63 // pred_check_branch
          %7634 = sbr.rel (%p7632) target = $region88
        $region87: #{_mlp_forward.1} parent=63 // pred_region
          %s7635 = smul.u32 19, %s27
        $region88: #{_mlp_forward.1} parent=63 // pred_fallthru
          _
      $region64: #{_mlp_forward.1} parent=5 // pred_fallthru
        _
      %p7636 = scmp.le.s32.totalorder 2, %s22
      // Predicated region
      $region89: #{_mlp_forward.1} parent=5 // pred_check
        %p7637 = pneg %p7636
      $region90: #{_mlp_forward.1} parent=5 // pred_check_branch
        %7639 = sbr.rel (%p7637) target = $region92
      $region91: #{_mlp_forward.1} parent=5 // pred_region
        %s7640 = ssub.s32 %s22, 2
        // Predicated region
        $region93: #{_mlp_forward.1} parent=91 // pred_check
          %p7641 = pneg %p287
        $region94: #{_mlp_forward.1} parent=91 // pred_check_branch
          %7643 = sbr.rel (%p7641) target = $region96
        $region95: #{_mlp_forward.1} parent=91 // pred_region
          %s7644 = smul.u32 19, %s28
          %p7645 = scmp.lt.s32.totalorder %s7644, 37
          %s7646 = scalar_select %p7645, %s7644, 37
          %s7647 = smul.addr %s7646, 8
          %s7648 = scalar_lea.vmem %s11, %s7647
        $region96: #{_mlp_forward.1} parent=91 // pred_fallthru
          _
        // Predicated region
        $region97: #{_mlp_forward.1} parent=91 // pred_check
          %p7649 = pneg %p313
        $region98: #{_mlp_forward.1} parent=91 // pred_check_branch
          %7651 = sbr.rel (%p7649) target = $region100
        $region99: #{_mlp_forward.1} parent=91 // pred_region
          %s7652 = smul.u32 19, %s28
          %p7653 = scmp.lt.s32.totalorder %s7652, 37
          %s7654 = scalar_select %p7653, %s7652, 37
          %s7655 = smul.addr %s7654, 8
          %s7656 = scalar_lea.vmem %s12, %s7655
        $region100: #{_mlp_forward.1} parent=91 // pred_fallthru
          _
      $region92: #{_mlp_forward.1} parent=5 // pred_fallthru
        _
    $region6: #{_mlp_forward.1} parent=1 // loop_footer
      %s26 = sadd.s32 1, %s22
    $region7: #{_mlp_forward.1} parent=1 // loop_footer_branch
      %21 = sbr.rel target = $region3
    $region8: #{_mlp_forward.1} parent=1 // loop_exit
      _
    %7657 = vsyncpa [#allocation4], 1
    %s7658 = scalar_lea.sflag [#allocation4], 1
    %7659 = vsyncpa %s7658, 1
    %7660 = vsyncpa [#allocation6], 1
    %7661 = vsyncpa [#allocation9], 1

</llo_original>
